<compile_context>
chip_gen: v7x
topology: tpu7x:2x2x1
jax: 0.10.0
libtpu: 0.0.40
codegen_flags: <defaults>
</compile_context>

<pallas_src>
import jax
import jax.numpy as jnp
from jax import lax
from jax.experimental import pallas as pl
from jax.experimental.pallas import tpu as pltpu


_WEIGHT_ORDER = (
    "wq_s", "wk_s", "wv_s", "wo_s", "bo_s", "g0", "b0",
    "wq_c", "wk_c", "wv_c", "wo_c", "bo_c", "g1", "b1",
    "w1", "bf1", "w2", "bf2", "g2", "b2",
    "fc_w", "fc_b",
)


# ----------------------------------------------------------------------------
# Pallas kernel: full decoder stack for one batch element.
# ----------------------------------------------------------------------------
def _make_decoder_kernel(heads, num_layers, embed):
    H, L, E = heads, num_layers, embed
    D = E // H
    inv_sqrt_e = 1.0 / (float(E) ** 0.5)   # PyTorch scales by 1/sqrt(embed_size)

    def layer_norm(x, g, b):
        mu = jnp.mean(x, axis=-1, keepdims=True)
        var = jnp.mean((x - mu) * (x - mu), axis=-1, keepdims=True)
        return (x - mu) * lax.rsqrt(var + 1e-5) * g + b

    def attention(q_in, kv_in, bias, wq, wk, wv, wo, bo):
        # q_in: (Tq, E), kv_in: (Tk, E), bias: (Tq or 1, Tk) additive mask.
        # wq/wk/wv: (E, E) block-diagonal (in, out): one full-width matmul per
        # projection instead of H tiny (D, D) matmuls.
        q = jnp.dot(q_in, wq, preferred_element_type=jnp.float32) * inv_sqrt_e
        k = jnp.dot(kv_in, wk, preferred_element_type=jnp.float32)
        v = jnp.dot(kv_in, wv, preferred_element_type=jnp.float32)
        acc = jnp.zeros((q_in.shape[0], E), jnp.float32)
        for h in range(H):                       # static unroll; heads is small
            qh = q[:, h * D:(h + 1) * D]         # (Tq, D)
            kh = k[:, h * D:(h + 1) * D]         # (Tk, D)
            vh = v[:, h * D:(h + 1) * D]         # (Tk, D)
            # q @ k^T as an NT dot_general (no materialised transpose).
            logits = lax.dot_general(
                qh, kh, (((1,), (1,)), ((), ())),
                preferred_element_type=jnp.float32) + bias
            logits = logits - jnp.max(logits, axis=-1, keepdims=True)
            p = jnp.exp(logits)
            p = p * pl.reciprocal(jnp.sum(p, axis=-1, keepdims=True), approx=True)
            ctx_h = jnp.dot(p, vh, preferred_element_type=jnp.float32)   # (Tq, D)
            # Distributed O-projection: no concat / scratch, sublane-aligned
            # (D = E/H multiple of 8) weight row-slice, accumulate in f32.
            acc = acc + jnp.dot(ctx_h, wo[h * D:(h + 1) * D, :],
                                preferred_element_type=jnp.float32)
        return acc + bo

    def kernel(trg_mask_ref, src_mask_ref, x_ref, enc_ref, *rest):
        (wq_s, wk_s, wv_s, wo_s, bo_s, g0, b0,
         wq_c, wk_c, wv_c, wo_c, bo_c, g1, b1,
         w1, bf1, w2, bf2, g2, b2,
         fc_w, fc_b, out_ref) = rest

        x = x_ref[0]                        # (T, E) token + position embedding
        enc = enc_ref[0]                    # (S, E) encoder output

        # Hoisted additive mask biases: masked -> -1e20, kept -> 0.
        trg_bias = jnp.where(trg_mask_ref[0] == 0.0,
                             jnp.float32(-1e20), jnp.float32(0.0))        # (T, T)
        src_bias = jnp.where(src_mask_ref[0] == 0.0,
                             jnp.float32(-1e20), jnp.float32(0.0))        # (1, S)

        for li in range(L):                 # static unroll over decoder layers
            # -- masked self-attention + residual + LayerNorm --
            sa = attention(x, x, trg_bias,
                           wq_s[li], wk_s[li], wv_s[li], wo_s[li], bo_s[li])
            query = layer_norm(sa + x, g0[li], b0[li])

            # -- cross-attention over encoder output + residual + LayerNorm --
            ca = attention(query, enc, src_bias,
                           wq_c[li], wk_c[li], wv_c[li], wo_c[li], bo_c[li])
            x1 = layer_norm(ca + query, g1[li], b1[li])

            # -- feed forward + residual + LayerNorm --
            hdn = jnp.maximum(
                jnp.dot(x1, w1[li], preferred_element_type=jnp.float32) + bf1[li],
                0.0)
            ff = jnp.dot(hdn, w2[li], preferred_element_type=jnp.float32) + bf2[li]
            x = layer_norm(ff + x1, g2[li], b2[li])

        # -- final vocabulary projection (lane-dense: vocab padded to 128) --
        out_ref[0] = jnp.dot(x, fc_w[...],
                             preferred_element_type=jnp.float32) + fc_b[...]

    return kernel


# ----------------------------------------------------------------------------
# Wrapper: embedding glue + single fused pallas_call over the batch.
# ----------------------------------------------------------------------------
def decoder_forward(tokens, enc_out, src_mask, trg_mask, packed, heads, vocab):
    """tokens: (N,T) int32; enc_out: (N,S,E) f32;
    src_mask: (N,1,S) f32 (0 = masked); trg_mask: (N,T,T) f32 (0 = masked).
    Returns logits (N, T, vocab)."""
    N, T = tokens.shape
    _, S, E = enc_out.shape
    num_layers = packed["wq_s"].shape[0]
    v_pad = packed["fc_w"].shape[1]

    # Embedding lookup (gather) in plain JAX as glue; dropout -> identity.
    positions = jnp.arange(T, dtype=jnp.int32)
    x_emb = packed["word_emb"][tokens] + packed["pos_emb"][positions][None, :, :]

    weights = [packed[name] for name in _WEIGHT_ORDER]

    def full_spec(arr):
        zeros = (0,) * arr.ndim
        return pl.BlockSpec(arr.shape, lambda n, _z=zeros: _z)

    in_specs = [
        pl.BlockSpec((1, T, T), lambda n: (n, 0, 0)),   # trg_mask
        pl.BlockSpec((1, 1, S), lambda n: (n, 0, 0)),   # src_mask
        pl.BlockSpec((1, T, E), lambda n: (n, 0, 0)),   # x embedding
        pl.BlockSpec((1, S, E), lambda n: (n, 0, 0)),   # encoder output
    ] + [full_spec(w) for w in weights]

    kernel = _make_decoder_kernel(heads, num_layers, E)

    out = pl.pallas_call(
        kernel,
        out_shape=jax.ShapeDtypeStruct((N, T, v_pad), jnp.float32),
        grid=(N,),
        in_specs=in_specs,
        out_specs=pl.BlockSpec((1, T, v_pad), lambda n: (n, 0, 0)),
        compiler_params=pltpu.CompilerParams(
            dimension_semantics=("parallel",),          # v7x: 2 TCs over batch
            vmem_limit_bytes=32 * 1024 * 1024),
    )(trg_mask, src_mask, x_emb, enc_out, *weights)

    return out[:, :, :vocab]


# ----------------------------------------------------------------------------
# Parameter construction (PyTorch nn.Linear convention) + kernel-layout packing.
# ----------------------------------------------------------------------------
def init_params(key, vocab, embed, heads, num_layers, forward_expansion, max_len):
    D = embed // heads
    F = forward_expansion * embed
    keys = jax.random.split(key, 3 + num_layers)
    fck = jax.random.split(keys[2], 2)
    params = {
        "word_emb": 0.1 * jax.random.normal(keys[0], (vocab, embed), jnp.float32),
        "pos_emb": 0.1 * jax.random.normal(keys[1], (max_len, embed), jnp.float32),
        "fc_w": 0.1 * jax.random.normal(fck[0], (vocab, embed), jnp.float32),  # (out,in)
        "fc_b": 0.05 * jax.random.normal(fck[1], (vocab,), jnp.float32),
        "layers": [],
    }
    for li in range(num_layers):
        lk = jax.random.split(keys[3 + li], 14)
        layer = {
            # masked self-attention (weights in PyTorch (out, in) convention)
            "sa_wq": 0.2 * jax.random.normal(lk[0], (D, D), jnp.float32),
            "sa_wk": 0.2 * jax.random.normal(lk[1], (D, D), jnp.float32),
            "sa_wv": 0.2 * jax.random.normal(lk[2], (D, D), jnp.float32),
            "sa_wo": 0.1 * jax.random.normal(lk[3], (embed, embed), jnp.float32),
            "sa_bo": 0.05 * jax.random.normal(lk[4], (embed,), jnp.float32),
            "n0_g": jnp.ones((embed,), jnp.float32),
            "n0_b": jnp.zeros((embed,), jnp.float32),
            # cross-attention
            "ca_wq": 0.2 * jax.random.normal(lk[5], (D, D), jnp.float32),
            "ca_wk": 0.2 * jax.random.normal(lk[6], (D, D), jnp.float32),
            "ca_wv": 0.2 * jax.random.normal(lk[7], (D, D), jnp.float32),
            "ca_wo": 0.1 * jax.random.normal(lk[8], (embed, embed), jnp.float32),
            "ca_bo": 0.05 * jax.random.normal(lk[9], (embed,), jnp.float32),
            "n1_g": jnp.ones((embed,), jnp.float32),
            "n1_b": jnp.zeros((embed,), jnp.float32),
            # feed forward
            "ff_w1": 0.1 * jax.random.normal(lk[10], (F, embed), jnp.float32),
            "ff_b1": 0.05 * jax.random.normal(lk[11], (F,), jnp.float32),
            "ff_w2": 0.1 * jax.random.normal(lk[12], (embed, F), jnp.float32),
            "ff_b2": 0.05 * jax.random.normal(lk[13], (embed,), jnp.float32),
            "n2_g": jnp.ones((embed,), jnp.float32),
            "n2_b": jnp.zeros((embed,), jnp.float32),
        }
        params["layers"].append(layer)
    return params


def pack_params(params, heads):
    """Kernel layout: weights (in,out), per-head QKV block-diagonalised to (E,E),
    per-layer tensors stacked on a leading layer axis, fc_out padded to 128 lanes."""
    E = params["word_emb"].shape[1]
    eye_h = jnp.eye(heads, dtype=jnp.float32)

    def block_diag(w_dd):          # (D,D) (out,in) -> (E,E) block-diag, (in,out)
        return jnp.kron(eye_h, w_dd.T)

    def stack(fn):
        return jnp.stack([fn(l) for l in params["layers"]], axis=0)

    vocab = params["fc_w"].shape[0]
    v_pad = ((vocab + 127) // 128) * 128
    fc_w = jnp.zeros((E, v_pad), jnp.float32).at[:, :vocab].set(params["fc_w"].T)
    fc_b = jnp.zeros((1, v_pad), jnp.float32).at[:, :vocab].set(params["fc_b"][None, :])

    return {
        "word_emb": params["word_emb"],
        "pos_emb": params["pos_emb"],
        "wq_s": stack(lambda l: block_diag(l["sa_wq"])),
        "wk_s": stack(lambda l: block_diag(l["sa_wk"])),
        "wv_s": stack(lambda l: block_diag(l["sa_wv"])),
        "wo_s": stack(lambda l: l["sa_wo"].T),
        "bo_s": stack(lambda l: l["sa_bo"][None, :]),
        "g0": stack(lambda l: l["n0_g"][None, :]),
        "b0": stack(lambda l: l["n0_b"][None, :]),
        "wq_c": stack(lambda l: block_diag(l["ca_wq"])),
        "wk_c": stack(lambda l: block_diag(l["ca_wk"])),
        "wv_c": stack(lambda l: block_diag(l["ca_wv"])),
        "wo_c": stack(lambda l: l["ca_wo"].T),
        "bo_c": stack(lambda l: l["ca_bo"][None, :]),
        "g1": stack(lambda l: l["n1_g"][None, :]),
        "b1": stack(lambda l: l["n1_b"][None, :]),
        "w1": stack(lambda l: l["ff_w1"].T),
        "bf1": stack(lambda l: l["ff_b1"][None, :]),
        "w2": stack(lambda l: l["ff_w2"].T),
        "bf2": stack(lambda l: l["ff_b2"][None, :]),
        "g2": stack(lambda l: l["n2_g"][None, :]),
        "b2": stack(lambda l: l["n2_b"][None, :]),
        "fc_w": fc_w,
        "fc_b": fc_b,
    }


if __name__ == "__main__":
    # Small, forward-consistent sizes.
    N, T, S = 2, 8, 8
    VOCAB, EMBED, HEADS = 50, 32, 4
    NUM_LAYERS, FWD_EXP, MAX_LEN = 2, 2, 16

    key = jax.random.PRNGKey(0)
    pkey, tkey, ekey = jax.random.split(key, 3)
    params = init_params(pkey, VOCAB, EMBED, HEADS, NUM_LAYERS, FWD_EXP, MAX_LEN)
    packed = pack_params(params, HEADS)

    tokens = jax.random.randint(tkey, (N, T), 0, VOCAB, dtype=jnp.int32)
    enc_out = 0.1 * jax.random.normal(ekey, (N, S, EMBED), jnp.float32)
    src_mask = jnp.ones((N, 1, S), jnp.float32)                       # no padding
    trg_mask = jnp.broadcast_to(jnp.tril(jnp.ones((T, T), jnp.float32)), (N, T, T))

    logits = decoder_forward(tokens, enc_out, src_mask, trg_mask, packed,
                             HEADS, VOCAB)
    logits = jax.block_until_ready(logits)

    assert logits.shape == (N, T, VOCAB)
    assert bool(jnp.all(jnp.isfinite(logits)))
    print("KERNEL_OK")
</pallas_src>

<mosaic_0001>
module attributes {stable_mosaic.version = 11 : i64} {
  func.func @kernel(%arg0: i32, %arg1: memref<1x8x8xf32, #tpu.memory_space<vmem>>, %arg2: memref<1x1x8xf32, #tpu.memory_space<vmem>>, %arg3: memref<1x8x32xf32, #tpu.memory_space<vmem>>, %arg4: memref<1x8x32xf32, #tpu.memory_space<vmem>>, %arg5: memref<2x32x32xf32, #tpu.memory_space<vmem>>, %arg6: memref<2x32x32xf32, #tpu.memory_space<vmem>>, %arg7: memref<2x32x32xf32, #tpu.memory_space<vmem>>, %arg8: memref<2x32x32xf32, #tpu.memory_space<vmem>>, %arg9: memref<2x1x32xf32, #tpu.memory_space<vmem>>, %arg10: memref<2x1x32xf32, #tpu.memory_space<vmem>>, %arg11: memref<2x1x32xf32, #tpu.memory_space<vmem>>, %arg12: memref<2x32x32xf32, #tpu.memory_space<vmem>>, %arg13: memref<2x32x32xf32, #tpu.memory_space<vmem>>, %arg14: memref<2x32x32xf32, #tpu.memory_space<vmem>>, %arg15: memref<2x32x32xf32, #tpu.memory_space<vmem>>, %arg16: memref<2x1x32xf32, #tpu.memory_space<vmem>>, %arg17: memref<2x1x32xf32, #tpu.memory_space<vmem>>, %arg18: memref<2x1x32xf32, #tpu.memory_space<vmem>>, %arg19: memref<2x32x64xf32, #tpu.memory_space<vmem>>, %arg20: memref<2x1x64xf32, #tpu.memory_space<vmem>>, %arg21: memref<2x64x32xf32, #tpu.memory_space<vmem>>, %arg22: memref<2x1x32xf32, #tpu.memory_space<vmem>>, %arg23: memref<2x1x32xf32, #tpu.memory_space<vmem>>, %arg24: memref<2x1x32xf32, #tpu.memory_space<vmem>>, %arg25: memref<32x128xf32, #tpu.memory_space<vmem>>, %arg26: memref<1x128xf32, #tpu.memory_space<vmem>>, %arg27: memref<1x8x128xf32, #tpu.memory_space<vmem>>) attributes {dimension_semantics = [#tpu.dimension_semantics<parallel>], iteration_bounds = array<i64: 2>, scalar_prefetch = 0 : i64, scratch_operands = 0 : i64, tpu.core_type = #tpu.core_type<tc>, window_params = [{transform_indices = @transform_0, window_bounds = array<i64: 1, 8, 8>}, {transform_indices = @transform_1, window_bounds = array<i64: 1, 1, 8>}, {transform_indices = @transform_2, window_bounds = array<i64: 1, 8, 32>}, {transform_indices = @transform_3, window_bounds = array<i64: 1, 8, 32>}, {pipeline_mode = #tpu.pipeline_mode<synchronous>, transform_indices = @transform_4, window_bounds = array<i64: 2, 32, 32>}, {pipeline_mode = #tpu.pipeline_mode<synchronous>, transform_indices = @transform_5, window_bounds = array<i64: 2, 32, 32>}, {pipeline_mode = #tpu.pipeline_mode<synchronous>, transform_indices = @transform_6, window_bounds = array<i64: 2, 32, 32>}, {pipeline_mode = #tpu.pipeline_mode<synchronous>, transform_indices = @transform_7, window_bounds = array<i64: 2, 32, 32>}, {pipeline_mode = #tpu.pipeline_mode<synchronous>, transform_indices = @transform_8, window_bounds = array<i64: 2, 1, 32>}, {pipeline_mode = #tpu.pipeline_mode<synchronous>, transform_indices = @transform_9, window_bounds = array<i64: 2, 1, 32>}, {pipeline_mode = #tpu.pipeline_mode<synchronous>, transform_indices = @transform_10, window_bounds = array<i64: 2, 1, 32>}, {pipeline_mode = #tpu.pipeline_mode<synchronous>, transform_indices = @transform_11, window_bounds = array<i64: 2, 32, 32>}, {pipeline_mode = #tpu.pipeline_mode<synchronous>, transform_indices = @transform_12, window_bounds = array<i64: 2, 32, 32>}, {pipeline_mode = #tpu.pipeline_mode<synchronous>, transform_indices = @transform_13, window_bounds = array<i64: 2, 32, 32>}, {pipeline_mode = #tpu.pipeline_mode<synchronous>, transform_indices = @transform_14, window_bounds = array<i64: 2, 32, 32>}, {pipeline_mode = #tpu.pipeline_mode<synchronous>, transform_indices = @transform_15, window_bounds = array<i64: 2, 1, 32>}, {pipeline_mode = #tpu.pipeline_mode<synchronous>, transform_indices = @transform_16, window_bounds = array<i64: 2, 1, 32>}, {pipeline_mode = #tpu.pipeline_mode<synchronous>, transform_indices = @transform_17, window_bounds = array<i64: 2, 1, 32>}, {pipeline_mode = #tpu.pipeline_mode<synchronous>, transform_indices = @transform_18, window_bounds = array<i64: 2, 32, 64>}, {pipeline_mode = #tpu.pipeline_mode<synchronous>, transform_indices = @transform_19, window_bounds = array<i64: 2, 1, 64>}, {pipeline_mode = #tpu.pipeline_mode<synchronous>, transform_indices = @transform_20, window_bounds = array<i64: 2, 64, 32>}, {pipeline_mode = #tpu.pipeline_mode<synchronous>, transform_indices = @transform_21, window_bounds = array<i64: 2, 1, 32>}, {pipeline_mode = #tpu.pipeline_mode<synchronous>, transform_indices = @transform_22, window_bounds = array<i64: 2, 1, 32>}, {pipeline_mode = #tpu.pipeline_mode<synchronous>, transform_indices = @transform_23, window_bounds = array<i64: 2, 1, 32>}, {pipeline_mode = #tpu.pipeline_mode<synchronous>, transform_indices = @transform_24, window_bounds = array<i64: 32, 128>}, {pipeline_mode = #tpu.pipeline_mode<synchronous>, transform_indices = @transform_25, window_bounds = array<i64: 1, 128>}, {transform_indices = @transform_26, window_bounds = array<i64: 1, 8, 128>}]} {
    %c0 = arith.constant 0 : index
    %c0_0 = arith.constant 0 : index
    %c0_1 = arith.constant 0 : index
    %0 = vector.load %arg3[%c0, %c0_0, %c0_1] : memref<1x8x32xf32, #tpu.memory_space<vmem>>, vector<1x8x32xf32>
    %1 = vector.shape_cast %0 : vector<1x8x32xf32> to vector<8x32xf32>
    %c0_2 = arith.constant 0 : index
    %c0_3 = arith.constant 0 : index
    %c0_4 = arith.constant 0 : index
    %2 = vector.load %arg4[%c0_2, %c0_3, %c0_4] : memref<1x8x32xf32, #tpu.memory_space<vmem>>, vector<1x8x32xf32>
    %3 = vector.shape_cast %2 : vector<1x8x32xf32> to vector<8x32xf32>
    %c0_5 = arith.constant 0 : index
    %c0_6 = arith.constant 0 : index
    %c0_7 = arith.constant 0 : index
    %4 = vector.load %arg1[%c0_5, %c0_6, %c0_7] : memref<1x8x8xf32, #tpu.memory_space<vmem>>, vector<1x8x8xf32>
    %5 = vector.shape_cast %4 : vector<1x8x8xf32> to vector<8x8xf32>
    %cst = arith.constant 0.000000e+00 : f32
    %6 = vector.broadcast %cst : f32 to vector<8x8xf32>
    %7 = arith.cmpf oeq, %5, %6 : vector<8x8xf32>
    %cst_8 = arith.constant -1.000000e+20 : f32
    %cst_9 = arith.constant 0.000000e+00 : f32
    %8 = vector.broadcast %cst_8 : f32 to vector<8x8xf32>
    %9 = vector.broadcast %cst_9 : f32 to vector<8x8xf32>
    %10 = arith.select %7, %8, %9 : vector<8x8xi1>, vector<8x8xf32>
    %c0_10 = arith.constant 0 : index
    %c0_11 = arith.constant 0 : index
    %c0_12 = arith.constant 0 : index
    %11 = vector.load %arg2[%c0_10, %c0_11, %c0_12] : memref<1x1x8xf32, #tpu.memory_space<vmem>>, vector<1x1x8xf32>
    %12 = vector.shape_cast %11 : vector<1x1x8xf32> to vector<1x8xf32>
    %cst_13 = arith.constant 0.000000e+00 : f32
    %13 = vector.broadcast %cst_13 : f32 to vector<1x8xf32>
    %14 = arith.cmpf oeq, %12, %13 : vector<1x8xf32>
    %cst_14 = arith.constant -1.000000e+20 : f32
    %cst_15 = arith.constant 0.000000e+00 : f32
    %15 = vector.broadcast %cst_14 : f32 to vector<1x8xf32>
    %16 = vector.broadcast %cst_15 : f32 to vector<1x8xf32>
    %17 = arith.select %14, %15, %16 : vector<1x8xi1>, vector<1x8xf32>
    %c0_16 = arith.constant 0 : index
    %c0_17 = arith.constant 0 : index
    %c0_18 = arith.constant 0 : index
    %18 = vector.load %arg5[%c0_16, %c0_17, %c0_18] : memref<2x32x32xf32, #tpu.memory_space<vmem>>, vector<1x32x32xf32>
    %19 = vector.shape_cast %18 : vector<1x32x32xf32> to vector<32x32xf32>
    %c0_19 = arith.constant 0 : index
    %c0_20 = arith.constant 0 : index
    %c0_21 = arith.constant 0 : index
    %20 = vector.load %arg6[%c0_19, %c0_20, %c0_21] : memref<2x32x32xf32, #tpu.memory_space<vmem>>, vector<1x32x32xf32>
    %21 = vector.shape_cast %20 : vector<1x32x32xf32> to vector<32x32xf32>
    %c0_22 = arith.constant 0 : index
    %c0_23 = arith.constant 0 : index
    %c0_24 = arith.constant 0 : index
    %22 = vector.load %arg7[%c0_22, %c0_23, %c0_24] : memref<2x32x32xf32, #tpu.memory_space<vmem>>, vector<1x32x32xf32>
    %23 = vector.shape_cast %22 : vector<1x32x32xf32> to vector<32x32xf32>
    %c0_25 = arith.constant 0 : index
    %c0_26 = arith.constant 0 : index
    %c0_27 = arith.constant 0 : index
    %24 = vector.load %arg8[%c0_25, %c0_26, %c0_27] : memref<2x32x32xf32, #tpu.memory_space<vmem>>, vector<1x32x32xf32>
    %25 = vector.shape_cast %24 : vector<1x32x32xf32> to vector<32x32xf32>
    %c0_28 = arith.constant 0 : index
    %c0_29 = arith.constant 0 : index
    %c0_30 = arith.constant 0 : index
    %26 = vector.load %arg9[%c0_28, %c0_29, %c0_30] : memref<2x1x32xf32, #tpu.memory_space<vmem>>, vector<1x1x32xf32>
    %27 = vector.shape_cast %26 : vector<1x1x32xf32> to vector<1x32xf32>
    %cst_31 = arith.constant dense<0.000000e+00> : vector<8x32xf32>
    %28 = tpu.matmul %1, %19, %cst_31 {dimension_numbers = #tpu.dot_dimension_numbers<[1], [0], [0], [1], [0, 0, 1, 1], [], []>} : vector<8x32xf32>, vector<32x32xf32>, vector<8x32xf32> -> vector<8x32xf32>
    %cst_32 = arith.constant 0.176776692 : f32
    %29 = vector.broadcast %cst_32 : f32 to vector<8x32xf32>
    %30 = arith.mulf %28, %29 : vector<8x32xf32>
    %cst_33 = arith.constant dense<0.000000e+00> : vector<8x32xf32>
    %31 = tpu.matmul %1, %21, %cst_33 {dimension_numbers = #tpu.dot_dimension_numbers<[1], [0], [0], [1], [0, 0, 1, 1], [], []>} : vector<8x32xf32>, vector<32x32xf32>, vector<8x32xf32> -> vector<8x32xf32>
    %cst_34 = arith.constant dense<0.000000e+00> : vector<8x32xf32>
    %32 = tpu.matmul %1, %23, %cst_34 {dimension_numbers = #tpu.dot_dimension_numbers<[1], [0], [0], [1], [0, 0, 1, 1], [], []>} : vector<8x32xf32>, vector<32x32xf32>, vector<8x32xf32> -> vector<8x32xf32>
    %cst_35 = arith.constant 0.000000e+00 : f32
    %33 = vector.broadcast %cst_35 : f32 to vector<8x32xf32>
    %34 = vector.extract_strided_slice %30 {offsets = [0, 0], sizes = [8, 8], strides = [1, 1]} : vector<8x32xf32> to vector<8x8xf32>
    %35 = vector.extract_strided_slice %31 {offsets = [0, 0], sizes = [8, 8], strides = [1, 1]} : vector<8x32xf32> to vector<8x8xf32>
    %36 = vector.extract_strided_slice %32 {offsets = [0, 0], sizes = [8, 8], strides = [1, 1]} : vector<8x32xf32> to vector<8x8xf32>
    %cst_36 = arith.constant dense<0.000000e+00> : vector<8x8xf32>
    %37 = tpu.matmul %34, %35, %cst_36 {dimension_numbers = #tpu.dot_dimension_numbers<[1], [1], [0], [0], [0, 0, 1, 0], [], []>} : vector<8x8xf32>, vector<8x8xf32>, vector<8x8xf32> -> vector<8x8xf32>
    %38 = arith.addf %37, %10 : vector<8x8xf32>
    %cst_37 = arith.constant dense<0xFF800000> : vector<8xf32>
    %39 = vector.multi_reduction <maximumf>, %38, %cst_37 [1] : vector<8x8xf32> to vector<8xf32>
    %40 = vector.shape_cast %39 : vector<8xf32> to vector<8x1xf32>
    %41 = vector.broadcast %40 : vector<8x1xf32> to vector<8x8xf32>
    %42 = arith.subf %38, %41 : vector<8x8xf32>
    %43 = math.exp %42 : vector<8x8xf32>
    %cst_38 = arith.constant dense<0.000000e+00> : vector<8xf32>
    %44 = vector.multi_reduction <add>, %43, %cst_38 [1] : vector<8x8xf32> to vector<8xf32>
    %45 = vector.shape_cast %44 : vector<8xf32> to vector<8x1xf32>
    %46 = tpu.reciprocal %45 {approx = true} : vector<8x1xf32> -> vector<8x1xf32>
    %47 = vector.broadcast %46 : vector<8x1xf32> to vector<8x8xf32>
    %48 = arith.mulf %43, %47 : vector<8x8xf32>
    %cst_39 = arith.constant dense<0.000000e+00> : vector<8x8xf32>
    %49 = tpu.matmul %48, %36, %cst_39 {dimension_numbers = #tpu.dot_dimension_numbers<[1], [0], [0], [1], [0, 0, 1, 1], [], []>} : vector<8x8xf32>, vector<8x8xf32>, vector<8x8xf32> -> vector<8x8xf32>
    %50 = vector.extract_strided_slice %25 {offsets = [0, 0], sizes = [8, 32], strides = [1, 1]} : vector<32x32xf32> to vector<8x32xf32>
    %cst_40 = arith.constant dense<0.000000e+00> : vector<8x32xf32>
    %51 = tpu.matmul %49, %50, %cst_40 {dimension_numbers = #tpu.dot_dimension_numbers<[1], [0], [0], [1], [0, 0, 1, 1], [], []>} : vector<8x8xf32>, vector<8x32xf32>, vector<8x32xf32> -> vector<8x32xf32>
    %52 = arith.addf %33, %51 : vector<8x32xf32>
    %53 = vector.extract_strided_slice %30 {offsets = [0, 8], sizes = [8, 8], strides = [1, 1]} : vector<8x32xf32> to vector<8x8xf32>
    %54 = vector.extract_strided_slice %31 {offsets = [0, 8], sizes = [8, 8], strides = [1, 1]} : vector<8x32xf32> to vector<8x8xf32>
    %55 = vector.extract_strided_slice %32 {offsets = [0, 8], sizes = [8, 8], strides = [1, 1]} : vector<8x32xf32> to vector<8x8xf32>
    %cst_41 = arith.constant dense<0.000000e+00> : vector<8x8xf32>
    %56 = tpu.matmul %53, %54, %cst_41 {dimension_numbers = #tpu.dot_dimension_numbers<[1], [1], [0], [0], [0, 0, 1, 0], [], []>} : vector<8x8xf32>, vector<8x8xf32>, vector<8x8xf32> -> vector<8x8xf32>
    %57 = arith.addf %56, %10 : vector<8x8xf32>
    %cst_42 = arith.constant dense<0xFF800000> : vector<8xf32>
    %58 = vector.multi_reduction <maximumf>, %57, %cst_42 [1] : vector<8x8xf32> to vector<8xf32>
    %59 = vector.shape_cast %58 : vector<8xf32> to vector<8x1xf32>
    %60 = vector.broadcast %59 : vector<8x1xf32> to vector<8x8xf32>
    %61 = arith.subf %57, %60 : vector<8x8xf32>
    %62 = math.exp %61 : vector<8x8xf32>
    %cst_43 = arith.constant dense<0.000000e+00> : vector<8xf32>
    %63 = vector.multi_reduction <add>, %62, %cst_43 [1] : vector<8x8xf32> to vector<8xf32>
    %64 = vector.shape_cast %63 : vector<8xf32> to vector<8x1xf32>
    %65 = tpu.reciprocal %64 {approx = true} : vector<8x1xf32> -> vector<8x1xf32>
    %66 = vector.broadcast %65 : vector<8x1xf32> to vector<8x8xf32>
    %67 = arith.mulf %62, %66 : vector<8x8xf32>
    %cst_44 = arith.constant dense<0.000000e+00> : vector<8x8xf32>
    %68 = tpu.matmul %67, %55, %cst_44 {dimension_numbers = #tpu.dot_dimension_numbers<[1], [0], [0], [1], [0, 0, 1, 1], [], []>} : vector<8x8xf32>, vector<8x8xf32>, vector<8x8xf32> -> vector<8x8xf32>
    %69 = vector.extract_strided_slice %25 {offsets = [8, 0], sizes = [8, 32], strides = [1, 1]} : vector<32x32xf32> to vector<8x32xf32>
    %cst_45 = arith.constant dense<0.000000e+00> : vector<8x32xf32>
    %70 = tpu.matmul %68, %69, %cst_45 {dimension_numbers = #tpu.dot_dimension_numbers<[1], [0], [0], [1], [0, 0, 1, 1], [], []>} : vector<8x8xf32>, vector<8x32xf32>, vector<8x32xf32> -> vector<8x32xf32>
    %71 = arith.addf %52, %70 : vector<8x32xf32>
    %72 = vector.extract_strided_slice %30 {offsets = [0, 16], sizes = [8, 8], strides = [1, 1]} : vector<8x32xf32> to vector<8x8xf32>
    %73 = vector.extract_strided_slice %31 {offsets = [0, 16], sizes = [8, 8], strides = [1, 1]} : vector<8x32xf32> to vector<8x8xf32>
    %74 = vector.extract_strided_slice %32 {offsets = [0, 16], sizes = [8, 8], strides = [1, 1]} : vector<8x32xf32> to vector<8x8xf32>
    %cst_46 = arith.constant dense<0.000000e+00> : vector<8x8xf32>
    %75 = tpu.matmul %72, %73, %cst_46 {dimension_numbers = #tpu.dot_dimension_numbers<[1], [1], [0], [0], [0, 0, 1, 0], [], []>} : vector<8x8xf32>, vector<8x8xf32>, vector<8x8xf32> -> vector<8x8xf32>
    %76 = arith.addf %75, %10 : vector<8x8xf32>
    %cst_47 = arith.constant dense<0xFF800000> : vector<8xf32>
    %77 = vector.multi_reduction <maximumf>, %76, %cst_47 [1] : vector<8x8xf32> to vector<8xf32>
    %78 = vector.shape_cast %77 : vector<8xf32> to vector<8x1xf32>
    %79 = vector.broadcast %78 : vector<8x1xf32> to vector<8x8xf32>
    %80 = arith.subf %76, %79 : vector<8x8xf32>
    %81 = math.exp %80 : vector<8x8xf32>
    %cst_48 = arith.constant dense<0.000000e+00> : vector<8xf32>
    %82 = vector.multi_reduction <add>, %81, %cst_48 [1] : vector<8x8xf32> to vector<8xf32>
    %83 = vector.shape_cast %82 : vector<8xf32> to vector<8x1xf32>
    %84 = tpu.reciprocal %83 {approx = true} : vector<8x1xf32> -> vector<8x1xf32>
    %85 = vector.broadcast %84 : vector<8x1xf32> to vector<8x8xf32>
    %86 = arith.mulf %81, %85 : vector<8x8xf32>
    %cst_49 = arith.constant dense<0.000000e+00> : vector<8x8xf32>
    %87 = tpu.matmul %86, %74, %cst_49 {dimension_numbers = #tpu.dot_dimension_numbers<[1], [0], [0], [1], [0, 0, 1, 1], [], []>} : vector<8x8xf32>, vector<8x8xf32>, vector<8x8xf32> -> vector<8x8xf32>
    %88 = vector.extract_strided_slice %25 {offsets = [16, 0], sizes = [8, 32], strides = [1, 1]} : vector<32x32xf32> to vector<8x32xf32>
    %cst_50 = arith.constant dense<0.000000e+00> : vector<8x32xf32>
    %89 = tpu.matmul %87, %88, %cst_50 {dimension_numbers = #tpu.dot_dimension_numbers<[1], [0], [0], [1], [0, 0, 1, 1], [], []>} : vector<8x8xf32>, vector<8x32xf32>, vector<8x32xf32> -> vector<8x32xf32>
    %90 = arith.addf %71, %89 : vector<8x32xf32>
    %91 = vector.extract_strided_slice %30 {offsets = [0, 24], sizes = [8, 8], strides = [1, 1]} : vector<8x32xf32> to vector<8x8xf32>
    %92 = vector.extract_strided_slice %31 {offsets = [0, 24], sizes = [8, 8], strides = [1, 1]} : vector<8x32xf32> to vector<8x8xf32>
    %93 = vector.extract_strided_slice %32 {offsets = [0, 24], sizes = [8, 8], strides = [1, 1]} : vector<8x32xf32> to vector<8x8xf32>
    %cst_51 = arith.constant dense<0.000000e+00> : vector<8x8xf32>
    %94 = tpu.matmul %91, %92, %cst_51 {dimension_numbers = #tpu.dot_dimension_numbers<[1], [1], [0], [0], [0, 0, 1, 0], [], []>} : vector<8x8xf32>, vector<8x8xf32>, vector<8x8xf32> -> vector<8x8xf32>
    %95 = arith.addf %94, %10 : vector<8x8xf32>
    %cst_52 = arith.constant dense<0xFF800000> : vector<8xf32>
    %96 = vector.multi_reduction <maximumf>, %95, %cst_52 [1] : vector<8x8xf32> to vector<8xf32>
    %97 = vector.shape_cast %96 : vector<8xf32> to vector<8x1xf32>
    %98 = vector.broadcast %97 : vector<8x1xf32> to vector<8x8xf32>
    %99 = arith.subf %95, %98 : vector<8x8xf32>
    %100 = math.exp %99 : vector<8x8xf32>
    %cst_53 = arith.constant dense<0.000000e+00> : vector<8xf32>
    %101 = vector.multi_reduction <add>, %100, %cst_53 [1] : vector<8x8xf32> to vector<8xf32>
    %102 = vector.shape_cast %101 : vector<8xf32> to vector<8x1xf32>
    %103 = tpu.reciprocal %102 {approx = true} : vector<8x1xf32> -> vector<8x1xf32>
    %104 = vector.broadcast %103 : vector<8x1xf32> to vector<8x8xf32>
    %105 = arith.mulf %100, %104 : vector<8x8xf32>
    %cst_54 = arith.constant dense<0.000000e+00> : vector<8x8xf32>
    %106 = tpu.matmul %105, %93, %cst_54 {dimension_numbers = #tpu.dot_dimension_numbers<[1], [0], [0], [1], [0, 0, 1, 1], [], []>} : vector<8x8xf32>, vector<8x8xf32>, vector<8x8xf32> -> vector<8x8xf32>
    %107 = vector.extract_strided_slice %25 {offsets = [24, 0], sizes = [8, 32], strides = [1, 1]} : vector<32x32xf32> to vector<8x32xf32>
    %cst_55 = arith.constant dense<0.000000e+00> : vector<8x32xf32>
    %108 = tpu.matmul %106, %107, %cst_55 {dimension_numbers = #tpu.dot_dimension_numbers<[1], [0], [0], [1], [0, 0, 1, 1], [], []>} : vector<8x8xf32>, vector<8x32xf32>, vector<8x32xf32> -> vector<8x32xf32>
    %109 = arith.addf %90, %108 : vector<8x32xf32>
    %110 = vector.broadcast %27 : vector<1x32xf32> to vector<8x32xf32>
    %111 = arith.addf %109, %110 : vector<8x32xf32>
    %112 = arith.addf %111, %1 : vector<8x32xf32>
    %c0_56 = arith.constant 0 : index
    %c0_57 = arith.constant 0 : index
    %c0_58 = arith.constant 0 : index
    %113 = vector.load %arg10[%c0_56, %c0_57, %c0_58] : memref<2x1x32xf32, #tpu.memory_space<vmem>>, vector<1x1x32xf32>
    %114 = vector.shape_cast %113 : vector<1x1x32xf32> to vector<1x32xf32>
    %c0_59 = arith.constant 0 : index
    %c0_60 = arith.constant 0 : index
    %c0_61 = arith.constant 0 : index
    %115 = vector.load %arg11[%c0_59, %c0_60, %c0_61] : memref<2x1x32xf32, #tpu.memory_space<vmem>>, vector<1x1x32xf32>
    %116 = vector.shape_cast %115 : vector<1x1x32xf32> to vector<1x32xf32>
    %cst_62 = arith.constant dense<0.000000e+00> : vector<8xf32>
    %117 = vector.multi_reduction <add>, %112, %cst_62 [1] : vector<8x32xf32> to vector<8xf32>
    %118 = vector.shape_cast %117 : vector<8xf32> to vector<8x1xf32>
    %cst_63 = arith.constant 3.200000e+01 : f32
    %119 = vector.broadcast %cst_63 : f32 to vector<8x1xf32>
    %120 = arith.divf %118, %119 : vector<8x1xf32>
    %121 = vector.broadcast %120 : vector<8x1xf32> to vector<8x32xf32>
    %122 = arith.subf %112, %121 : vector<8x32xf32>
    %123 = vector.broadcast %120 : vector<8x1xf32> to vector<8x32xf32>
    %124 = arith.subf %112, %123 : vector<8x32xf32>
    %125 = arith.mulf %122, %124 : vector<8x32xf32>
    %cst_64 = arith.constant dense<0.000000e+00> : vector<8xf32>
    %126 = vector.multi_reduction <add>, %125, %cst_64 [1] : vector<8x32xf32> to vector<8xf32>
    %127 = vector.shape_cast %126 : vector<8xf32> to vector<8x1xf32>
    %cst_65 = arith.constant 3.200000e+01 : f32
    %128 = vector.broadcast %cst_65 : f32 to vector<8x1xf32>
    %129 = arith.divf %127, %128 : vector<8x1xf32>
    %130 = vector.broadcast %120 : vector<8x1xf32> to vector<8x32xf32>
    %131 = arith.subf %112, %130 : vector<8x32xf32>
    %cst_66 = arith.constant 9.99999974E-6 : f32
    %132 = vector.broadcast %cst_66 : f32 to vector<8x1xf32>
    %133 = arith.addf %129, %132 : vector<8x1xf32>
    %134 = math.rsqrt %133 : vector<8x1xf32>
    %135 = vector.broadcast %134 : vector<8x1xf32> to vector<8x32xf32>
    %136 = arith.mulf %131, %135 : vector<8x32xf32>
    %137 = vector.broadcast %114 : vector<1x32xf32> to vector<8x32xf32>
    %138 = arith.mulf %136, %137 : vector<8x32xf32>
    %139 = vector.broadcast %116 : vector<1x32xf32> to vector<8x32xf32>
    %140 = arith.addf %138, %139 : vector<8x32xf32>
    %c0_67 = arith.constant 0 : index
    %c0_68 = arith.constant 0 : index
    %c0_69 = arith.constant 0 : index
    %141 = vector.load %arg12[%c0_67, %c0_68, %c0_69] : memref<2x32x32xf32, #tpu.memory_space<vmem>>, vector<1x32x32xf32>
    %142 = vector.shape_cast %141 : vector<1x32x32xf32> to vector<32x32xf32>
    %c0_70 = arith.constant 0 : index
    %c0_71 = arith.constant 0 : index
    %c0_72 = arith.constant 0 : index
    %143 = vector.load %arg13[%c0_70, %c0_71, %c0_72] : memref<2x32x32xf32, #tpu.memory_space<vmem>>, vector<1x32x32xf32>
    %144 = vector.shape_cast %143 : vector<1x32x32xf32> to vector<32x32xf32>
    %c0_73 = arith.constant 0 : index
    %c0_74 = arith.constant 0 : index
    %c0_75 = arith.constant 0 : index
    %145 = vector.load %arg14[%c0_73, %c0_74, %c0_75] : memref<2x32x32xf32, #tpu.memory_space<vmem>>, vector<1x32x32xf32>
    %146 = vector.shape_cast %145 : vector<1x32x32xf32> to vector<32x32xf32>
    %c0_76 = arith.constant 0 : index
    %c0_77 = arith.constant 0 : index
    %c0_78 = arith.constant 0 : index
    %147 = vector.load %arg15[%c0_76, %c0_77, %c0_78] : memref<2x32x32xf32, #tpu.memory_space<vmem>>, vector<1x32x32xf32>
    %148 = vector.shape_cast %147 : vector<1x32x32xf32> to vector<32x32xf32>
    %c0_79 = arith.constant 0 : index
    %c0_80 = arith.constant 0 : index
    %c0_81 = arith.constant 0 : index
    %149 = vector.load %arg16[%c0_79, %c0_80, %c0_81] : memref<2x1x32xf32, #tpu.memory_space<vmem>>, vector<1x1x32xf32>
    %150 = vector.shape_cast %149 : vector<1x1x32xf32> to vector<1x32xf32>
    %cst_82 = arith.constant dense<0.000000e+00> : vector<8x32xf32>
    %151 = tpu.matmul %140, %142, %cst_82 {dimension_numbers = #tpu.dot_dimension_numbers<[1], [0], [0], [1], [0, 0, 1, 1], [], []>} : vector<8x32xf32>, vector<32x32xf32>, vector<8x32xf32> -> vector<8x32xf32>
    %cst_83 = arith.constant 0.176776692 : f32
    %152 = vector.broadcast %cst_83 : f32 to vector<8x32xf32>
    %153 = arith.mulf %151, %152 : vector<8x32xf32>
    %cst_84 = arith.constant dense<0.000000e+00> : vector<8x32xf32>
    %154 = tpu.matmul %3, %144, %cst_84 {dimension_numbers = #tpu.dot_dimension_numbers<[1], [0], [0], [1], [0, 0, 1, 1], [], []>} : vector<8x32xf32>, vector<32x32xf32>, vector<8x32xf32> -> vector<8x32xf32>
    %cst_85 = arith.constant dense<0.000000e+00> : vector<8x32xf32>
    %155 = tpu.matmul %3, %146, %cst_85 {dimension_numbers = #tpu.dot_dimension_numbers<[1], [0], [0], [1], [0, 0, 1, 1], [], []>} : vector<8x32xf32>, vector<32x32xf32>, vector<8x32xf32> -> vector<8x32xf32>
    %cst_86 = arith.constant 0.000000e+00 : f32
    %156 = vector.broadcast %cst_86 : f32 to vector<8x32xf32>
    %157 = vector.extract_strided_slice %153 {offsets = [0, 0], sizes = [8, 8], strides = [1, 1]} : vector<8x32xf32> to vector<8x8xf32>
    %158 = vector.extract_strided_slice %154 {offsets = [0, 0], sizes = [8, 8], strides = [1, 1]} : vector<8x32xf32> to vector<8x8xf32>
    %159 = vector.extract_strided_slice %155 {offsets = [0, 0], sizes = [8, 8], strides = [1, 1]} : vector<8x32xf32> to vector<8x8xf32>
    %cst_87 = arith.constant dense<0.000000e+00> : vector<8x8xf32>
    %160 = tpu.matmul %157, %158, %cst_87 {dimension_numbers = #tpu.dot_dimension_numbers<[1], [1], [0], [0], [0, 0, 1, 0], [], []>} : vector<8x8xf32>, vector<8x8xf32>, vector<8x8xf32> -> vector<8x8xf32>
    %161 = vector.broadcast %17 : vector<1x8xf32> to vector<8x8xf32>
    %162 = arith.addf %160, %161 : vector<8x8xf32>
    %cst_88 = arith.constant dense<0xFF800000> : vector<8xf32>
    %163 = vector.multi_reduction <maximumf>, %162, %cst_88 [1] : vector<8x8xf32> to vector<8xf32>
    %164 = vector.shape_cast %163 : vector<8xf32> to vector<8x1xf32>
    %165 = vector.broadcast %164 : vector<8x1xf32> to vector<8x8xf32>
    %166 = arith.subf %162, %165 : vector<8x8xf32>
    %167 = math.exp %166 : vector<8x8xf32>
    %cst_89 = arith.constant dense<0.000000e+00> : vector<8xf32>
    %168 = vector.multi_reduction <add>, %167, %cst_89 [1] : vector<8x8xf32> to vector<8xf32>
    %169 = vector.shape_cast %168 : vector<8xf32> to vector<8x1xf32>
    %170 = tpu.reciprocal %169 {approx = true} : vector<8x1xf32> -> vector<8x1xf32>
    %171 = vector.broadcast %170 : vector<8x1xf32> to vector<8x8xf32>
    %172 = arith.mulf %167, %171 : vector<8x8xf32>
    %cst_90 = arith.constant dense<0.000000e+00> : vector<8x8xf32>
    %173 = tpu.matmul %172, %159, %cst_90 {dimension_numbers = #tpu.dot_dimension_numbers<[1], [0], [0], [1], [0, 0, 1, 1], [], []>} : vector<8x8xf32>, vector<8x8xf32>, vector<8x8xf32> -> vector<8x8xf32>
    %174 = vector.extract_strided_slice %148 {offsets = [0, 0], sizes = [8, 32], strides = [1, 1]} : vector<32x32xf32> to vector<8x32xf32>
    %cst_91 = arith.constant dense<0.000000e+00> : vector<8x32xf32>
    %175 = tpu.matmul %173, %174, %cst_91 {dimension_numbers = #tpu.dot_dimension_numbers<[1], [0], [0], [1], [0, 0, 1, 1], [], []>} : vector<8x8xf32>, vector<8x32xf32>, vector<8x32xf32> -> vector<8x32xf32>
    %176 = arith.addf %156, %175 : vector<8x32xf32>
    %177 = vector.extract_strided_slice %153 {offsets = [0, 8], sizes = [8, 8], strides = [1, 1]} : vector<8x32xf32> to vector<8x8xf32>
    %178 = vector.extract_strided_slice %154 {offsets = [0, 8], sizes = [8, 8], strides = [1, 1]} : vector<8x32xf32> to vector<8x8xf32>
    %179 = vector.extract_strided_slice %155 {offsets = [0, 8], sizes = [8, 8], strides = [1, 1]} : vector<8x32xf32> to vector<8x8xf32>
    %cst_92 = arith.constant dense<0.000000e+00> : vector<8x8xf32>
    %180 = tpu.matmul %177, %178, %cst_92 {dimension_numbers = #tpu.dot_dimension_numbers<[1], [1], [0], [0], [0, 0, 1, 0], [], []>} : vector<8x8xf32>, vector<8x8xf32>, vector<8x8xf32> -> vector<8x8xf32>
    %181 = vector.broadcast %17 : vector<1x8xf32> to vector<8x8xf32>
    %182 = arith.addf %180, %181 : vector<8x8xf32>
    %cst_93 = arith.constant dense<0xFF800000> : vector<8xf32>
    %183 = vector.multi_reduction <maximumf>, %182, %cst_93 [1] : vector<8x8xf32> to vector<8xf32>
    %184 = vector.shape_cast %183 : vector<8xf32> to vector<8x1xf32>
    %185 = vector.broadcast %184 : vector<8x1xf32> to vector<8x8xf32>
    %186 = arith.subf %182, %185 : vector<8x8xf32>
    %187 = math.exp %186 : vector<8x8xf32>
    %cst_94 = arith.constant dense<0.000000e+00> : vector<8xf32>
    %188 = vector.multi_reduction <add>, %187, %cst_94 [1] : vector<8x8xf32> to vector<8xf32>
    %189 = vector.shape_cast %188 : vector<8xf32> to vector<8x1xf32>
    %190 = tpu.reciprocal %189 {approx = true} : vector<8x1xf32> -> vector<8x1xf32>
    %191 = vector.broadcast %190 : vector<8x1xf32> to vector<8x8xf32>
    %192 = arith.mulf %187, %191 : vector<8x8xf32>
    %cst_95 = arith.constant dense<0.000000e+00> : vector<8x8xf32>
    %193 = tpu.matmul %192, %179, %cst_95 {dimension_numbers = #tpu.dot_dimension_numbers<[1], [0], [0], [1], [0, 0, 1, 1], [], []>} : vector<8x8xf32>, vector<8x8xf32>, vector<8x8xf32> -> vector<8x8xf32>
    %194 = vector.extract_strided_slice %148 {offsets = [8, 0], sizes = [8, 32], strides = [1, 1]} : vector<32x32xf32> to vector<8x32xf32>
    %cst_96 = arith.constant dense<0.000000e+00> : vector<8x32xf32>
    %195 = tpu.matmul %193, %194, %cst_96 {dimension_numbers = #tpu.dot_dimension_numbers<[1], [0], [0], [1], [0, 0, 1, 1], [], []>} : vector<8x8xf32>, vector<8x32xf32>, vector<8x32xf32> -> vector<8x32xf32>
    %196 = arith.addf %176, %195 : vector<8x32xf32>
    %197 = vector.extract_strided_slice %153 {offsets = [0, 16], sizes = [8, 8], strides = [1, 1]} : vector<8x32xf32> to vector<8x8xf32>
    %198 = vector.extract_strided_slice %154 {offsets = [0, 16], sizes = [8, 8], strides = [1, 1]} : vector<8x32xf32> to vector<8x8xf32>
    %199 = vector.extract_strided_slice %155 {offsets = [0, 16], sizes = [8, 8], strides = [1, 1]} : vector<8x32xf32> to vector<8x8xf32>
    %cst_97 = arith.constant dense<0.000000e+00> : vector<8x8xf32>
    %200 = tpu.matmul %197, %198, %cst_97 {dimension_numbers = #tpu.dot_dimension_numbers<[1], [1], [0], [0], [0, 0, 1, 0], [], []>} : vector<8x8xf32>, vector<8x8xf32>, vector<8x8xf32> -> vector<8x8xf32>
    %201 = vector.broadcast %17 : vector<1x8xf32> to vector<8x8xf32>
    %202 = arith.addf %200, %201 : vector<8x8xf32>
    %cst_98 = arith.constant dense<0xFF800000> : vector<8xf32>
    %203 = vector.multi_reduction <maximumf>, %202, %cst_98 [1] : vector<8x8xf32> to vector<8xf32>
    %204 = vector.shape_cast %203 : vector<8xf32> to vector<8x1xf32>
    %205 = vector.broadcast %204 : vector<8x1xf32> to vector<8x8xf32>
    %206 = arith.subf %202, %205 : vector<8x8xf32>
    %207 = math.exp %206 : vector<8x8xf32>
    %cst_99 = arith.constant dense<0.000000e+00> : vector<8xf32>
    %208 = vector.multi_reduction <add>, %207, %cst_99 [1] : vector<8x8xf32> to vector<8xf32>
    %209 = vector.shape_cast %208 : vector<8xf32> to vector<8x1xf32>
    %210 = tpu.reciprocal %209 {approx = true} : vector<8x1xf32> -> vector<8x1xf32>
    %211 = vector.broadcast %210 : vector<8x1xf32> to vector<8x8xf32>
    %212 = arith.mulf %207, %211 : vector<8x8xf32>
    %cst_100 = arith.constant dense<0.000000e+00> : vector<8x8xf32>
    %213 = tpu.matmul %212, %199, %cst_100 {dimension_numbers = #tpu.dot_dimension_numbers<[1], [0], [0], [1], [0, 0, 1, 1], [], []>} : vector<8x8xf32>, vector<8x8xf32>, vector<8x8xf32> -> vector<8x8xf32>
    %214 = vector.extract_strided_slice %148 {offsets = [16, 0], sizes = [8, 32], strides = [1, 1]} : vector<32x32xf32> to vector<8x32xf32>
    %cst_101 = arith.constant dense<0.000000e+00> : vector<8x32xf32>
    %215 = tpu.matmul %213, %214, %cst_101 {dimension_numbers = #tpu.dot_dimension_numbers<[1], [0], [0], [1], [0, 0, 1, 1], [], []>} : vector<8x8xf32>, vector<8x32xf32>, vector<8x32xf32> -> vector<8x32xf32>
    %216 = arith.addf %196, %215 : vector<8x32xf32>
    %217 = vector.extract_strided_slice %153 {offsets = [0, 24], sizes = [8, 8], strides = [1, 1]} : vector<8x32xf32> to vector<8x8xf32>
    %218 = vector.extract_strided_slice %154 {offsets = [0, 24], sizes = [8, 8], strides = [1, 1]} : vector<8x32xf32> to vector<8x8xf32>
    %219 = vector.extract_strided_slice %155 {offsets = [0, 24], sizes = [8, 8], strides = [1, 1]} : vector<8x32xf32> to vector<8x8xf32>
    %cst_102 = arith.constant dense<0.000000e+00> : vector<8x8xf32>
    %220 = tpu.matmul %217, %218, %cst_102 {dimension_numbers = #tpu.dot_dimension_numbers<[1], [1], [0], [0], [0, 0, 1, 0], [], []>} : vector<8x8xf32>, vector<8x8xf32>, vector<8x8xf32> -> vector<8x8xf32>
    %221 = vector.broadcast %17 : vector<1x8xf32> to vector<8x8xf32>
    %222 = arith.addf %220, %221 : vector<8x8xf32>
    %cst_103 = arith.constant dense<0xFF800000> : vector<8xf32>
    %223 = vector.multi_reduction <maximumf>, %222, %cst_103 [1] : vector<8x8xf32> to vector<8xf32>
    %224 = vector.shape_cast %223 : vector<8xf32> to vector<8x1xf32>
    %225 = vector.broadcast %224 : vector<8x1xf32> to vector<8x8xf32>
    %226 = arith.subf %222, %225 : vector<8x8xf32>
    %227 = math.exp %226 : vector<8x8xf32>
    %cst_104 = arith.constant dense<0.000000e+00> : vector<8xf32>
    %228 = vector.multi_reduction <add>, %227, %cst_104 [1] : vector<8x8xf32> to vector<8xf32>
    %229 = vector.shape_cast %228 : vector<8xf32> to vector<8x1xf32>
    %230 = tpu.reciprocal %229 {approx = true} : vector<8x1xf32> -> vector<8x1xf32>
    %231 = vector.broadcast %230 : vector<8x1xf32> to vector<8x8xf32>
    %232 = arith.mulf %227, %231 : vector<8x8xf32>
    %cst_105 = arith.constant dense<0.000000e+00> : vector<8x8xf32>
    %233 = tpu.matmul %232, %219, %cst_105 {dimension_numbers = #tpu.dot_dimension_numbers<[1], [0], [0], [1], [0, 0, 1, 1], [], []>} : vector<8x8xf32>, vector<8x8xf32>, vector<8x8xf32> -> vector<8x8xf32>
    %234 = vector.extract_strided_slice %148 {offsets = [24, 0], sizes = [8, 32], strides = [1, 1]} : vector<32x32xf32> to vector<8x32xf32>
    %cst_106 = arith.constant dense<0.000000e+00> : vector<8x32xf32>
    %235 = tpu.matmul %233, %234, %cst_106 {dimension_numbers = #tpu.dot_dimension_numbers<[1], [0], [0], [1], [0, 0, 1, 1], [], []>} : vector<8x8xf32>, vector<8x32xf32>, vector<8x32xf32> -> vector<8x32xf32>
    %236 = arith.addf %216, %235 : vector<8x32xf32>
    %237 = vector.broadcast %150 : vector<1x32xf32> to vector<8x32xf32>
    %238 = arith.addf %236, %237 : vector<8x32xf32>
    %239 = arith.addf %238, %140 : vector<8x32xf32>
    %c0_107 = arith.constant 0 : index
    %c0_108 = arith.constant 0 : index
    %c0_109 = arith.constant 0 : index
    %240 = vector.load %arg17[%c0_107, %c0_108, %c0_109] : memref<2x1x32xf32, #tpu.memory_space<vmem>>, vector<1x1x32xf32>
    %241 = vector.shape_cast %240 : vector<1x1x32xf32> to vector<1x32xf32>
    %c0_110 = arith.constant 0 : index
    %c0_111 = arith.constant 0 : index
    %c0_112 = arith.constant 0 : index
    %242 = vector.load %arg18[%c0_110, %c0_111, %c0_112] : memref<2x1x32xf32, #tpu.memory_space<vmem>>, vector<1x1x32xf32>
    %243 = vector.shape_cast %242 : vector<1x1x32xf32> to vector<1x32xf32>
    %cst_113 = arith.constant dense<0.000000e+00> : vector<8xf32>
    %244 = vector.multi_reduction <add>, %239, %cst_113 [1] : vector<8x32xf32> to vector<8xf32>
    %245 = vector.shape_cast %244 : vector<8xf32> to vector<8x1xf32>
    %cst_114 = arith.constant 3.200000e+01 : f32
    %246 = vector.broadcast %cst_114 : f32 to vector<8x1xf32>
    %247 = arith.divf %245, %246 : vector<8x1xf32>
    %248 = vector.broadcast %247 : vector<8x1xf32> to vector<8x32xf32>
    %249 = arith.subf %239, %248 : vector<8x32xf32>
    %250 = vector.broadcast %247 : vector<8x1xf32> to vector<8x32xf32>
    %251 = arith.subf %239, %250 : vector<8x32xf32>
    %252 = arith.mulf %249, %251 : vector<8x32xf32>
    %cst_115 = arith.constant dense<0.000000e+00> : vector<8xf32>
    %253 = vector.multi_reduction <add>, %252, %cst_115 [1] : vector<8x32xf32> to vector<8xf32>
    %254 = vector.shape_cast %253 : vector<8xf32> to vector<8x1xf32>
    %cst_116 = arith.constant 3.200000e+01 : f32
    %255 = vector.broadcast %cst_116 : f32 to vector<8x1xf32>
    %256 = arith.divf %254, %255 : vector<8x1xf32>
    %257 = vector.broadcast %247 : vector<8x1xf32> to vector<8x32xf32>
    %258 = arith.subf %239, %257 : vector<8x32xf32>
    %cst_117 = arith.constant 9.99999974E-6 : f32
    %259 = vector.broadcast %cst_117 : f32 to vector<8x1xf32>
    %260 = arith.addf %256, %259 : vector<8x1xf32>
    %261 = math.rsqrt %260 : vector<8x1xf32>
    %262 = vector.broadcast %261 : vector<8x1xf32> to vector<8x32xf32>
    %263 = arith.mulf %258, %262 : vector<8x32xf32>
    %264 = vector.broadcast %241 : vector<1x32xf32> to vector<8x32xf32>
    %265 = arith.mulf %263, %264 : vector<8x32xf32>
    %266 = vector.broadcast %243 : vector<1x32xf32> to vector<8x32xf32>
    %267 = arith.addf %265, %266 : vector<8x32xf32>
    %c0_118 = arith.constant 0 : index
    %c0_119 = arith.constant 0 : index
    %c0_120 = arith.constant 0 : index
    %268 = vector.load %arg19[%c0_118, %c0_119, %c0_120] : memref<2x32x64xf32, #tpu.memory_space<vmem>>, vector<1x32x64xf32>
    %269 = vector.shape_cast %268 : vector<1x32x64xf32> to vector<32x64xf32>
    %cst_121 = arith.constant dense<0.000000e+00> : vector<8x64xf32>
    %270 = tpu.matmul %267, %269, %cst_121 {dimension_numbers = #tpu.dot_dimension_numbers<[1], [0], [0], [1], [0, 0, 1, 1], [], []>} : vector<8x32xf32>, vector<32x64xf32>, vector<8x64xf32> -> vector<8x64xf32>
    %c0_122 = arith.constant 0 : index
    %c0_123 = arith.constant 0 : index
    %c0_124 = arith.constant 0 : index
    %271 = vector.load %arg20[%c0_122, %c0_123, %c0_124] : memref<2x1x64xf32, #tpu.memory_space<vmem>>, vector<1x1x64xf32>
    %272 = vector.shape_cast %271 : vector<1x1x64xf32> to vector<1x64xf32>
    %273 = vector.broadcast %272 : vector<1x64xf32> to vector<8x64xf32>
    %274 = arith.addf %270, %273 : vector<8x64xf32>
    %cst_125 = arith.constant 0.000000e+00 : f32
    %275 = vector.broadcast %cst_125 : f32 to vector<8x64xf32>
    %276 = arith.maximumf %274, %275 : vector<8x64xf32>
    %c0_126 = arith.constant 0 : index
    %c0_127 = arith.constant 0 : index
    %c0_128 = arith.constant 0 : index
    %277 = vector.load %arg21[%c0_126, %c0_127, %c0_128] : memref<2x64x32xf32, #tpu.memory_space<vmem>>, vector<1x64x32xf32>
    %278 = vector.shape_cast %277 : vector<1x64x32xf32> to vector<64x32xf32>
    %cst_129 = arith.constant dense<0.000000e+00> : vector<8x32xf32>
    %279 = tpu.matmul %276, %278, %cst_129 {dimension_numbers = #tpu.dot_dimension_numbers<[1], [0], [0], [1], [0, 0, 1, 1], [], []>} : vector<8x64xf32>, vector<64x32xf32>, vector<8x32xf32> -> vector<8x32xf32>
    %c0_130 = arith.constant 0 : index
    %c0_131 = arith.constant 0 : index
    %c0_132 = arith.constant 0 : index
    %280 = vector.load %arg22[%c0_130, %c0_131, %c0_132] : memref<2x1x32xf32, #tpu.memory_space<vmem>>, vector<1x1x32xf32>
    %281 = vector.shape_cast %280 : vector<1x1x32xf32> to vector<1x32xf32>
    %282 = vector.broadcast %281 : vector<1x32xf32> to vector<8x32xf32>
    %283 = arith.addf %279, %282 : vector<8x32xf32>
    %284 = arith.addf %283, %267 : vector<8x32xf32>
    %c0_133 = arith.constant 0 : index
    %c0_134 = arith.constant 0 : index
    %c0_135 = arith.constant 0 : index
    %285 = vector.load %arg23[%c0_133, %c0_134, %c0_135] : memref<2x1x32xf32, #tpu.memory_space<vmem>>, vector<1x1x32xf32>
    %286 = vector.shape_cast %285 : vector<1x1x32xf32> to vector<1x32xf32>
    %c0_136 = arith.constant 0 : index
    %c0_137 = arith.constant 0 : index
    %c0_138 = arith.constant 0 : index
    %287 = vector.load %arg24[%c0_136, %c0_137, %c0_138] : memref<2x1x32xf32, #tpu.memory_space<vmem>>, vector<1x1x32xf32>
    %288 = vector.shape_cast %287 : vector<1x1x32xf32> to vector<1x32xf32>
    %cst_139 = arith.constant dense<0.000000e+00> : vector<8xf32>
    %289 = vector.multi_reduction <add>, %284, %cst_139 [1] : vector<8x32xf32> to vector<8xf32>
    %290 = vector.shape_cast %289 : vector<8xf32> to vector<8x1xf32>
    %cst_140 = arith.constant 3.200000e+01 : f32
    %291 = vector.broadcast %cst_140 : f32 to vector<8x1xf32>
    %292 = arith.divf %290, %291 : vector<8x1xf32>
    %293 = vector.broadcast %292 : vector<8x1xf32> to vector<8x32xf32>
    %294 = arith.subf %284, %293 : vector<8x32xf32>
    %295 = vector.broadcast %292 : vector<8x1xf32> to vector<8x32xf32>
    %296 = arith.subf %284, %295 : vector<8x32xf32>
    %297 = arith.mulf %294, %296 : vector<8x32xf32>
    %cst_141 = arith.constant dense<0.000000e+00> : vector<8xf32>
    %298 = vector.multi_reduction <add>, %297, %cst_141 [1] : vector<8x32xf32> to vector<8xf32>
    %299 = vector.shape_cast %298 : vector<8xf32> to vector<8x1xf32>
    %cst_142 = arith.constant 3.200000e+01 : f32
    %300 = vector.broadcast %cst_142 : f32 to vector<8x1xf32>
    %301 = arith.divf %299, %300 : vector<8x1xf32>
    %302 = vector.broadcast %292 : vector<8x1xf32> to vector<8x32xf32>
    %303 = arith.subf %284, %302 : vector<8x32xf32>
    %cst_143 = arith.constant 9.99999974E-6 : f32
    %304 = vector.broadcast %cst_143 : f32 to vector<8x1xf32>
    %305 = arith.addf %301, %304 : vector<8x1xf32>
    %306 = math.rsqrt %305 : vector<8x1xf32>
    %307 = vector.broadcast %306 : vector<8x1xf32> to vector<8x32xf32>
    %308 = arith.mulf %303, %307 : vector<8x32xf32>
    %309 = vector.broadcast %286 : vector<1x32xf32> to vector<8x32xf32>
    %310 = arith.mulf %308, %309 : vector<8x32xf32>
    %311 = vector.broadcast %288 : vector<1x32xf32> to vector<8x32xf32>
    %312 = arith.addf %310, %311 : vector<8x32xf32>
    %c1 = arith.constant 1 : index
    %c0_144 = arith.constant 0 : index
    %c0_145 = arith.constant 0 : index
    %313 = vector.load %arg5[%c1, %c0_144, %c0_145] : memref<2x32x32xf32, #tpu.memory_space<vmem>>, vector<1x32x32xf32>
    %314 = vector.shape_cast %313 : vector<1x32x32xf32> to vector<32x32xf32>
    %c1_146 = arith.constant 1 : index
    %c0_147 = arith.constant 0 : index
    %c0_148 = arith.constant 0 : index
    %315 = vector.load %arg6[%c1_146, %c0_147, %c0_148] : memref<2x32x32xf32, #tpu.memory_space<vmem>>, vector<1x32x32xf32>
    %316 = vector.shape_cast %315 : vector<1x32x32xf32> to vector<32x32xf32>
    %c1_149 = arith.constant 1 : index
    %c0_150 = arith.constant 0 : index
    %c0_151 = arith.constant 0 : index
    %317 = vector.load %arg7[%c1_149, %c0_150, %c0_151] : memref<2x32x32xf32, #tpu.memory_space<vmem>>, vector<1x32x32xf32>
    %318 = vector.shape_cast %317 : vector<1x32x32xf32> to vector<32x32xf32>
    %c1_152 = arith.constant 1 : index
    %c0_153 = arith.constant 0 : index
    %c0_154 = arith.constant 0 : index
    %319 = vector.load %arg8[%c1_152, %c0_153, %c0_154] : memref<2x32x32xf32, #tpu.memory_space<vmem>>, vector<1x32x32xf32>
    %320 = vector.shape_cast %319 : vector<1x32x32xf32> to vector<32x32xf32>
    %c1_155 = arith.constant 1 : index
    %c0_156 = arith.constant 0 : index
    %c0_157 = arith.constant 0 : index
    %321 = vector.load %arg9[%c1_155, %c0_156, %c0_157] : memref<2x1x32xf32, #tpu.memory_space<vmem>>, vector<1x1x32xf32>
    %322 = vector.shape_cast %321 : vector<1x1x32xf32> to vector<1x32xf32>
    %cst_158 = arith.constant dense<0.000000e+00> : vector<8x32xf32>
    %323 = tpu.matmul %312, %314, %cst_158 {dimension_numbers = #tpu.dot_dimension_numbers<[1], [0], [0], [1], [0, 0, 1, 1], [], []>} : vector<8x32xf32>, vector<32x32xf32>, vector<8x32xf32> -> vector<8x32xf32>
    %cst_159 = arith.constant 0.176776692 : f32
    %324 = vector.broadcast %cst_159 : f32 to vector<8x32xf32>
    %325 = arith.mulf %323, %324 : vector<8x32xf32>
    %cst_160 = arith.constant dense<0.000000e+00> : vector<8x32xf32>
    %326 = tpu.matmul %312, %316, %cst_160 {dimension_numbers = #tpu.dot_dimension_numbers<[1], [0], [0], [1], [0, 0, 1, 1], [], []>} : vector<8x32xf32>, vector<32x32xf32>, vector<8x32xf32> -> vector<8x32xf32>
    %cst_161 = arith.constant dense<0.000000e+00> : vector<8x32xf32>
    %327 = tpu.matmul %312, %318, %cst_161 {dimension_numbers = #tpu.dot_dimension_numbers<[1], [0], [0], [1], [0, 0, 1, 1], [], []>} : vector<8x32xf32>, vector<32x32xf32>, vector<8x32xf32> -> vector<8x32xf32>
    %cst_162 = arith.constant 0.000000e+00 : f32
    %328 = vector.broadcast %cst_162 : f32 to vector<8x32xf32>
    %329 = vector.extract_strided_slice %325 {offsets = [0, 0], sizes = [8, 8], strides = [1, 1]} : vector<8x32xf32> to vector<8x8xf32>
    %330 = vector.extract_strided_slice %326 {offsets = [0, 0], sizes = [8, 8], strides = [1, 1]} : vector<8x32xf32> to vector<8x8xf32>
    %331 = vector.extract_strided_slice %327 {offsets = [0, 0], sizes = [8, 8], strides = [1, 1]} : vector<8x32xf32> to vector<8x8xf32>
    %cst_163 = arith.constant dense<0.000000e+00> : vector<8x8xf32>
    %332 = tpu.matmul %329, %330, %cst_163 {dimension_numbers = #tpu.dot_dimension_numbers<[1], [1], [0], [0], [0, 0, 1, 0], [], []>} : vector<8x8xf32>, vector<8x8xf32>, vector<8x8xf32> -> vector<8x8xf32>
    %333 = arith.addf %332, %10 : vector<8x8xf32>
    %cst_164 = arith.constant dense<0xFF800000> : vector<8xf32>
    %334 = vector.multi_reduction <maximumf>, %333, %cst_164 [1] : vector<8x8xf32> to vector<8xf32>
    %335 = vector.shape_cast %334 : vector<8xf32> to vector<8x1xf32>
    %336 = vector.broadcast %335 : vector<8x1xf32> to vector<8x8xf32>
    %337 = arith.subf %333, %336 : vector<8x8xf32>
    %338 = math.exp %337 : vector<8x8xf32>
    %cst_165 = arith.constant dense<0.000000e+00> : vector<8xf32>
    %339 = vector.multi_reduction <add>, %338, %cst_165 [1] : vector<8x8xf32> to vector<8xf32>
    %340 = vector.shape_cast %339 : vector<8xf32> to vector<8x1xf32>
    %341 = tpu.reciprocal %340 {approx = true} : vector<8x1xf32> -> vector<8x1xf32>
    %342 = vector.broadcast %341 : vector<8x1xf32> to vector<8x8xf32>
    %343 = arith.mulf %338, %342 : vector<8x8xf32>
    %cst_166 = arith.constant dense<0.000000e+00> : vector<8x8xf32>
    %344 = tpu.matmul %343, %331, %cst_166 {dimension_numbers = #tpu.dot_dimension_numbers<[1], [0], [0], [1], [0, 0, 1, 1], [], []>} : vector<8x8xf32>, vector<8x8xf32>, vector<8x8xf32> -> vector<8x8xf32>
    %345 = vector.extract_strided_slice %320 {offsets = [0, 0], sizes = [8, 32], strides = [1, 1]} : vector<32x32xf32> to vector<8x32xf32>
    %cst_167 = arith.constant dense<0.000000e+00> : vector<8x32xf32>
    %346 = tpu.matmul %344, %345, %cst_167 {dimension_numbers = #tpu.dot_dimension_numbers<[1], [0], [0], [1], [0, 0, 1, 1], [], []>} : vector<8x8xf32>, vector<8x32xf32>, vector<8x32xf32> -> vector<8x32xf32>
    %347 = arith.addf %328, %346 : vector<8x32xf32>
    %348 = vector.extract_strided_slice %325 {offsets = [0, 8], sizes = [8, 8], strides = [1, 1]} : vector<8x32xf32> to vector<8x8xf32>
    %349 = vector.extract_strided_slice %326 {offsets = [0, 8], sizes = [8, 8], strides = [1, 1]} : vector<8x32xf32> to vector<8x8xf32>
    %350 = vector.extract_strided_slice %327 {offsets = [0, 8], sizes = [8, 8], strides = [1, 1]} : vector<8x32xf32> to vector<8x8xf32>
    %cst_168 = arith.constant dense<0.000000e+00> : vector<8x8xf32>
    %351 = tpu.matmul %348, %349, %cst_168 {dimension_numbers = #tpu.dot_dimension_numbers<[1], [1], [0], [0], [0, 0, 1, 0], [], []>} : vector<8x8xf32>, vector<8x8xf32>, vector<8x8xf32> -> vector<8x8xf32>
    %352 = arith.addf %351, %10 : vector<8x8xf32>
    %cst_169 = arith.constant dense<0xFF800000> : vector<8xf32>
    %353 = vector.multi_reduction <maximumf>, %352, %cst_169 [1] : vector<8x8xf32> to vector<8xf32>
    %354 = vector.shape_cast %353 : vector<8xf32> to vector<8x1xf32>
    %355 = vector.broadcast %354 : vector<8x1xf32> to vector<8x8xf32>
    %356 = arith.subf %352, %355 : vector<8x8xf32>
    %357 = math.exp %356 : vector<8x8xf32>
    %cst_170 = arith.constant dense<0.000000e+00> : vector<8xf32>
    %358 = vector.multi_reduction <add>, %357, %cst_170 [1] : vector<8x8xf32> to vector<8xf32>
    %359 = vector.shape_cast %358 : vector<8xf32> to vector<8x1xf32>
    %360 = tpu.reciprocal %359 {approx = true} : vector<8x1xf32> -> vector<8x1xf32>
    %361 = vector.broadcast %360 : vector<8x1xf32> to vector<8x8xf32>
    %362 = arith.mulf %357, %361 : vector<8x8xf32>
    %cst_171 = arith.constant dense<0.000000e+00> : vector<8x8xf32>
    %363 = tpu.matmul %362, %350, %cst_171 {dimension_numbers = #tpu.dot_dimension_numbers<[1], [0], [0], [1], [0, 0, 1, 1], [], []>} : vector<8x8xf32>, vector<8x8xf32>, vector<8x8xf32> -> vector<8x8xf32>
    %364 = vector.extract_strided_slice %320 {offsets = [8, 0], sizes = [8, 32], strides = [1, 1]} : vector<32x32xf32> to vector<8x32xf32>
    %cst_172 = arith.constant dense<0.000000e+00> : vector<8x32xf32>
    %365 = tpu.matmul %363, %364, %cst_172 {dimension_numbers = #tpu.dot_dimension_numbers<[1], [0], [0], [1], [0, 0, 1, 1], [], []>} : vector<8x8xf32>, vector<8x32xf32>, vector<8x32xf32> -> vector<8x32xf32>
    %366 = arith.addf %347, %365 : vector<8x32xf32>
    %367 = vector.extract_strided_slice %325 {offsets = [0, 16], sizes = [8, 8], strides = [1, 1]} : vector<8x32xf32> to vector<8x8xf32>
    %368 = vector.extract_strided_slice %326 {offsets = [0, 16], sizes = [8, 8], strides = [1, 1]} : vector<8x32xf32> to vector<8x8xf32>
    %369 = vector.extract_strided_slice %327 {offsets = [0, 16], sizes = [8, 8], strides = [1, 1]} : vector<8x32xf32> to vector<8x8xf32>
    %cst_173 = arith.constant dense<0.000000e+00> : vector<8x8xf32>
    %370 = tpu.matmul %367, %368, %cst_173 {dimension_numbers = #tpu.dot_dimension_numbers<[1], [1], [0], [0], [0, 0, 1, 0], [], []>} : vector<8x8xf32>, vector<8x8xf32>, vector<8x8xf32> -> vector<8x8xf32>
    %371 = arith.addf %370, %10 : vector<8x8xf32>
    %cst_174 = arith.constant dense<0xFF800000> : vector<8xf32>
    %372 = vector.multi_reduction <maximumf>, %371, %cst_174 [1] : vector<8x8xf32> to vector<8xf32>
    %373 = vector.shape_cast %372 : vector<8xf32> to vector<8x1xf32>
    %374 = vector.broadcast %373 : vector<8x1xf32> to vector<8x8xf32>
    %375 = arith.subf %371, %374 : vector<8x8xf32>
    %376 = math.exp %375 : vector<8x8xf32>
    %cst_175 = arith.constant dense<0.000000e+00> : vector<8xf32>
    %377 = vector.multi_reduction <add>, %376, %cst_175 [1] : vector<8x8xf32> to vector<8xf32>
    %378 = vector.shape_cast %377 : vector<8xf32> to vector<8x1xf32>
    %379 = tpu.reciprocal %378 {approx = true} : vector<8x1xf32> -> vector<8x1xf32>
    %380 = vector.broadcast %379 : vector<8x1xf32> to vector<8x8xf32>
    %381 = arith.mulf %376, %380 : vector<8x8xf32>
    %cst_176 = arith.constant dense<0.000000e+00> : vector<8x8xf32>
    %382 = tpu.matmul %381, %369, %cst_176 {dimension_numbers = #tpu.dot_dimension_numbers<[1], [0], [0], [1], [0, 0, 1, 1], [], []>} : vector<8x8xf32>, vector<8x8xf32>, vector<8x8xf32> -> vector<8x8xf32>
    %383 = vector.extract_strided_slice %320 {offsets = [16, 0], sizes = [8, 32], strides = [1, 1]} : vector<32x32xf32> to vector<8x32xf32>
    %cst_177 = arith.constant dense<0.000000e+00> : vector<8x32xf32>
    %384 = tpu.matmul %382, %383, %cst_177 {dimension_numbers = #tpu.dot_dimension_numbers<[1], [0], [0], [1], [0, 0, 1, 1], [], []>} : vector<8x8xf32>, vector<8x32xf32>, vector<8x32xf32> -> vector<8x32xf32>
    %385 = arith.addf %366, %384 : vector<8x32xf32>
    %386 = vector.extract_strided_slice %325 {offsets = [0, 24], sizes = [8, 8], strides = [1, 1]} : vector<8x32xf32> to vector<8x8xf32>
    %387 = vector.extract_strided_slice %326 {offsets = [0, 24], sizes = [8, 8], strides = [1, 1]} : vector<8x32xf32> to vector<8x8xf32>
    %388 = vector.extract_strided_slice %327 {offsets = [0, 24], sizes = [8, 8], strides = [1, 1]} : vector<8x32xf32> to vector<8x8xf32>
    %cst_178 = arith.constant dense<0.000000e+00> : vector<8x8xf32>
    %389 = tpu.matmul %386, %387, %cst_178 {dimension_numbers = #tpu.dot_dimension_numbers<[1], [1], [0], [0], [0, 0, 1, 0], [], []>} : vector<8x8xf32>, vector<8x8xf32>, vector<8x8xf32> -> vector<8x8xf32>
    %390 = arith.addf %389, %10 : vector<8x8xf32>
    %cst_179 = arith.constant dense<0xFF800000> : vector<8xf32>
    %391 = vector.multi_reduction <maximumf>, %390, %cst_179 [1] : vector<8x8xf32> to vector<8xf32>
    %392 = vector.shape_cast %391 : vector<8xf32> to vector<8x1xf32>
    %393 = vector.broadcast %392 : vector<8x1xf32> to vector<8x8xf32>
    %394 = arith.subf %390, %393 : vector<8x8xf32>
    %395 = math.exp %394 : vector<8x8xf32>
    %cst_180 = arith.constant dense<0.000000e+00> : vector<8xf32>
    %396 = vector.multi_reduction <add>, %395, %cst_180 [1] : vector<8x8xf32> to vector<8xf32>
    %397 = vector.shape_cast %396 : vector<8xf32> to vector<8x1xf32>
    %398 = tpu.reciprocal %397 {approx = true} : vector<8x1xf32> -> vector<8x1xf32>
    %399 = vector.broadcast %398 : vector<8x1xf32> to vector<8x8xf32>
    %400 = arith.mulf %395, %399 : vector<8x8xf32>
    %cst_181 = arith.constant dense<0.000000e+00> : vector<8x8xf32>
    %401 = tpu.matmul %400, %388, %cst_181 {dimension_numbers = #tpu.dot_dimension_numbers<[1], [0], [0], [1], [0, 0, 1, 1], [], []>} : vector<8x8xf32>, vector<8x8xf32>, vector<8x8xf32> -> vector<8x8xf32>
    %402 = vector.extract_strided_slice %320 {offsets = [24, 0], sizes = [8, 32], strides = [1, 1]} : vector<32x32xf32> to vector<8x32xf32>
    %cst_182 = arith.constant dense<0.000000e+00> : vector<8x32xf32>
    %403 = tpu.matmul %401, %402, %cst_182 {dimension_numbers = #tpu.dot_dimension_numbers<[1], [0], [0], [1], [0, 0, 1, 1], [], []>} : vector<8x8xf32>, vector<8x32xf32>, vector<8x32xf32> -> vector<8x32xf32>
    %404 = arith.addf %385, %403 : vector<8x32xf32>
    %405 = vector.broadcast %322 : vector<1x32xf32> to vector<8x32xf32>
    %406 = arith.addf %404, %405 : vector<8x32xf32>
    %407 = arith.addf %406, %312 : vector<8x32xf32>
    %c1_183 = arith.constant 1 : index
    %c0_184 = arith.constant 0 : index
    %c0_185 = arith.constant 0 : index
    %408 = vector.load %arg10[%c1_183, %c0_184, %c0_185] : memref<2x1x32xf32, #tpu.memory_space<vmem>>, vector<1x1x32xf32>
    %409 = vector.shape_cast %408 : vector<1x1x32xf32> to vector<1x32xf32>
    %c1_186 = arith.constant 1 : index
    %c0_187 = arith.constant 0 : index
    %c0_188 = arith.constant 0 : index
    %410 = vector.load %arg11[%c1_186, %c0_187, %c0_188] : memref<2x1x32xf32, #tpu.memory_space<vmem>>, vector<1x1x32xf32>
    %411 = vector.shape_cast %410 : vector<1x1x32xf32> to vector<1x32xf32>
    %cst_189 = arith.constant dense<0.000000e+00> : vector<8xf32>
    %412 = vector.multi_reduction <add>, %407, %cst_189 [1] : vector<8x32xf32> to vector<8xf32>
    %413 = vector.shape_cast %412 : vector<8xf32> to vector<8x1xf32>
    %cst_190 = arith.constant 3.200000e+01 : f32
    %414 = vector.broadcast %cst_190 : f32 to vector<8x1xf32>
    %415 = arith.divf %413, %414 : vector<8x1xf32>
    %416 = vector.broadcast %415 : vector<8x1xf32> to vector<8x32xf32>
    %417 = arith.subf %407, %416 : vector<8x32xf32>
    %418 = vector.broadcast %415 : vector<8x1xf32> to vector<8x32xf32>
    %419 = arith.subf %407, %418 : vector<8x32xf32>
    %420 = arith.mulf %417, %419 : vector<8x32xf32>
    %cst_191 = arith.constant dense<0.000000e+00> : vector<8xf32>
    %421 = vector.multi_reduction <add>, %420, %cst_191 [1] : vector<8x32xf32> to vector<8xf32>
    %422 = vector.shape_cast %421 : vector<8xf32> to vector<8x1xf32>
    %cst_192 = arith.constant 3.200000e+01 : f32
    %423 = vector.broadcast %cst_192 : f32 to vector<8x1xf32>
    %424 = arith.divf %422, %423 : vector<8x1xf32>
    %425 = vector.broadcast %415 : vector<8x1xf32> to vector<8x32xf32>
    %426 = arith.subf %407, %425 : vector<8x32xf32>
    %cst_193 = arith.constant 9.99999974E-6 : f32
    %427 = vector.broadcast %cst_193 : f32 to vector<8x1xf32>
    %428 = arith.addf %424, %427 : vector<8x1xf32>
    %429 = math.rsqrt %428 : vector<8x1xf32>
    %430 = vector.broadcast %429 : vector<8x1xf32> to vector<8x32xf32>
    %431 = arith.mulf %426, %430 : vector<8x32xf32>
    %432 = vector.broadcast %409 : vector<1x32xf32> to vector<8x32xf32>
    %433 = arith.mulf %431, %432 : vector<8x32xf32>
    %434 = vector.broadcast %411 : vector<1x32xf32> to vector<8x32xf32>
    %435 = arith.addf %433, %434 : vector<8x32xf32>
    %c1_194 = arith.constant 1 : index
    %c0_195 = arith.constant 0 : index
    %c0_196 = arith.constant 0 : index
    %436 = vector.load %arg12[%c1_194, %c0_195, %c0_196] : memref<2x32x32xf32, #tpu.memory_space<vmem>>, vector<1x32x32xf32>
    %437 = vector.shape_cast %436 : vector<1x32x32xf32> to vector<32x32xf32>
    %c1_197 = arith.constant 1 : index
    %c0_198 = arith.constant 0 : index
    %c0_199 = arith.constant 0 : index
    %438 = vector.load %arg13[%c1_197, %c0_198, %c0_199] : memref<2x32x32xf32, #tpu.memory_space<vmem>>, vector<1x32x32xf32>
    %439 = vector.shape_cast %438 : vector<1x32x32xf32> to vector<32x32xf32>
    %c1_200 = arith.constant 1 : index
    %c0_201 = arith.constant 0 : index
    %c0_202 = arith.constant 0 : index
    %440 = vector.load %arg14[%c1_200, %c0_201, %c0_202] : memref<2x32x32xf32, #tpu.memory_space<vmem>>, vector<1x32x32xf32>
    %441 = vector.shape_cast %440 : vector<1x32x32xf32> to vector<32x32xf32>
    %c1_203 = arith.constant 1 : index
    %c0_204 = arith.constant 0 : index
    %c0_205 = arith.constant 0 : index
    %442 = vector.load %arg15[%c1_203, %c0_204, %c0_205] : memref<2x32x32xf32, #tpu.memory_space<vmem>>, vector<1x32x32xf32>
    %443 = vector.shape_cast %442 : vector<1x32x32xf32> to vector<32x32xf32>
    %c1_206 = arith.constant 1 : index
    %c0_207 = arith.constant 0 : index
    %c0_208 = arith.constant 0 : index
    %444 = vector.load %arg16[%c1_206, %c0_207, %c0_208] : memref<2x1x32xf32, #tpu.memory_space<vmem>>, vector<1x1x32xf32>
    %445 = vector.shape_cast %444 : vector<1x1x32xf32> to vector<1x32xf32>
    %cst_209 = arith.constant dense<0.000000e+00> : vector<8x32xf32>
    %446 = tpu.matmul %435, %437, %cst_209 {dimension_numbers = #tpu.dot_dimension_numbers<[1], [0], [0], [1], [0, 0, 1, 1], [], []>} : vector<8x32xf32>, vector<32x32xf32>, vector<8x32xf32> -> vector<8x32xf32>
    %cst_210 = arith.constant 0.176776692 : f32
    %447 = vector.broadcast %cst_210 : f32 to vector<8x32xf32>
    %448 = arith.mulf %446, %447 : vector<8x32xf32>
    %cst_211 = arith.constant dense<0.000000e+00> : vector<8x32xf32>
    %449 = tpu.matmul %3, %439, %cst_211 {dimension_numbers = #tpu.dot_dimension_numbers<[1], [0], [0], [1], [0, 0, 1, 1], [], []>} : vector<8x32xf32>, vector<32x32xf32>, vector<8x32xf32> -> vector<8x32xf32>
    %cst_212 = arith.constant dense<0.000000e+00> : vector<8x32xf32>
    %450 = tpu.matmul %3, %441, %cst_212 {dimension_numbers = #tpu.dot_dimension_numbers<[1], [0], [0], [1], [0, 0, 1, 1], [], []>} : vector<8x32xf32>, vector<32x32xf32>, vector<8x32xf32> -> vector<8x32xf32>
    %cst_213 = arith.constant 0.000000e+00 : f32
    %451 = vector.broadcast %cst_213 : f32 to vector<8x32xf32>
    %452 = vector.extract_strided_slice %448 {offsets = [0, 0], sizes = [8, 8], strides = [1, 1]} : vector<8x32xf32> to vector<8x8xf32>
    %453 = vector.extract_strided_slice %449 {offsets = [0, 0], sizes = [8, 8], strides = [1, 1]} : vector<8x32xf32> to vector<8x8xf32>
    %454 = vector.extract_strided_slice %450 {offsets = [0, 0], sizes = [8, 8], strides = [1, 1]} : vector<8x32xf32> to vector<8x8xf32>
    %cst_214 = arith.constant dense<0.000000e+00> : vector<8x8xf32>
    %455 = tpu.matmul %452, %453, %cst_214 {dimension_numbers = #tpu.dot_dimension_numbers<[1], [1], [0], [0], [0, 0, 1, 0], [], []>} : vector<8x8xf32>, vector<8x8xf32>, vector<8x8xf32> -> vector<8x8xf32>
    %456 = vector.broadcast %17 : vector<1x8xf32> to vector<8x8xf32>
    %457 = arith.addf %455, %456 : vector<8x8xf32>
    %cst_215 = arith.constant dense<0xFF800000> : vector<8xf32>
    %458 = vector.multi_reduction <maximumf>, %457, %cst_215 [1] : vector<8x8xf32> to vector<8xf32>
    %459 = vector.shape_cast %458 : vector<8xf32> to vector<8x1xf32>
    %460 = vector.broadcast %459 : vector<8x1xf32> to vector<8x8xf32>
    %461 = arith.subf %457, %460 : vector<8x8xf32>
    %462 = math.exp %461 : vector<8x8xf32>
    %cst_216 = arith.constant dense<0.000000e+00> : vector<8xf32>
    %463 = vector.multi_reduction <add>, %462, %cst_216 [1] : vector<8x8xf32> to vector<8xf32>
    %464 = vector.shape_cast %463 : vector<8xf32> to vector<8x1xf32>
    %465 = tpu.reciprocal %464 {approx = true} : vector<8x1xf32> -> vector<8x1xf32>
    %466 = vector.broadcast %465 : vector<8x1xf32> to vector<8x8xf32>
    %467 = arith.mulf %462, %466 : vector<8x8xf32>
    %cst_217 = arith.constant dense<0.000000e+00> : vector<8x8xf32>
    %468 = tpu.matmul %467, %454, %cst_217 {dimension_numbers = #tpu.dot_dimension_numbers<[1], [0], [0], [1], [0, 0, 1, 1], [], []>} : vector<8x8xf32>, vector<8x8xf32>, vector<8x8xf32> -> vector<8x8xf32>
    %469 = vector.extract_strided_slice %443 {offsets = [0, 0], sizes = [8, 32], strides = [1, 1]} : vector<32x32xf32> to vector<8x32xf32>
    %cst_218 = arith.constant dense<0.000000e+00> : vector<8x32xf32>
    %470 = tpu.matmul %468, %469, %cst_218 {dimension_numbers = #tpu.dot_dimension_numbers<[1], [0], [0], [1], [0, 0, 1, 1], [], []>} : vector<8x8xf32>, vector<8x32xf32>, vector<8x32xf32> -> vector<8x32xf32>
    %471 = arith.addf %451, %470 : vector<8x32xf32>
    %472 = vector.extract_strided_slice %448 {offsets = [0, 8], sizes = [8, 8], strides = [1, 1]} : vector<8x32xf32> to vector<8x8xf32>
    %473 = vector.extract_strided_slice %449 {offsets = [0, 8], sizes = [8, 8], strides = [1, 1]} : vector<8x32xf32> to vector<8x8xf32>
    %474 = vector.extract_strided_slice %450 {offsets = [0, 8], sizes = [8, 8], strides = [1, 1]} : vector<8x32xf32> to vector<8x8xf32>
    %cst_219 = arith.constant dense<0.000000e+00> : vector<8x8xf32>
    %475 = tpu.matmul %472, %473, %cst_219 {dimension_numbers = #tpu.dot_dimension_numbers<[1], [1], [0], [0], [0, 0, 1, 0], [], []>} : vector<8x8xf32>, vector<8x8xf32>, vector<8x8xf32> -> vector<8x8xf32>
    %476 = vector.broadcast %17 : vector<1x8xf32> to vector<8x8xf32>
    %477 = arith.addf %475, %476 : vector<8x8xf32>
    %cst_220 = arith.constant dense<0xFF800000> : vector<8xf32>
    %478 = vector.multi_reduction <maximumf>, %477, %cst_220 [1] : vector<8x8xf32> to vector<8xf32>
    %479 = vector.shape_cast %478 : vector<8xf32> to vector<8x1xf32>
    %480 = vector.broadcast %479 : vector<8x1xf32> to vector<8x8xf32>
    %481 = arith.subf %477, %480 : vector<8x8xf32>
    %482 = math.exp %481 : vector<8x8xf32>
    %cst_221 = arith.constant dense<0.000000e+00> : vector<8xf32>
    %483 = vector.multi_reduction <add>, %482, %cst_221 [1] : vector<8x8xf32> to vector<8xf32>
    %484 = vector.shape_cast %483 : vector<8xf32> to vector<8x1xf32>
    %485 = tpu.reciprocal %484 {approx = true} : vector<8x1xf32> -> vector<8x1xf32>
    %486 = vector.broadcast %485 : vector<8x1xf32> to vector<8x8xf32>
    %487 = arith.mulf %482, %486 : vector<8x8xf32>
    %cst_222 = arith.constant dense<0.000000e+00> : vector<8x8xf32>
    %488 = tpu.matmul %487, %474, %cst_222 {dimension_numbers = #tpu.dot_dimension_numbers<[1], [0], [0], [1], [0, 0, 1, 1], [], []>} : vector<8x8xf32>, vector<8x8xf32>, vector<8x8xf32> -> vector<8x8xf32>
    %489 = vector.extract_strided_slice %443 {offsets = [8, 0], sizes = [8, 32], strides = [1, 1]} : vector<32x32xf32> to vector<8x32xf32>
    %cst_223 = arith.constant dense<0.000000e+00> : vector<8x32xf32>
    %490 = tpu.matmul %488, %489, %cst_223 {dimension_numbers = #tpu.dot_dimension_numbers<[1], [0], [0], [1], [0, 0, 1, 1], [], []>} : vector<8x8xf32>, vector<8x32xf32>, vector<8x32xf32> -> vector<8x32xf32>
    %491 = arith.addf %471, %490 : vector<8x32xf32>
    %492 = vector.extract_strided_slice %448 {offsets = [0, 16], sizes = [8, 8], strides = [1, 1]} : vector<8x32xf32> to vector<8x8xf32>
    %493 = vector.extract_strided_slice %449 {offsets = [0, 16], sizes = [8, 8], strides = [1, 1]} : vector<8x32xf32> to vector<8x8xf32>
    %494 = vector.extract_strided_slice %450 {offsets = [0, 16], sizes = [8, 8], strides = [1, 1]} : vector<8x32xf32> to vector<8x8xf32>
    %cst_224 = arith.constant dense<0.000000e+00> : vector<8x8xf32>
    %495 = tpu.matmul %492, %493, %cst_224 {dimension_numbers = #tpu.dot_dimension_numbers<[1], [1], [0], [0], [0, 0, 1, 0], [], []>} : vector<8x8xf32>, vector<8x8xf32>, vector<8x8xf32> -> vector<8x8xf32>
    %496 = vector.broadcast %17 : vector<1x8xf32> to vector<8x8xf32>
    %497 = arith.addf %495, %496 : vector<8x8xf32>
    %cst_225 = arith.constant dense<0xFF800000> : vector<8xf32>
    %498 = vector.multi_reduction <maximumf>, %497, %cst_225 [1] : vector<8x8xf32> to vector<8xf32>
    %499 = vector.shape_cast %498 : vector<8xf32> to vector<8x1xf32>
    %500 = vector.broadcast %499 : vector<8x1xf32> to vector<8x8xf32>
    %501 = arith.subf %497, %500 : vector<8x8xf32>
    %502 = math.exp %501 : vector<8x8xf32>
    %cst_226 = arith.constant dense<0.000000e+00> : vector<8xf32>
    %503 = vector.multi_reduction <add>, %502, %cst_226 [1] : vector<8x8xf32> to vector<8xf32>
    %504 = vector.shape_cast %503 : vector<8xf32> to vector<8x1xf32>
    %505 = tpu.reciprocal %504 {approx = true} : vector<8x1xf32> -> vector<8x1xf32>
    %506 = vector.broadcast %505 : vector<8x1xf32> to vector<8x8xf32>
    %507 = arith.mulf %502, %506 : vector<8x8xf32>
    %cst_227 = arith.constant dense<0.000000e+00> : vector<8x8xf32>
    %508 = tpu.matmul %507, %494, %cst_227 {dimension_numbers = #tpu.dot_dimension_numbers<[1], [0], [0], [1], [0, 0, 1, 1], [], []>} : vector<8x8xf32>, vector<8x8xf32>, vector<8x8xf32> -> vector<8x8xf32>
    %509 = vector.extract_strided_slice %443 {offsets = [16, 0], sizes = [8, 32], strides = [1, 1]} : vector<32x32xf32> to vector<8x32xf32>
    %cst_228 = arith.constant dense<0.000000e+00> : vector<8x32xf32>
    %510 = tpu.matmul %508, %509, %cst_228 {dimension_numbers = #tpu.dot_dimension_numbers<[1], [0], [0], [1], [0, 0, 1, 1], [], []>} : vector<8x8xf32>, vector<8x32xf32>, vector<8x32xf32> -> vector<8x32xf32>
    %511 = arith.addf %491, %510 : vector<8x32xf32>
    %512 = vector.extract_strided_slice %448 {offsets = [0, 24], sizes = [8, 8], strides = [1, 1]} : vector<8x32xf32> to vector<8x8xf32>
    %513 = vector.extract_strided_slice %449 {offsets = [0, 24], sizes = [8, 8], strides = [1, 1]} : vector<8x32xf32> to vector<8x8xf32>
    %514 = vector.extract_strided_slice %450 {offsets = [0, 24], sizes = [8, 8], strides = [1, 1]} : vector<8x32xf32> to vector<8x8xf32>
    %cst_229 = arith.constant dense<0.000000e+00> : vector<8x8xf32>
    %515 = tpu.matmul %512, %513, %cst_229 {dimension_numbers = #tpu.dot_dimension_numbers<[1], [1], [0], [0], [0, 0, 1, 0], [], []>} : vector<8x8xf32>, vector<8x8xf32>, vector<8x8xf32> -> vector<8x8xf32>
    %516 = vector.broadcast %17 : vector<1x8xf32> to vector<8x8xf32>
    %517 = arith.addf %515, %516 : vector<8x8xf32>
    %cst_230 = arith.constant dense<0xFF800000> : vector<8xf32>
    %518 = vector.multi_reduction <maximumf>, %517, %cst_230 [1] : vector<8x8xf32> to vector<8xf32>
    %519 = vector.shape_cast %518 : vector<8xf32> to vector<8x1xf32>
    %520 = vector.broadcast %519 : vector<8x1xf32> to vector<8x8xf32>
    %521 = arith.subf %517, %520 : vector<8x8xf32>
    %522 = math.exp %521 : vector<8x8xf32>
    %cst_231 = arith.constant dense<0.000000e+00> : vector<8xf32>
    %523 = vector.multi_reduction <add>, %522, %cst_231 [1] : vector<8x8xf32> to vector<8xf32>
    %524 = vector.shape_cast %523 : vector<8xf32> to vector<8x1xf32>
    %525 = tpu.reciprocal %524 {approx = true} : vector<8x1xf32> -> vector<8x1xf32>
    %526 = vector.broadcast %525 : vector<8x1xf32> to vector<8x8xf32>
    %527 = arith.mulf %522, %526 : vector<8x8xf32>
    %cst_232 = arith.constant dense<0.000000e+00> : vector<8x8xf32>
    %528 = tpu.matmul %527, %514, %cst_232 {dimension_numbers = #tpu.dot_dimension_numbers<[1], [0], [0], [1], [0, 0, 1, 1], [], []>} : vector<8x8xf32>, vector<8x8xf32>, vector<8x8xf32> -> vector<8x8xf32>
    %529 = vector.extract_strided_slice %443 {offsets = [24, 0], sizes = [8, 32], strides = [1, 1]} : vector<32x32xf32> to vector<8x32xf32>
    %cst_233 = arith.constant dense<0.000000e+00> : vector<8x32xf32>
    %530 = tpu.matmul %528, %529, %cst_233 {dimension_numbers = #tpu.dot_dimension_numbers<[1], [0], [0], [1], [0, 0, 1, 1], [], []>} : vector<8x8xf32>, vector<8x32xf32>, vector<8x32xf32> -> vector<8x32xf32>
    %531 = arith.addf %511, %530 : vector<8x32xf32>
    %532 = vector.broadcast %445 : vector<1x32xf32> to vector<8x32xf32>
    %533 = arith.addf %531, %532 : vector<8x32xf32>
    %534 = arith.addf %533, %435 : vector<8x32xf32>
    %c1_234 = arith.constant 1 : index
    %c0_235 = arith.constant 0 : index
    %c0_236 = arith.constant 0 : index
    %535 = vector.load %arg17[%c1_234, %c0_235, %c0_236] : memref<2x1x32xf32, #tpu.memory_space<vmem>>, vector<1x1x32xf32>
    %536 = vector.shape_cast %535 : vector<1x1x32xf32> to vector<1x32xf32>
    %c1_237 = arith.constant 1 : index
    %c0_238 = arith.constant 0 : index
    %c0_239 = arith.constant 0 : index
    %537 = vector.load %arg18[%c1_237, %c0_238, %c0_239] : memref<2x1x32xf32, #tpu.memory_space<vmem>>, vector<1x1x32xf32>
    %538 = vector.shape_cast %537 : vector<1x1x32xf32> to vector<1x32xf32>
    %cst_240 = arith.constant dense<0.000000e+00> : vector<8xf32>
    %539 = vector.multi_reduction <add>, %534, %cst_240 [1] : vector<8x32xf32> to vector<8xf32>
    %540 = vector.shape_cast %539 : vector<8xf32> to vector<8x1xf32>
    %cst_241 = arith.constant 3.200000e+01 : f32
    %541 = vector.broadcast %cst_241 : f32 to vector<8x1xf32>
    %542 = arith.divf %540, %541 : vector<8x1xf32>
    %543 = vector.broadcast %542 : vector<8x1xf32> to vector<8x32xf32>
    %544 = arith.subf %534, %543 : vector<8x32xf32>
    %545 = vector.broadcast %542 : vector<8x1xf32> to vector<8x32xf32>
    %546 = arith.subf %534, %545 : vector<8x32xf32>
    %547 = arith.mulf %544, %546 : vector<8x32xf32>
    %cst_242 = arith.constant dense<0.000000e+00> : vector<8xf32>
    %548 = vector.multi_reduction <add>, %547, %cst_242 [1] : vector<8x32xf32> to vector<8xf32>
    %549 = vector.shape_cast %548 : vector<8xf32> to vector<8x1xf32>
    %cst_243 = arith.constant 3.200000e+01 : f32
    %550 = vector.broadcast %cst_243 : f32 to vector<8x1xf32>
    %551 = arith.divf %549, %550 : vector<8x1xf32>
    %552 = vector.broadcast %542 : vector<8x1xf32> to vector<8x32xf32>
    %553 = arith.subf %534, %552 : vector<8x32xf32>
    %cst_244 = arith.constant 9.99999974E-6 : f32
    %554 = vector.broadcast %cst_244 : f32 to vector<8x1xf32>
    %555 = arith.addf %551, %554 : vector<8x1xf32>
    %556 = math.rsqrt %555 : vector<8x1xf32>
    %557 = vector.broadcast %556 : vector<8x1xf32> to vector<8x32xf32>
    %558 = arith.mulf %553, %557 : vector<8x32xf32>
    %559 = vector.broadcast %536 : vector<1x32xf32> to vector<8x32xf32>
    %560 = arith.mulf %558, %559 : vector<8x32xf32>
    %561 = vector.broadcast %538 : vector<1x32xf32> to vector<8x32xf32>
    %562 = arith.addf %560, %561 : vector<8x32xf32>
    %c1_245 = arith.constant 1 : index
    %c0_246 = arith.constant 0 : index
    %c0_247 = arith.constant 0 : index
    %563 = vector.load %arg19[%c1_245, %c0_246, %c0_247] : memref<2x32x64xf32, #tpu.memory_space<vmem>>, vector<1x32x64xf32>
    %564 = vector.shape_cast %563 : vector<1x32x64xf32> to vector<32x64xf32>
    %cst_248 = arith.constant dense<0.000000e+00> : vector<8x64xf32>
    %565 = tpu.matmul %562, %564, %cst_248 {dimension_numbers = #tpu.dot_dimension_numbers<[1], [0], [0], [1], [0, 0, 1, 1], [], []>} : vector<8x32xf32>, vector<32x64xf32>, vector<8x64xf32> -> vector<8x64xf32>
    %c1_249 = arith.constant 1 : index
    %c0_250 = arith.constant 0 : index
    %c0_251 = arith.constant 0 : index
    %566 = vector.load %arg20[%c1_249, %c0_250, %c0_251] : memref<2x1x64xf32, #tpu.memory_space<vmem>>, vector<1x1x64xf32>
    %567 = vector.shape_cast %566 : vector<1x1x64xf32> to vector<1x64xf32>
    %568 = vector.broadcast %567 : vector<1x64xf32> to vector<8x64xf32>
    %569 = arith.addf %565, %568 : vector<8x64xf32>
    %cst_252 = arith.constant 0.000000e+00 : f32
    %570 = vector.broadcast %cst_252 : f32 to vector<8x64xf32>
    %571 = arith.maximumf %569, %570 : vector<8x64xf32>
    %c1_253 = arith.constant 1 : index
    %c0_254 = arith.constant 0 : index
    %c0_255 = arith.constant 0 : index
    %572 = vector.load %arg21[%c1_253, %c0_254, %c0_255] : memref<2x64x32xf32, #tpu.memory_space<vmem>>, vector<1x64x32xf32>
    %573 = vector.shape_cast %572 : vector<1x64x32xf32> to vector<64x32xf32>
    %cst_256 = arith.constant dense<0.000000e+00> : vector<8x32xf32>
    %574 = tpu.matmul %571, %573, %cst_256 {dimension_numbers = #tpu.dot_dimension_numbers<[1], [0], [0], [1], [0, 0, 1, 1], [], []>} : vector<8x64xf32>, vector<64x32xf32>, vector<8x32xf32> -> vector<8x32xf32>
    %c1_257 = arith.constant 1 : index
    %c0_258 = arith.constant 0 : index
    %c0_259 = arith.constant 0 : index
    %575 = vector.load %arg22[%c1_257, %c0_258, %c0_259] : memref<2x1x32xf32, #tpu.memory_space<vmem>>, vector<1x1x32xf32>
    %576 = vector.shape_cast %575 : vector<1x1x32xf32> to vector<1x32xf32>
    %577 = vector.broadcast %576 : vector<1x32xf32> to vector<8x32xf32>
    %578 = arith.addf %574, %577 : vector<8x32xf32>
    %579 = arith.addf %578, %562 : vector<8x32xf32>
    %c1_260 = arith.constant 1 : index
    %c0_261 = arith.constant 0 : index
    %c0_262 = arith.constant 0 : index
    %580 = vector.load %arg23[%c1_260, %c0_261, %c0_262] : memref<2x1x32xf32, #tpu.memory_space<vmem>>, vector<1x1x32xf32>
    %581 = vector.shape_cast %580 : vector<1x1x32xf32> to vector<1x32xf32>
    %c1_263 = arith.constant 1 : index
    %c0_264 = arith.constant 0 : index
    %c0_265 = arith.constant 0 : index
    %582 = vector.load %arg24[%c1_263, %c0_264, %c0_265] : memref<2x1x32xf32, #tpu.memory_space<vmem>>, vector<1x1x32xf32>
    %583 = vector.shape_cast %582 : vector<1x1x32xf32> to vector<1x32xf32>
    %cst_266 = arith.constant dense<0.000000e+00> : vector<8xf32>
    %584 = vector.multi_reduction <add>, %579, %cst_266 [1] : vector<8x32xf32> to vector<8xf32>
    %585 = vector.shape_cast %584 : vector<8xf32> to vector<8x1xf32>
    %cst_267 = arith.constant 3.200000e+01 : f32
    %586 = vector.broadcast %cst_267 : f32 to vector<8x1xf32>
    %587 = arith.divf %585, %586 : vector<8x1xf32>
    %588 = vector.broadcast %587 : vector<8x1xf32> to vector<8x32xf32>
    %589 = arith.subf %579, %588 : vector<8x32xf32>
    %590 = vector.broadcast %587 : vector<8x1xf32> to vector<8x32xf32>
    %591 = arith.subf %579, %590 : vector<8x32xf32>
    %592 = arith.mulf %589, %591 : vector<8x32xf32>
    %cst_268 = arith.constant dense<0.000000e+00> : vector<8xf32>
    %593 = vector.multi_reduction <add>, %592, %cst_268 [1] : vector<8x32xf32> to vector<8xf32>
    %594 = vector.shape_cast %593 : vector<8xf32> to vector<8x1xf32>
    %cst_269 = arith.constant 3.200000e+01 : f32
    %595 = vector.broadcast %cst_269 : f32 to vector<8x1xf32>
    %596 = arith.divf %594, %595 : vector<8x1xf32>
    %597 = vector.broadcast %587 : vector<8x1xf32> to vector<8x32xf32>
    %598 = arith.subf %579, %597 : vector<8x32xf32>
    %cst_270 = arith.constant 9.99999974E-6 : f32
    %599 = vector.broadcast %cst_270 : f32 to vector<8x1xf32>
    %600 = arith.addf %596, %599 : vector<8x1xf32>
    %601 = math.rsqrt %600 : vector<8x1xf32>
    %602 = vector.broadcast %601 : vector<8x1xf32> to vector<8x32xf32>
    %603 = arith.mulf %598, %602 : vector<8x32xf32>
    %604 = vector.broadcast %581 : vector<1x32xf32> to vector<8x32xf32>
    %605 = arith.mulf %603, %604 : vector<8x32xf32>
    %606 = vector.broadcast %583 : vector<1x32xf32> to vector<8x32xf32>
    %607 = arith.addf %605, %606 : vector<8x32xf32>
    %c0_271 = arith.constant 0 : index
    %c0_272 = arith.constant 0 : index
    %608 = vector.load %arg25[%c0_271, %c0_272] : memref<32x128xf32, #tpu.memory_space<vmem>>, vector<32x128xf32>
    %cst_273 = arith.constant dense<0.000000e+00> : vector<8x128xf32>
    %609 = tpu.matmul %607, %608, %cst_273 {dimension_numbers = #tpu.dot_dimension_numbers<[1], [0], [0], [1], [0, 0, 1, 1], [], []>} : vector<8x32xf32>, vector<32x128xf32>, vector<8x128xf32> -> vector<8x128xf32>
    %c0_274 = arith.constant 0 : index
    %c0_275 = arith.constant 0 : index
    %610 = vector.load %arg26[%c0_274, %c0_275] : memref<1x128xf32, #tpu.memory_space<vmem>>, vector<1x128xf32>
    %611 = vector.broadcast %610 : vector<1x128xf32> to vector<8x128xf32>
    %612 = arith.addf %609, %611 : vector<8x128xf32>
    %c0_276 = arith.constant 0 : index
    %c0_277 = arith.constant 0 : index
    %c0_278 = arith.constant 0 : index
    %613 = vector.load %arg27[%c0_276, %c0_277, %c0_278] : memref<1x8x128xf32, #tpu.memory_space<vmem>>, vector<1x8x128xf32>
    %614 = vector.shape_cast %613 : vector<1x8x128xf32> to vector<8x128xf32>
    %615 = vector.shape_cast %612 : vector<8x128xf32> to vector<1x8x128xf32>
    tpu.vector_store %arg27[%c0_276, %c0_277, %c0_278], %615 {strides = array<i32>} : memref<1x8x128xf32, #tpu.memory_space<vmem>>, vector<1x8x128xf32>,
    return
  }
  func.func @transform_0(%arg0: i32) -> (i32, i32, i32) {
    %c0_i32 = arith.constant 0 : i32
    %c0_i32_0 = arith.constant 0 : i32
    %c0_i32_1 = arith.constant 0 : i32
    return %arg0, %c0_i32, %c0_i32_0 : i32, i32, i32
  }
  func.func @transform_1(%arg0: i32) -> (i32, i32, i32) {
    %c0_i32 = arith.constant 0 : i32
    %c0_i32_0 = arith.constant 0 : i32
    %c0_i32_1 = arith.constant 0 : i32
    return %arg0, %c0_i32, %c0_i32_0 : i32, i32, i32
  }
  func.func @transform_2(%arg0: i32) -> (i32, i32, i32) {
    %c0_i32 = arith.constant 0 : i32
    %c0_i32_0 = arith.constant 0 : i32
    %c0_i32_1 = arith.constant 0 : i32
    return %arg0, %c0_i32, %c0_i32_0 : i32, i32, i32
  }
  func.func @transform_3(%arg0: i32) -> (i32, i32, i32) {
    %c0_i32 = arith.constant 0 : i32
    %c0_i32_0 = arith.constant 0 : i32
    %c0_i32_1 = arith.constant 0 : i32
    return %arg0, %c0_i32, %c0_i32_0 : i32, i32, i32
  }
  func.func @transform_4(%arg0: i32) -> (i32, i32, i32) {
    %c0_i32 = arith.constant 0 : i32
    %c0_i32_0 = arith.constant 0 : i32
    %c0_i32_1 = arith.constant 0 : i32
    %c0_i32_2 = arith.constant 0 : i32
    return %c0_i32, %c0_i32_0, %c0_i32_1 : i32, i32, i32
  }
  func.func @transform_5(%arg0: i32) -> (i32, i32, i32) {
    %c0_i32 = arith.constant 0 : i32
    %c0_i32_0 = arith.constant 0 : i32
    %c0_i32_1 = arith.constant 0 : i32
    %c0_i32_2 = arith.constant 0 : i32
    return %c0_i32, %c0_i32_0, %c0_i32_1 : i32, i32, i32
  }
  func.func @transform_6(%arg0: i32) -> (i32, i32, i32) {
    %c0_i32 = arith.constant 0 : i32
    %c0_i32_0 = arith.constant 0 : i32
    %c0_i32_1 = arith.constant 0 : i32
    %c0_i32_2 = arith.constant 0 : i32
    return %c0_i32, %c0_i32_0, %c0_i32_1 : i32, i32, i32
  }
  func.func @transform_7(%arg0: i32) -> (i32, i32, i32) {
    %c0_i32 = arith.constant 0 : i32
    %c0_i32_0 = arith.constant 0 : i32
    %c0_i32_1 = arith.constant 0 : i32
    %c0_i32_2 = arith.constant 0 : i32
    return %c0_i32, %c0_i32_0, %c0_i32_1 : i32, i32, i32
  }
  func.func @transform_8(%arg0: i32) -> (i32, i32, i32) {
    %c0_i32 = arith.constant 0 : i32
    %c0_i32_0 = arith.constant 0 : i32
    %c0_i32_1 = arith.constant 0 : i32
    %c0_i32_2 = arith.constant 0 : i32
    return %c0_i32, %c0_i32_0, %c0_i32_1 : i32, i32, i32
  }
  func.func @transform_9(%arg0: i32) -> (i32, i32, i32) {
    %c0_i32 = arith.constant 0 : i32
    %c0_i32_0 = arith.constant 0 : i32
    %c0_i32_1 = arith.constant 0 : i32
    %c0_i32_2 = arith.constant 0 : i32
    return %c0_i32, %c0_i32_0, %c0_i32_1 : i32, i32, i32
  }
  func.func @transform_10(%arg0: i32) -> (i32, i32, i32) {
    %c0_i32 = arith.constant 0 : i32
    %c0_i32_0 = arith.constant 0 : i32
    %c0_i32_1 = arith.constant 0 : i32
    %c0_i32_2 = arith.constant 0 : i32
    return %c0_i32, %c0_i32_0, %c0_i32_1 : i32, i32, i32
  }
  func.func @transform_11(%arg0: i32) -> (i32, i32, i32) {
    %c0_i32 = arith.constant 0 : i32
    %c0_i32_0 = arith.constant 0 : i32
    %c0_i32_1 = arith.constant 0 : i32
    %c0_i32_2 = arith.constant 0 : i32
    return %c0_i32, %c0_i32_0, %c0_i32_1 : i32, i32, i32
  }
  func.func @transform_12(%arg0: i32) -> (i32, i32, i32) {
    %c0_i32 = arith.constant 0 : i32
    %c0_i32_0 = arith.constant 0 : i32
    %c0_i32_1 = arith.constant 0 : i32
    %c0_i32_2 = arith.constant 0 : i32
    return %c0_i32, %c0_i32_0, %c0_i32_1 : i32, i32, i32
  }
  func.func @transform_13(%arg0: i32) -> (i32, i32, i32) {
    %c0_i32 = arith.constant 0 : i32
    %c0_i32_0 = arith.constant 0 : i32
    %c0_i32_1 = arith.constant 0 : i32
    %c0_i32_2 = arith.constant 0 : i32
    return %c0_i32, %c0_i32_0, %c0_i32_1 : i32, i32, i32
  }
  func.func @transform_14(%arg0: i32) -> (i32, i32, i32) {
    %c0_i32 = arith.constant 0 : i32
    %c0_i32_0 = arith.constant 0 : i32
    %c0_i32_1 = arith.constant 0 : i32
    %c0_i32_2 = arith.constant 0 : i32
    return %c0_i32, %c0_i32_0, %c0_i32_1 : i32, i32, i32
  }
  func.func @transform_15(%arg0: i32) -> (i32, i32, i32) {
    %c0_i32 = arith.constant 0 : i32
    %c0_i32_0 = arith.constant 0 : i32
    %c0_i32_1 = arith.constant 0 : i32
    %c0_i32_2 = arith.constant 0 : i32
    return %c0_i32, %c0_i32_0, %c0_i32_1 : i32, i32, i32
  }
  func.func @transform_16(%arg0: i32) -> (i32, i32, i32) {
    %c0_i32 = arith.constant 0 : i32
    %c0_i32_0 = arith.constant 0 : i32
    %c0_i32_1 = arith.constant 0 : i32
    %c0_i32_2 = arith.constant 0 : i32
    return %c0_i32, %c0_i32_0, %c0_i32_1 : i32, i32, i32
  }
  func.func @transform_17(%arg0: i32) -> (i32, i32, i32) {
    %c0_i32 = arith.constant 0 : i32
    %c0_i32_0 = arith.constant 0 : i32
    %c0_i32_1 = arith.constant 0 : i32
    %c0_i32_2 = arith.constant 0 : i32
    return %c0_i32, %c0_i32_0, %c0_i32_1 : i32, i32, i32
  }
  func.func @transform_18(%arg0: i32) -> (i32, i32, i32) {
    %c0_i32 = arith.constant 0 : i32
    %c0_i32_0 = arith.constant 0 : i32
    %c0_i32_1 = arith.constant 0 : i32
    %c0_i32_2 = arith.constant 0 : i32
    return %c0_i32, %c0_i32_0, %c0_i32_1 : i32, i32, i32
  }
  func.func @transform_19(%arg0: i32) -> (i32, i32, i32) {
    %c0_i32 = arith.constant 0 : i32
    %c0_i32_0 = arith.constant 0 : i32
    %c0_i32_1 = arith.constant 0 : i32
    %c0_i32_2 = arith.constant 0 : i32
    return %c0_i32, %c0_i32_0, %c0_i32_1 : i32, i32, i32
  }
  func.func @transform_20(%arg0: i32) -> (i32, i32, i32) {
    %c0_i32 = arith.constant 0 : i32
    %c0_i32_0 = arith.constant 0 : i32
    %c0_i32_1 = arith.constant 0 : i32
    %c0_i32_2 = arith.constant 0 : i32
    return %c0_i32, %c0_i32_0, %c0_i32_1 : i32, i32, i32
  }
  func.func @transform_21(%arg0: i32) -> (i32, i32, i32) {
    %c0_i32 = arith.constant 0 : i32
    %c0_i32_0 = arith.constant 0 : i32
    %c0_i32_1 = arith.constant 0 : i32
    %c0_i32_2 = arith.constant 0 : i32
    return %c0_i32, %c0_i32_0, %c0_i32_1 : i32, i32, i32
  }
  func.func @transform_22(%arg0: i32) -> (i32, i32, i32) {
    %c0_i32 = arith.constant 0 : i32
    %c0_i32_0 = arith.constant 0 : i32
    %c0_i32_1 = arith.constant 0 : i32
    %c0_i32_2 = arith.constant 0 : i32
    return %c0_i32, %c0_i32_0, %c0_i32_1 : i32, i32, i32
  }
  func.func @transform_23(%arg0: i32) -> (i32, i32, i32) {
    %c0_i32 = arith.constant 0 : i32
    %c0_i32_0 = arith.constant 0 : i32
    %c0_i32_1 = arith.constant 0 : i32
    %c0_i32_2 = arith.constant 0 : i32
    return %c0_i32, %c0_i32_0, %c0_i32_1 : i32, i32, i32
  }
  func.func @transform_24(%arg0: i32) -> (i32, i32) {
    %c0_i32 = arith.constant 0 : i32
    %c0_i32_0 = arith.constant 0 : i32
    %c0_i32_1 = arith.constant 0 : i32
    return %c0_i32, %c0_i32_0 : i32, i32
  }
  func.func @transform_25(%arg0: i32) -> (i32, i32) {
    %c0_i32 = arith.constant 0 : i32
    %c0_i32_0 = arith.constant 0 : i32
    %c0_i32_1 = arith.constant 0 : i32
    return %c0_i32, %c0_i32_0 : i32, i32
  }
  func.func @transform_26(%arg0: i32) -> (i32, i32, i32) {
    %c0_i32 = arith.constant 0 : i32
    %c0_i32_0 = arith.constant 0 : i32
    %c0_i32_1 = arith.constant 0 : i32
    return %arg0, %c0_i32, %c0_i32_0 : i32, i32, i32
  }
}

</mosaic_0001>

<llo_original>
// kernel: tpu_custom_call.1
$region0: #{tpu_custom_call.1}
  #allocation0 [shape = 'u32[]', space=smem, size = 0x4, offset = 0x4, fixed_abs, tag = 'smem constant byte address 0x4 - core index']
  #allocation1 [shape = 'u32[144,128]{1,0:T(1,128)}', space=vmem, size = 0x12000, scoped, tag = 'internal scratch']
  %s0 = inlined_call_operand.hbm [shape: f32[2,8,8], index: 0, kind: input, shape index: {}]
  %s1 = inlined_call_operand.vmem [shape: f32[2,1,8], index: 1, kind: input, shape index: {}]
  %s2 = inlined_call_operand.hbm [shape: f32[2,8,32], index: 2, kind: input, shape index: {}]
  %s3 = inlined_call_operand.hbm [shape: f32[2,8,32], index: 3, kind: input, shape index: {}]
  %s4 = inlined_call_operand.vmem [shape: f32[2,32,32], index: 4, kind: input, shape index: {}]
  %s5 = inlined_call_operand.vmem [shape: f32[2,32,32], index: 5, kind: input, shape index: {}]
  %s6 = inlined_call_operand.vmem [shape: f32[2,32,32], index: 6, kind: input, shape index: {}]
  %s7 = inlined_call_operand.hbm [shape: f32[2,32,32], index: 7, kind: input, shape index: {}]
  %s8 = inlined_call_operand.vmem [shape: f32[2,1,32], index: 8, kind: input, shape index: {}]
  %s9 = inlined_call_operand.vmem [shape: f32[2,1,32], index: 9, kind: input, shape index: {}]
  %s10 = inlined_call_operand.vmem [shape: f32[2,1,32], index: 10, kind: input, shape index: {}]
  %s11 = inlined_call_operand.hbm [shape: f32[2,32,32], index: 11, kind: input, shape index: {}]
  %s12 = inlined_call_operand.hbm [shape: f32[2,32,32], index: 12, kind: input, shape index: {}]
  %s13 = inlined_call_operand.hbm [shape: f32[2,32,32], index: 13, kind: input, shape index: {}]
  %s14 = inlined_call_operand.hbm [shape: f32[2,32,32], index: 14, kind: input, shape index: {}]
  %s15 = inlined_call_operand.vmem [shape: f32[2,1,32], index: 15, kind: input, shape index: {}]
  %s16 = inlined_call_operand.hbm [shape: f32[2,1,32], index: 16, kind: input, shape index: {}]
  %s17 = inlined_call_operand.hbm [shape: f32[2,1,32], index: 17, kind: input, shape index: {}]
  %s18 = inlined_call_operand.hbm [shape: f32[2,32,64], index: 18, kind: input, shape index: {}]
  %s19 = inlined_call_operand.hbm [shape: f32[2,1,64], index: 19, kind: input, shape index: {}]
  %s20 = inlined_call_operand.vmem [shape: f32[2,64,32], index: 20, kind: input, shape index: {}]
  %s21 = inlined_call_operand.vmem [shape: f32[2,1,32], index: 21, kind: input, shape index: {}]
  %s22 = inlined_call_operand.vmem [shape: f32[2,1,32], index: 22, kind: input, shape index: {}]
  %s23 = inlined_call_operand.vmem [shape: f32[2,1,32], index: 23, kind: input, shape index: {}]
  %s24 = inlined_call_operand.hbm [shape: f32[32,128], index: 24, kind: input, shape index: {}]
  %s25 = inlined_call_operand.vmem [shape: f32[1,128], index: 25, kind: input, shape index: {}]
  %s26 = inlined_call_operand.hbm [shape: f32[2,8,128], index: 26, kind: output, shape index: {}]
  %s27 = sld [smem:[#allocation0]]
  $region189: #{tpu_custom_call.1} parent=0
    _
  %s29 = ssub.s32 1, %s27
  %s30 = scalar_select 0, %s29, %s27
  $region1: #{tpu_custom_call.1} parent=0
    #allocation2 [shape = 'u8[8192]{0}', space=vmem, size = 0x2000, scoped, tag = 'input window, operand 0']
    #allocation3 [shape = 's32[2]{0}', space=sflag, size = 0x8, scoped, tag = 'scoped memory for tpu_custom_call.1']
    #allocation4 [shape = 's32[2]{0}', space=sflag, size = 0x8, scoped, tag = 'scoped memory for tpu_custom_call.1']
    #allocation5 [shape = 'u8[8192]{0}', space=vmem, size = 0x2000, scoped, tag = 'input window, operand 2']
    #allocation6 [shape = 's32[2]{0}', space=sflag, size = 0x8, scoped, tag = 'scoped memory for tpu_custom_call.1']
    #allocation7 [shape = 'u8[8192]{0}', space=vmem, size = 0x2000, scoped, tag = 'input window, operand 3']
    #allocation8 [shape = 'u8[32768]{0}', space=vmem, size = 0x8000, scoped, tag = 'input window, operand 7, single buffered']
    #allocation9 [shape = 's32[1]{0}', space=sflag, size = 0x4, scoped, tag = 'scoped memory for tpu_custom_call.1']
    #allocation10 [shape = 'u8[32768]{0}', space=vmem, size = 0x8000, scoped, tag = 'input window, operand 11, single buffered']
    #allocation11 [shape = 'u8[32768]{0}', space=vmem, size = 0x8000, scoped, tag = 'input window, operand 12, single buffered']
    #allocation12 [shape = 's32[1]{0}', space=sflag, size = 0x4, scoped, tag = 'scoped memory for tpu_custom_call.1']
    #allocation13 [shape = 'u8[32768]{0}', space=vmem, size = 0x8000, scoped, tag = 'input window, operand 13, single buffered']
    #allocation14 [shape = 'u8[32768]{0}', space=vmem, size = 0x8000, scoped, tag = 'input window, operand 14, single buffered']
    #allocation15 [shape = 's32[1]{0}', space=sflag, size = 0x4, scoped, tag = 'scoped memory for tpu_custom_call.1']
    #allocation16 [shape = 'u8[1024]{0}', space=vmem, size = 0x400, scoped, tag = 'input window, operand 16, single buffered']
    #allocation17 [shape = 'u8[1024]{0}', space=vmem, size = 0x400, scoped, tag = 'input window, operand 17, single buffered']
    #allocation18 [shape = 's32[1]{0}', space=sflag, size = 0x4, scoped, tag = 'scoped memory for tpu_custom_call.1']
    #allocation19 [shape = 'u8[32768]{0}', space=vmem, size = 0x8000, scoped, tag = 'input window, operand 18, single buffered']
    #allocation20 [shape = 'u8[1024]{0}', space=vmem, size = 0x400, scoped, tag = 'input window, operand 19, single buffered']
    #allocation21 [shape = 's32[1]{0}', space=sflag, size = 0x4, scoped, tag = 'scoped memory for tpu_custom_call.1']
    #allocation22 [shape = 'u8[16384]{0}', space=vmem, size = 0x4000, scoped, tag = 'input window, operand 24, single buffered']
    #allocation23 [shape = 'u8[8192]{0}', space=vmem, size = 0x2000, scoped, tag = 'output window, operand 0']
    %31 = vsyncpa [#allocation3], 0
    %s32 = scalar_lea.sflag [#allocation3], 1
    %33 = vsyncpa %s32, 0
    %34 = vsyncpa [#allocation6], 0
    %s35 = scalar_lea.sflag [#allocation6], 1
    %36 = vsyncpa %s35, 0
    %37 = vsyncpa [#allocation9], 0
    %38 = vsyncpa [#allocation12], 0
    %39 = vsyncpa [#allocation15], 0
    %40 = vsyncpa [#allocation18], 0
    %41 = vsyncpa [#allocation21], 0
    %42 = vsyncpa [#allocation4], 0
    %s43 = scalar_lea.sflag [#allocation4], 1
    %44 = vsyncpa %s43, 0
    loop: start=0, step=1, limit=4
    $region2: #{tpu_custom_call.1} parent=1 // loop_pre_header
      _
    $region3: #{tpu_custom_call.1} parent=1 // loop_header
      %s46 = sphi 0, %s50
      %p47 = scmp.ge.s32.totalorder %s46, 4
      %s56 = sphi 0, %s58
      %s59 = sphi 0, %s56
      %s60 = sphi 0, %s59
      %s76 = sphi 0, %s60
      %s82 = sphi 0, %s84
      %s85 = sphi 0, %s82
      %s86 = sphi 0, %s85
      %s102 = sphi 0, %s86
      %s108 = sphi 0, %s110
      %s111 = sphi 0, %s108
      %s112 = sphi 0, %s111
      %s128 = sphi 0, %s112
      %s134 = sphi 0, %s136
      %s137 = sphi 0, %s134
      %s138 = sphi 0, %s137
      %s154 = sphi 0, %s138
      %s158 = sphi 0, %s158
      %s160 = sphi 0, %s158
      %s161 = sphi 0, %s160
      %s175 = sphi 0, %s161
      %s179 = sphi 0, %s179
      %s181 = sphi 0, %s179
      %s182 = sphi 0, %s181
      %s196 = sphi 0, %s182
      %s200 = sphi 0, %s200
      %s202 = sphi 0, %s200
      %s203 = sphi 0, %s202
      %s217 = sphi 0, %s203
      %s221 = sphi 0, %s221
      %s223 = sphi 0, %s221
      %s224 = sphi 0, %s223
      %s238 = sphi 0, %s224
      %s242 = sphi 0, %s242
      %s244 = sphi 0, %s242
      %s245 = sphi 0, %s244
      %s259 = sphi 0, %s245
      %s263 = sphi 0, %s263
      %s265 = sphi 0, %s263
      %s266 = sphi 0, %s265
      %s280 = sphi 0, %s266
      %s284 = sphi 0, %s284
      %s286 = sphi 0, %s284
      %s287 = sphi 0, %s286
      %s301 = sphi 0, %s287
      %s305 = sphi 0, %s305
      %s307 = sphi 0, %s305
      %s308 = sphi 0, %s307
      %s322 = sphi 0, %s308
      %s326 = sphi 0, %s326
      %s328 = sphi 0, %s326
      %s329 = sphi 0, %s328
      %s343 = sphi 0, %s329
      %s347 = sphi 0, %s347
      %s349 = sphi 0, %s347
      %s350 = sphi 0, %s349
      %s364 = sphi 0, %s350
      %s368 = sphi 0, %s368
      %s370 = sphi 0, %s368
      %s371 = sphi 0, %s370
      %s385 = sphi 0, %s371
      %s389 = sphi 0, %s389
      %s391 = sphi 0, %s389
      %s392 = sphi 0, %s391
      %s406 = sphi 0, %s392
      %s410 = sphi 0, %s410
      %s412 = sphi 0, %s410
      %s413 = sphi 0, %s412
      %s427 = sphi 0, %s413
      %s431 = sphi 0, %s431
      %s433 = sphi 0, %s431
      %s434 = sphi 0, %s433
      %s448 = sphi 0, %s434
      %s452 = sphi 0, %s452
      %s454 = sphi 0, %s452
      %s455 = sphi 0, %s454
      %s469 = sphi 0, %s455
      %s473 = sphi 0, %s473
      %s475 = sphi 0, %s473
      %s476 = sphi 0, %s475
      %s490 = sphi 0, %s476
      %s494 = sphi 0, %s494
      %s496 = sphi 0, %s494
      %s497 = sphi 0, %s496
      %s511 = sphi 0, %s497
      %s515 = sphi 0, %s515
      %s517 = sphi 0, %s515
      %s518 = sphi 0, %s517
      %s532 = sphi 0, %s518
      %s536 = sphi 0, %s536
      %s538 = sphi 0, %s536
      %s539 = sphi 0, %s538
      %s553 = sphi 0, %s539
      %s557 = sphi 0, %s557
      %s559 = sphi 0, %s557
      %s560 = sphi 0, %s559
      %s574 = sphi 0, %s560
      %s578 = sphi 0, %s578
      %s580 = sphi 0, %s578
      %s581 = sphi 0, %s580
      %s595 = sphi 0, %s581
      %s599 = sphi 0, %s599
      %s601 = sphi 0, %s599
      %s602 = sphi 0, %s601
      %s616 = sphi 0, %s602
      %s622 = sphi 0, %s624
      %s625 = sphi 0, %s622
      %s626 = sphi 0, %s625
      %s642 = sphi 0, %s626
    $region4: #{tpu_custom_call.1} parent=1 // loop_header_branch
      %49 = sbr.rel (%p47) target = $region8
    $region5: #{tpu_custom_call.1} parent=1 // loop_body
      %s51 = ssub.s32 %s46, 1
      %s52 = ssub.s32 %s46, 2
      %s53 = sadd.s32 %s46, 1
      %s54 = ssub.s32 %s46, %s53
      %p55 = scmp.eq.s32.totalorder %s54, 0
      %s57 = sadd.s32 %s56, 1
      %s58 = scalar_select %p55, %s56, %s57
      %p61 = pneg %p55
      %p62 = scmp.eq.s32.totalorder %s46, 1
      %p63 = por %p61, %p62
      %p64 = scmp.ne.s32.totalorder %s56, %s59
      %p65 = scmp.eq.s32.totalorder %s46, 0
      %p66 = por %p64, %p65
      %p67 = scmp.ne.s32.totalorder %s56, %s59
      %p68 = scmp.eq.s32.totalorder %s51, 1
      %p69 = por %p67, %p68
      %p70 = scmp.ne.s32.totalorder %s59, %s60
      %p71 = scmp.eq.s32.totalorder %s51, 0
      %p72 = por %p70, %p71
      %p73 = scmp.ne.s32.totalorder %s59, %s60
      %p74 = scmp.eq.s32.totalorder %s52, 1
      %p75 = por %p73, %p74
      %p77 = scmp.ne.s32.totalorder %s60, %s76
      %p78 = scmp.eq.s32.totalorder %s52, 0
      %p79 = por %p77, %p78
      %s80 = ssub.s32 %s46, %s53
      %p81 = scmp.eq.s32.totalorder %s80, 0
      %s83 = sadd.s32 %s82, 1
      %s84 = scalar_select %p81, %s82, %s83
      %p87 = pneg %p81
      %p88 = scmp.eq.s32.totalorder %s46, 1
      %p89 = por %p87, %p88
      %p90 = scmp.ne.s32.totalorder %s82, %s85
      %p91 = scmp.eq.s32.totalorder %s46, 0
      %p92 = por %p90, %p91
      %p93 = scmp.ne.s32.totalorder %s82, %s85
      %p94 = scmp.eq.s32.totalorder %s51, 1
      %p95 = por %p93, %p94
      %p96 = scmp.ne.s32.totalorder %s85, %s86
      %p97 = scmp.eq.s32.totalorder %s51, 0
      %p98 = por %p96, %p97
      %p99 = scmp.ne.s32.totalorder %s85, %s86
      %p100 = scmp.eq.s32.totalorder %s52, 1
      %p101 = por %p99, %p100
      %p103 = scmp.ne.s32.totalorder %s86, %s102
      %p104 = scmp.eq.s32.totalorder %s52, 0
      %p105 = por %p103, %p104
      %s106 = ssub.s32 %s46, %s53
      %p107 = scmp.eq.s32.totalorder %s106, 0
      %s109 = sadd.s32 %s108, 1
      %s110 = scalar_select %p107, %s108, %s109
      %p113 = pneg %p107
      %p114 = scmp.eq.s32.totalorder %s46, 1
      %p115 = por %p113, %p114
      %p116 = scmp.ne.s32.totalorder %s108, %s111
      %p117 = scmp.eq.s32.totalorder %s46, 0
      %p118 = por %p116, %p117
      %p119 = scmp.ne.s32.totalorder %s108, %s111
      %p120 = scmp.eq.s32.totalorder %s51, 1
      %p121 = por %p119, %p120
      %p122 = scmp.ne.s32.totalorder %s111, %s112
      %p123 = scmp.eq.s32.totalorder %s51, 0
      %p124 = por %p122, %p123
      %p125 = scmp.ne.s32.totalorder %s111, %s112
      %p126 = scmp.eq.s32.totalorder %s52, 1
      %p127 = por %p125, %p126
      %p129 = scmp.ne.s32.totalorder %s112, %s128
      %p130 = scmp.eq.s32.totalorder %s52, 0
      %p131 = por %p129, %p130
      %s132 = ssub.s32 %s46, %s53
      %p133 = scmp.eq.s32.totalorder %s132, 0
      %s135 = sadd.s32 %s134, 1
      %s136 = scalar_select %p133, %s134, %s135
      %p139 = pneg %p133
      %p140 = scmp.eq.s32.totalorder %s46, 1
      %p141 = por %p139, %p140
      %p142 = scmp.ne.s32.totalorder %s134, %s137
      %p143 = scmp.eq.s32.totalorder %s46, 0
      %p144 = por %p142, %p143
      %p145 = scmp.ne.s32.totalorder %s134, %s137
      %p146 = scmp.eq.s32.totalorder %s51, 1
      %p147 = por %p145, %p146
      %p148 = scmp.ne.s32.totalorder %s137, %s138
      %p149 = scmp.eq.s32.totalorder %s51, 0
      %p150 = por %p148, %p149
      %p151 = scmp.ne.s32.totalorder %s137, %s138
      %p152 = scmp.eq.s32.totalorder %s52, 1
      %p153 = por %p151, %p152
      %p155 = scmp.ne.s32.totalorder %s138, %s154
      %p156 = scmp.eq.s32.totalorder %s52, 0
      %p157 = por %p155, %p156
      %s159 = sadd.s32 %s158, 1
      %p162 = scmp.eq.s32.totalorder %s46, 1
      %p163 = scmp.ne.s32.totalorder %s158, %s160
      %p164 = scmp.eq.s32.totalorder %s46, 0
      %p165 = por %p163, %p164
      %p166 = scmp.ne.s32.totalorder %s158, %s160
      %p167 = scmp.eq.s32.totalorder %s51, 1
      %p168 = por %p166, %p167
      %p169 = scmp.ne.s32.totalorder %s160, %s161
      %p170 = scmp.eq.s32.totalorder %s51, 0
      %p171 = por %p169, %p170
      %p172 = scmp.ne.s32.totalorder %s160, %s161
      %p173 = scmp.eq.s32.totalorder %s52, 1
      %p174 = por %p172, %p173
      %p176 = scmp.ne.s32.totalorder %s161, %s175
      %p177 = scmp.eq.s32.totalorder %s52, 0
      %p178 = por %p176, %p177
      %s180 = sadd.s32 %s179, 1
      %p183 = scmp.eq.s32.totalorder %s46, 1
      %p184 = scmp.ne.s32.totalorder %s179, %s181
      %p185 = scmp.eq.s32.totalorder %s46, 0
      %p186 = por %p184, %p185
      %p187 = scmp.ne.s32.totalorder %s179, %s181
      %p188 = scmp.eq.s32.totalorder %s51, 1
      %p189 = por %p187, %p188
      %p190 = scmp.ne.s32.totalorder %s181, %s182
      %p191 = scmp.eq.s32.totalorder %s51, 0
      %p192 = por %p190, %p191
      %p193 = scmp.ne.s32.totalorder %s181, %s182
      %p194 = scmp.eq.s32.totalorder %s52, 1
      %p195 = por %p193, %p194
      %p197 = scmp.ne.s32.totalorder %s182, %s196
      %p198 = scmp.eq.s32.totalorder %s52, 0
      %p199 = por %p197, %p198
      %s201 = sadd.s32 %s200, 1
      %p204 = scmp.eq.s32.totalorder %s46, 1
      %p205 = scmp.ne.s32.totalorder %s200, %s202
      %p206 = scmp.eq.s32.totalorder %s46, 0
      %p207 = por %p205, %p206
      %p208 = scmp.ne.s32.totalorder %s200, %s202
      %p209 = scmp.eq.s32.totalorder %s51, 1
      %p210 = por %p208, %p209
      %p211 = scmp.ne.s32.totalorder %s202, %s203
      %p212 = scmp.eq.s32.totalorder %s51, 0
      %p213 = por %p211, %p212
      %p214 = scmp.ne.s32.totalorder %s202, %s203
      %p215 = scmp.eq.s32.totalorder %s52, 1
      %p216 = por %p214, %p215
      %p218 = scmp.ne.s32.totalorder %s203, %s217
      %p219 = scmp.eq.s32.totalorder %s52, 0
      %p220 = por %p218, %p219
      %s222 = sadd.s32 %s221, 1
      %p225 = scmp.eq.s32.totalorder %s46, 1
      %p226 = scmp.ne.s32.totalorder %s221, %s223
      %p227 = scmp.eq.s32.totalorder %s46, 0
      %p228 = por %p226, %p227
      %p229 = scmp.ne.s32.totalorder %s221, %s223
      %p230 = scmp.eq.s32.totalorder %s51, 1
      %p231 = por %p229, %p230
      %p232 = scmp.ne.s32.totalorder %s223, %s224
      %p233 = scmp.eq.s32.totalorder %s51, 0
      %p234 = por %p232, %p233
      %p235 = scmp.ne.s32.totalorder %s223, %s224
      %p236 = scmp.eq.s32.totalorder %s52, 1
      %p237 = por %p235, %p236
      %p239 = scmp.ne.s32.totalorder %s224, %s238
      %p240 = scmp.eq.s32.totalorder %s52, 0
      %p241 = por %p239, %p240
      %s243 = sadd.s32 %s242, 1
      %p246 = scmp.eq.s32.totalorder %s46, 1
      %p247 = scmp.ne.s32.totalorder %s242, %s244
      %p248 = scmp.eq.s32.totalorder %s46, 0
      %p249 = por %p247, %p248
      %p250 = scmp.ne.s32.totalorder %s242, %s244
      %p251 = scmp.eq.s32.totalorder %s51, 1
      %p252 = por %p250, %p251
      %p253 = scmp.ne.s32.totalorder %s244, %s245
      %p254 = scmp.eq.s32.totalorder %s51, 0
      %p255 = por %p253, %p254
      %p256 = scmp.ne.s32.totalorder %s244, %s245
      %p257 = scmp.eq.s32.totalorder %s52, 1
      %p258 = por %p256, %p257
      %p260 = scmp.ne.s32.totalorder %s245, %s259
      %p261 = scmp.eq.s32.totalorder %s52, 0
      %p262 = por %p260, %p261
      %s264 = sadd.s32 %s263, 1
      %p267 = scmp.eq.s32.totalorder %s46, 1
      %p268 = scmp.ne.s32.totalorder %s263, %s265
      %p269 = scmp.eq.s32.totalorder %s46, 0
      %p270 = por %p268, %p269
      %p271 = scmp.ne.s32.totalorder %s263, %s265
      %p272 = scmp.eq.s32.totalorder %s51, 1
      %p273 = por %p271, %p272
      %p274 = scmp.ne.s32.totalorder %s265, %s266
      %p275 = scmp.eq.s32.totalorder %s51, 0
      %p276 = por %p274, %p275
      %p277 = scmp.ne.s32.totalorder %s265, %s266
      %p278 = scmp.eq.s32.totalorder %s52, 1
      %p279 = por %p277, %p278
      %p281 = scmp.ne.s32.totalorder %s266, %s280
      %p282 = scmp.eq.s32.totalorder %s52, 0
      %p283 = por %p281, %p282
      %s285 = sadd.s32 %s284, 1
      %p288 = scmp.eq.s32.totalorder %s46, 1
      %p289 = scmp.ne.s32.totalorder %s284, %s286
      %p290 = scmp.eq.s32.totalorder %s46, 0
      %p291 = por %p289, %p290
      %p292 = scmp.ne.s32.totalorder %s284, %s286
      %p293 = scmp.eq.s32.totalorder %s51, 1
      %p294 = por %p292, %p293
      %p295 = scmp.ne.s32.totalorder %s286, %s287
      %p296 = scmp.eq.s32.totalorder %s51, 0
      %p297 = por %p295, %p296
      %p298 = scmp.ne.s32.totalorder %s286, %s287
      %p299 = scmp.eq.s32.totalorder %s52, 1
      %p300 = por %p298, %p299
      %p302 = scmp.ne.s32.totalorder %s287, %s301
      %p303 = scmp.eq.s32.totalorder %s52, 0
      %p304 = por %p302, %p303
      %s306 = sadd.s32 %s305, 1
      %p309 = scmp.eq.s32.totalorder %s46, 1
      %p310 = scmp.ne.s32.totalorder %s305, %s307
      %p311 = scmp.eq.s32.totalorder %s46, 0
      %p312 = por %p310, %p311
      %p313 = scmp.ne.s32.totalorder %s305, %s307
      %p314 = scmp.eq.s32.totalorder %s51, 1
      %p315 = por %p313, %p314
      %p316 = scmp.ne.s32.totalorder %s307, %s308
      %p317 = scmp.eq.s32.totalorder %s51, 0
      %p318 = por %p316, %p317
      %p319 = scmp.ne.s32.totalorder %s307, %s308
      %p320 = scmp.eq.s32.totalorder %s52, 1
      %p321 = por %p319, %p320
      %p323 = scmp.ne.s32.totalorder %s308, %s322
      %p324 = scmp.eq.s32.totalorder %s52, 0
      %p325 = por %p323, %p324
      %s327 = sadd.s32 %s326, 1
      %p330 = scmp.eq.s32.totalorder %s46, 1
      %p331 = scmp.ne.s32.totalorder %s326, %s328
      %p332 = scmp.eq.s32.totalorder %s46, 0
      %p333 = por %p331, %p332
      %p334 = scmp.ne.s32.totalorder %s326, %s328
      %p335 = scmp.eq.s32.totalorder %s51, 1
      %p336 = por %p334, %p335
      %p337 = scmp.ne.s32.totalorder %s328, %s329
      %p338 = scmp.eq.s32.totalorder %s51, 0
      %p339 = por %p337, %p338
      %p340 = scmp.ne.s32.totalorder %s328, %s329
      %p341 = scmp.eq.s32.totalorder %s52, 1
      %p342 = por %p340, %p341
      %p344 = scmp.ne.s32.totalorder %s329, %s343
      %p345 = scmp.eq.s32.totalorder %s52, 0
      %p346 = por %p344, %p345
      %s348 = sadd.s32 %s347, 1
      %p351 = scmp.eq.s32.totalorder %s46, 1
      %p352 = scmp.ne.s32.totalorder %s347, %s349
      %p353 = scmp.eq.s32.totalorder %s46, 0
      %p354 = por %p352, %p353
      %p355 = scmp.ne.s32.totalorder %s347, %s349
      %p356 = scmp.eq.s32.totalorder %s51, 1
      %p357 = por %p355, %p356
      %p358 = scmp.ne.s32.totalorder %s349, %s350
      %p359 = scmp.eq.s32.totalorder %s51, 0
      %p360 = por %p358, %p359
      %p361 = scmp.ne.s32.totalorder %s349, %s350
      %p362 = scmp.eq.s32.totalorder %s52, 1
      %p363 = por %p361, %p362
      %p365 = scmp.ne.s32.totalorder %s350, %s364
      %p366 = scmp.eq.s32.totalorder %s52, 0
      %p367 = por %p365, %p366
      %s369 = sadd.s32 %s368, 1
      %p372 = scmp.eq.s32.totalorder %s46, 1
      %p373 = scmp.ne.s32.totalorder %s368, %s370
      %p374 = scmp.eq.s32.totalorder %s46, 0
      %p375 = por %p373, %p374
      %p376 = scmp.ne.s32.totalorder %s368, %s370
      %p377 = scmp.eq.s32.totalorder %s51, 1
      %p378 = por %p376, %p377
      %p379 = scmp.ne.s32.totalorder %s370, %s371
      %p380 = scmp.eq.s32.totalorder %s51, 0
      %p381 = por %p379, %p380
      %p382 = scmp.ne.s32.totalorder %s370, %s371
      %p383 = scmp.eq.s32.totalorder %s52, 1
      %p384 = por %p382, %p383
      %p386 = scmp.ne.s32.totalorder %s371, %s385
      %p387 = scmp.eq.s32.totalorder %s52, 0
      %p388 = por %p386, %p387
      %s390 = sadd.s32 %s389, 1
      %p393 = scmp.eq.s32.totalorder %s46, 1
      %p394 = scmp.ne.s32.totalorder %s389, %s391
      %p395 = scmp.eq.s32.totalorder %s46, 0
      %p396 = por %p394, %p395
      %p397 = scmp.ne.s32.totalorder %s389, %s391
      %p398 = scmp.eq.s32.totalorder %s51, 1
      %p399 = por %p397, %p398
      %p400 = scmp.ne.s32.totalorder %s391, %s392
      %p401 = scmp.eq.s32.totalorder %s51, 0
      %p402 = por %p400, %p401
      %p403 = scmp.ne.s32.totalorder %s391, %s392
      %p404 = scmp.eq.s32.totalorder %s52, 1
      %p405 = por %p403, %p404
      %p407 = scmp.ne.s32.totalorder %s392, %s406
      %p408 = scmp.eq.s32.totalorder %s52, 0
      %p409 = por %p407, %p408
      %s411 = sadd.s32 %s410, 1
      %p414 = scmp.eq.s32.totalorder %s46, 1
      %p415 = scmp.ne.s32.totalorder %s410, %s412
      %p416 = scmp.eq.s32.totalorder %s46, 0
      %p417 = por %p415, %p416
      %p418 = scmp.ne.s32.totalorder %s410, %s412
      %p419 = scmp.eq.s32.totalorder %s51, 1
      %p420 = por %p418, %p419
      %p421 = scmp.ne.s32.totalorder %s412, %s413
      %p422 = scmp.eq.s32.totalorder %s51, 0
      %p423 = por %p421, %p422
      %p424 = scmp.ne.s32.totalorder %s412, %s413
      %p425 = scmp.eq.s32.totalorder %s52, 1
      %p426 = por %p424, %p425
      %p428 = scmp.ne.s32.totalorder %s413, %s427
      %p429 = scmp.eq.s32.totalorder %s52, 0
      %p430 = por %p428, %p429
      %s432 = sadd.s32 %s431, 1
      %p435 = scmp.eq.s32.totalorder %s46, 1
      %p436 = scmp.ne.s32.totalorder %s431, %s433
      %p437 = scmp.eq.s32.totalorder %s46, 0
      %p438 = por %p436, %p437
      %p439 = scmp.ne.s32.totalorder %s431, %s433
      %p440 = scmp.eq.s32.totalorder %s51, 1
      %p441 = por %p439, %p440
      %p442 = scmp.ne.s32.totalorder %s433, %s434
      %p443 = scmp.eq.s32.totalorder %s51, 0
      %p444 = por %p442, %p443
      %p445 = scmp.ne.s32.totalorder %s433, %s434
      %p446 = scmp.eq.s32.totalorder %s52, 1
      %p447 = por %p445, %p446
      %p449 = scmp.ne.s32.totalorder %s434, %s448
      %p450 = scmp.eq.s32.totalorder %s52, 0
      %p451 = por %p449, %p450
      %s453 = sadd.s32 %s452, 1
      %p456 = scmp.eq.s32.totalorder %s46, 1
      %p457 = scmp.ne.s32.totalorder %s452, %s454
      %p458 = scmp.eq.s32.totalorder %s46, 0
      %p459 = por %p457, %p458
      %p460 = scmp.ne.s32.totalorder %s452, %s454
      %p461 = scmp.eq.s32.totalorder %s51, 1
      %p462 = por %p460, %p461
      %p463 = scmp.ne.s32.totalorder %s454, %s455
      %p464 = scmp.eq.s32.totalorder %s51, 0
      %p465 = por %p463, %p464
      %p466 = scmp.ne.s32.totalorder %s454, %s455
      %p467 = scmp.eq.s32.totalorder %s52, 1
      %p468 = por %p466, %p467
      %p470 = scmp.ne.s32.totalorder %s455, %s469
      %p471 = scmp.eq.s32.totalorder %s52, 0
      %p472 = por %p470, %p471
      %s474 = sadd.s32 %s473, 1
      %p477 = scmp.eq.s32.totalorder %s46, 1
      %p478 = scmp.ne.s32.totalorder %s473, %s475
      %p479 = scmp.eq.s32.totalorder %s46, 0
      %p480 = por %p478, %p479
      %p481 = scmp.ne.s32.totalorder %s473, %s475
      %p482 = scmp.eq.s32.totalorder %s51, 1
      %p483 = por %p481, %p482
      %p484 = scmp.ne.s32.totalorder %s475, %s476
      %p485 = scmp.eq.s32.totalorder %s51, 0
      %p486 = por %p484, %p485
      %p487 = scmp.ne.s32.totalorder %s475, %s476
      %p488 = scmp.eq.s32.totalorder %s52, 1
      %p489 = por %p487, %p488
      %p491 = scmp.ne.s32.totalorder %s476, %s490
      %p492 = scmp.eq.s32.totalorder %s52, 0
      %p493 = por %p491, %p492
      %s495 = sadd.s32 %s494, 1
      %p498 = scmp.eq.s32.totalorder %s46, 1
      %p499 = scmp.ne.s32.totalorder %s494, %s496
      %p500 = scmp.eq.s32.totalorder %s46, 0
      %p501 = por %p499, %p500
      %p502 = scmp.ne.s32.totalorder %s494, %s496
      %p503 = scmp.eq.s32.totalorder %s51, 1
      %p504 = por %p502, %p503
      %p505 = scmp.ne.s32.totalorder %s496, %s497
      %p506 = scmp.eq.s32.totalorder %s51, 0
      %p507 = por %p505, %p506
      %p508 = scmp.ne.s32.totalorder %s496, %s497
      %p509 = scmp.eq.s32.totalorder %s52, 1
      %p510 = por %p508, %p509
      %p512 = scmp.ne.s32.totalorder %s497, %s511
      %p513 = scmp.eq.s32.totalorder %s52, 0
      %p514 = por %p512, %p513
      %s516 = sadd.s32 %s515, 1
      %p519 = scmp.eq.s32.totalorder %s46, 1
      %p520 = scmp.ne.s32.totalorder %s515, %s517
      %p521 = scmp.eq.s32.totalorder %s46, 0
      %p522 = por %p520, %p521
      %p523 = scmp.ne.s32.totalorder %s515, %s517
      %p524 = scmp.eq.s32.totalorder %s51, 1
      %p525 = por %p523, %p524
      %p526 = scmp.ne.s32.totalorder %s517, %s518
      %p527 = scmp.eq.s32.totalorder %s51, 0
      %p528 = por %p526, %p527
      %p529 = scmp.ne.s32.totalorder %s517, %s518
      %p530 = scmp.eq.s32.totalorder %s52, 1
      %p531 = por %p529, %p530
      %p533 = scmp.ne.s32.totalorder %s518, %s532
      %p534 = scmp.eq.s32.totalorder %s52, 0
      %p535 = por %p533, %p534
      %s537 = sadd.s32 %s536, 1
      %p540 = scmp.eq.s32.totalorder %s46, 1
      %p541 = scmp.ne.s32.totalorder %s536, %s538
      %p542 = scmp.eq.s32.totalorder %s46, 0
      %p543 = por %p541, %p542
      %p544 = scmp.ne.s32.totalorder %s536, %s538
      %p545 = scmp.eq.s32.totalorder %s51, 1
      %p546 = por %p544, %p545
      %p547 = scmp.ne.s32.totalorder %s538, %s539
      %p548 = scmp.eq.s32.totalorder %s51, 0
      %p549 = por %p547, %p548
      %p550 = scmp.ne.s32.totalorder %s538, %s539
      %p551 = scmp.eq.s32.totalorder %s52, 1
      %p552 = por %p550, %p551
      %p554 = scmp.ne.s32.totalorder %s539, %s553
      %p555 = scmp.eq.s32.totalorder %s52, 0
      %p556 = por %p554, %p555
      %s558 = sadd.s32 %s557, 1
      %p561 = scmp.eq.s32.totalorder %s46, 1
      %p562 = scmp.ne.s32.totalorder %s557, %s559
      %p563 = scmp.eq.s32.totalorder %s46, 0
      %p564 = por %p562, %p563
      %p565 = scmp.ne.s32.totalorder %s557, %s559
      %p566 = scmp.eq.s32.totalorder %s51, 1
      %p567 = por %p565, %p566
      %p568 = scmp.ne.s32.totalorder %s559, %s560
      %p569 = scmp.eq.s32.totalorder %s51, 0
      %p570 = por %p568, %p569
      %p571 = scmp.ne.s32.totalorder %s559, %s560
      %p572 = scmp.eq.s32.totalorder %s52, 1
      %p573 = por %p571, %p572
      %p575 = scmp.ne.s32.totalorder %s560, %s574
      %p576 = scmp.eq.s32.totalorder %s52, 0
      %p577 = por %p575, %p576
      %s579 = sadd.s32 %s578, 1
      %p582 = scmp.eq.s32.totalorder %s46, 1
      %p583 = scmp.ne.s32.totalorder %s578, %s580
      %p584 = scmp.eq.s32.totalorder %s46, 0
      %p585 = por %p583, %p584
      %p586 = scmp.ne.s32.totalorder %s578, %s580
      %p587 = scmp.eq.s32.totalorder %s51, 1
      %p588 = por %p586, %p587
      %p589 = scmp.ne.s32.totalorder %s580, %s581
      %p590 = scmp.eq.s32.totalorder %s51, 0
      %p591 = por %p589, %p590
      %p592 = scmp.ne.s32.totalorder %s580, %s581
      %p593 = scmp.eq.s32.totalorder %s52, 1
      %p594 = por %p592, %p593
      %p596 = scmp.ne.s32.totalorder %s581, %s595
      %p597 = scmp.eq.s32.totalorder %s52, 0
      %p598 = por %p596, %p597
      %s600 = sadd.s32 %s599, 1
      %p603 = scmp.eq.s32.totalorder %s46, 1
      %p604 = scmp.ne.s32.totalorder %s599, %s601
      %p605 = scmp.eq.s32.totalorder %s46, 0
      %p606 = por %p604, %p605
      %p607 = scmp.ne.s32.totalorder %s599, %s601
      %p608 = scmp.eq.s32.totalorder %s51, 1
      %p609 = por %p607, %p608
      %p610 = scmp.ne.s32.totalorder %s601, %s602
      %p611 = scmp.eq.s32.totalorder %s51, 0
      %p612 = por %p610, %p611
      %p613 = scmp.ne.s32.totalorder %s601, %s602
      %p614 = scmp.eq.s32.totalorder %s52, 1
      %p615 = por %p613, %p614
      %p617 = scmp.ne.s32.totalorder %s602, %s616
      %p618 = scmp.eq.s32.totalorder %s52, 0
      %p619 = por %p617, %p618
      %s620 = ssub.s32 %s46, %s53
      %p621 = scmp.eq.s32.totalorder %s620, 0
      %s623 = sadd.s32 %s622, 1
      %s624 = scalar_select %p621, %s622, %s623
      %p627 = pneg %p621
      %p628 = scmp.eq.s32.totalorder %s46, 1
      %p629 = por %p627, %p628
      %p630 = scmp.ne.s32.totalorder %s622, %s625
      %p631 = scmp.eq.s32.totalorder %s46, 0
      %p632 = por %p630, %p631
      %p633 = scmp.ne.s32.totalorder %s622, %s625
      %p634 = scmp.eq.s32.totalorder %s51, 1
      %p635 = por %p633, %p634
      %p636 = scmp.ne.s32.totalorder %s625, %s626
      %p637 = scmp.eq.s32.totalorder %s51, 0
      %p638 = por %p636, %p637
      %p639 = scmp.ne.s32.totalorder %s625, %s626
      %p640 = scmp.eq.s32.totalorder %s52, 1
      %p641 = por %p639, %p640
      %p643 = scmp.ne.s32.totalorder %s626, %s642
      %p644 = scmp.eq.s32.totalorder %s52, 0
      %p645 = por %p643, %p644
      %p646 = scmp.le.s32.totalorder 1, %s46
      %p647 = scmp.lt.s32.totalorder %s46, 3
      %p648 = pnand %p646, %p647
      %p649 = pneg %p648
      // Predicated region
      $region9: #{tpu_custom_call.1} parent=5 // pred_check
        _
      $region10: #{tpu_custom_call.1} parent=5 // pred_check_branch
        %651 = sbr.rel (%p648) target = $region12
      $region11: #{tpu_custom_call.1} parent=5 // pred_region
        %s652 = ssub.s32 %s46, 1
        // Predicated region
        $region13: #{tpu_custom_call.1} parent=11 // pred_check
          %p653 = pneg %p171
        $region14: #{tpu_custom_call.1} parent=11 // pred_check_branch
          %655 = sbr.rel (%p653) target = $region16
        $region15: #{tpu_custom_call.1} parent=11 // pred_region
          _
        $region16: #{tpu_custom_call.1} parent=11 // pred_fallthru
          _
        // Predicated region
        $region17: #{tpu_custom_call.1} parent=11 // pred_check
          %p656 = pneg %p192
        $region18: #{tpu_custom_call.1} parent=11 // pred_check_branch
          %658 = sbr.rel (%p656) target = $region20
        $region19: #{tpu_custom_call.1} parent=11 // pred_region
          _
        $region20: #{tpu_custom_call.1} parent=11 // pred_fallthru
          _
        // Predicated region
        $region21: #{tpu_custom_call.1} parent=11 // pred_check
          %p659 = pneg %p213
        $region22: #{tpu_custom_call.1} parent=11 // pred_check_branch
          %661 = sbr.rel (%p659) target = $region24
        $region23: #{tpu_custom_call.1} parent=11 // pred_region
          _
        $region24: #{tpu_custom_call.1} parent=11 // pred_fallthru
          _
        // Predicated region
        $region25: #{tpu_custom_call.1} parent=11 // pred_check
          %p662 = pneg %p234
        $region26: #{tpu_custom_call.1} parent=11 // pred_check_branch
          %664 = sbr.rel (%p662) target = $region28
        $region27: #{tpu_custom_call.1} parent=11 // pred_region
          %s666 = ssub.s32 1024, 1024
          %667 = vsyncadd [#allocation9], %s666
          %s668 = sshll.u32 [#allocation8], 4
          %s669 = int_to_ptr.vmem [resolvable:$true] %s668
          %674 = dma.hbm_to_vmem [thread:$0]  %s7, 1024, %s669, [#allocation9], 128, 128, 8
        $region28: #{tpu_custom_call.1} parent=11 // pred_fallthru
          _
        // Predicated region
        $region29: #{tpu_custom_call.1} parent=11 // pred_check
          %p675 = pneg %p255
        $region30: #{tpu_custom_call.1} parent=11 // pred_check_branch
          %677 = sbr.rel (%p675) target = $region32
        $region31: #{tpu_custom_call.1} parent=11 // pred_region
          _
        $region32: #{tpu_custom_call.1} parent=11 // pred_fallthru
          _
        // Predicated region
        $region33: #{tpu_custom_call.1} parent=11 // pred_check
          %p678 = pneg %p276
        $region34: #{tpu_custom_call.1} parent=11 // pred_check_branch
          %680 = sbr.rel (%p678) target = $region36
        $region35: #{tpu_custom_call.1} parent=11 // pred_region
          _
        $region36: #{tpu_custom_call.1} parent=11 // pred_fallthru
          _
        // Predicated region
        $region37: #{tpu_custom_call.1} parent=11 // pred_check
          %p681 = pneg %p297
        $region38: #{tpu_custom_call.1} parent=11 // pred_check_branch
          %683 = sbr.rel (%p681) target = $region40
        $region39: #{tpu_custom_call.1} parent=11 // pred_region
          _
        $region40: #{tpu_custom_call.1} parent=11 // pred_fallthru
          _
        // Predicated region
        $region41: #{tpu_custom_call.1} parent=11 // pred_check
          %p684 = pneg %p318
        $region42: #{tpu_custom_call.1} parent=11 // pred_check_branch
          %686 = sbr.rel (%p684) target = $region44
        $region43: #{tpu_custom_call.1} parent=11 // pred_region
          %s688 = ssub.s32 1024, 1024
          %689 = vsyncadd [#allocation9], %s688
          %s690 = sshll.u32 [#allocation10], 4
          %s691 = int_to_ptr.vmem [resolvable:$true] %s690
          %696 = dma.hbm_to_vmem [thread:$0]  %s11, 1024, %s691, [#allocation9], 128, 128, 8
        $region44: #{tpu_custom_call.1} parent=11 // pred_fallthru
          _
        // Predicated region
        $region45: #{tpu_custom_call.1} parent=11 // pred_check
          %p697 = pneg %p339
        $region46: #{tpu_custom_call.1} parent=11 // pred_check_branch
          %699 = sbr.rel (%p697) target = $region48
        $region47: #{tpu_custom_call.1} parent=11 // pred_region
          %s701 = ssub.s32 1024, 1024
          %702 = vsyncadd [#allocation12], %s701
          %s703 = sshll.u32 [#allocation11], 4
          %s704 = int_to_ptr.vmem [resolvable:$true] %s703
          %709 = dma.hbm_to_vmem [thread:$0]  %s12, 1024, %s704, [#allocation12], 128, 128, 8
        $region48: #{tpu_custom_call.1} parent=11 // pred_fallthru
          _
        // Predicated region
        $region49: #{tpu_custom_call.1} parent=11 // pred_check
          %p710 = pneg %p360
        $region50: #{tpu_custom_call.1} parent=11 // pred_check_branch
          %712 = sbr.rel (%p710) target = $region52
        $region51: #{tpu_custom_call.1} parent=11 // pred_region
          %s714 = ssub.s32 1024, 1024
          %715 = vsyncadd [#allocation12], %s714
          %s716 = sshll.u32 [#allocation13], 4
          %s717 = int_to_ptr.vmem [resolvable:$true] %s716
          %722 = dma.hbm_to_vmem [thread:$0]  %s13, 1024, %s717, [#allocation12], 128, 128, 8
        $region52: #{tpu_custom_call.1} parent=11 // pred_fallthru
          _
        // Predicated region
        $region53: #{tpu_custom_call.1} parent=11 // pred_check
          %p723 = pneg %p381
        $region54: #{tpu_custom_call.1} parent=11 // pred_check_branch
          %725 = sbr.rel (%p723) target = $region56
        $region55: #{tpu_custom_call.1} parent=11 // pred_region
          %s727 = ssub.s32 1024, 1024
          %728 = vsyncadd [#allocation15], %s727
          %s729 = sshll.u32 [#allocation14], 4
          %s730 = int_to_ptr.vmem [resolvable:$true] %s729
          %735 = dma.hbm_to_vmem [thread:$0]  %s14, 1024, %s730, [#allocation15], 128, 128, 8
        $region56: #{tpu_custom_call.1} parent=11 // pred_fallthru
          _
        // Predicated region
        $region57: #{tpu_custom_call.1} parent=11 // pred_check
          %p736 = pneg %p402
        $region58: #{tpu_custom_call.1} parent=11 // pred_check_branch
          %738 = sbr.rel (%p736) target = $region60
        $region59: #{tpu_custom_call.1} parent=11 // pred_region
          _
        $region60: #{tpu_custom_call.1} parent=11 // pred_fallthru
          _
        // Predicated region
        $region61: #{tpu_custom_call.1} parent=11 // pred_check
          %p739 = pneg %p423
        $region62: #{tpu_custom_call.1} parent=11 // pred_check_branch
          %741 = sbr.rel (%p739) target = $region64
        $region63: #{tpu_custom_call.1} parent=11 // pred_region
          %s743 = ssub.s32 32, 32
          %744 = vsyncadd [#allocation15], %s743
          %s745 = sshll.u32 [#allocation16], 4
          %s746 = int_to_ptr.vmem [resolvable:$true] %s745
          %751 = dma.hbm_to_vmem [thread:$0]  %s16, 32, %s746, [#allocation15], 16, 16, 1
        $region64: #{tpu_custom_call.1} parent=11 // pred_fallthru
          _
        // Predicated region
        $region65: #{tpu_custom_call.1} parent=11 // pred_check
          %p752 = pneg %p444
        $region66: #{tpu_custom_call.1} parent=11 // pred_check_branch
          %754 = sbr.rel (%p752) target = $region68
        $region67: #{tpu_custom_call.1} parent=11 // pred_region
          %s756 = ssub.s32 32, 32
          %757 = vsyncadd [#allocation18], %s756
          %s758 = sshll.u32 [#allocation17], 4
          %s759 = int_to_ptr.vmem [resolvable:$true] %s758
          %764 = dma.hbm_to_vmem [thread:$0]  %s17, 32, %s759, [#allocation18], 16, 16, 1
        $region68: #{tpu_custom_call.1} parent=11 // pred_fallthru
          _
        // Predicated region
        $region69: #{tpu_custom_call.1} parent=11 // pred_check
          %p765 = pneg %p465
        $region70: #{tpu_custom_call.1} parent=11 // pred_check_branch
          %767 = sbr.rel (%p765) target = $region72
        $region71: #{tpu_custom_call.1} parent=11 // pred_region
          %s769 = ssub.s32 1024, 1024
          %770 = vsyncadd [#allocation18], %s769
          %s771 = sshll.u32 [#allocation19], 4
          %s772 = int_to_ptr.vmem [resolvable:$true] %s771
          %777 = dma.hbm_to_vmem [thread:$0]  %s18, 1024, %s772, [#allocation18], 128, 128, 8
        $region72: #{tpu_custom_call.1} parent=11 // pred_fallthru
          _
        // Predicated region
        $region73: #{tpu_custom_call.1} parent=11 // pred_check
          %p778 = pneg %p486
        $region74: #{tpu_custom_call.1} parent=11 // pred_check_branch
          %780 = sbr.rel (%p778) target = $region76
        $region75: #{tpu_custom_call.1} parent=11 // pred_region
          %s782 = ssub.s32 32, 32
          %783 = vsyncadd [#allocation21], %s782
          %s784 = sshll.u32 [#allocation20], 4
          %s785 = int_to_ptr.vmem [resolvable:$true] %s784
          %790 = dma.hbm_to_vmem [thread:$0]  %s19, 32, %s785, [#allocation21], 16, 16, 1
        $region76: #{tpu_custom_call.1} parent=11 // pred_fallthru
          _
        // Predicated region
        $region77: #{tpu_custom_call.1} parent=11 // pred_check
          %p791 = pneg %p507
        $region78: #{tpu_custom_call.1} parent=11 // pred_check_branch
          %793 = sbr.rel (%p791) target = $region80
        $region79: #{tpu_custom_call.1} parent=11 // pred_region
          _
        $region80: #{tpu_custom_call.1} parent=11 // pred_fallthru
          _
        // Predicated region
        $region81: #{tpu_custom_call.1} parent=11 // pred_check
          %p794 = pneg %p528
        $region82: #{tpu_custom_call.1} parent=11 // pred_check_branch
          %796 = sbr.rel (%p794) target = $region84
        $region83: #{tpu_custom_call.1} parent=11 // pred_region
          _
        $region84: #{tpu_custom_call.1} parent=11 // pred_fallthru
          _
        // Predicated region
        $region85: #{tpu_custom_call.1} parent=11 // pred_check
          %p797 = pneg %p549
        $region86: #{tpu_custom_call.1} parent=11 // pred_check_branch
          %799 = sbr.rel (%p797) target = $region88
        $region87: #{tpu_custom_call.1} parent=11 // pred_region
          _
        $region88: #{tpu_custom_call.1} parent=11 // pred_fallthru
          _
        // Predicated region
        $region89: #{tpu_custom_call.1} parent=11 // pred_check
          %p800 = pneg %p570
        $region90: #{tpu_custom_call.1} parent=11 // pred_check_branch
          %802 = sbr.rel (%p800) target = $region92
        $region91: #{tpu_custom_call.1} parent=11 // pred_region
          _
        $region92: #{tpu_custom_call.1} parent=11 // pred_fallthru
          _
        // Predicated region
        $region93: #{tpu_custom_call.1} parent=11 // pred_check
          %p803 = pneg %p591
        $region94: #{tpu_custom_call.1} parent=11 // pred_check_branch
          %805 = sbr.rel (%p803) target = $region96
        $region95: #{tpu_custom_call.1} parent=11 // pred_region
          %s807 = ssub.s32 512, 512
          %808 = vsyncadd [#allocation21], %s807
          %s809 = sshll.u32 [#allocation22], 4
          %s810 = int_to_ptr.vmem [resolvable:$true] %s809
          %815 = dma.hbm_to_vmem [thread:$0]  %s24, 512, %s810, [#allocation21], 128, 128, 8
        $region96: #{tpu_custom_call.1} parent=11 // pred_fallthru
          _
        // Predicated region
        $region97: #{tpu_custom_call.1} parent=11 // pred_check
          %p816 = pneg %p612
        $region98: #{tpu_custom_call.1} parent=11 // pred_check_branch
          %818 = sbr.rel (%p816) target = $region100
        $region99: #{tpu_custom_call.1} parent=11 // pred_region
          _
        $region100: #{tpu_custom_call.1} parent=11 // pred_fallthru
          _
      $region12: #{tpu_custom_call.1} parent=5 // pred_fallthru
        _
      %p819 = scmp.lt.s32.totalorder %s46, 2
      // Predicated region
      $region101: #{tpu_custom_call.1} parent=5 // pred_check
        %p820 = pneg %p819
      $region102: #{tpu_custom_call.1} parent=5 // pred_check_branch
        %822 = sbr.rel (%p820) target = $region104
      $region103: #{tpu_custom_call.1} parent=5 // pred_region
        // Predicated region
        $region105: #{tpu_custom_call.1} parent=103 // pred_check
          %p823 = pneg %p66
        $region106: #{tpu_custom_call.1} parent=103 // pred_check_branch
          %825 = sbr.rel (%p823) target = $region108
        $region107: #{tpu_custom_call.1} parent=103 // pred_region
          %s826 = sand.u32 %s56, 1
          %s827 = scalar_lea.sflag [#allocation3], %s826
          %s828 = sand.u32 %s56, 1
          %s829 = smul.addr %s828, 8
          %s830 = scalar_lea.vmem [#allocation2], %s829
          %s832 = ssub.s32 128, 128
          %833 = vsyncadd %s827, %s832
          %s834 = smul.addr %s46, 128
          %s835 = scalar_lea.hbm %s0, %s834
          %s837 = sshll.u32 %s830, 4
          %s838 = int_to_ptr.vmem [resolvable:$true] %s837
          %840 = dma.hbm_to_vmem [thread:$0]  %s835, 128, %s838, %s827
        $region108: #{tpu_custom_call.1} parent=103 // pred_fallthru
          _
        // Predicated region
        $region109: #{tpu_custom_call.1} parent=103 // pred_check
          %p841 = pneg %p92
        $region110: #{tpu_custom_call.1} parent=103 // pred_check_branch
          %843 = sbr.rel (%p841) target = $region112
        $region111: #{tpu_custom_call.1} parent=103 // pred_region
          %p844 = scmp.lt.s32.totalorder %s46, 1
          %s845 = scalar_select %p844, %s46, 1
          %s846 = scalar_lea.vmem %s1, %s845
        $region112: #{tpu_custom_call.1} parent=103 // pred_fallthru
          _
        // Predicated region
        $region113: #{tpu_custom_call.1} parent=103 // pred_check
          %p847 = pneg %p118
        $region114: #{tpu_custom_call.1} parent=103 // pred_check_branch
          %849 = sbr.rel (%p847) target = $region116
        $region115: #{tpu_custom_call.1} parent=103 // pred_region
          %s850 = sand.u32 %s46, 1
          %s851 = scalar_lea.sflag [#allocation6], %s850
          %s852 = sand.u32 %s108, 1
          %s853 = smul.addr %s852, 8
          %s854 = scalar_lea.vmem [#allocation5], %s853
          %s856 = ssub.s32 128, 128
          %857 = vsyncadd %s851, %s856
          %s858 = smul.addr %s46, 128
          %s859 = scalar_lea.hbm %s2, %s858
          %s861 = sshll.u32 %s854, 4
          %s862 = int_to_ptr.vmem [resolvable:$true] %s861
          %864 = dma.hbm_to_vmem [thread:$0]  %s859, 128, %s862, %s851
        $region116: #{tpu_custom_call.1} parent=103 // pred_fallthru
          _
        // Predicated region
        $region117: #{tpu_custom_call.1} parent=103 // pred_check
          %p865 = pneg %p144
        $region118: #{tpu_custom_call.1} parent=103 // pred_check_branch
          %867 = sbr.rel (%p865) target = $region120
        $region119: #{tpu_custom_call.1} parent=103 // pred_region
          %s868 = sand.u32 %s46, 1
          %s869 = scalar_lea.sflag [#allocation6], %s868
          %s870 = sand.u32 %s134, 1
          %s871 = smul.addr %s870, 8
          %s872 = scalar_lea.vmem [#allocation7], %s871
          %s874 = ssub.s32 128, 128
          %875 = vsyncadd %s869, %s874
          %s876 = smul.addr %s46, 128
          %s877 = scalar_lea.hbm %s3, %s876
          %s879 = sshll.u32 %s872, 4
          %s880 = int_to_ptr.vmem [resolvable:$true] %s879
          %882 = dma.hbm_to_vmem [thread:$0]  %s877, 128, %s880, %s869
        $region120: #{tpu_custom_call.1} parent=103 // pred_fallthru
          _
      $region104: #{tpu_custom_call.1} parent=5 // pred_fallthru
        _
      %p883 = scmp.le.s32.totalorder 1, %s46
      %p884 = scmp.lt.s32.totalorder %s46, 3
      %p885 = pnand %p883, %p884
      %p886 = pneg %p885
      // Predicated region
      $region121: #{tpu_custom_call.1} parent=5 // pred_check
        _
      $region122: #{tpu_custom_call.1} parent=5 // pred_check_branch
        %888 = sbr.rel (%p885) target = $region124
      $region123: #{tpu_custom_call.1} parent=5 // pred_region
        %s889 = ssub.s32 %s46, 1
        %s890 = sand.u32 %s59, 1
        %s891 = scalar_lea.sflag [#allocation3], %s890
        %s892 = sand.u32 %s59, 1
        %s893 = smul.addr %s892, 8
        %s894 = scalar_lea.vmem [#allocation2], %s893
        // Predicated region
        $region125: #{tpu_custom_call.1} parent=123 // pred_check
          %p895 = pneg %p72
        $region126: #{tpu_custom_call.1} parent=123 // pred_check_branch
          %897 = sbr.rel (%p895) target = $region128
        $region127: #{tpu_custom_call.1} parent=123 // pred_region
          %898 = dma.done %s891, 128
        $region128: #{tpu_custom_call.1} parent=123 // pred_fallthru
          _
        %s899 = sand.u32 %s51, 1
        %s900 = scalar_lea.sflag [#allocation6], %s899
        %s901 = sand.u32 %s111, 1
        %s902 = smul.addr %s901, 8
        %s903 = scalar_lea.vmem [#allocation5], %s902
        // Predicated region
        $region129: #{tpu_custom_call.1} parent=123 // pred_check
          %p904 = pneg %p124
        $region130: #{tpu_custom_call.1} parent=123 // pred_check_branch
          %906 = sbr.rel (%p904) target = $region132
        $region131: #{tpu_custom_call.1} parent=123 // pred_region
          %907 = dma.done %s900, 128
        $region132: #{tpu_custom_call.1} parent=123 // pred_fallthru
          _
        %s908 = sand.u32 %s51, 1
        %s909 = scalar_lea.sflag [#allocation6], %s908
        %s910 = sand.u32 %s137, 1
        %s911 = smul.addr %s910, 8
        %s912 = scalar_lea.vmem [#allocation7], %s911
        // Predicated region
        $region133: #{tpu_custom_call.1} parent=123 // pred_check
          %p913 = pneg %p150
        $region134: #{tpu_custom_call.1} parent=123 // pred_check_branch
          %915 = sbr.rel (%p913) target = $region136
        $region135: #{tpu_custom_call.1} parent=123 // pred_region
          %916 = dma.done %s909, 128
        $region136: #{tpu_custom_call.1} parent=123 // pred_fallthru
          _
        // Predicated region
        $region137: #{tpu_custom_call.1} parent=123 // pred_check
          %p917 = pneg %p234
        $region138: #{tpu_custom_call.1} parent=123 // pred_check_branch
          %919 = sbr.rel (%p917) target = $region140
        $region139: #{tpu_custom_call.1} parent=123 // pred_region
          %920 = dma.done [#allocation9], 1024
        $region140: #{tpu_custom_call.1} parent=123 // pred_fallthru
          _
        // Predicated region
        $region141: #{tpu_custom_call.1} parent=123 // pred_check
          %p921 = pneg %p318
        $region142: #{tpu_custom_call.1} parent=123 // pred_check_branch
          %923 = sbr.rel (%p921) target = $region144
        $region143: #{tpu_custom_call.1} parent=123 // pred_region
          %924 = dma.done [#allocation9], 1024
        $region144: #{tpu_custom_call.1} parent=123 // pred_fallthru
          _
        // Predicated region
        $region145: #{tpu_custom_call.1} parent=123 // pred_check
          %p925 = pneg %p339
        $region146: #{tpu_custom_call.1} parent=123 // pred_check_branch
          %927 = sbr.rel (%p925) target = $region148
        $region147: #{tpu_custom_call.1} parent=123 // pred_region
          %928 = dma.done [#allocation12], 1024
        $region148: #{tpu_custom_call.1} parent=123 // pred_fallthru
          _
        // Predicated region
        $region149: #{tpu_custom_call.1} parent=123 // pred_check
          %p929 = pneg %p360
        $region150: #{tpu_custom_call.1} parent=123 // pred_check_branch
          %931 = sbr.rel (%p929) target = $region152
        $region151: #{tpu_custom_call.1} parent=123 // pred_region
          %932 = dma.done [#allocation12], 1024
        $region152: #{tpu_custom_call.1} parent=123 // pred_fallthru
          _
        // Predicated region
        $region153: #{tpu_custom_call.1} parent=123 // pred_check
          %p933 = pneg %p381
        $region154: #{tpu_custom_call.1} parent=123 // pred_check_branch
          %935 = sbr.rel (%p933) target = $region156
        $region155: #{tpu_custom_call.1} parent=123 // pred_region
          %936 = dma.done [#allocation15], 1024
        $region156: #{tpu_custom_call.1} parent=123 // pred_fallthru
          _
        // Predicated region
        $region157: #{tpu_custom_call.1} parent=123 // pred_check
          %p937 = pneg %p423
        $region158: #{tpu_custom_call.1} parent=123 // pred_check_branch
          %939 = sbr.rel (%p937) target = $region160
        $region159: #{tpu_custom_call.1} parent=123 // pred_region
          %940 = dma.done [#allocation15], 32
        $region160: #{tpu_custom_call.1} parent=123 // pred_fallthru
          _
        // Predicated region
        $region161: #{tpu_custom_call.1} parent=123 // pred_check
          %p941 = pneg %p444
        $region162: #{tpu_custom_call.1} parent=123 // pred_check_branch
          %943 = sbr.rel (%p941) target = $region164
        $region163: #{tpu_custom_call.1} parent=123 // pred_region
          %944 = dma.done [#allocation18], 32
        $region164: #{tpu_custom_call.1} parent=123 // pred_fallthru
          _
        // Predicated region
        $region165: #{tpu_custom_call.1} parent=123 // pred_check
          %p945 = pneg %p465
        $region166: #{tpu_custom_call.1} parent=123 // pred_check_branch
          %947 = sbr.rel (%p945) target = $region168
        $region167: #{tpu_custom_call.1} parent=123 // pred_region
          %948 = dma.done [#allocation18], 1024
        $region168: #{tpu_custom_call.1} parent=123 // pred_fallthru
          _
        // Predicated region
        $region169: #{tpu_custom_call.1} parent=123 // pred_check
          %p949 = pneg %p486
        $region170: #{tpu_custom_call.1} parent=123 // pred_check_branch
          %951 = sbr.rel (%p949) target = $region172
        $region171: #{tpu_custom_call.1} parent=123 // pred_region
          %952 = dma.done [#allocation21], 32
        $region172: #{tpu_custom_call.1} parent=123 // pred_fallthru
          _
        // Predicated region
        $region173: #{tpu_custom_call.1} parent=123 // pred_check
          %p953 = pneg %p591
        $region174: #{tpu_custom_call.1} parent=123 // pred_check_branch
          %955 = sbr.rel (%p953) target = $region176
        $region175: #{tpu_custom_call.1} parent=123 // pred_region
          %956 = dma.done [#allocation21], 512
        $region176: #{tpu_custom_call.1} parent=123 // pred_fallthru
          _
        %s957 = sand.u32 %s59, 1
        %s958 = scalar_lea.sflag [#allocation3], %s957
        %s959 = sand.u32 %s59, 1
        %s960 = smul.addr %s959, 8
        %s961 = scalar_lea.vmem [#allocation2], %s960
        %p962 = pneg %p72
        %p963 = pneg %p69
        %p964 = scmp.lt.s32.totalorder %s51, 1
        %s965 = scalar_select %p964, %s51, 1
        %s966 = scalar_lea.vmem %s1, %s965
        %p967 = pneg %p98
        %p968 = pneg %p95
        %s969 = sand.u32 %s51, 1
        %s970 = scalar_lea.sflag [#allocation6], %s969
        %s971 = sand.u32 %s111, 1
        %s972 = smul.addr %s971, 8
        %s973 = scalar_lea.vmem [#allocation5], %s972
        %p974 = pneg %p124
        %p975 = pneg %p121
        %s976 = sand.u32 %s51, 1
        %s977 = scalar_lea.sflag [#allocation6], %s976
        %s978 = sand.u32 %s137, 1
        %s979 = smul.addr %s978, 8
        %s980 = scalar_lea.vmem [#allocation7], %s979
        %p981 = pneg %p150
        %p982 = pneg %p147
        %p983 = pneg %p171
        %p984 = pneg %p168
        %p985 = pneg %p192
        %p986 = pneg %p189
        %p987 = pneg %p213
        %p988 = pneg %p210
        %p989 = pneg %p234
        %p990 = pneg %p231
        %p991 = pneg %p255
        %p992 = pneg %p252
        %p993 = pneg %p276
        %p994 = pneg %p273
        %p995 = pneg %p297
        %p996 = pneg %p294
        %p997 = pneg %p318
        %p998 = pneg %p315
        %p999 = pneg %p339
        %p1000 = pneg %p336
        %p1001 = pneg %p360
        %p1002 = pneg %p357
        %p1003 = pneg %p381
        %p1004 = pneg %p378
        %p1005 = pneg %p402
        %p1006 = pneg %p399
        %p1007 = pneg %p423
        %p1008 = pneg %p420
        %p1009 = pneg %p444
        %p1010 = pneg %p441
        %p1011 = pneg %p465
        %p1012 = pneg %p462
        %p1013 = pneg %p486
        %p1014 = pneg %p483
        %p1015 = pneg %p507
        %p1016 = pneg %p504
        %p1017 = pneg %p528
        %p1018 = pneg %p525
        %p1019 = pneg %p549
        %p1020 = pneg %p546
        %p1021 = pneg %p570
        %p1022 = pneg %p567
        %p1023 = pneg %p591
        %p1024 = pneg %p588
        %p1025 = pneg %p612
        %p1026 = pneg %p609
        %p1027 = pneg %p638
        %p1028 = pneg %p635
        %s1029 = sand.u32 %s625, 1
        %s1030 = scalar_lea.sflag [#allocation4], %s1029
        %s1031 = sand.u32 %s625, 1
        %s1032 = smul.addr %s1031, 8
        %s1033 = scalar_lea.vmem [#allocation23], %s1032
        %p1034 = scmp.lt.s32.totalorder %s51, 1
        %s1035 = scalar_select %p1034, %s51, 1
        %s1036 = scalar_lea.vmem %s1, %s1035
        %v1037 = vld [vmem:[%s903] sm:$0xff]
        %v1038 = vld [vmem:[%s912] sm:$0xff]
        %v1039 = vld [vmem:[%s894] sm:$0xff]
        %vm1040 = vcmp.eq.f32.partialorder %v1039, 0.0
        %v1041 = vsel %vm1040, -1e+20, 0.0
        %v1042 = vld [vmem:[%s1036] sm:$0x1]
        %vm1043 = vcmp.eq.f32.partialorder %v1042, 0.0
        %v1044 = vsel %vm1043, -1e+20, 0.0
        %v1045 = vld [vmem:[%s4] sm:$0xff]
        %v1046 = vld [vmem:[%s4 + $0x8] sm:$0xff]
        %v1047 = vld [vmem:[%s4 + $0x10] sm:$0xff]
        %v1048 = vld [vmem:[%s4 + $0x18] sm:$0xff]
        %v1049 = vld [vmem:[%s5] sm:$0xff]
        %v1050 = vld [vmem:[%s5 + $0x8] sm:$0xff]
        %v1051 = vld [vmem:[%s5 + $0x10] sm:$0xff]
        %v1052 = vld [vmem:[%s5 + $0x18] sm:$0xff]
        %v1053 = vld [vmem:[%s6] sm:$0xff]
        %v1054 = vld [vmem:[%s6 + $0x8] sm:$0xff]
        %v1055 = vld [vmem:[%s6 + $0x10] sm:$0xff]
        %v1056 = vld [vmem:[%s6 + $0x18] sm:$0xff]
        %v1057 = vld [vmem:[#allocation8] sm:$0xff]
        %v1058 = vld [vmem:[#allocation8 + $0x8] sm:$0xff]
        %v1059 = vld [vmem:[#allocation8 + $0x10] sm:$0xff]
        %v1060 = vld [vmem:[#allocation8 + $0x18] sm:$0xff]
        %v1061 = vld [vmem:[%s8] sm:$0x1]
        %vm1062 = vcmask 261120
        %v1064 = vsel %vm1062, %v1037, 0
        %1066 = vmatprep.subr.mxu0 0.0
        %1067 = vmatpush1.msra.mxu0 %v1045
        %1068 = vmatprep.subr.mxu0 0.0
        %1069 = vmatpush1.msra.mxu0 %v1046
        %1070 = vmatprep.subr.mxu0 0.0
        %1071 = vmatpush1.msra.mxu0 %v1047
        %1072 = vmatprep.subr.mxu0 0.0
        %1073 = vmatpush1.msra.mxu0 %v1048
        %1074 = vmatprep.subr.mxu0 0.0
        %1075 = vmatpush1.msra.mxu0 0.0
        %1076 = vmatprep.subr.mxu0 0.0
        %1077 = vmatpush1.msra.mxu0 0.0
        %1078 = vmatprep.subr.mxu0 0.0
        %1079 = vmatpush1.msra.mxu0 0.0
        %1080 = vmatprep.subr.mxu0 0.0
        %1081 = vmatpush1.msra.mxu0 0.0
        %1082 = vmatprep.subr.mxu0 0.0
        %1083 = vmatpush1.msra.mxu0 0.0
        %1084 = vmatprep.subr.mxu0 0.0
        %1085 = vmatpush1.msra.mxu0 0.0
        %1086 = vmatprep.subr.mxu0 0.0
        %1087 = vmatpush1.msra.mxu0 0.0
        %1088 = vmatprep.subr.mxu0 0.0
        %1089 = vmatpush1.msra.mxu0 0.0
        %1090 = vmatprep.subr.mxu0 0.0
        %1091 = vmatpush1.msra.mxu0 0.0
        %1092 = vmatprep.subr.mxu0 0.0
        %1093 = vmatpush1.msra.mxu0 0.0
        %1094 = vmatprep.subr.mxu0 0.0
        %1095 = vmatpush1.msra.mxu0 0.0
        %1096 = vmatprep.subr.mxu0 0.0
        %1097 = vmatpush1.msra.mxu0 0.0
        %1098 = vmatprep.subr.mxu0 0.0
        %1099 = vmatpush1.msra.mxu0 0.0
        %1100 = vmatprep.subr.mxu0 0.0
        %1101 = vmatpush1.msra.mxu0 0.0
        %1102 = vmatprep.subr.mxu0 0.0
        %1103 = vmatpush1.msra.mxu0 0.0
        %1104 = vmatprep.subr.mxu0 0.0
        %1105 = vmatpush1.msra.mxu0 0.0
        %1106 = vmatprep.subr.mxu0 0.0
        %1107 = vmatpush1.msra.mxu0 0.0
        %1108 = vmatprep.subr.mxu0 0.0
        %1109 = vmatpush1.msra.mxu0 0.0
        %1110 = vmatprep.subr.mxu0 0.0
        %1111 = vmatpush1.msra.mxu0 0.0
        %1112 = vmatprep.subr.mxu0 0.0
        %1113 = vmatpush1.msra.mxu0 0.0
        %1114 = vmatprep.subr.mxu0 0.0
        %1115 = vmatpush1.msra.mxu0 0.0
        %1116 = vmatprep.subr.mxu0 0.0
        %1117 = vmatpush1.msra.mxu0 0.0
        %1118 = vmatprep.subr.mxu0 0.0
        %1119 = vmatpush1.msra.mxu0 0.0
        %1120 = vmatprep.subr.mxu0 0.0
        %1121 = vmatpush1.msra.mxu0 0.0
        %1122 = vmatprep.subr.mxu0 0.0
        %1123 = vmatpush1.msra.mxu0 0.0
        %1124 = vmatprep.subr.mxu0 0.0
        %1125 = vmatpush1.msra.mxu0 0.0
        %1126 = vmatprep.subr.mxu0 0.0
        %1127 = vmatpush1.msra.mxu0 0.0
        %1128 = vmatprep.subr.mxu0 0.0
        %1129 = vmatpush1.msra.mxu0 0.0
        %1130 = vmatprep.mubr.f32.mxu0 0.0
        %1131 = vmatmul.mubr.f32.gmra.mrb[0].mxu0 %v1064
        %v1132 = vpop.f32.mrb[0].mxu0
        %v1133 = vadd.f32 0.0, %v1132
        %v1134 = vpop.f32.mrb[0].mxu0
        %1135 = vdwg.mxu0
        %v1136 = vmul.f32 %v1133, 0.17677669
        %1137 = vmatprep.subr.mxu0 0.0
        %1138 = vmatpush1.msra.mxu0 %v1049
        %1139 = vmatprep.subr.mxu0 0.0
        %1140 = vmatpush1.msra.mxu0 %v1050
        %1141 = vmatprep.subr.mxu0 0.0
        %1142 = vmatpush1.msra.mxu0 %v1051
        %1143 = vmatprep.subr.mxu0 0.0
        %1144 = vmatpush1.msra.mxu0 %v1052
        %1145 = vmatprep.subr.mxu0 0.0
        %1146 = vmatpush1.msra.mxu0 0.0
        %1147 = vmatprep.subr.mxu0 0.0
        %1148 = vmatpush1.msra.mxu0 0.0
        %1149 = vmatprep.subr.mxu0 0.0
        %1150 = vmatpush1.msra.mxu0 0.0
        %1151 = vmatprep.subr.mxu0 0.0
        %1152 = vmatpush1.msra.mxu0 0.0
        %1153 = vmatprep.subr.mxu0 0.0
        %1154 = vmatpush1.msra.mxu0 0.0
        %1155 = vmatprep.subr.mxu0 0.0
        %1156 = vmatpush1.msra.mxu0 0.0
        %1157 = vmatprep.subr.mxu0 0.0
        %1158 = vmatpush1.msra.mxu0 0.0
        %1159 = vmatprep.subr.mxu0 0.0
        %1160 = vmatpush1.msra.mxu0 0.0
        %1161 = vmatprep.subr.mxu0 0.0
        %1162 = vmatpush1.msra.mxu0 0.0
        %1163 = vmatprep.subr.mxu0 0.0
        %1164 = vmatpush1.msra.mxu0 0.0
        %1165 = vmatprep.subr.mxu0 0.0
        %1166 = vmatpush1.msra.mxu0 0.0
        %1167 = vmatprep.subr.mxu0 0.0
        %1168 = vmatpush1.msra.mxu0 0.0
        %1169 = vmatprep.subr.mxu0 0.0
        %1170 = vmatpush1.msra.mxu0 0.0
        %1171 = vmatprep.subr.mxu0 0.0
        %1172 = vmatpush1.msra.mxu0 0.0
        %1173 = vmatprep.subr.mxu0 0.0
        %1174 = vmatpush1.msra.mxu0 0.0
        %1175 = vmatprep.subr.mxu0 0.0
        %1176 = vmatpush1.msra.mxu0 0.0
        %1177 = vmatprep.subr.mxu0 0.0
        %1178 = vmatpush1.msra.mxu0 0.0
        %1179 = vmatprep.subr.mxu0 0.0
        %1180 = vmatpush1.msra.mxu0 0.0
        %1181 = vmatprep.subr.mxu0 0.0
        %1182 = vmatpush1.msra.mxu0 0.0
        %1183 = vmatprep.subr.mxu0 0.0
        %1184 = vmatpush1.msra.mxu0 0.0
        %1185 = vmatprep.subr.mxu0 0.0
        %1186 = vmatpush1.msra.mxu0 0.0
        %1187 = vmatprep.subr.mxu0 0.0
        %1188 = vmatpush1.msra.mxu0 0.0
        %1189 = vmatprep.subr.mxu0 0.0
        %1190 = vmatpush1.msra.mxu0 0.0
        %1191 = vmatprep.subr.mxu0 0.0
        %1192 = vmatpush1.msra.mxu0 0.0
        %1193 = vmatprep.subr.mxu0 0.0
        %1194 = vmatpush1.msra.mxu0 0.0
        %1195 = vmatprep.subr.mxu0 0.0
        %1196 = vmatpush1.msra.mxu0 0.0
        %1197 = vmatprep.subr.mxu0 0.0
        %1198 = vmatpush1.msra.mxu0 0.0
        %1199 = vmatprep.subr.mxu0 0.0
        %1200 = vmatpush1.msra.mxu0 0.0
        %1201 = vmatprep.mubr.f32.mxu0 0.0
        %1202 = vmatmul.mubr.f32.gmra.mrb[0].mxu0 %v1064
        %v1203 = vpop.f32.mrb[0].mxu0
        %v1204 = vadd.f32 0.0, %v1203
        %v1205 = vpop.f32.mrb[0].mxu0
        %1206 = vdwg.mxu0
        %1207 = vmatprep.subr.mxu0 0.0
        %1208 = vmatpush1.msra.mxu0 %v1053
        %1209 = vmatprep.subr.mxu0 0.0
        %1210 = vmatpush1.msra.mxu0 %v1054
        %1211 = vmatprep.subr.mxu0 0.0
        %1212 = vmatpush1.msra.mxu0 %v1055
        %1213 = vmatprep.subr.mxu0 0.0
        %1214 = vmatpush1.msra.mxu0 %v1056
        %1215 = vmatprep.subr.mxu0 0.0
        %1216 = vmatpush1.msra.mxu0 0.0
        %1217 = vmatprep.subr.mxu0 0.0
        %1218 = vmatpush1.msra.mxu0 0.0
        %1219 = vmatprep.subr.mxu0 0.0
        %1220 = vmatpush1.msra.mxu0 0.0
        %1221 = vmatprep.subr.mxu0 0.0
        %1222 = vmatpush1.msra.mxu0 0.0
        %1223 = vmatprep.subr.mxu0 0.0
        %1224 = vmatpush1.msra.mxu0 0.0
        %1225 = vmatprep.subr.mxu0 0.0
        %1226 = vmatpush1.msra.mxu0 0.0
        %1227 = vmatprep.subr.mxu0 0.0
        %1228 = vmatpush1.msra.mxu0 0.0
        %1229 = vmatprep.subr.mxu0 0.0
        %1230 = vmatpush1.msra.mxu0 0.0
        %1231 = vmatprep.subr.mxu0 0.0
        %1232 = vmatpush1.msra.mxu0 0.0
        %1233 = vmatprep.subr.mxu0 0.0
        %1234 = vmatpush1.msra.mxu0 0.0
        %1235 = vmatprep.subr.mxu0 0.0
        %1236 = vmatpush1.msra.mxu0 0.0
        %1237 = vmatprep.subr.mxu0 0.0
        %1238 = vmatpush1.msra.mxu0 0.0
        %1239 = vmatprep.subr.mxu0 0.0
        %1240 = vmatpush1.msra.mxu0 0.0
        %1241 = vmatprep.subr.mxu0 0.0
        %1242 = vmatpush1.msra.mxu0 0.0
        %1243 = vmatprep.subr.mxu0 0.0
        %1244 = vmatpush1.msra.mxu0 0.0
        %1245 = vmatprep.subr.mxu0 0.0
        %1246 = vmatpush1.msra.mxu0 0.0
        %1247 = vmatprep.subr.mxu0 0.0
        %1248 = vmatpush1.msra.mxu0 0.0
        %1249 = vmatprep.subr.mxu0 0.0
        %1250 = vmatpush1.msra.mxu0 0.0
        %1251 = vmatprep.subr.mxu0 0.0
        %1252 = vmatpush1.msra.mxu0 0.0
        %1253 = vmatprep.subr.mxu0 0.0
        %1254 = vmatpush1.msra.mxu0 0.0
        %1255 = vmatprep.subr.mxu0 0.0
        %1256 = vmatpush1.msra.mxu0 0.0
        %1257 = vmatprep.subr.mxu0 0.0
        %1258 = vmatpush1.msra.mxu0 0.0
        %1259 = vmatprep.subr.mxu0 0.0
        %1260 = vmatpush1.msra.mxu0 0.0
        %1261 = vmatprep.subr.mxu0 0.0
        %1262 = vmatpush1.msra.mxu0 0.0
        %1263 = vmatprep.subr.mxu0 0.0
        %1264 = vmatpush1.msra.mxu0 0.0
        %1265 = vmatprep.subr.mxu0 0.0
        %1266 = vmatpush1.msra.mxu0 0.0
        %1267 = vmatprep.subr.mxu0 0.0
        %1268 = vmatpush1.msra.mxu0 0.0
        %1269 = vmatprep.subr.mxu0 0.0
        %1270 = vmatpush1.msra.mxu0 0.0
        %1271 = vmatprep.mubr.f32.mxu0 0.0
        %1272 = vmatmul.mubr.f32.gmra.mrb[0].mxu0 %v1064
        %v1273 = vpop.f32.mrb[0].mxu0
        %v1274 = vadd.f32 0.0, %v1273
        %v1275 = vpop.f32.mrb[0].mxu0
        %1276 = vdwg.mxu0
        %vm1277 = vcmask 64512
        %v1279 = vsel %vm1277, %v1136, 0
        %v1282 = vsel %vm1277, %v1204, 0
        %1284 = vmatprep.subr.mxu0 0.0
        %1285 = vmatpush1.xpose.msra.mxu0 %v1282
        %1286 = vmatprep.subr.mxu0 0.0
        %1287 = vmatpush1.xpose.msra.mxu0 0.0
        %1288 = vmatprep.subr.mxu0 0.0
        %1289 = vmatpush1.xpose.msra.mxu0 0.0
        %1290 = vmatprep.subr.mxu0 0.0
        %1291 = vmatpush1.xpose.msra.mxu0 0.0
        %1292 = vmatprep.subr.mxu0 0.0
        %1293 = vmatpush1.xpose.msra.mxu0 0.0
        %1294 = vmatprep.subr.mxu0 0.0
        %1295 = vmatpush1.xpose.msra.mxu0 0.0
        %1296 = vmatprep.subr.mxu0 0.0
        %1297 = vmatpush1.xpose.msra.mxu0 0.0
        %1298 = vmatprep.subr.mxu0 0.0
        %1299 = vmatpush1.xpose.msra.mxu0 0.0
        %1300 = vmatprep.subr.mxu0 0.0
        %1301 = vmatpush1.xpose.msra.mxu0 0.0
        %1302 = vmatprep.subr.mxu0 0.0
        %1303 = vmatpush1.xpose.msra.mxu0 0.0
        %1304 = vmatprep.subr.mxu0 0.0
        %1305 = vmatpush1.xpose.msra.mxu0 0.0
        %1306 = vmatprep.subr.mxu0 0.0
        %1307 = vmatpush1.xpose.msra.mxu0 0.0
        %1308 = vmatprep.subr.mxu0 0.0
        %1309 = vmatpush1.xpose.msra.mxu0 0.0
        %1310 = vmatprep.subr.mxu0 0.0
        %1311 = vmatpush1.xpose.msra.mxu0 0.0
        %1312 = vmatprep.subr.mxu0 0.0
        %1313 = vmatpush1.xpose.msra.mxu0 0.0
        %1314 = vmatprep.subr.mxu0 0.0
        %1315 = vmatpush1.xpose.msra.mxu0 0.0
        %1316 = vmatprep.subr.mxu0 0.0
        %1317 = vmatpush1.xpose.msra.mxu0 0.0
        %1318 = vmatprep.subr.mxu0 0.0
        %1319 = vmatpush1.xpose.msra.mxu0 0.0
        %1320 = vmatprep.subr.mxu0 0.0
        %1321 = vmatpush1.xpose.msra.mxu0 0.0
        %1322 = vmatprep.subr.mxu0 0.0
        %1323 = vmatpush1.xpose.msra.mxu0 0.0
        %1324 = vmatprep.subr.mxu0 0.0
        %1325 = vmatpush1.xpose.msra.mxu0 0.0
        %1326 = vmatprep.subr.mxu0 0.0
        %1327 = vmatpush1.xpose.msra.mxu0 0.0
        %1328 = vmatprep.subr.mxu0 0.0
        %1329 = vmatpush1.xpose.msra.mxu0 0.0
        %1330 = vmatprep.subr.mxu0 0.0
        %1331 = vmatpush1.xpose.msra.mxu0 0.0
        %1332 = vmatprep.subr.mxu0 0.0
        %1333 = vmatpush1.xpose.msra.mxu0 0.0
        %1334 = vmatprep.subr.mxu0 0.0
        %1335 = vmatpush1.xpose.msra.mxu0 0.0
        %1336 = vmatprep.subr.mxu0 0.0
        %1337 = vmatpush1.xpose.msra.mxu0 0.0
        %1338 = vmatprep.subr.mxu0 0.0
        %1339 = vmatpush1.xpose.msra.mxu0 0.0
        %1340 = vmatprep.subr.mxu0 0.0
        %1341 = vmatpush1.xpose.msra.mxu0 0.0
        %1342 = vmatprep.subr.mxu0 0.0
        %1343 = vmatpush1.xpose.msra.mxu0 0.0
        %1344 = vmatprep.subr.mxu0 0.0
        %1345 = vmatpush1.xpose.msra.mxu0 0.0
        %1346 = vmatprep.subr.mxu0 0.0
        %1347 = vmatpush1.xpose.msra.mxu0 0.0
        %1348 = vmatprep.mubr.f32.mxu0 0.0
        %1349 = vmatmul.mubr.f32.gmra.mrb[0].mxu0 %v1279
        %v1350 = vpop.f32.mrb[0].mxu0
        %v1351 = vadd.f32 %v1041, %v1350
        %v1352 = vpop.f32.mrb[0].mxu0
        %1353 = vdwg.mxu0
        %v1354 = vsel %vm1277, %v1351, -inf
        %1355 = vmax.xlane.f32.xlu0 %v1354
        %v1356 = vpop.xlane.xlu0 %1355
        %v1357 = vsub.f32 %v1351, %v1356
        %v1358 = vmul.f32 %v1357, 1.442695
        %v1359 = vpow.pop %v1358
        %v1360 = vsel %vm1277, %v1359, 0.0
        %1361 = vadd.xlane.f32.xlu0 %v1360
        %v1362 = vpop.xlane.xlu0 %1361
        %v1363 = vrcp.pop %v1362
        %v1364 = vmul.f32 %v1359, %v1363
        %v1366 = vsel %vm1277, %v1364, 0
        %1368 = vmatprep.subr.mxu0 0.0
        %1369 = vmatpush1.msra.mxu0 %v1274
        %1370 = vmatprep.subr.mxu0 0.0
        %1371 = vmatpush1.msra.mxu0 0.0
        %1372 = vmatprep.subr.mxu0 0.0
        %1373 = vmatpush1.msra.mxu0 0.0
        %1374 = vmatprep.subr.mxu0 0.0
        %1375 = vmatpush1.msra.mxu0 0.0
        %1376 = vmatprep.subr.mxu0 0.0
        %1377 = vmatpush1.msra.mxu0 0.0
        %1378 = vmatprep.subr.mxu0 0.0
        %1379 = vmatpush1.msra.mxu0 0.0
        %1380 = vmatprep.subr.mxu0 0.0
        %1381 = vmatpush1.msra.mxu0 0.0
        %1382 = vmatprep.subr.mxu0 0.0
        %1383 = vmatpush1.msra.mxu0 0.0
        %1384 = vmatprep.subr.mxu0 0.0
        %1385 = vmatpush1.msra.mxu0 0.0
        %1386 = vmatprep.subr.mxu0 0.0
        %1387 = vmatpush1.msra.mxu0 0.0
        %1388 = vmatprep.subr.mxu0 0.0
        %1389 = vmatpush1.msra.mxu0 0.0
        %1390 = vmatprep.subr.mxu0 0.0
        %1391 = vmatpush1.msra.mxu0 0.0
        %1392 = vmatprep.subr.mxu0 0.0
        %1393 = vmatpush1.msra.mxu0 0.0
        %1394 = vmatprep.subr.mxu0 0.0
        %1395 = vmatpush1.msra.mxu0 0.0
        %1396 = vmatprep.subr.mxu0 0.0
        %1397 = vmatpush1.msra.mxu0 0.0
        %1398 = vmatprep.subr.mxu0 0.0
        %1399 = vmatpush1.msra.mxu0 0.0
        %1400 = vmatprep.subr.mxu0 0.0
        %1401 = vmatpush1.msra.mxu0 0.0
        %1402 = vmatprep.subr.mxu0 0.0
        %1403 = vmatpush1.msra.mxu0 0.0
        %1404 = vmatprep.subr.mxu0 0.0
        %1405 = vmatpush1.msra.mxu0 0.0
        %1406 = vmatprep.subr.mxu0 0.0
        %1407 = vmatpush1.msra.mxu0 0.0
        %1408 = vmatprep.subr.mxu0 0.0
        %1409 = vmatpush1.msra.mxu0 0.0
        %1410 = vmatprep.subr.mxu0 0.0
        %1411 = vmatpush1.msra.mxu0 0.0
        %1412 = vmatprep.subr.mxu0 0.0
        %1413 = vmatpush1.msra.mxu0 0.0
        %1414 = vmatprep.subr.mxu0 0.0
        %1415 = vmatpush1.msra.mxu0 0.0
        %1416 = vmatprep.subr.mxu0 0.0
        %1417 = vmatpush1.msra.mxu0 0.0
        %1418 = vmatprep.subr.mxu0 0.0
        %1419 = vmatpush1.msra.mxu0 0.0
        %1420 = vmatprep.subr.mxu0 0.0
        %1421 = vmatpush1.msra.mxu0 0.0
        %1422 = vmatprep.subr.mxu0 0.0
        %1423 = vmatpush1.msra.mxu0 0.0
        %1424 = vmatprep.subr.mxu0 0.0
        %1425 = vmatpush1.msra.mxu0 0.0
        %1426 = vmatprep.subr.mxu0 0.0
        %1427 = vmatpush1.msra.mxu0 0.0
        %1428 = vmatprep.subr.mxu0 0.0
        %1429 = vmatpush1.msra.mxu0 0.0
        %1430 = vmatprep.subr.mxu0 0.0
        %1431 = vmatpush1.msra.mxu0 0.0
        %1432 = vmatprep.mubr.f32.mxu0 0.0
        %1433 = vmatmul.mubr.f32.gmra.mrb[0].mxu0 %v1366
        %v1434 = vpop.f32.mrb[0].mxu0
        %v1435 = vadd.f32 0.0, %v1434
        %v1436 = vpop.f32.mrb[0].mxu0
        %1437 = vdwg.mxu0
        %1438 = vrot.lane.b32.xlu0 %v1136, 120
        %v1439 = vpop.permute.xlu0 %1438
        %1440 = vrot.lane.b32.xlu0 %v1204, 120
        %v1441 = vpop.permute.xlu0 %1440
        %v1442 = vsel %vm1277, %v1439, 0
        %v1444 = vsel %vm1277, %v1441, 0
        %1446 = vmatprep.subr.mxu0 0.0
        %1447 = vmatpush1.xpose.msra.mxu0 %v1444
        %1448 = vmatprep.subr.mxu0 0.0
        %1449 = vmatpush1.xpose.msra.mxu0 0.0
        %1450 = vmatprep.subr.mxu0 0.0
        %1451 = vmatpush1.xpose.msra.mxu0 0.0
        %1452 = vmatprep.subr.mxu0 0.0
        %1453 = vmatpush1.xpose.msra.mxu0 0.0
        %1454 = vmatprep.subr.mxu0 0.0
        %1455 = vmatpush1.xpose.msra.mxu0 0.0
        %1456 = vmatprep.subr.mxu0 0.0
        %1457 = vmatpush1.xpose.msra.mxu0 0.0
        %1458 = vmatprep.subr.mxu0 0.0
        %1459 = vmatpush1.xpose.msra.mxu0 0.0
        %1460 = vmatprep.subr.mxu0 0.0
        %1461 = vmatpush1.xpose.msra.mxu0 0.0
        %1462 = vmatprep.subr.mxu0 0.0
        %1463 = vmatpush1.xpose.msra.mxu0 0.0
        %1464 = vmatprep.subr.mxu0 0.0
        %1465 = vmatpush1.xpose.msra.mxu0 0.0
        %1466 = vmatprep.subr.mxu0 0.0
        %1467 = vmatpush1.xpose.msra.mxu0 0.0
        %1468 = vmatprep.subr.mxu0 0.0
        %1469 = vmatpush1.xpose.msra.mxu0 0.0
        %1470 = vmatprep.subr.mxu0 0.0
        %1471 = vmatpush1.xpose.msra.mxu0 0.0
        %1472 = vmatprep.subr.mxu0 0.0
        %1473 = vmatpush1.xpose.msra.mxu0 0.0
        %1474 = vmatprep.subr.mxu0 0.0
        %1475 = vmatpush1.xpose.msra.mxu0 0.0
        %1476 = vmatprep.subr.mxu0 0.0
        %1477 = vmatpush1.xpose.msra.mxu0 0.0
        %1478 = vmatprep.subr.mxu0 0.0
        %1479 = vmatpush1.xpose.msra.mxu0 0.0
        %1480 = vmatprep.subr.mxu0 0.0
        %1481 = vmatpush1.xpose.msra.mxu0 0.0
        %1482 = vmatprep.subr.mxu0 0.0
        %1483 = vmatpush1.xpose.msra.mxu0 0.0
        %1484 = vmatprep.subr.mxu0 0.0
        %1485 = vmatpush1.xpose.msra.mxu0 0.0
        %1486 = vmatprep.subr.mxu0 0.0
        %1487 = vmatpush1.xpose.msra.mxu0 0.0
        %1488 = vmatprep.subr.mxu0 0.0
        %1489 = vmatpush1.xpose.msra.mxu0 0.0
        %1490 = vmatprep.subr.mxu0 0.0
        %1491 = vmatpush1.xpose.msra.mxu0 0.0
        %1492 = vmatprep.subr.mxu0 0.0
        %1493 = vmatpush1.xpose.msra.mxu0 0.0
        %1494 = vmatprep.subr.mxu0 0.0
        %1495 = vmatpush1.xpose.msra.mxu0 0.0
        %1496 = vmatprep.subr.mxu0 0.0
        %1497 = vmatpush1.xpose.msra.mxu0 0.0
        %1498 = vmatprep.subr.mxu0 0.0
        %1499 = vmatpush1.xpose.msra.mxu0 0.0
        %1500 = vmatprep.subr.mxu0 0.0
        %1501 = vmatpush1.xpose.msra.mxu0 0.0
        %1502 = vmatprep.subr.mxu0 0.0
        %1503 = vmatpush1.xpose.msra.mxu0 0.0
        %1504 = vmatprep.subr.mxu0 0.0
        %1505 = vmatpush1.xpose.msra.mxu0 0.0
        %1506 = vmatprep.subr.mxu0 0.0
        %1507 = vmatpush1.xpose.msra.mxu0 0.0
        %1508 = vmatprep.subr.mxu0 0.0
        %1509 = vmatpush1.xpose.msra.mxu0 0.0
        %1510 = vmatprep.mubr.f32.mxu0 0.0
        %1511 = vmatmul.mubr.f32.gmra.mrb[0].mxu0 %v1442
        %v1512 = vpop.f32.mrb[0].mxu0
        %v1513 = vadd.f32 %v1041, %v1512
        %v1514 = vpop.f32.mrb[0].mxu0
        %1515 = vdwg.mxu0
        %v1516 = vsel %vm1277, %v1513, -inf
        %1517 = vmax.xlane.f32.xlu0 %v1516
        %v1518 = vpop.xlane.xlu0 %1517
        %v1519 = vsub.f32 %v1513, %v1518
        %v1520 = vmul.f32 %v1519, 1.442695
        %v1521 = vpow.pop %v1520
        %v1522 = vsel %vm1277, %v1521, 0.0
        %1523 = vadd.xlane.f32.xlu0 %v1522
        %v1524 = vpop.xlane.xlu0 %1523
        %v1525 = vrcp.pop %v1524
        %v1526 = vmul.f32 %v1521, %v1525
        %1528 = vrot.lane.b32.xlu0 %v1274, 120
        %v1529 = vpop.permute.xlu0 %1528
        %v1532 = vsel %vm1277, %v1526, 0
        %1534 = vmatprep.subr.mxu0 0.0
        %1535 = vmatpush1.msra.mxu0 %v1529
        %1536 = vmatprep.subr.mxu0 0.0
        %1537 = vmatpush1.msra.mxu0 0.0
        %1538 = vmatprep.subr.mxu0 0.0
        %1539 = vmatpush1.msra.mxu0 0.0
        %1540 = vmatprep.subr.mxu0 0.0
        %1541 = vmatpush1.msra.mxu0 0.0
        %1542 = vmatprep.subr.mxu0 0.0
        %1543 = vmatpush1.msra.mxu0 0.0
        %1544 = vmatprep.subr.mxu0 0.0
        %1545 = vmatpush1.msra.mxu0 0.0
        %1546 = vmatprep.subr.mxu0 0.0
        %1547 = vmatpush1.msra.mxu0 0.0
        %1548 = vmatprep.subr.mxu0 0.0
        %1549 = vmatpush1.msra.mxu0 0.0
        %1550 = vmatprep.subr.mxu0 0.0
        %1551 = vmatpush1.msra.mxu0 0.0
        %1552 = vmatprep.subr.mxu0 0.0
        %1553 = vmatpush1.msra.mxu0 0.0
        %1554 = vmatprep.subr.mxu0 0.0
        %1555 = vmatpush1.msra.mxu0 0.0
        %1556 = vmatprep.subr.mxu0 0.0
        %1557 = vmatpush1.msra.mxu0 0.0
        %1558 = vmatprep.subr.mxu0 0.0
        %1559 = vmatpush1.msra.mxu0 0.0
        %1560 = vmatprep.subr.mxu0 0.0
        %1561 = vmatpush1.msra.mxu0 0.0
        %1562 = vmatprep.subr.mxu0 0.0
        %1563 = vmatpush1.msra.mxu0 0.0
        %1564 = vmatprep.subr.mxu0 0.0
        %1565 = vmatpush1.msra.mxu0 0.0
        %1566 = vmatprep.subr.mxu0 0.0
        %1567 = vmatpush1.msra.mxu0 0.0
        %1568 = vmatprep.subr.mxu0 0.0
        %1569 = vmatpush1.msra.mxu0 0.0
        %1570 = vmatprep.subr.mxu0 0.0
        %1571 = vmatpush1.msra.mxu0 0.0
        %1572 = vmatprep.subr.mxu0 0.0
        %1573 = vmatpush1.msra.mxu0 0.0
        %1574 = vmatprep.subr.mxu0 0.0
        %1575 = vmatpush1.msra.mxu0 0.0
        %1576 = vmatprep.subr.mxu0 0.0
        %1577 = vmatpush1.msra.mxu0 0.0
        %1578 = vmatprep.subr.mxu0 0.0
        %1579 = vmatpush1.msra.mxu0 0.0
        %1580 = vmatprep.subr.mxu0 0.0
        %1581 = vmatpush1.msra.mxu0 0.0
        %1582 = vmatprep.subr.mxu0 0.0
        %1583 = vmatpush1.msra.mxu0 0.0
        %1584 = vmatprep.subr.mxu0 0.0
        %1585 = vmatpush1.msra.mxu0 0.0
        %1586 = vmatprep.subr.mxu0 0.0
        %1587 = vmatpush1.msra.mxu0 0.0
        %1588 = vmatprep.subr.mxu0 0.0
        %1589 = vmatpush1.msra.mxu0 0.0
        %1590 = vmatprep.subr.mxu0 0.0
        %1591 = vmatpush1.msra.mxu0 0.0
        %1592 = vmatprep.subr.mxu0 0.0
        %1593 = vmatpush1.msra.mxu0 0.0
        %1594 = vmatprep.subr.mxu0 0.0
        %1595 = vmatpush1.msra.mxu0 0.0
        %1596 = vmatprep.subr.mxu0 0.0
        %1597 = vmatpush1.msra.mxu0 0.0
        %1598 = vmatprep.mubr.f32.mxu0 0.0
        %1599 = vmatmul.mubr.f32.gmra.mrb[0].mxu0 %v1532
        %v1600 = vpop.f32.mrb[0].mxu0
        %v1601 = vadd.f32 0.0, %v1600
        %v1602 = vpop.f32.mrb[0].mxu0
        %1603 = vdwg.mxu0
        %v1605 = vsel %vm1277, %v1601, 0
        %1607 = vmatprep.subr.mxu0 0.0
        %1608 = vmatpush1.msra.mxu0 %v1058
        %1609 = vmatprep.subr.mxu0 0.0
        %1610 = vmatpush1.msra.mxu0 0.0
        %1611 = vmatprep.subr.mxu0 0.0
        %1612 = vmatpush1.msra.mxu0 0.0
        %1613 = vmatprep.subr.mxu0 0.0
        %1614 = vmatpush1.msra.mxu0 0.0
        %1615 = vmatprep.subr.mxu0 0.0
        %1616 = vmatpush1.msra.mxu0 0.0
        %1617 = vmatprep.subr.mxu0 0.0
        %1618 = vmatpush1.msra.mxu0 0.0
        %1619 = vmatprep.subr.mxu0 0.0
        %1620 = vmatpush1.msra.mxu0 0.0
        %1621 = vmatprep.subr.mxu0 0.0
        %1622 = vmatpush1.msra.mxu0 0.0
        %1623 = vmatprep.subr.mxu0 0.0
        %1624 = vmatpush1.msra.mxu0 0.0
        %1625 = vmatprep.subr.mxu0 0.0
        %1626 = vmatpush1.msra.mxu0 0.0
        %1627 = vmatprep.subr.mxu0 0.0
        %1628 = vmatpush1.msra.mxu0 0.0
        %1629 = vmatprep.subr.mxu0 0.0
        %1630 = vmatpush1.msra.mxu0 0.0
        %1631 = vmatprep.subr.mxu0 0.0
        %1632 = vmatpush1.msra.mxu0 0.0
        %1633 = vmatprep.subr.mxu0 0.0
        %1634 = vmatpush1.msra.mxu0 0.0
        %1635 = vmatprep.subr.mxu0 0.0
        %1636 = vmatpush1.msra.mxu0 0.0
        %1637 = vmatprep.subr.mxu0 0.0
        %1638 = vmatpush1.msra.mxu0 0.0
        %1639 = vmatprep.subr.mxu0 0.0
        %1640 = vmatpush1.msra.mxu0 0.0
        %1641 = vmatprep.subr.mxu0 0.0
        %1642 = vmatpush1.msra.mxu0 0.0
        %1643 = vmatprep.subr.mxu0 0.0
        %1644 = vmatpush1.msra.mxu0 0.0
        %1645 = vmatprep.subr.mxu0 0.0
        %1646 = vmatpush1.msra.mxu0 0.0
        %1647 = vmatprep.subr.mxu0 0.0
        %1648 = vmatpush1.msra.mxu0 0.0
        %1649 = vmatprep.subr.mxu0 0.0
        %1650 = vmatpush1.msra.mxu0 0.0
        %1651 = vmatprep.subr.mxu0 0.0
        %1652 = vmatpush1.msra.mxu0 0.0
        %1653 = vmatprep.subr.mxu0 0.0
        %1654 = vmatpush1.msra.mxu0 0.0
        %1655 = vmatprep.subr.mxu0 0.0
        %1656 = vmatpush1.msra.mxu0 0.0
        %1657 = vmatprep.subr.mxu0 0.0
        %1658 = vmatpush1.msra.mxu0 0.0
        %1659 = vmatprep.subr.mxu0 0.0
        %1660 = vmatpush1.msra.mxu0 0.0
        %1661 = vmatprep.subr.mxu0 0.0
        %1662 = vmatpush1.msra.mxu0 0.0
        %1663 = vmatprep.subr.mxu0 0.0
        %1664 = vmatpush1.msra.mxu0 0.0
        %1665 = vmatprep.subr.mxu0 0.0
        %1666 = vmatpush1.msra.mxu0 0.0
        %1667 = vmatprep.subr.mxu0 0.0
        %1668 = vmatpush1.msra.mxu0 0.0
        %1669 = vmatprep.subr.mxu0 0.0
        %1670 = vmatpush1.msra.mxu0 0.0
        %1671 = vmatprep.mubr.f32.mxu0 0.0
        %1672 = vmatmul.mubr.f32.gmra.mrb[0].mxu0 %v1605
        %v1673 = vpop.f32.mrb[0].mxu0
        %v1674 = vadd.f32 0.0, %v1673
        %v1675 = vpop.f32.mrb[0].mxu0
        %1676 = vdwg.mxu0
        %v1678 = vsel %vm1277, %v1435, 0
        %1680 = vmatprep.subr.mxu0 0.0
        %1681 = vmatpush1.msra.mxu0 %v1057
        %1682 = vmatprep.subr.mxu0 0.0
        %1683 = vmatpush1.msra.mxu0 0.0
        %1684 = vmatprep.subr.mxu0 0.0
        %1685 = vmatpush1.msra.mxu0 0.0
        %1686 = vmatprep.subr.mxu0 0.0
        %1687 = vmatpush1.msra.mxu0 0.0
        %1688 = vmatprep.subr.mxu0 0.0
        %1689 = vmatpush1.msra.mxu0 0.0
        %1690 = vmatprep.subr.mxu0 0.0
        %1691 = vmatpush1.msra.mxu0 0.0
        %1692 = vmatprep.subr.mxu0 0.0
        %1693 = vmatpush1.msra.mxu0 0.0
        %1694 = vmatprep.subr.mxu0 0.0
        %1695 = vmatpush1.msra.mxu0 0.0
        %1696 = vmatprep.subr.mxu0 0.0
        %1697 = vmatpush1.msra.mxu0 0.0
        %1698 = vmatprep.subr.mxu0 0.0
        %1699 = vmatpush1.msra.mxu0 0.0
        %1700 = vmatprep.subr.mxu0 0.0
        %1701 = vmatpush1.msra.mxu0 0.0
        %1702 = vmatprep.subr.mxu0 0.0
        %1703 = vmatpush1.msra.mxu0 0.0
        %1704 = vmatprep.subr.mxu0 0.0
        %1705 = vmatpush1.msra.mxu0 0.0
        %1706 = vmatprep.subr.mxu0 0.0
        %1707 = vmatpush1.msra.mxu0 0.0
        %1708 = vmatprep.subr.mxu0 0.0
        %1709 = vmatpush1.msra.mxu0 0.0
        %1710 = vmatprep.subr.mxu0 0.0
        %1711 = vmatpush1.msra.mxu0 0.0
        %1712 = vmatprep.subr.mxu0 0.0
        %1713 = vmatpush1.msra.mxu0 0.0
        %1714 = vmatprep.subr.mxu0 0.0
        %1715 = vmatpush1.msra.mxu0 0.0
        %1716 = vmatprep.subr.mxu0 0.0
        %1717 = vmatpush1.msra.mxu0 0.0
        %1718 = vmatprep.subr.mxu0 0.0
        %1719 = vmatpush1.msra.mxu0 0.0
        %1720 = vmatprep.subr.mxu0 0.0
        %1721 = vmatpush1.msra.mxu0 0.0
        %1722 = vmatprep.subr.mxu0 0.0
        %1723 = vmatpush1.msra.mxu0 0.0
        %1724 = vmatprep.subr.mxu0 0.0
        %1725 = vmatpush1.msra.mxu0 0.0
        %1726 = vmatprep.subr.mxu0 0.0
        %1727 = vmatpush1.msra.mxu0 0.0
        %1728 = vmatprep.subr.mxu0 0.0
        %1729 = vmatpush1.msra.mxu0 0.0
        %1730 = vmatprep.subr.mxu0 0.0
        %1731 = vmatpush1.msra.mxu0 0.0
        %1732 = vmatprep.subr.mxu0 0.0
        %1733 = vmatpush1.msra.mxu0 0.0
        %1734 = vmatprep.subr.mxu0 0.0
        %1735 = vmatpush1.msra.mxu0 0.0
        %1736 = vmatprep.subr.mxu0 0.0
        %1737 = vmatpush1.msra.mxu0 0.0
        %1738 = vmatprep.subr.mxu0 0.0
        %1739 = vmatpush1.msra.mxu0 0.0
        %1740 = vmatprep.subr.mxu0 0.0
        %1741 = vmatpush1.msra.mxu0 0.0
        %1742 = vmatprep.subr.mxu0 0.0
        %1743 = vmatpush1.msra.mxu0 0.0
        %1744 = vmatprep.mubr.f32.mxu0 0.0
        %1745 = vmatmul.mubr.f32.gmra.mrb[0].mxu0 %v1678
        %v1746 = vpop.f32.mrb[0].mxu0
        %v1747 = vadd.f32 %v1674, %v1746
        %v1748 = vpop.f32.mrb[0].mxu0
        %1749 = vdwg.mxu0
        %1750 = vrot.lane.b32.xlu0 %v1136, 112
        %v1751 = vpop.permute.xlu0 %1750
        %1752 = vrot.lane.b32.xlu0 %v1204, 112
        %v1753 = vpop.permute.xlu0 %1752
        %v1754 = vsel %vm1277, %v1751, 0
        %v1756 = vsel %vm1277, %v1753, 0
        %1758 = vmatprep.subr.mxu0 0.0
        %1759 = vmatpush1.xpose.msra.mxu0 %v1756
        %1760 = vmatprep.subr.mxu0 0.0
        %1761 = vmatpush1.xpose.msra.mxu0 0.0
        %1762 = vmatprep.subr.mxu0 0.0
        %1763 = vmatpush1.xpose.msra.mxu0 0.0
        %1764 = vmatprep.subr.mxu0 0.0
        %1765 = vmatpush1.xpose.msra.mxu0 0.0
        %1766 = vmatprep.subr.mxu0 0.0
        %1767 = vmatpush1.xpose.msra.mxu0 0.0
        %1768 = vmatprep.subr.mxu0 0.0
        %1769 = vmatpush1.xpose.msra.mxu0 0.0
        %1770 = vmatprep.subr.mxu0 0.0
        %1771 = vmatpush1.xpose.msra.mxu0 0.0
        %1772 = vmatprep.subr.mxu0 0.0
        %1773 = vmatpush1.xpose.msra.mxu0 0.0
        %1774 = vmatprep.subr.mxu0 0.0
        %1775 = vmatpush1.xpose.msra.mxu0 0.0
        %1776 = vmatprep.subr.mxu0 0.0
        %1777 = vmatpush1.xpose.msra.mxu0 0.0
        %1778 = vmatprep.subr.mxu0 0.0
        %1779 = vmatpush1.xpose.msra.mxu0 0.0
        %1780 = vmatprep.subr.mxu0 0.0
        %1781 = vmatpush1.xpose.msra.mxu0 0.0
        %1782 = vmatprep.subr.mxu0 0.0
        %1783 = vmatpush1.xpose.msra.mxu0 0.0
        %1784 = vmatprep.subr.mxu0 0.0
        %1785 = vmatpush1.xpose.msra.mxu0 0.0
        %1786 = vmatprep.subr.mxu0 0.0
        %1787 = vmatpush1.xpose.msra.mxu0 0.0
        %1788 = vmatprep.subr.mxu0 0.0
        %1789 = vmatpush1.xpose.msra.mxu0 0.0
        %1790 = vmatprep.subr.mxu0 0.0
        %1791 = vmatpush1.xpose.msra.mxu0 0.0
        %1792 = vmatprep.subr.mxu0 0.0
        %1793 = vmatpush1.xpose.msra.mxu0 0.0
        %1794 = vmatprep.subr.mxu0 0.0
        %1795 = vmatpush1.xpose.msra.mxu0 0.0
        %1796 = vmatprep.subr.mxu0 0.0
        %1797 = vmatpush1.xpose.msra.mxu0 0.0
        %1798 = vmatprep.subr.mxu0 0.0
        %1799 = vmatpush1.xpose.msra.mxu0 0.0
        %1800 = vmatprep.subr.mxu0 0.0
        %1801 = vmatpush1.xpose.msra.mxu0 0.0
        %1802 = vmatprep.subr.mxu0 0.0
        %1803 = vmatpush1.xpose.msra.mxu0 0.0
        %1804 = vmatprep.subr.mxu0 0.0
        %1805 = vmatpush1.xpose.msra.mxu0 0.0
        %1806 = vmatprep.subr.mxu0 0.0
        %1807 = vmatpush1.xpose.msra.mxu0 0.0
        %1808 = vmatprep.subr.mxu0 0.0
        %1809 = vmatpush1.xpose.msra.mxu0 0.0
        %1810 = vmatprep.subr.mxu0 0.0
        %1811 = vmatpush1.xpose.msra.mxu0 0.0
        %1812 = vmatprep.subr.mxu0 0.0
        %1813 = vmatpush1.xpose.msra.mxu0 0.0
        %1814 = vmatprep.subr.mxu0 0.0
        %1815 = vmatpush1.xpose.msra.mxu0 0.0
        %1816 = vmatprep.subr.mxu0 0.0
        %1817 = vmatpush1.xpose.msra.mxu0 0.0
        %1818 = vmatprep.subr.mxu0 0.0
        %1819 = vmatpush1.xpose.msra.mxu0 0.0
        %1820 = vmatprep.subr.mxu0 0.0
        %1821 = vmatpush1.xpose.msra.mxu0 0.0
        %1822 = vmatprep.mubr.f32.mxu0 0.0
        %1823 = vmatmul.mubr.f32.gmra.mrb[0].mxu0 %v1754
        %v1824 = vpop.f32.mrb[0].mxu0
        %v1825 = vadd.f32 %v1041, %v1824
        %v1826 = vpop.f32.mrb[0].mxu0
        %1827 = vdwg.mxu0
        %v1828 = vsel %vm1277, %v1825, -inf
        %1829 = vmax.xlane.f32.xlu0 %v1828
        %v1830 = vpop.xlane.xlu0 %1829
        %v1831 = vsub.f32 %v1825, %v1830
        %v1832 = vmul.f32 %v1831, 1.442695
        %v1833 = vpow.pop %v1832
        %v1834 = vsel %vm1277, %v1833, 0.0
        %1835 = vadd.xlane.f32.xlu0 %v1834
        %v1836 = vpop.xlane.xlu0 %1835
        %v1837 = vrcp.pop %v1836
        %v1838 = vmul.f32 %v1833, %v1837
        %1839 = vrot.lane.b32.xlu0 %v1274, 112
        %v1840 = vpop.permute.xlu0 %1839
        %v1843 = vsel %vm1277, %v1838, 0
        %1845 = vmatprep.subr.mxu0 0.0
        %1846 = vmatpush1.msra.mxu0 %v1840
        %1847 = vmatprep.subr.mxu0 0.0
        %1848 = vmatpush1.msra.mxu0 0.0
        %1849 = vmatprep.subr.mxu0 0.0
        %1850 = vmatpush1.msra.mxu0 0.0
        %1851 = vmatprep.subr.mxu0 0.0
        %1852 = vmatpush1.msra.mxu0 0.0
        %1853 = vmatprep.subr.mxu0 0.0
        %1854 = vmatpush1.msra.mxu0 0.0
        %1855 = vmatprep.subr.mxu0 0.0
        %1856 = vmatpush1.msra.mxu0 0.0
        %1857 = vmatprep.subr.mxu0 0.0
        %1858 = vmatpush1.msra.mxu0 0.0
        %1859 = vmatprep.subr.mxu0 0.0
        %1860 = vmatpush1.msra.mxu0 0.0
        %1861 = vmatprep.subr.mxu0 0.0
        %1862 = vmatpush1.msra.mxu0 0.0
        %1863 = vmatprep.subr.mxu0 0.0
        %1864 = vmatpush1.msra.mxu0 0.0
        %1865 = vmatprep.subr.mxu0 0.0
        %1866 = vmatpush1.msra.mxu0 0.0
        %1867 = vmatprep.subr.mxu0 0.0
        %1868 = vmatpush1.msra.mxu0 0.0
        %1869 = vmatprep.subr.mxu0 0.0
        %1870 = vmatpush1.msra.mxu0 0.0
        %1871 = vmatprep.subr.mxu0 0.0
        %1872 = vmatpush1.msra.mxu0 0.0
        %1873 = vmatprep.subr.mxu0 0.0
        %1874 = vmatpush1.msra.mxu0 0.0
        %1875 = vmatprep.subr.mxu0 0.0
        %1876 = vmatpush1.msra.mxu0 0.0
        %1877 = vmatprep.subr.mxu0 0.0
        %1878 = vmatpush1.msra.mxu0 0.0
        %1879 = vmatprep.subr.mxu0 0.0
        %1880 = vmatpush1.msra.mxu0 0.0
        %1881 = vmatprep.subr.mxu0 0.0
        %1882 = vmatpush1.msra.mxu0 0.0
        %1883 = vmatprep.subr.mxu0 0.0
        %1884 = vmatpush1.msra.mxu0 0.0
        %1885 = vmatprep.subr.mxu0 0.0
        %1886 = vmatpush1.msra.mxu0 0.0
        %1887 = vmatprep.subr.mxu0 0.0
        %1888 = vmatpush1.msra.mxu0 0.0
        %1889 = vmatprep.subr.mxu0 0.0
        %1890 = vmatpush1.msra.mxu0 0.0
        %1891 = vmatprep.subr.mxu0 0.0
        %1892 = vmatpush1.msra.mxu0 0.0
        %1893 = vmatprep.subr.mxu0 0.0
        %1894 = vmatpush1.msra.mxu0 0.0
        %1895 = vmatprep.subr.mxu0 0.0
        %1896 = vmatpush1.msra.mxu0 0.0
        %1897 = vmatprep.subr.mxu0 0.0
        %1898 = vmatpush1.msra.mxu0 0.0
        %1899 = vmatprep.subr.mxu0 0.0
        %1900 = vmatpush1.msra.mxu0 0.0
        %1901 = vmatprep.subr.mxu0 0.0
        %1902 = vmatpush1.msra.mxu0 0.0
        %1903 = vmatprep.subr.mxu0 0.0
        %1904 = vmatpush1.msra.mxu0 0.0
        %1905 = vmatprep.subr.mxu0 0.0
        %1906 = vmatpush1.msra.mxu0 0.0
        %1907 = vmatprep.subr.mxu0 0.0
        %1908 = vmatpush1.msra.mxu0 0.0
        %1909 = vmatprep.mubr.f32.mxu0 0.0
        %1910 = vmatmul.mubr.f32.gmra.mrb[0].mxu0 %v1843
        %v1911 = vpop.f32.mrb[0].mxu0
        %v1912 = vadd.f32 0.0, %v1911
        %v1913 = vpop.f32.mrb[0].mxu0
        %1914 = vdwg.mxu0
        %v1916 = vsel %vm1277, %v1912, 0
        %1918 = vmatprep.subr.mxu0 0.0
        %1919 = vmatpush1.msra.mxu0 %v1059
        %1920 = vmatprep.subr.mxu0 0.0
        %1921 = vmatpush1.msra.mxu0 0.0
        %1922 = vmatprep.subr.mxu0 0.0
        %1923 = vmatpush1.msra.mxu0 0.0
        %1924 = vmatprep.subr.mxu0 0.0
        %1925 = vmatpush1.msra.mxu0 0.0
        %1926 = vmatprep.subr.mxu0 0.0
        %1927 = vmatpush1.msra.mxu0 0.0
        %1928 = vmatprep.subr.mxu0 0.0
        %1929 = vmatpush1.msra.mxu0 0.0
        %1930 = vmatprep.subr.mxu0 0.0
        %1931 = vmatpush1.msra.mxu0 0.0
        %1932 = vmatprep.subr.mxu0 0.0
        %1933 = vmatpush1.msra.mxu0 0.0
        %1934 = vmatprep.subr.mxu0 0.0
        %1935 = vmatpush1.msra.mxu0 0.0
        %1936 = vmatprep.subr.mxu0 0.0
        %1937 = vmatpush1.msra.mxu0 0.0
        %1938 = vmatprep.subr.mxu0 0.0
        %1939 = vmatpush1.msra.mxu0 0.0
        %1940 = vmatprep.subr.mxu0 0.0
        %1941 = vmatpush1.msra.mxu0 0.0
        %1942 = vmatprep.subr.mxu0 0.0
        %1943 = vmatpush1.msra.mxu0 0.0
        %1944 = vmatprep.subr.mxu0 0.0
        %1945 = vmatpush1.msra.mxu0 0.0
        %1946 = vmatprep.subr.mxu0 0.0
        %1947 = vmatpush1.msra.mxu0 0.0
        %1948 = vmatprep.subr.mxu0 0.0
        %1949 = vmatpush1.msra.mxu0 0.0
        %1950 = vmatprep.subr.mxu0 0.0
        %1951 = vmatpush1.msra.mxu0 0.0
        %1952 = vmatprep.subr.mxu0 0.0
        %1953 = vmatpush1.msra.mxu0 0.0
        %1954 = vmatprep.subr.mxu0 0.0
        %1955 = vmatpush1.msra.mxu0 0.0
        %1956 = vmatprep.subr.mxu0 0.0
        %1957 = vmatpush1.msra.mxu0 0.0
        %1958 = vmatprep.subr.mxu0 0.0
        %1959 = vmatpush1.msra.mxu0 0.0
        %1960 = vmatprep.subr.mxu0 0.0
        %1961 = vmatpush1.msra.mxu0 0.0
        %1962 = vmatprep.subr.mxu0 0.0
        %1963 = vmatpush1.msra.mxu0 0.0
        %1964 = vmatprep.subr.mxu0 0.0
        %1965 = vmatpush1.msra.mxu0 0.0
        %1966 = vmatprep.subr.mxu0 0.0
        %1967 = vmatpush1.msra.mxu0 0.0
        %1968 = vmatprep.subr.mxu0 0.0
        %1969 = vmatpush1.msra.mxu0 0.0
        %1970 = vmatprep.subr.mxu0 0.0
        %1971 = vmatpush1.msra.mxu0 0.0
        %1972 = vmatprep.subr.mxu0 0.0
        %1973 = vmatpush1.msra.mxu0 0.0
        %1974 = vmatprep.subr.mxu0 0.0
        %1975 = vmatpush1.msra.mxu0 0.0
        %1976 = vmatprep.subr.mxu0 0.0
        %1977 = vmatpush1.msra.mxu0 0.0
        %1978 = vmatprep.subr.mxu0 0.0
        %1979 = vmatpush1.msra.mxu0 0.0
        %1980 = vmatprep.subr.mxu0 0.0
        %1981 = vmatpush1.msra.mxu0 0.0
        %1982 = vmatprep.mubr.f32.mxu0 0.0
        %1983 = vmatmul.mubr.f32.gmra.mrb[0].mxu0 %v1916
        %v1984 = vpop.f32.mrb[0].mxu0
        %v1985 = vadd.f32 0.0, %v1984
        %v1986 = vpop.f32.mrb[0].mxu0
        %1987 = vdwg.mxu0
        %v1988 = vadd.f32 %v1747, %v1985
        %1989 = vrot.lane.b32.xlu0 %v1136, 104
        %v1990 = vpop.permute.xlu0 %1989
        %1991 = vrot.lane.b32.xlu0 %v1204, 104
        %v1992 = vpop.permute.xlu0 %1991
        %v1993 = vsel %vm1277, %v1990, 0
        %v1995 = vsel %vm1277, %v1992, 0
        %1997 = vmatprep.subr.mxu0 0.0
        %1998 = vmatpush1.xpose.msra.mxu0 %v1995
        %1999 = vmatprep.subr.mxu0 0.0
        %2000 = vmatpush1.xpose.msra.mxu0 0.0
        %2001 = vmatprep.subr.mxu0 0.0
        %2002 = vmatpush1.xpose.msra.mxu0 0.0
        %2003 = vmatprep.subr.mxu0 0.0
        %2004 = vmatpush1.xpose.msra.mxu0 0.0
        %2005 = vmatprep.subr.mxu0 0.0
        %2006 = vmatpush1.xpose.msra.mxu0 0.0
        %2007 = vmatprep.subr.mxu0 0.0
        %2008 = vmatpush1.xpose.msra.mxu0 0.0
        %2009 = vmatprep.subr.mxu0 0.0
        %2010 = vmatpush1.xpose.msra.mxu0 0.0
        %2011 = vmatprep.subr.mxu0 0.0
        %2012 = vmatpush1.xpose.msra.mxu0 0.0
        %2013 = vmatprep.subr.mxu0 0.0
        %2014 = vmatpush1.xpose.msra.mxu0 0.0
        %2015 = vmatprep.subr.mxu0 0.0
        %2016 = vmatpush1.xpose.msra.mxu0 0.0
        %2017 = vmatprep.subr.mxu0 0.0
        %2018 = vmatpush1.xpose.msra.mxu0 0.0
        %2019 = vmatprep.subr.mxu0 0.0
        %2020 = vmatpush1.xpose.msra.mxu0 0.0
        %2021 = vmatprep.subr.mxu0 0.0
        %2022 = vmatpush1.xpose.msra.mxu0 0.0
        %2023 = vmatprep.subr.mxu0 0.0
        %2024 = vmatpush1.xpose.msra.mxu0 0.0
        %2025 = vmatprep.subr.mxu0 0.0
        %2026 = vmatpush1.xpose.msra.mxu0 0.0
        %2027 = vmatprep.subr.mxu0 0.0
        %2028 = vmatpush1.xpose.msra.mxu0 0.0
        %2029 = vmatprep.subr.mxu0 0.0
        %2030 = vmatpush1.xpose.msra.mxu0 0.0
        %2031 = vmatprep.subr.mxu0 0.0
        %2032 = vmatpush1.xpose.msra.mxu0 0.0
        %2033 = vmatprep.subr.mxu0 0.0
        %2034 = vmatpush1.xpose.msra.mxu0 0.0
        %2035 = vmatprep.subr.mxu0 0.0
        %2036 = vmatpush1.xpose.msra.mxu0 0.0
        %2037 = vmatprep.subr.mxu0 0.0
        %2038 = vmatpush1.xpose.msra.mxu0 0.0
        %2039 = vmatprep.subr.mxu0 0.0
        %2040 = vmatpush1.xpose.msra.mxu0 0.0
        %2041 = vmatprep.subr.mxu0 0.0
        %2042 = vmatpush1.xpose.msra.mxu0 0.0
        %2043 = vmatprep.subr.mxu0 0.0
        %2044 = vmatpush1.xpose.msra.mxu0 0.0
        %2045 = vmatprep.subr.mxu0 0.0
        %2046 = vmatpush1.xpose.msra.mxu0 0.0
        %2047 = vmatprep.subr.mxu0 0.0
        %2048 = vmatpush1.xpose.msra.mxu0 0.0
        %2049 = vmatprep.subr.mxu0 0.0
        %2050 = vmatpush1.xpose.msra.mxu0 0.0
        %2051 = vmatprep.subr.mxu0 0.0
        %2052 = vmatpush1.xpose.msra.mxu0 0.0
        %2053 = vmatprep.subr.mxu0 0.0
        %2054 = vmatpush1.xpose.msra.mxu0 0.0
        %2055 = vmatprep.subr.mxu0 0.0
        %2056 = vmatpush1.xpose.msra.mxu0 0.0
        %2057 = vmatprep.subr.mxu0 0.0
        %2058 = vmatpush1.xpose.msra.mxu0 0.0
        %2059 = vmatprep.subr.mxu0 0.0
        %2060 = vmatpush1.xpose.msra.mxu0 0.0
        %2061 = vmatprep.mubr.f32.mxu0 0.0
        %2062 = vmatmul.mubr.f32.gmra.mrb[0].mxu0 %v1993
        %v2063 = vpop.f32.mrb[0].mxu0
        %v2064 = vadd.f32 %v1041, %v2063
        %v2065 = vpop.f32.mrb[0].mxu0
        %2066 = vdwg.mxu0
        %v2067 = vsel %vm1277, %v2064, -inf
        %2068 = vmax.xlane.f32.xlu0 %v2067
        %v2069 = vpop.xlane.xlu0 %2068
        %v2070 = vsub.f32 %v2064, %v2069
        %v2071 = vmul.f32 %v2070, 1.442695
        %v2072 = vpow.pop %v2071
        %v2073 = vsel %vm1277, %v2072, 0.0
        %2074 = vadd.xlane.f32.xlu0 %v2073
        %v2075 = vpop.xlane.xlu0 %2074
        %v2076 = vrcp.pop %v2075
        %v2077 = vmul.f32 %v2072, %v2076
        %2078 = vrot.lane.b32.xlu0 %v1274, 104
        %v2079 = vpop.permute.xlu0 %2078
        %v2082 = vsel %vm1277, %v2077, 0
        %2084 = vmatprep.subr.mxu0 0.0
        %2085 = vmatpush1.msra.mxu0 %v2079
        %2086 = vmatprep.subr.mxu0 0.0
        %2087 = vmatpush1.msra.mxu0 0.0
        %2088 = vmatprep.subr.mxu0 0.0
        %2089 = vmatpush1.msra.mxu0 0.0
        %2090 = vmatprep.subr.mxu0 0.0
        %2091 = vmatpush1.msra.mxu0 0.0
        %2092 = vmatprep.subr.mxu0 0.0
        %2093 = vmatpush1.msra.mxu0 0.0
        %2094 = vmatprep.subr.mxu0 0.0
        %2095 = vmatpush1.msra.mxu0 0.0
        %2096 = vmatprep.subr.mxu0 0.0
        %2097 = vmatpush1.msra.mxu0 0.0
        %2098 = vmatprep.subr.mxu0 0.0
        %2099 = vmatpush1.msra.mxu0 0.0
        %2100 = vmatprep.subr.mxu0 0.0
        %2101 = vmatpush1.msra.mxu0 0.0
        %2102 = vmatprep.subr.mxu0 0.0
        %2103 = vmatpush1.msra.mxu0 0.0
        %2104 = vmatprep.subr.mxu0 0.0
        %2105 = vmatpush1.msra.mxu0 0.0
        %2106 = vmatprep.subr.mxu0 0.0
        %2107 = vmatpush1.msra.mxu0 0.0
        %2108 = vmatprep.subr.mxu0 0.0
        %2109 = vmatpush1.msra.mxu0 0.0
        %2110 = vmatprep.subr.mxu0 0.0
        %2111 = vmatpush1.msra.mxu0 0.0
        %2112 = vmatprep.subr.mxu0 0.0
        %2113 = vmatpush1.msra.mxu0 0.0
        %2114 = vmatprep.subr.mxu0 0.0
        %2115 = vmatpush1.msra.mxu0 0.0
        %2116 = vmatprep.subr.mxu0 0.0
        %2117 = vmatpush1.msra.mxu0 0.0
        %2118 = vmatprep.subr.mxu0 0.0
        %2119 = vmatpush1.msra.mxu0 0.0
        %2120 = vmatprep.subr.mxu0 0.0
        %2121 = vmatpush1.msra.mxu0 0.0
        %2122 = vmatprep.subr.mxu0 0.0
        %2123 = vmatpush1.msra.mxu0 0.0
        %2124 = vmatprep.subr.mxu0 0.0
        %2125 = vmatpush1.msra.mxu0 0.0
        %2126 = vmatprep.subr.mxu0 0.0
        %2127 = vmatpush1.msra.mxu0 0.0
        %2128 = vmatprep.subr.mxu0 0.0
        %2129 = vmatpush1.msra.mxu0 0.0
        %2130 = vmatprep.subr.mxu0 0.0
        %2131 = vmatpush1.msra.mxu0 0.0
        %2132 = vmatprep.subr.mxu0 0.0
        %2133 = vmatpush1.msra.mxu0 0.0
        %2134 = vmatprep.subr.mxu0 0.0
        %2135 = vmatpush1.msra.mxu0 0.0
        %2136 = vmatprep.subr.mxu0 0.0
        %2137 = vmatpush1.msra.mxu0 0.0
        %2138 = vmatprep.subr.mxu0 0.0
        %2139 = vmatpush1.msra.mxu0 0.0
        %2140 = vmatprep.subr.mxu0 0.0
        %2141 = vmatpush1.msra.mxu0 0.0
        %2142 = vmatprep.subr.mxu0 0.0
        %2143 = vmatpush1.msra.mxu0 0.0
        %2144 = vmatprep.subr.mxu0 0.0
        %2145 = vmatpush1.msra.mxu0 0.0
        %2146 = vmatprep.subr.mxu0 0.0
        %2147 = vmatpush1.msra.mxu0 0.0
        %2148 = vmatprep.mubr.f32.mxu0 0.0
        %2149 = vmatmul.mubr.f32.gmra.mrb[0].mxu0 %v2082
        %v2150 = vpop.f32.mrb[0].mxu0
        %v2151 = vadd.f32 0.0, %v2150
        %v2152 = vpop.f32.mrb[0].mxu0
        %2153 = vdwg.mxu0
        %v2155 = vsel %vm1277, %v2151, 0
        %2157 = vmatprep.subr.mxu0 0.0
        %2158 = vmatpush1.msra.mxu0 %v1060
        %2159 = vmatprep.subr.mxu0 0.0
        %2160 = vmatpush1.msra.mxu0 0.0
        %2161 = vmatprep.subr.mxu0 0.0
        %2162 = vmatpush1.msra.mxu0 0.0
        %2163 = vmatprep.subr.mxu0 0.0
        %2164 = vmatpush1.msra.mxu0 0.0
        %2165 = vmatprep.subr.mxu0 0.0
        %2166 = vmatpush1.msra.mxu0 0.0
        %2167 = vmatprep.subr.mxu0 0.0
        %2168 = vmatpush1.msra.mxu0 0.0
        %2169 = vmatprep.subr.mxu0 0.0
        %2170 = vmatpush1.msra.mxu0 0.0
        %2171 = vmatprep.subr.mxu0 0.0
        %2172 = vmatpush1.msra.mxu0 0.0
        %2173 = vmatprep.subr.mxu0 0.0
        %2174 = vmatpush1.msra.mxu0 0.0
        %2175 = vmatprep.subr.mxu0 0.0
        %2176 = vmatpush1.msra.mxu0 0.0
        %2177 = vmatprep.subr.mxu0 0.0
        %2178 = vmatpush1.msra.mxu0 0.0
        %2179 = vmatprep.subr.mxu0 0.0
        %2180 = vmatpush1.msra.mxu0 0.0
        %2181 = vmatprep.subr.mxu0 0.0
        %2182 = vmatpush1.msra.mxu0 0.0
        %2183 = vmatprep.subr.mxu0 0.0
        %2184 = vmatpush1.msra.mxu0 0.0
        %2185 = vmatprep.subr.mxu0 0.0
        %2186 = vmatpush1.msra.mxu0 0.0
        %2187 = vmatprep.subr.mxu0 0.0
        %2188 = vmatpush1.msra.mxu0 0.0
        %2189 = vmatprep.subr.mxu0 0.0
        %2190 = vmatpush1.msra.mxu0 0.0
        %2191 = vmatprep.subr.mxu0 0.0
        %2192 = vmatpush1.msra.mxu0 0.0
        %2193 = vmatprep.subr.mxu0 0.0
        %2194 = vmatpush1.msra.mxu0 0.0
        %2195 = vmatprep.subr.mxu0 0.0
        %2196 = vmatpush1.msra.mxu0 0.0
        %2197 = vmatprep.subr.mxu0 0.0
        %2198 = vmatpush1.msra.mxu0 0.0
        %2199 = vmatprep.subr.mxu0 0.0
        %2200 = vmatpush1.msra.mxu0 0.0
        %2201 = vmatprep.subr.mxu0 0.0
        %2202 = vmatpush1.msra.mxu0 0.0
        %2203 = vmatprep.subr.mxu0 0.0
        %2204 = vmatpush1.msra.mxu0 0.0
        %2205 = vmatprep.subr.mxu0 0.0
        %2206 = vmatpush1.msra.mxu0 0.0
        %2207 = vmatprep.subr.mxu0 0.0
        %2208 = vmatpush1.msra.mxu0 0.0
        %2209 = vmatprep.subr.mxu0 0.0
        %2210 = vmatpush1.msra.mxu0 0.0
        %2211 = vmatprep.subr.mxu0 0.0
        %2212 = vmatpush1.msra.mxu0 0.0
        %2213 = vmatprep.subr.mxu0 0.0
        %2214 = vmatpush1.msra.mxu0 0.0
        %2215 = vmatprep.subr.mxu0 0.0
        %2216 = vmatpush1.msra.mxu0 0.0
        %2217 = vmatprep.subr.mxu0 0.0
        %2218 = vmatpush1.msra.mxu0 0.0
        %2219 = vmatprep.subr.mxu0 0.0
        %2220 = vmatpush1.msra.mxu0 0.0
        %2221 = vmatprep.mubr.f32.mxu0 0.0
        %2222 = vmatmul.mubr.f32.gmra.mrb[0].mxu0 %v2155
        %v2223 = vpop.f32.mrb[0].mxu0
        %v2224 = vadd.f32 0.0, %v2223
        %v2225 = vpop.f32.mrb[0].mxu0
        %2226 = vdwg.mxu0
        %v2227 = vadd.f32 %v1988, %v2224
        %v2229 = vlaneseq
        %v2230 = vshrl.u32 %v2229, 7
        %v2231 = vsub.s32 0, %v2230
        %v2232 = vrot.slane %v1061, %v2231
        %v2234 = vadd.f32 %v2227, %v2232
        %v2235 = vadd.f32 %v2234, %v1037
        %v2236 = vld [vmem:[%s9] sm:$0x1]
        %v2237 = vld [vmem:[%s10] sm:$0x1]
        %v2238 = vsel %vm1062, %v2235, 0.0
        %2239 = vadd.xlane.f32.xlu0 %v2238
        %v2240 = vpop.xlane.xlu0 %2239
        %v2241 = vrcp.pop 32.0
        %v2242 = vmul.f32 %v2240, %v2241
        %v2243 = vsub.f32 %v2235, %v2242
        %v2244 = vmul.f32 %v2243, %v2243
        %v2245 = vsel %vm1062, %v2244, 0.0
        %2246 = vadd.xlane.f32.xlu0 %v2245
        %v2247 = vpop.xlane.xlu0 %2246
        %v2248 = vmul.f32 %v2247, %v2241
        %v2249 = vadd.f32 %v2248, 1e-05
        %v2250 = vrsqrt.pop %v2249
        %v2251 = vmul.f32 %v2243, %v2250
        %v2253 = vlaneseq
        %v2254 = vshrl.u32 %v2253, 7
        %v2255 = vsub.s32 0, %v2254
        %v2256 = vrot.slane %v2236, %v2255
        %v2258 = vmul.f32 %v2251, %v2256
        %v2260 = vlaneseq
        %v2261 = vshrl.u32 %v2260, 7
        %v2262 = vsub.s32 0, %v2261
        %v2263 = vrot.slane %v2237, %v2262
        %v2265 = vadd.f32 %v2258, %v2263
        %v2266 = vld [vmem:[#allocation10] sm:$0xff]
        %v2267 = vld [vmem:[#allocation10 + $0x8] sm:$0xff]
        %v2268 = vld [vmem:[#allocation10 + $0x10] sm:$0xff]
        %v2269 = vld [vmem:[#allocation10 + $0x18] sm:$0xff]
        %v2270 = vld [vmem:[#allocation11] sm:$0xff]
        %v2271 = vld [vmem:[#allocation11 + $0x8] sm:$0xff]
        %v2272 = vld [vmem:[#allocation11 + $0x10] sm:$0xff]
        %v2273 = vld [vmem:[#allocation11 + $0x18] sm:$0xff]
        %v2274 = vld [vmem:[#allocation13] sm:$0xff]
        %v2275 = vld [vmem:[#allocation13 + $0x8] sm:$0xff]
        %v2276 = vld [vmem:[#allocation13 + $0x10] sm:$0xff]
        %v2277 = vld [vmem:[#allocation13 + $0x18] sm:$0xff]
        %v2278 = vld [vmem:[#allocation14] sm:$0xff]
        %v2279 = vld [vmem:[#allocation14 + $0x8] sm:$0xff]
        %v2280 = vld [vmem:[#allocation14 + $0x10] sm:$0xff]
        %v2281 = vld [vmem:[#allocation14 + $0x18] sm:$0xff]
        %v2282 = vld [vmem:[%s15] sm:$0x1]
        %v2284 = vsel %vm1062, %v2265, 0
        %2286 = vmatprep.subr.mxu0 0.0
        %2287 = vmatpush1.msra.mxu0 %v2266
        %2288 = vmatprep.subr.mxu0 0.0
        %2289 = vmatpush1.msra.mxu0 %v2267
        %2290 = vmatprep.subr.mxu0 0.0
        %2291 = vmatpush1.msra.mxu0 %v2268
        %2292 = vmatprep.subr.mxu0 0.0
        %2293 = vmatpush1.msra.mxu0 %v2269
        %2294 = vmatprep.subr.mxu0 0.0
        %2295 = vmatpush1.msra.mxu0 0.0
        %2296 = vmatprep.subr.mxu0 0.0
        %2297 = vmatpush1.msra.mxu0 0.0
        %2298 = vmatprep.subr.mxu0 0.0
        %2299 = vmatpush1.msra.mxu0 0.0
        %2300 = vmatprep.subr.mxu0 0.0
        %2301 = vmatpush1.msra.mxu0 0.0
        %2302 = vmatprep.subr.mxu0 0.0
        %2303 = vmatpush1.msra.mxu0 0.0
        %2304 = vmatprep.subr.mxu0 0.0
        %2305 = vmatpush1.msra.mxu0 0.0
        %2306 = vmatprep.subr.mxu0 0.0
        %2307 = vmatpush1.msra.mxu0 0.0
        %2308 = vmatprep.subr.mxu0 0.0
        %2309 = vmatpush1.msra.mxu0 0.0
        %2310 = vmatprep.subr.mxu0 0.0
        %2311 = vmatpush1.msra.mxu0 0.0
        %2312 = vmatprep.subr.mxu0 0.0
        %2313 = vmatpush1.msra.mxu0 0.0
        %2314 = vmatprep.subr.mxu0 0.0
        %2315 = vmatpush1.msra.mxu0 0.0
        %2316 = vmatprep.subr.mxu0 0.0
        %2317 = vmatpush1.msra.mxu0 0.0
        %2318 = vmatprep.subr.mxu0 0.0
        %2319 = vmatpush1.msra.mxu0 0.0
        %2320 = vmatprep.subr.mxu0 0.0
        %2321 = vmatpush1.msra.mxu0 0.0
        %2322 = vmatprep.subr.mxu0 0.0
        %2323 = vmatpush1.msra.mxu0 0.0
        %2324 = vmatprep.subr.mxu0 0.0
        %2325 = vmatpush1.msra.mxu0 0.0
        %2326 = vmatprep.subr.mxu0 0.0
        %2327 = vmatpush1.msra.mxu0 0.0
        %2328 = vmatprep.subr.mxu0 0.0
        %2329 = vmatpush1.msra.mxu0 0.0
        %2330 = vmatprep.subr.mxu0 0.0
        %2331 = vmatpush1.msra.mxu0 0.0
        %2332 = vmatprep.subr.mxu0 0.0
        %2333 = vmatpush1.msra.mxu0 0.0
        %2334 = vmatprep.subr.mxu0 0.0
        %2335 = vmatpush1.msra.mxu0 0.0
        %2336 = vmatprep.subr.mxu0 0.0
        %2337 = vmatpush1.msra.mxu0 0.0
        %2338 = vmatprep.subr.mxu0 0.0
        %2339 = vmatpush1.msra.mxu0 0.0
        %2340 = vmatprep.subr.mxu0 0.0
        %2341 = vmatpush1.msra.mxu0 0.0
        %2342 = vmatprep.subr.mxu0 0.0
        %2343 = vmatpush1.msra.mxu0 0.0
        %2344 = vmatprep.subr.mxu0 0.0
        %2345 = vmatpush1.msra.mxu0 0.0
        %2346 = vmatprep.subr.mxu0 0.0
        %2347 = vmatpush1.msra.mxu0 0.0
        %2348 = vmatprep.subr.mxu0 0.0
        %2349 = vmatpush1.msra.mxu0 0.0
        %2350 = vmatprep.mubr.f32.mxu0 0.0
        %2351 = vmatmul.mubr.f32.gmra.mrb[0].mxu0 %v2284
        %v2352 = vpop.f32.mrb[0].mxu0
        %v2353 = vadd.f32 0.0, %v2352
        %v2354 = vpop.f32.mrb[0].mxu0
        %2355 = vdwg.mxu0
        %v2356 = vmul.f32 %v2353, 0.17677669
        %v2358 = vsel %vm1062, %v1038, 0
        %2360 = vmatprep.subr.mxu0 0.0
        %2361 = vmatpush1.msra.mxu0 %v2270
        %2362 = vmatprep.subr.mxu0 0.0
        %2363 = vmatpush1.msra.mxu0 %v2271
        %2364 = vmatprep.subr.mxu0 0.0
        %2365 = vmatpush1.msra.mxu0 %v2272
        %2366 = vmatprep.subr.mxu0 0.0
        %2367 = vmatpush1.msra.mxu0 %v2273
        %2368 = vmatprep.subr.mxu0 0.0
        %2369 = vmatpush1.msra.mxu0 0.0
        %2370 = vmatprep.subr.mxu0 0.0
        %2371 = vmatpush1.msra.mxu0 0.0
        %2372 = vmatprep.subr.mxu0 0.0
        %2373 = vmatpush1.msra.mxu0 0.0
        %2374 = vmatprep.subr.mxu0 0.0
        %2375 = vmatpush1.msra.mxu0 0.0
        %2376 = vmatprep.subr.mxu0 0.0
        %2377 = vmatpush1.msra.mxu0 0.0
        %2378 = vmatprep.subr.mxu0 0.0
        %2379 = vmatpush1.msra.mxu0 0.0
        %2380 = vmatprep.subr.mxu0 0.0
        %2381 = vmatpush1.msra.mxu0 0.0
        %2382 = vmatprep.subr.mxu0 0.0
        %2383 = vmatpush1.msra.mxu0 0.0
        %2384 = vmatprep.subr.mxu0 0.0
        %2385 = vmatpush1.msra.mxu0 0.0
        %2386 = vmatprep.subr.mxu0 0.0
        %2387 = vmatpush1.msra.mxu0 0.0
        %2388 = vmatprep.subr.mxu0 0.0
        %2389 = vmatpush1.msra.mxu0 0.0
        %2390 = vmatprep.subr.mxu0 0.0
        %2391 = vmatpush1.msra.mxu0 0.0
        %2392 = vmatprep.subr.mxu0 0.0
        %2393 = vmatpush1.msra.mxu0 0.0
        %2394 = vmatprep.subr.mxu0 0.0
        %2395 = vmatpush1.msra.mxu0 0.0
        %2396 = vmatprep.subr.mxu0 0.0
        %2397 = vmatpush1.msra.mxu0 0.0
        %2398 = vmatprep.subr.mxu0 0.0
        %2399 = vmatpush1.msra.mxu0 0.0
        %2400 = vmatprep.subr.mxu0 0.0
        %2401 = vmatpush1.msra.mxu0 0.0
        %2402 = vmatprep.subr.mxu0 0.0
        %2403 = vmatpush1.msra.mxu0 0.0
        %2404 = vmatprep.subr.mxu0 0.0
        %2405 = vmatpush1.msra.mxu0 0.0
        %2406 = vmatprep.subr.mxu0 0.0
        %2407 = vmatpush1.msra.mxu0 0.0
        %2408 = vmatprep.subr.mxu0 0.0
        %2409 = vmatpush1.msra.mxu0 0.0
        %2410 = vmatprep.subr.mxu0 0.0
        %2411 = vmatpush1.msra.mxu0 0.0
        %2412 = vmatprep.subr.mxu0 0.0
        %2413 = vmatpush1.msra.mxu0 0.0
        %2414 = vmatprep.subr.mxu0 0.0
        %2415 = vmatpush1.msra.mxu0 0.0
        %2416 = vmatprep.subr.mxu0 0.0
        %2417 = vmatpush1.msra.mxu0 0.0
        %2418 = vmatprep.subr.mxu0 0.0
        %2419 = vmatpush1.msra.mxu0 0.0
        %2420 = vmatprep.subr.mxu0 0.0
        %2421 = vmatpush1.msra.mxu0 0.0
        %2422 = vmatprep.subr.mxu0 0.0
        %2423 = vmatpush1.msra.mxu0 0.0
        %2424 = vmatprep.mubr.f32.mxu0 0.0
        %2425 = vmatmul.mubr.f32.gmra.mrb[0].mxu0 %v2358
        %v2426 = vpop.f32.mrb[0].mxu0
        %v2427 = vadd.f32 0.0, %v2426
        %v2428 = vpop.f32.mrb[0].mxu0
        %2429 = vdwg.mxu0
        %2430 = vmatprep.subr.mxu0 0.0
        %2431 = vmatpush1.msra.mxu0 %v2274
        %2432 = vmatprep.subr.mxu0 0.0
        %2433 = vmatpush1.msra.mxu0 %v2275
        %2434 = vmatprep.subr.mxu0 0.0
        %2435 = vmatpush1.msra.mxu0 %v2276
        %2436 = vmatprep.subr.mxu0 0.0
        %2437 = vmatpush1.msra.mxu0 %v2277
        %2438 = vmatprep.subr.mxu0 0.0
        %2439 = vmatpush1.msra.mxu0 0.0
        %2440 = vmatprep.subr.mxu0 0.0
        %2441 = vmatpush1.msra.mxu0 0.0
        %2442 = vmatprep.subr.mxu0 0.0
        %2443 = vmatpush1.msra.mxu0 0.0
        %2444 = vmatprep.subr.mxu0 0.0
        %2445 = vmatpush1.msra.mxu0 0.0
        %2446 = vmatprep.subr.mxu0 0.0
        %2447 = vmatpush1.msra.mxu0 0.0
        %2448 = vmatprep.subr.mxu0 0.0
        %2449 = vmatpush1.msra.mxu0 0.0
        %2450 = vmatprep.subr.mxu0 0.0
        %2451 = vmatpush1.msra.mxu0 0.0
        %2452 = vmatprep.subr.mxu0 0.0
        %2453 = vmatpush1.msra.mxu0 0.0
        %2454 = vmatprep.subr.mxu0 0.0
        %2455 = vmatpush1.msra.mxu0 0.0
        %2456 = vmatprep.subr.mxu0 0.0
        %2457 = vmatpush1.msra.mxu0 0.0
        %2458 = vmatprep.subr.mxu0 0.0
        %2459 = vmatpush1.msra.mxu0 0.0
        %2460 = vmatprep.subr.mxu0 0.0
        %2461 = vmatpush1.msra.mxu0 0.0
        %2462 = vmatprep.subr.mxu0 0.0
        %2463 = vmatpush1.msra.mxu0 0.0
        %2464 = vmatprep.subr.mxu0 0.0
        %2465 = vmatpush1.msra.mxu0 0.0
        %2466 = vmatprep.subr.mxu0 0.0
        %2467 = vmatpush1.msra.mxu0 0.0
        %2468 = vmatprep.subr.mxu0 0.0
        %2469 = vmatpush1.msra.mxu0 0.0
        %2470 = vmatprep.subr.mxu0 0.0
        %2471 = vmatpush1.msra.mxu0 0.0
        %2472 = vmatprep.subr.mxu0 0.0
        %2473 = vmatpush1.msra.mxu0 0.0
        %2474 = vmatprep.subr.mxu0 0.0
        %2475 = vmatpush1.msra.mxu0 0.0
        %2476 = vmatprep.subr.mxu0 0.0
        %2477 = vmatpush1.msra.mxu0 0.0
        %2478 = vmatprep.subr.mxu0 0.0
        %2479 = vmatpush1.msra.mxu0 0.0
        %2480 = vmatprep.subr.mxu0 0.0
        %2481 = vmatpush1.msra.mxu0 0.0
        %2482 = vmatprep.subr.mxu0 0.0
        %2483 = vmatpush1.msra.mxu0 0.0
        %2484 = vmatprep.subr.mxu0 0.0
        %2485 = vmatpush1.msra.mxu0 0.0
        %2486 = vmatprep.subr.mxu0 0.0
        %2487 = vmatpush1.msra.mxu0 0.0
        %2488 = vmatprep.subr.mxu0 0.0
        %2489 = vmatpush1.msra.mxu0 0.0
        %2490 = vmatprep.subr.mxu0 0.0
        %2491 = vmatpush1.msra.mxu0 0.0
        %2492 = vmatprep.subr.mxu0 0.0
        %2493 = vmatpush1.msra.mxu0 0.0
        %2494 = vmatprep.mubr.f32.mxu0 0.0
        %2495 = vmatmul.mubr.f32.gmra.mrb[0].mxu0 %v2358
        %v2496 = vpop.f32.mrb[0].mxu0
        %v2497 = vadd.f32 0.0, %v2496
        %v2498 = vpop.f32.mrb[0].mxu0
        %2499 = vdwg.mxu0
        %v2501 = vlaneseq
        %v2502 = vshrl.u32 %v2501, 7
        %v2503 = vsub.s32 0, %v2502
        %v2504 = vrot.slane %v1044, %v2503
        %v2507 = vsel %vm1277, %v2356, 0
        %v2510 = vsel %vm1277, %v2427, 0
        %2512 = vmatprep.subr.mxu0 0.0
        %2513 = vmatpush1.xpose.msra.mxu0 %v2510
        %2514 = vmatprep.subr.mxu0 0.0
        %2515 = vmatpush1.xpose.msra.mxu0 0.0
        %2516 = vmatprep.subr.mxu0 0.0
        %2517 = vmatpush1.xpose.msra.mxu0 0.0
        %2518 = vmatprep.subr.mxu0 0.0
        %2519 = vmatpush1.xpose.msra.mxu0 0.0
        %2520 = vmatprep.subr.mxu0 0.0
        %2521 = vmatpush1.xpose.msra.mxu0 0.0
        %2522 = vmatprep.subr.mxu0 0.0
        %2523 = vmatpush1.xpose.msra.mxu0 0.0
        %2524 = vmatprep.subr.mxu0 0.0
        %2525 = vmatpush1.xpose.msra.mxu0 0.0
        %2526 = vmatprep.subr.mxu0 0.0
        %2527 = vmatpush1.xpose.msra.mxu0 0.0
        %2528 = vmatprep.subr.mxu0 0.0
        %2529 = vmatpush1.xpose.msra.mxu0 0.0
        %2530 = vmatprep.subr.mxu0 0.0
        %2531 = vmatpush1.xpose.msra.mxu0 0.0
        %2532 = vmatprep.subr.mxu0 0.0
        %2533 = vmatpush1.xpose.msra.mxu0 0.0
        %2534 = vmatprep.subr.mxu0 0.0
        %2535 = vmatpush1.xpose.msra.mxu0 0.0
        %2536 = vmatprep.subr.mxu0 0.0
        %2537 = vmatpush1.xpose.msra.mxu0 0.0
        %2538 = vmatprep.subr.mxu0 0.0
        %2539 = vmatpush1.xpose.msra.mxu0 0.0
        %2540 = vmatprep.subr.mxu0 0.0
        %2541 = vmatpush1.xpose.msra.mxu0 0.0
        %2542 = vmatprep.subr.mxu0 0.0
        %2543 = vmatpush1.xpose.msra.mxu0 0.0
        %2544 = vmatprep.subr.mxu0 0.0
        %2545 = vmatpush1.xpose.msra.mxu0 0.0
        %2546 = vmatprep.subr.mxu0 0.0
        %2547 = vmatpush1.xpose.msra.mxu0 0.0
        %2548 = vmatprep.subr.mxu0 0.0
        %2549 = vmatpush1.xpose.msra.mxu0 0.0
        %2550 = vmatprep.subr.mxu0 0.0
        %2551 = vmatpush1.xpose.msra.mxu0 0.0
        %2552 = vmatprep.subr.mxu0 0.0
        %2553 = vmatpush1.xpose.msra.mxu0 0.0
        %2554 = vmatprep.subr.mxu0 0.0
        %2555 = vmatpush1.xpose.msra.mxu0 0.0
        %2556 = vmatprep.subr.mxu0 0.0
        %2557 = vmatpush1.xpose.msra.mxu0 0.0
        %2558 = vmatprep.subr.mxu0 0.0
        %2559 = vmatpush1.xpose.msra.mxu0 0.0
        %2560 = vmatprep.subr.mxu0 0.0
        %2561 = vmatpush1.xpose.msra.mxu0 0.0
        %2562 = vmatprep.subr.mxu0 0.0
        %2563 = vmatpush1.xpose.msra.mxu0 0.0
        %2564 = vmatprep.subr.mxu0 0.0
        %2565 = vmatpush1.xpose.msra.mxu0 0.0
        %2566 = vmatprep.subr.mxu0 0.0
        %2567 = vmatpush1.xpose.msra.mxu0 0.0
        %2568 = vmatprep.subr.mxu0 0.0
        %2569 = vmatpush1.xpose.msra.mxu0 0.0
        %2570 = vmatprep.subr.mxu0 0.0
        %2571 = vmatpush1.xpose.msra.mxu0 0.0
        %2572 = vmatprep.subr.mxu0 0.0
        %2573 = vmatpush1.xpose.msra.mxu0 0.0
        %2574 = vmatprep.subr.mxu0 0.0
        %2575 = vmatpush1.xpose.msra.mxu0 0.0
        %2576 = vmatprep.mubr.f32.mxu0 0.0
        %2577 = vmatmul.mubr.f32.gmra.mrb[0].mxu0 %v2507
        %v2578 = vpop.f32.mrb[0].mxu0
        %v2579 = vadd.f32 %v2504, %v2578
        %v2580 = vpop.f32.mrb[0].mxu0
        %2581 = vdwg.mxu0
        %v2582 = vsel %vm1277, %v2579, -inf
        %2583 = vmax.xlane.f32.xlu0 %v2582
        %v2584 = vpop.xlane.xlu0 %2583
        %v2585 = vsub.f32 %v2579, %v2584
        %v2586 = vmul.f32 %v2585, 1.442695
        %v2587 = vpow.pop %v2586
        %v2588 = vsel %vm1277, %v2587, 0.0
        %2589 = vadd.xlane.f32.xlu0 %v2588
        %v2590 = vpop.xlane.xlu0 %2589
        %v2591 = vrcp.pop %v2590
        %v2592 = vmul.f32 %v2587, %v2591
        %v2594 = vsel %vm1277, %v2592, 0
        %2596 = vmatprep.subr.mxu0 0.0
        %2597 = vmatpush1.msra.mxu0 %v2497
        %2598 = vmatprep.subr.mxu0 0.0
        %2599 = vmatpush1.msra.mxu0 0.0
        %2600 = vmatprep.subr.mxu0 0.0
        %2601 = vmatpush1.msra.mxu0 0.0
        %2602 = vmatprep.subr.mxu0 0.0
        %2603 = vmatpush1.msra.mxu0 0.0
        %2604 = vmatprep.subr.mxu0 0.0
        %2605 = vmatpush1.msra.mxu0 0.0
        %2606 = vmatprep.subr.mxu0 0.0
        %2607 = vmatpush1.msra.mxu0 0.0
        %2608 = vmatprep.subr.mxu0 0.0
        %2609 = vmatpush1.msra.mxu0 0.0
        %2610 = vmatprep.subr.mxu0 0.0
        %2611 = vmatpush1.msra.mxu0 0.0
        %2612 = vmatprep.subr.mxu0 0.0
        %2613 = vmatpush1.msra.mxu0 0.0
        %2614 = vmatprep.subr.mxu0 0.0
        %2615 = vmatpush1.msra.mxu0 0.0
        %2616 = vmatprep.subr.mxu0 0.0
        %2617 = vmatpush1.msra.mxu0 0.0
        %2618 = vmatprep.subr.mxu0 0.0
        %2619 = vmatpush1.msra.mxu0 0.0
        %2620 = vmatprep.subr.mxu0 0.0
        %2621 = vmatpush1.msra.mxu0 0.0
        %2622 = vmatprep.subr.mxu0 0.0
        %2623 = vmatpush1.msra.mxu0 0.0
        %2624 = vmatprep.subr.mxu0 0.0
        %2625 = vmatpush1.msra.mxu0 0.0
        %2626 = vmatprep.subr.mxu0 0.0
        %2627 = vmatpush1.msra.mxu0 0.0
        %2628 = vmatprep.subr.mxu0 0.0
        %2629 = vmatpush1.msra.mxu0 0.0
        %2630 = vmatprep.subr.mxu0 0.0
        %2631 = vmatpush1.msra.mxu0 0.0
        %2632 = vmatprep.subr.mxu0 0.0
        %2633 = vmatpush1.msra.mxu0 0.0
        %2634 = vmatprep.subr.mxu0 0.0
        %2635 = vmatpush1.msra.mxu0 0.0
        %2636 = vmatprep.subr.mxu0 0.0
        %2637 = vmatpush1.msra.mxu0 0.0
        %2638 = vmatprep.subr.mxu0 0.0
        %2639 = vmatpush1.msra.mxu0 0.0
        %2640 = vmatprep.subr.mxu0 0.0
        %2641 = vmatpush1.msra.mxu0 0.0
        %2642 = vmatprep.subr.mxu0 0.0
        %2643 = vmatpush1.msra.mxu0 0.0
        %2644 = vmatprep.subr.mxu0 0.0
        %2645 = vmatpush1.msra.mxu0 0.0
        %2646 = vmatprep.subr.mxu0 0.0
        %2647 = vmatpush1.msra.mxu0 0.0
        %2648 = vmatprep.subr.mxu0 0.0
        %2649 = vmatpush1.msra.mxu0 0.0
        %2650 = vmatprep.subr.mxu0 0.0
        %2651 = vmatpush1.msra.mxu0 0.0
        %2652 = vmatprep.subr.mxu0 0.0
        %2653 = vmatpush1.msra.mxu0 0.0
        %2654 = vmatprep.subr.mxu0 0.0
        %2655 = vmatpush1.msra.mxu0 0.0
        %2656 = vmatprep.subr.mxu0 0.0
        %2657 = vmatpush1.msra.mxu0 0.0
        %2658 = vmatprep.subr.mxu0 0.0
        %2659 = vmatpush1.msra.mxu0 0.0
        %2660 = vmatprep.mubr.f32.mxu0 0.0
        %2661 = vmatmul.mubr.f32.gmra.mrb[0].mxu0 %v2594
        %v2662 = vpop.f32.mrb[0].mxu0
        %v2663 = vadd.f32 0.0, %v2662
        %v2664 = vpop.f32.mrb[0].mxu0
        %2665 = vdwg.mxu0
        %2666 = vrot.lane.b32.xlu0 %v2356, 120
        %v2667 = vpop.permute.xlu0 %2666
        %2668 = vrot.lane.b32.xlu0 %v2427, 120
        %v2669 = vpop.permute.xlu0 %2668
        %v2670 = vsel %vm1277, %v2667, 0
        %v2672 = vsel %vm1277, %v2669, 0
        %2674 = vmatprep.subr.mxu0 0.0
        %2675 = vmatpush1.xpose.msra.mxu0 %v2672
        %2676 = vmatprep.subr.mxu0 0.0
        %2677 = vmatpush1.xpose.msra.mxu0 0.0
        %2678 = vmatprep.subr.mxu0 0.0
        %2679 = vmatpush1.xpose.msra.mxu0 0.0
        %2680 = vmatprep.subr.mxu0 0.0
        %2681 = vmatpush1.xpose.msra.mxu0 0.0
        %2682 = vmatprep.subr.mxu0 0.0
        %2683 = vmatpush1.xpose.msra.mxu0 0.0
        %2684 = vmatprep.subr.mxu0 0.0
        %2685 = vmatpush1.xpose.msra.mxu0 0.0
        %2686 = vmatprep.subr.mxu0 0.0
        %2687 = vmatpush1.xpose.msra.mxu0 0.0
        %2688 = vmatprep.subr.mxu0 0.0
        %2689 = vmatpush1.xpose.msra.mxu0 0.0
        %2690 = vmatprep.subr.mxu0 0.0
        %2691 = vmatpush1.xpose.msra.mxu0 0.0
        %2692 = vmatprep.subr.mxu0 0.0
        %2693 = vmatpush1.xpose.msra.mxu0 0.0
        %2694 = vmatprep.subr.mxu0 0.0
        %2695 = vmatpush1.xpose.msra.mxu0 0.0
        %2696 = vmatprep.subr.mxu0 0.0
        %2697 = vmatpush1.xpose.msra.mxu0 0.0
        %2698 = vmatprep.subr.mxu0 0.0
        %2699 = vmatpush1.xpose.msra.mxu0 0.0
        %2700 = vmatprep.subr.mxu0 0.0
        %2701 = vmatpush1.xpose.msra.mxu0 0.0
        %2702 = vmatprep.subr.mxu0 0.0
        %2703 = vmatpush1.xpose.msra.mxu0 0.0
        %2704 = vmatprep.subr.mxu0 0.0
        %2705 = vmatpush1.xpose.msra.mxu0 0.0
        %2706 = vmatprep.subr.mxu0 0.0
        %2707 = vmatpush1.xpose.msra.mxu0 0.0
        %2708 = vmatprep.subr.mxu0 0.0
        %2709 = vmatpush1.xpose.msra.mxu0 0.0
        %2710 = vmatprep.subr.mxu0 0.0
        %2711 = vmatpush1.xpose.msra.mxu0 0.0
        %2712 = vmatprep.subr.mxu0 0.0
        %2713 = vmatpush1.xpose.msra.mxu0 0.0
        %2714 = vmatprep.subr.mxu0 0.0
        %2715 = vmatpush1.xpose.msra.mxu0 0.0
        %2716 = vmatprep.subr.mxu0 0.0
        %2717 = vmatpush1.xpose.msra.mxu0 0.0
        %2718 = vmatprep.subr.mxu0 0.0
        %2719 = vmatpush1.xpose.msra.mxu0 0.0
        %2720 = vmatprep.subr.mxu0 0.0
        %2721 = vmatpush1.xpose.msra.mxu0 0.0
        %2722 = vmatprep.subr.mxu0 0.0
        %2723 = vmatpush1.xpose.msra.mxu0 0.0
        %2724 = vmatprep.subr.mxu0 0.0
        %2725 = vmatpush1.xpose.msra.mxu0 0.0
        %2726 = vmatprep.subr.mxu0 0.0
        %2727 = vmatpush1.xpose.msra.mxu0 0.0
        %2728 = vmatprep.subr.mxu0 0.0
        %2729 = vmatpush1.xpose.msra.mxu0 0.0
        %2730 = vmatprep.subr.mxu0 0.0
        %2731 = vmatpush1.xpose.msra.mxu0 0.0
        %2732 = vmatprep.subr.mxu0 0.0
        %2733 = vmatpush1.xpose.msra.mxu0 0.0
        %2734 = vmatprep.subr.mxu0 0.0
        %2735 = vmatpush1.xpose.msra.mxu0 0.0
        %2736 = vmatprep.subr.mxu0 0.0
        %2737 = vmatpush1.xpose.msra.mxu0 0.0
        %2738 = vmatprep.mubr.f32.mxu0 0.0
        %2739 = vmatmul.mubr.f32.gmra.mrb[0].mxu0 %v2670
        %v2740 = vpop.f32.mrb[0].mxu0
        %v2741 = vadd.f32 %v2504, %v2740
        %v2742 = vpop.f32.mrb[0].mxu0
        %2743 = vdwg.mxu0
        %v2744 = vsel %vm1277, %v2741, -inf
        %2745 = vmax.xlane.f32.xlu0 %v2744
        %v2746 = vpop.xlane.xlu0 %2745
        %v2747 = vsub.f32 %v2741, %v2746
        %v2748 = vmul.f32 %v2747, 1.442695
        %v2749 = vpow.pop %v2748
        %v2750 = vsel %vm1277, %v2749, 0.0
        %2751 = vadd.xlane.f32.xlu0 %v2750
        %v2752 = vpop.xlane.xlu0 %2751
        %v2753 = vrcp.pop %v2752
        %v2754 = vmul.f32 %v2749, %v2753
        %2756 = vrot.lane.b32.xlu0 %v2497, 120
        %v2757 = vpop.permute.xlu0 %2756
        %v2760 = vsel %vm1277, %v2754, 0
        %2762 = vmatprep.subr.mxu0 0.0
        %2763 = vmatpush1.msra.mxu0 %v2757
        %2764 = vmatprep.subr.mxu0 0.0
        %2765 = vmatpush1.msra.mxu0 0.0
        %2766 = vmatprep.subr.mxu0 0.0
        %2767 = vmatpush1.msra.mxu0 0.0
        %2768 = vmatprep.subr.mxu0 0.0
        %2769 = vmatpush1.msra.mxu0 0.0
        %2770 = vmatprep.subr.mxu0 0.0
        %2771 = vmatpush1.msra.mxu0 0.0
        %2772 = vmatprep.subr.mxu0 0.0
        %2773 = vmatpush1.msra.mxu0 0.0
        %2774 = vmatprep.subr.mxu0 0.0
        %2775 = vmatpush1.msra.mxu0 0.0
        %2776 = vmatprep.subr.mxu0 0.0
        %2777 = vmatpush1.msra.mxu0 0.0
        %2778 = vmatprep.subr.mxu0 0.0
        %2779 = vmatpush1.msra.mxu0 0.0
        %2780 = vmatprep.subr.mxu0 0.0
        %2781 = vmatpush1.msra.mxu0 0.0
        %2782 = vmatprep.subr.mxu0 0.0
        %2783 = vmatpush1.msra.mxu0 0.0
        %2784 = vmatprep.subr.mxu0 0.0
        %2785 = vmatpush1.msra.mxu0 0.0
        %2786 = vmatprep.subr.mxu0 0.0
        %2787 = vmatpush1.msra.mxu0 0.0
        %2788 = vmatprep.subr.mxu0 0.0
        %2789 = vmatpush1.msra.mxu0 0.0
        %2790 = vmatprep.subr.mxu0 0.0
        %2791 = vmatpush1.msra.mxu0 0.0
        %2792 = vmatprep.subr.mxu0 0.0
        %2793 = vmatpush1.msra.mxu0 0.0
        %2794 = vmatprep.subr.mxu0 0.0
        %2795 = vmatpush1.msra.mxu0 0.0
        %2796 = vmatprep.subr.mxu0 0.0
        %2797 = vmatpush1.msra.mxu0 0.0
        %2798 = vmatprep.subr.mxu0 0.0
        %2799 = vmatpush1.msra.mxu0 0.0
        %2800 = vmatprep.subr.mxu0 0.0
        %2801 = vmatpush1.msra.mxu0 0.0
        %2802 = vmatprep.subr.mxu0 0.0
        %2803 = vmatpush1.msra.mxu0 0.0
        %2804 = vmatprep.subr.mxu0 0.0
        %2805 = vmatpush1.msra.mxu0 0.0
        %2806 = vmatprep.subr.mxu0 0.0
        %2807 = vmatpush1.msra.mxu0 0.0
        %2808 = vmatprep.subr.mxu0 0.0
        %2809 = vmatpush1.msra.mxu0 0.0
        %2810 = vmatprep.subr.mxu0 0.0
        %2811 = vmatpush1.msra.mxu0 0.0
        %2812 = vmatprep.subr.mxu0 0.0
        %2813 = vmatpush1.msra.mxu0 0.0
        %2814 = vmatprep.subr.mxu0 0.0
        %2815 = vmatpush1.msra.mxu0 0.0
        %2816 = vmatprep.subr.mxu0 0.0
        %2817 = vmatpush1.msra.mxu0 0.0
        %2818 = vmatprep.subr.mxu0 0.0
        %2819 = vmatpush1.msra.mxu0 0.0
        %2820 = vmatprep.subr.mxu0 0.0
        %2821 = vmatpush1.msra.mxu0 0.0
        %2822 = vmatprep.subr.mxu0 0.0
        %2823 = vmatpush1.msra.mxu0 0.0
        %2824 = vmatprep.subr.mxu0 0.0
        %2825 = vmatpush1.msra.mxu0 0.0
        %2826 = vmatprep.mubr.f32.mxu0 0.0
        %2827 = vmatmul.mubr.f32.gmra.mrb[0].mxu0 %v2760
        %v2828 = vpop.f32.mrb[0].mxu0
        %v2829 = vadd.f32 0.0, %v2828
        %v2830 = vpop.f32.mrb[0].mxu0
        %2831 = vdwg.mxu0
        %v2833 = vsel %vm1277, %v2829, 0
        %2835 = vmatprep.subr.mxu0 0.0
        %2836 = vmatpush1.msra.mxu0 %v2279
        %2837 = vmatprep.subr.mxu0 0.0
        %2838 = vmatpush1.msra.mxu0 0.0
        %2839 = vmatprep.subr.mxu0 0.0
        %2840 = vmatpush1.msra.mxu0 0.0
        %2841 = vmatprep.subr.mxu0 0.0
        %2842 = vmatpush1.msra.mxu0 0.0
        %2843 = vmatprep.subr.mxu0 0.0
        %2844 = vmatpush1.msra.mxu0 0.0
        %2845 = vmatprep.subr.mxu0 0.0
        %2846 = vmatpush1.msra.mxu0 0.0
        %2847 = vmatprep.subr.mxu0 0.0
        %2848 = vmatpush1.msra.mxu0 0.0
        %2849 = vmatprep.subr.mxu0 0.0
        %2850 = vmatpush1.msra.mxu0 0.0
        %2851 = vmatprep.subr.mxu0 0.0
        %2852 = vmatpush1.msra.mxu0 0.0
        %2853 = vmatprep.subr.mxu0 0.0
        %2854 = vmatpush1.msra.mxu0 0.0
        %2855 = vmatprep.subr.mxu0 0.0
        %2856 = vmatpush1.msra.mxu0 0.0
        %2857 = vmatprep.subr.mxu0 0.0
        %2858 = vmatpush1.msra.mxu0 0.0
        %2859 = vmatprep.subr.mxu0 0.0
        %2860 = vmatpush1.msra.mxu0 0.0
        %2861 = vmatprep.subr.mxu0 0.0
        %2862 = vmatpush1.msra.mxu0 0.0
        %2863 = vmatprep.subr.mxu0 0.0
        %2864 = vmatpush1.msra.mxu0 0.0
        %2865 = vmatprep.subr.mxu0 0.0
        %2866 = vmatpush1.msra.mxu0 0.0
        %2867 = vmatprep.subr.mxu0 0.0
        %2868 = vmatpush1.msra.mxu0 0.0
        %2869 = vmatprep.subr.mxu0 0.0
        %2870 = vmatpush1.msra.mxu0 0.0
        %2871 = vmatprep.subr.mxu0 0.0
        %2872 = vmatpush1.msra.mxu0 0.0
        %2873 = vmatprep.subr.mxu0 0.0
        %2874 = vmatpush1.msra.mxu0 0.0
        %2875 = vmatprep.subr.mxu0 0.0
        %2876 = vmatpush1.msra.mxu0 0.0
        %2877 = vmatprep.subr.mxu0 0.0
        %2878 = vmatpush1.msra.mxu0 0.0
        %2879 = vmatprep.subr.mxu0 0.0
        %2880 = vmatpush1.msra.mxu0 0.0
        %2881 = vmatprep.subr.mxu0 0.0
        %2882 = vmatpush1.msra.mxu0 0.0
        %2883 = vmatprep.subr.mxu0 0.0
        %2884 = vmatpush1.msra.mxu0 0.0
        %2885 = vmatprep.subr.mxu0 0.0
        %2886 = vmatpush1.msra.mxu0 0.0
        %2887 = vmatprep.subr.mxu0 0.0
        %2888 = vmatpush1.msra.mxu0 0.0
        %2889 = vmatprep.subr.mxu0 0.0
        %2890 = vmatpush1.msra.mxu0 0.0
        %2891 = vmatprep.subr.mxu0 0.0
        %2892 = vmatpush1.msra.mxu0 0.0
        %2893 = vmatprep.subr.mxu0 0.0
        %2894 = vmatpush1.msra.mxu0 0.0
        %2895 = vmatprep.subr.mxu0 0.0
        %2896 = vmatpush1.msra.mxu0 0.0
        %2897 = vmatprep.subr.mxu0 0.0
        %2898 = vmatpush1.msra.mxu0 0.0
        %2899 = vmatprep.mubr.f32.mxu0 0.0
        %2900 = vmatmul.mubr.f32.gmra.mrb[0].mxu0 %v2833
        %v2901 = vpop.f32.mrb[0].mxu0
        %v2902 = vadd.f32 0.0, %v2901
        %v2903 = vpop.f32.mrb[0].mxu0
        %2904 = vdwg.mxu0
        %v2906 = vsel %vm1277, %v2663, 0
        %2908 = vmatprep.subr.mxu0 0.0
        %2909 = vmatpush1.msra.mxu0 %v2278
        %2910 = vmatprep.subr.mxu0 0.0
        %2911 = vmatpush1.msra.mxu0 0.0
        %2912 = vmatprep.subr.mxu0 0.0
        %2913 = vmatpush1.msra.mxu0 0.0
        %2914 = vmatprep.subr.mxu0 0.0
        %2915 = vmatpush1.msra.mxu0 0.0
        %2916 = vmatprep.subr.mxu0 0.0
        %2917 = vmatpush1.msra.mxu0 0.0
        %2918 = vmatprep.subr.mxu0 0.0
        %2919 = vmatpush1.msra.mxu0 0.0
        %2920 = vmatprep.subr.mxu0 0.0
        %2921 = vmatpush1.msra.mxu0 0.0
        %2922 = vmatprep.subr.mxu0 0.0
        %2923 = vmatpush1.msra.mxu0 0.0
        %2924 = vmatprep.subr.mxu0 0.0
        %2925 = vmatpush1.msra.mxu0 0.0
        %2926 = vmatprep.subr.mxu0 0.0
        %2927 = vmatpush1.msra.mxu0 0.0
        %2928 = vmatprep.subr.mxu0 0.0
        %2929 = vmatpush1.msra.mxu0 0.0
        %2930 = vmatprep.subr.mxu0 0.0
        %2931 = vmatpush1.msra.mxu0 0.0
        %2932 = vmatprep.subr.mxu0 0.0
        %2933 = vmatpush1.msra.mxu0 0.0
        %2934 = vmatprep.subr.mxu0 0.0
        %2935 = vmatpush1.msra.mxu0 0.0
        %2936 = vmatprep.subr.mxu0 0.0
        %2937 = vmatpush1.msra.mxu0 0.0
        %2938 = vmatprep.subr.mxu0 0.0
        %2939 = vmatpush1.msra.mxu0 0.0
        %2940 = vmatprep.subr.mxu0 0.0
        %2941 = vmatpush1.msra.mxu0 0.0
        %2942 = vmatprep.subr.mxu0 0.0
        %2943 = vmatpush1.msra.mxu0 0.0
        %2944 = vmatprep.subr.mxu0 0.0
        %2945 = vmatpush1.msra.mxu0 0.0
        %2946 = vmatprep.subr.mxu0 0.0
        %2947 = vmatpush1.msra.mxu0 0.0
        %2948 = vmatprep.subr.mxu0 0.0
        %2949 = vmatpush1.msra.mxu0 0.0
        %2950 = vmatprep.subr.mxu0 0.0
        %2951 = vmatpush1.msra.mxu0 0.0
        %2952 = vmatprep.subr.mxu0 0.0
        %2953 = vmatpush1.msra.mxu0 0.0
        %2954 = vmatprep.subr.mxu0 0.0
        %2955 = vmatpush1.msra.mxu0 0.0
        %2956 = vmatprep.subr.mxu0 0.0
        %2957 = vmatpush1.msra.mxu0 0.0
        %2958 = vmatprep.subr.mxu0 0.0
        %2959 = vmatpush1.msra.mxu0 0.0
        %2960 = vmatprep.subr.mxu0 0.0
        %2961 = vmatpush1.msra.mxu0 0.0
        %2962 = vmatprep.subr.mxu0 0.0
        %2963 = vmatpush1.msra.mxu0 0.0
        %2964 = vmatprep.subr.mxu0 0.0
        %2965 = vmatpush1.msra.mxu0 0.0
        %2966 = vmatprep.subr.mxu0 0.0
        %2967 = vmatpush1.msra.mxu0 0.0
        %2968 = vmatprep.subr.mxu0 0.0
        %2969 = vmatpush1.msra.mxu0 0.0
        %2970 = vmatprep.subr.mxu0 0.0
        %2971 = vmatpush1.msra.mxu0 0.0
        %2972 = vmatprep.mubr.f32.mxu0 0.0
        %2973 = vmatmul.mubr.f32.gmra.mrb[0].mxu0 %v2906
        %v2974 = vpop.f32.mrb[0].mxu0
        %v2975 = vadd.f32 %v2902, %v2974
        %v2976 = vpop.f32.mrb[0].mxu0
        %2977 = vdwg.mxu0
        %2978 = vrot.lane.b32.xlu0 %v2356, 112
        %v2979 = vpop.permute.xlu0 %2978
        %2980 = vrot.lane.b32.xlu0 %v2427, 112
        %v2981 = vpop.permute.xlu0 %2980
        %v2982 = vsel %vm1277, %v2979, 0
        %v2984 = vsel %vm1277, %v2981, 0
        %2986 = vmatprep.subr.mxu0 0.0
        %2987 = vmatpush1.xpose.msra.mxu0 %v2984
        %2988 = vmatprep.subr.mxu0 0.0
        %2989 = vmatpush1.xpose.msra.mxu0 0.0
        %2990 = vmatprep.subr.mxu0 0.0
        %2991 = vmatpush1.xpose.msra.mxu0 0.0
        %2992 = vmatprep.subr.mxu0 0.0
        %2993 = vmatpush1.xpose.msra.mxu0 0.0
        %2994 = vmatprep.subr.mxu0 0.0
        %2995 = vmatpush1.xpose.msra.mxu0 0.0
        %2996 = vmatprep.subr.mxu0 0.0
        %2997 = vmatpush1.xpose.msra.mxu0 0.0
        %2998 = vmatprep.subr.mxu0 0.0
        %2999 = vmatpush1.xpose.msra.mxu0 0.0
        %3000 = vmatprep.subr.mxu0 0.0
        %3001 = vmatpush1.xpose.msra.mxu0 0.0
        %3002 = vmatprep.subr.mxu0 0.0
        %3003 = vmatpush1.xpose.msra.mxu0 0.0
        %3004 = vmatprep.subr.mxu0 0.0
        %3005 = vmatpush1.xpose.msra.mxu0 0.0
        %3006 = vmatprep.subr.mxu0 0.0
        %3007 = vmatpush1.xpose.msra.mxu0 0.0
        %3008 = vmatprep.subr.mxu0 0.0
        %3009 = vmatpush1.xpose.msra.mxu0 0.0
        %3010 = vmatprep.subr.mxu0 0.0
        %3011 = vmatpush1.xpose.msra.mxu0 0.0
        %3012 = vmatprep.subr.mxu0 0.0
        %3013 = vmatpush1.xpose.msra.mxu0 0.0
        %3014 = vmatprep.subr.mxu0 0.0
        %3015 = vmatpush1.xpose.msra.mxu0 0.0
        %3016 = vmatprep.subr.mxu0 0.0
        %3017 = vmatpush1.xpose.msra.mxu0 0.0
        %3018 = vmatprep.subr.mxu0 0.0
        %3019 = vmatpush1.xpose.msra.mxu0 0.0
        %3020 = vmatprep.subr.mxu0 0.0
        %3021 = vmatpush1.xpose.msra.mxu0 0.0
        %3022 = vmatprep.subr.mxu0 0.0
        %3023 = vmatpush1.xpose.msra.mxu0 0.0
        %3024 = vmatprep.subr.mxu0 0.0
        %3025 = vmatpush1.xpose.msra.mxu0 0.0
        %3026 = vmatprep.subr.mxu0 0.0
        %3027 = vmatpush1.xpose.msra.mxu0 0.0
        %3028 = vmatprep.subr.mxu0 0.0
        %3029 = vmatpush1.xpose.msra.mxu0 0.0
        %3030 = vmatprep.subr.mxu0 0.0
        %3031 = vmatpush1.xpose.msra.mxu0 0.0
        %3032 = vmatprep.subr.mxu0 0.0
        %3033 = vmatpush1.xpose.msra.mxu0 0.0
        %3034 = vmatprep.subr.mxu0 0.0
        %3035 = vmatpush1.xpose.msra.mxu0 0.0
        %3036 = vmatprep.subr.mxu0 0.0
        %3037 = vmatpush1.xpose.msra.mxu0 0.0
        %3038 = vmatprep.subr.mxu0 0.0
        %3039 = vmatpush1.xpose.msra.mxu0 0.0
        %3040 = vmatprep.subr.mxu0 0.0
        %3041 = vmatpush1.xpose.msra.mxu0 0.0
        %3042 = vmatprep.subr.mxu0 0.0
        %3043 = vmatpush1.xpose.msra.mxu0 0.0
        %3044 = vmatprep.subr.mxu0 0.0
        %3045 = vmatpush1.xpose.msra.mxu0 0.0
        %3046 = vmatprep.subr.mxu0 0.0
        %3047 = vmatpush1.xpose.msra.mxu0 0.0
        %3048 = vmatprep.subr.mxu0 0.0
        %3049 = vmatpush1.xpose.msra.mxu0 0.0
        %3050 = vmatprep.mubr.f32.mxu0 0.0
        %3051 = vmatmul.mubr.f32.gmra.mrb[0].mxu0 %v2982
        %v3052 = vpop.f32.mrb[0].mxu0
        %v3053 = vadd.f32 %v2504, %v3052
        %v3054 = vpop.f32.mrb[0].mxu0
        %3055 = vdwg.mxu0
        %v3056 = vsel %vm1277, %v3053, -inf
        %3057 = vmax.xlane.f32.xlu0 %v3056
        %v3058 = vpop.xlane.xlu0 %3057
        %v3059 = vsub.f32 %v3053, %v3058
        %v3060 = vmul.f32 %v3059, 1.442695
        %v3061 = vpow.pop %v3060
        %v3062 = vsel %vm1277, %v3061, 0.0
        %3063 = vadd.xlane.f32.xlu0 %v3062
        %v3064 = vpop.xlane.xlu0 %3063
        %v3065 = vrcp.pop %v3064
        %v3066 = vmul.f32 %v3061, %v3065
        %3067 = vrot.lane.b32.xlu0 %v2497, 112
        %v3068 = vpop.permute.xlu0 %3067
        %v3071 = vsel %vm1277, %v3066, 0
        %3073 = vmatprep.subr.mxu0 0.0
        %3074 = vmatpush1.msra.mxu0 %v3068
        %3075 = vmatprep.subr.mxu0 0.0
        %3076 = vmatpush1.msra.mxu0 0.0
        %3077 = vmatprep.subr.mxu0 0.0
        %3078 = vmatpush1.msra.mxu0 0.0
        %3079 = vmatprep.subr.mxu0 0.0
        %3080 = vmatpush1.msra.mxu0 0.0
        %3081 = vmatprep.subr.mxu0 0.0
        %3082 = vmatpush1.msra.mxu0 0.0
        %3083 = vmatprep.subr.mxu0 0.0
        %3084 = vmatpush1.msra.mxu0 0.0
        %3085 = vmatprep.subr.mxu0 0.0
        %3086 = vmatpush1.msra.mxu0 0.0
        %3087 = vmatprep.subr.mxu0 0.0
        %3088 = vmatpush1.msra.mxu0 0.0
        %3089 = vmatprep.subr.mxu0 0.0
        %3090 = vmatpush1.msra.mxu0 0.0
        %3091 = vmatprep.subr.mxu0 0.0
        %3092 = vmatpush1.msra.mxu0 0.0
        %3093 = vmatprep.subr.mxu0 0.0
        %3094 = vmatpush1.msra.mxu0 0.0
        %3095 = vmatprep.subr.mxu0 0.0
        %3096 = vmatpush1.msra.mxu0 0.0
        %3097 = vmatprep.subr.mxu0 0.0
        %3098 = vmatpush1.msra.mxu0 0.0
        %3099 = vmatprep.subr.mxu0 0.0
        %3100 = vmatpush1.msra.mxu0 0.0
        %3101 = vmatprep.subr.mxu0 0.0
        %3102 = vmatpush1.msra.mxu0 0.0
        %3103 = vmatprep.subr.mxu0 0.0
        %3104 = vmatpush1.msra.mxu0 0.0
        %3105 = vmatprep.subr.mxu0 0.0
        %3106 = vmatpush1.msra.mxu0 0.0
        %3107 = vmatprep.subr.mxu0 0.0
        %3108 = vmatpush1.msra.mxu0 0.0
        %3109 = vmatprep.subr.mxu0 0.0
        %3110 = vmatpush1.msra.mxu0 0.0
        %3111 = vmatprep.subr.mxu0 0.0
        %3112 = vmatpush1.msra.mxu0 0.0
        %3113 = vmatprep.subr.mxu0 0.0
        %3114 = vmatpush1.msra.mxu0 0.0
        %3115 = vmatprep.subr.mxu0 0.0
        %3116 = vmatpush1.msra.mxu0 0.0
        %3117 = vmatprep.subr.mxu0 0.0
        %3118 = vmatpush1.msra.mxu0 0.0
        %3119 = vmatprep.subr.mxu0 0.0
        %3120 = vmatpush1.msra.mxu0 0.0
        %3121 = vmatprep.subr.mxu0 0.0
        %3122 = vmatpush1.msra.mxu0 0.0
        %3123 = vmatprep.subr.mxu0 0.0
        %3124 = vmatpush1.msra.mxu0 0.0
        %3125 = vmatprep.subr.mxu0 0.0
        %3126 = vmatpush1.msra.mxu0 0.0
        %3127 = vmatprep.subr.mxu0 0.0
        %3128 = vmatpush1.msra.mxu0 0.0
        %3129 = vmatprep.subr.mxu0 0.0
        %3130 = vmatpush1.msra.mxu0 0.0
        %3131 = vmatprep.subr.mxu0 0.0
        %3132 = vmatpush1.msra.mxu0 0.0
        %3133 = vmatprep.subr.mxu0 0.0
        %3134 = vmatpush1.msra.mxu0 0.0
        %3135 = vmatprep.subr.mxu0 0.0
        %3136 = vmatpush1.msra.mxu0 0.0
        %3137 = vmatprep.mubr.f32.mxu0 0.0
        %3138 = vmatmul.mubr.f32.gmra.mrb[0].mxu0 %v3071
        %v3139 = vpop.f32.mrb[0].mxu0
        %v3140 = vadd.f32 0.0, %v3139
        %v3141 = vpop.f32.mrb[0].mxu0
        %3142 = vdwg.mxu0
        %v3144 = vsel %vm1277, %v3140, 0
        %3146 = vmatprep.subr.mxu0 0.0
        %3147 = vmatpush1.msra.mxu0 %v2280
        %3148 = vmatprep.subr.mxu0 0.0
        %3149 = vmatpush1.msra.mxu0 0.0
        %3150 = vmatprep.subr.mxu0 0.0
        %3151 = vmatpush1.msra.mxu0 0.0
        %3152 = vmatprep.subr.mxu0 0.0
        %3153 = vmatpush1.msra.mxu0 0.0
        %3154 = vmatprep.subr.mxu0 0.0
        %3155 = vmatpush1.msra.mxu0 0.0
        %3156 = vmatprep.subr.mxu0 0.0
        %3157 = vmatpush1.msra.mxu0 0.0
        %3158 = vmatprep.subr.mxu0 0.0
        %3159 = vmatpush1.msra.mxu0 0.0
        %3160 = vmatprep.subr.mxu0 0.0
        %3161 = vmatpush1.msra.mxu0 0.0
        %3162 = vmatprep.subr.mxu0 0.0
        %3163 = vmatpush1.msra.mxu0 0.0
        %3164 = vmatprep.subr.mxu0 0.0
        %3165 = vmatpush1.msra.mxu0 0.0
        %3166 = vmatprep.subr.mxu0 0.0
        %3167 = vmatpush1.msra.mxu0 0.0
        %3168 = vmatprep.subr.mxu0 0.0
        %3169 = vmatpush1.msra.mxu0 0.0
        %3170 = vmatprep.subr.mxu0 0.0
        %3171 = vmatpush1.msra.mxu0 0.0
        %3172 = vmatprep.subr.mxu0 0.0
        %3173 = vmatpush1.msra.mxu0 0.0
        %3174 = vmatprep.subr.mxu0 0.0
        %3175 = vmatpush1.msra.mxu0 0.0
        %3176 = vmatprep.subr.mxu0 0.0
        %3177 = vmatpush1.msra.mxu0 0.0
        %3178 = vmatprep.subr.mxu0 0.0
        %3179 = vmatpush1.msra.mxu0 0.0
        %3180 = vmatprep.subr.mxu0 0.0
        %3181 = vmatpush1.msra.mxu0 0.0
        %3182 = vmatprep.subr.mxu0 0.0
        %3183 = vmatpush1.msra.mxu0 0.0
        %3184 = vmatprep.subr.mxu0 0.0
        %3185 = vmatpush1.msra.mxu0 0.0
        %3186 = vmatprep.subr.mxu0 0.0
        %3187 = vmatpush1.msra.mxu0 0.0
        %3188 = vmatprep.subr.mxu0 0.0
        %3189 = vmatpush1.msra.mxu0 0.0
        %3190 = vmatprep.subr.mxu0 0.0
        %3191 = vmatpush1.msra.mxu0 0.0
        %3192 = vmatprep.subr.mxu0 0.0
        %3193 = vmatpush1.msra.mxu0 0.0
        %3194 = vmatprep.subr.mxu0 0.0
        %3195 = vmatpush1.msra.mxu0 0.0
        %3196 = vmatprep.subr.mxu0 0.0
        %3197 = vmatpush1.msra.mxu0 0.0
        %3198 = vmatprep.subr.mxu0 0.0
        %3199 = vmatpush1.msra.mxu0 0.0
        %3200 = vmatprep.subr.mxu0 0.0
        %3201 = vmatpush1.msra.mxu0 0.0
        %3202 = vmatprep.subr.mxu0 0.0
        %3203 = vmatpush1.msra.mxu0 0.0
        %3204 = vmatprep.subr.mxu0 0.0
        %3205 = vmatpush1.msra.mxu0 0.0
        %3206 = vmatprep.subr.mxu0 0.0
        %3207 = vmatpush1.msra.mxu0 0.0
        %3208 = vmatprep.subr.mxu0 0.0
        %3209 = vmatpush1.msra.mxu0 0.0
        %3210 = vmatprep.mubr.f32.mxu0 0.0
        %3211 = vmatmul.mubr.f32.gmra.mrb[0].mxu0 %v3144
        %v3212 = vpop.f32.mrb[0].mxu0
        %v3213 = vadd.f32 0.0, %v3212
        %v3214 = vpop.f32.mrb[0].mxu0
        %3215 = vdwg.mxu0
        %v3216 = vadd.f32 %v2975, %v3213
        %3217 = vrot.lane.b32.xlu0 %v2356, 104
        %v3218 = vpop.permute.xlu0 %3217
        %3219 = vrot.lane.b32.xlu0 %v2427, 104
        %v3220 = vpop.permute.xlu0 %3219
        %v3221 = vsel %vm1277, %v3218, 0
        %v3223 = vsel %vm1277, %v3220, 0
        %3225 = vmatprep.subr.mxu0 0.0
        %3226 = vmatpush1.xpose.msra.mxu0 %v3223
        %3227 = vmatprep.subr.mxu0 0.0
        %3228 = vmatpush1.xpose.msra.mxu0 0.0
        %3229 = vmatprep.subr.mxu0 0.0
        %3230 = vmatpush1.xpose.msra.mxu0 0.0
        %3231 = vmatprep.subr.mxu0 0.0
        %3232 = vmatpush1.xpose.msra.mxu0 0.0
        %3233 = vmatprep.subr.mxu0 0.0
        %3234 = vmatpush1.xpose.msra.mxu0 0.0
        %3235 = vmatprep.subr.mxu0 0.0
        %3236 = vmatpush1.xpose.msra.mxu0 0.0
        %3237 = vmatprep.subr.mxu0 0.0
        %3238 = vmatpush1.xpose.msra.mxu0 0.0
        %3239 = vmatprep.subr.mxu0 0.0
        %3240 = vmatpush1.xpose.msra.mxu0 0.0
        %3241 = vmatprep.subr.mxu0 0.0
        %3242 = vmatpush1.xpose.msra.mxu0 0.0
        %3243 = vmatprep.subr.mxu0 0.0
        %3244 = vmatpush1.xpose.msra.mxu0 0.0
        %3245 = vmatprep.subr.mxu0 0.0
        %3246 = vmatpush1.xpose.msra.mxu0 0.0
        %3247 = vmatprep.subr.mxu0 0.0
        %3248 = vmatpush1.xpose.msra.mxu0 0.0
        %3249 = vmatprep.subr.mxu0 0.0
        %3250 = vmatpush1.xpose.msra.mxu0 0.0
        %3251 = vmatprep.subr.mxu0 0.0
        %3252 = vmatpush1.xpose.msra.mxu0 0.0
        %3253 = vmatprep.subr.mxu0 0.0
        %3254 = vmatpush1.xpose.msra.mxu0 0.0
        %3255 = vmatprep.subr.mxu0 0.0
        %3256 = vmatpush1.xpose.msra.mxu0 0.0
        %3257 = vmatprep.subr.mxu0 0.0
        %3258 = vmatpush1.xpose.msra.mxu0 0.0
        %3259 = vmatprep.subr.mxu0 0.0
        %3260 = vmatpush1.xpose.msra.mxu0 0.0
        %3261 = vmatprep.subr.mxu0 0.0
        %3262 = vmatpush1.xpose.msra.mxu0 0.0
        %3263 = vmatprep.subr.mxu0 0.0
        %3264 = vmatpush1.xpose.msra.mxu0 0.0
        %3265 = vmatprep.subr.mxu0 0.0
        %3266 = vmatpush1.xpose.msra.mxu0 0.0
        %3267 = vmatprep.subr.mxu0 0.0
        %3268 = vmatpush1.xpose.msra.mxu0 0.0
        %3269 = vmatprep.subr.mxu0 0.0
        %3270 = vmatpush1.xpose.msra.mxu0 0.0
        %3271 = vmatprep.subr.mxu0 0.0
        %3272 = vmatpush1.xpose.msra.mxu0 0.0
        %3273 = vmatprep.subr.mxu0 0.0
        %3274 = vmatpush1.xpose.msra.mxu0 0.0
        %3275 = vmatprep.subr.mxu0 0.0
        %3276 = vmatpush1.xpose.msra.mxu0 0.0
        %3277 = vmatprep.subr.mxu0 0.0
        %3278 = vmatpush1.xpose.msra.mxu0 0.0
        %3279 = vmatprep.subr.mxu0 0.0
        %3280 = vmatpush1.xpose.msra.mxu0 0.0
        %3281 = vmatprep.subr.mxu0 0.0
        %3282 = vmatpush1.xpose.msra.mxu0 0.0
        %3283 = vmatprep.subr.mxu0 0.0
        %3284 = vmatpush1.xpose.msra.mxu0 0.0
        %3285 = vmatprep.subr.mxu0 0.0
        %3286 = vmatpush1.xpose.msra.mxu0 0.0
        %3287 = vmatprep.subr.mxu0 0.0
        %3288 = vmatpush1.xpose.msra.mxu0 0.0
        %3289 = vmatprep.mubr.f32.mxu0 0.0
        %3290 = vmatmul.mubr.f32.gmra.mrb[0].mxu0 %v3221
        %v3291 = vpop.f32.mrb[0].mxu0
        %v3292 = vadd.f32 %v2504, %v3291
        %v3293 = vpop.f32.mrb[0].mxu0
        %3294 = vdwg.mxu0
        %v3295 = vsel %vm1277, %v3292, -inf
        %3296 = vmax.xlane.f32.xlu0 %v3295
        %v3297 = vpop.xlane.xlu0 %3296
        %v3298 = vsub.f32 %v3292, %v3297
        %v3299 = vmul.f32 %v3298, 1.442695
        %v3300 = vpow.pop %v3299
        %v3301 = vsel %vm1277, %v3300, 0.0
        %3302 = vadd.xlane.f32.xlu0 %v3301
        %v3303 = vpop.xlane.xlu0 %3302
        %v3304 = vrcp.pop %v3303
        %v3305 = vmul.f32 %v3300, %v3304
        %3306 = vrot.lane.b32.xlu0 %v2497, 104
        %v3307 = vpop.permute.xlu0 %3306
        %v3310 = vsel %vm1277, %v3305, 0
        %3312 = vmatprep.subr.mxu0 0.0
        %3313 = vmatpush1.msra.mxu0 %v3307
        %3314 = vmatprep.subr.mxu0 0.0
        %3315 = vmatpush1.msra.mxu0 0.0
        %3316 = vmatprep.subr.mxu0 0.0
        %3317 = vmatpush1.msra.mxu0 0.0
        %3318 = vmatprep.subr.mxu0 0.0
        %3319 = vmatpush1.msra.mxu0 0.0
        %3320 = vmatprep.subr.mxu0 0.0
        %3321 = vmatpush1.msra.mxu0 0.0
        %3322 = vmatprep.subr.mxu0 0.0
        %3323 = vmatpush1.msra.mxu0 0.0
        %3324 = vmatprep.subr.mxu0 0.0
        %3325 = vmatpush1.msra.mxu0 0.0
        %3326 = vmatprep.subr.mxu0 0.0
        %3327 = vmatpush1.msra.mxu0 0.0
        %3328 = vmatprep.subr.mxu0 0.0
        %3329 = vmatpush1.msra.mxu0 0.0
        %3330 = vmatprep.subr.mxu0 0.0
        %3331 = vmatpush1.msra.mxu0 0.0
        %3332 = vmatprep.subr.mxu0 0.0
        %3333 = vmatpush1.msra.mxu0 0.0
        %3334 = vmatprep.subr.mxu0 0.0
        %3335 = vmatpush1.msra.mxu0 0.0
        %3336 = vmatprep.subr.mxu0 0.0
        %3337 = vmatpush1.msra.mxu0 0.0
        %3338 = vmatprep.subr.mxu0 0.0
        %3339 = vmatpush1.msra.mxu0 0.0
        %3340 = vmatprep.subr.mxu0 0.0
        %3341 = vmatpush1.msra.mxu0 0.0
        %3342 = vmatprep.subr.mxu0 0.0
        %3343 = vmatpush1.msra.mxu0 0.0
        %3344 = vmatprep.subr.mxu0 0.0
        %3345 = vmatpush1.msra.mxu0 0.0
        %3346 = vmatprep.subr.mxu0 0.0
        %3347 = vmatpush1.msra.mxu0 0.0
        %3348 = vmatprep.subr.mxu0 0.0
        %3349 = vmatpush1.msra.mxu0 0.0
        %3350 = vmatprep.subr.mxu0 0.0
        %3351 = vmatpush1.msra.mxu0 0.0
        %3352 = vmatprep.subr.mxu0 0.0
        %3353 = vmatpush1.msra.mxu0 0.0
        %3354 = vmatprep.subr.mxu0 0.0
        %3355 = vmatpush1.msra.mxu0 0.0
        %3356 = vmatprep.subr.mxu0 0.0
        %3357 = vmatpush1.msra.mxu0 0.0
        %3358 = vmatprep.subr.mxu0 0.0
        %3359 = vmatpush1.msra.mxu0 0.0
        %3360 = vmatprep.subr.mxu0 0.0
        %3361 = vmatpush1.msra.mxu0 0.0
        %3362 = vmatprep.subr.mxu0 0.0
        %3363 = vmatpush1.msra.mxu0 0.0
        %3364 = vmatprep.subr.mxu0 0.0
        %3365 = vmatpush1.msra.mxu0 0.0
        %3366 = vmatprep.subr.mxu0 0.0
        %3367 = vmatpush1.msra.mxu0 0.0
        %3368 = vmatprep.subr.mxu0 0.0
        %3369 = vmatpush1.msra.mxu0 0.0
        %3370 = vmatprep.subr.mxu0 0.0
        %3371 = vmatpush1.msra.mxu0 0.0
        %3372 = vmatprep.subr.mxu0 0.0
        %3373 = vmatpush1.msra.mxu0 0.0
        %3374 = vmatprep.subr.mxu0 0.0
        %3375 = vmatpush1.msra.mxu0 0.0
        %3376 = vmatprep.mubr.f32.mxu0 0.0
        %3377 = vmatmul.mubr.f32.gmra.mrb[0].mxu0 %v3310
        %v3378 = vpop.f32.mrb[0].mxu0
        %v3379 = vadd.f32 0.0, %v3378
        %v3380 = vpop.f32.mrb[0].mxu0
        %3381 = vdwg.mxu0
        %v3383 = vsel %vm1277, %v3379, 0
        %3385 = vmatprep.subr.mxu0 0.0
        %3386 = vmatpush1.msra.mxu0 %v2281
        %3387 = vmatprep.subr.mxu0 0.0
        %3388 = vmatpush1.msra.mxu0 0.0
        %3389 = vmatprep.subr.mxu0 0.0
        %3390 = vmatpush1.msra.mxu0 0.0
        %3391 = vmatprep.subr.mxu0 0.0
        %3392 = vmatpush1.msra.mxu0 0.0
        %3393 = vmatprep.subr.mxu0 0.0
        %3394 = vmatpush1.msra.mxu0 0.0
        %3395 = vmatprep.subr.mxu0 0.0
        %3396 = vmatpush1.msra.mxu0 0.0
        %3397 = vmatprep.subr.mxu0 0.0
        %3398 = vmatpush1.msra.mxu0 0.0
        %3399 = vmatprep.subr.mxu0 0.0
        %3400 = vmatpush1.msra.mxu0 0.0
        %3401 = vmatprep.subr.mxu0 0.0
        %3402 = vmatpush1.msra.mxu0 0.0
        %3403 = vmatprep.subr.mxu0 0.0
        %3404 = vmatpush1.msra.mxu0 0.0
        %3405 = vmatprep.subr.mxu0 0.0
        %3406 = vmatpush1.msra.mxu0 0.0
        %3407 = vmatprep.subr.mxu0 0.0
        %3408 = vmatpush1.msra.mxu0 0.0
        %3409 = vmatprep.subr.mxu0 0.0
        %3410 = vmatpush1.msra.mxu0 0.0
        %3411 = vmatprep.subr.mxu0 0.0
        %3412 = vmatpush1.msra.mxu0 0.0
        %3413 = vmatprep.subr.mxu0 0.0
        %3414 = vmatpush1.msra.mxu0 0.0
        %3415 = vmatprep.subr.mxu0 0.0
        %3416 = vmatpush1.msra.mxu0 0.0
        %3417 = vmatprep.subr.mxu0 0.0
        %3418 = vmatpush1.msra.mxu0 0.0
        %3419 = vmatprep.subr.mxu0 0.0
        %3420 = vmatpush1.msra.mxu0 0.0
        %3421 = vmatprep.subr.mxu0 0.0
        %3422 = vmatpush1.msra.mxu0 0.0
        %3423 = vmatprep.subr.mxu0 0.0
        %3424 = vmatpush1.msra.mxu0 0.0
        %3425 = vmatprep.subr.mxu0 0.0
        %3426 = vmatpush1.msra.mxu0 0.0
        %3427 = vmatprep.subr.mxu0 0.0
        %3428 = vmatpush1.msra.mxu0 0.0
        %3429 = vmatprep.subr.mxu0 0.0
        %3430 = vmatpush1.msra.mxu0 0.0
        %3431 = vmatprep.subr.mxu0 0.0
        %3432 = vmatpush1.msra.mxu0 0.0
        %3433 = vmatprep.subr.mxu0 0.0
        %3434 = vmatpush1.msra.mxu0 0.0
        %3435 = vmatprep.subr.mxu0 0.0
        %3436 = vmatpush1.msra.mxu0 0.0
        %3437 = vmatprep.subr.mxu0 0.0
        %3438 = vmatpush1.msra.mxu0 0.0
        %3439 = vmatprep.subr.mxu0 0.0
        %3440 = vmatpush1.msra.mxu0 0.0
        %3441 = vmatprep.subr.mxu0 0.0
        %3442 = vmatpush1.msra.mxu0 0.0
        %3443 = vmatprep.subr.mxu0 0.0
        %3444 = vmatpush1.msra.mxu0 0.0
        %3445 = vmatprep.subr.mxu0 0.0
        %3446 = vmatpush1.msra.mxu0 0.0
        %3447 = vmatprep.subr.mxu0 0.0
        %3448 = vmatpush1.msra.mxu0 0.0
        %3449 = vmatprep.mubr.f32.mxu0 0.0
        %3450 = vmatmul.mubr.f32.gmra.mrb[0].mxu0 %v3383
        %v3451 = vpop.f32.mrb[0].mxu0
        %v3452 = vadd.f32 0.0, %v3451
        %v3453 = vpop.f32.mrb[0].mxu0
        %3454 = vdwg.mxu0
        %v3455 = vadd.f32 %v3216, %v3452
        %v3457 = vlaneseq
        %v3458 = vshrl.u32 %v3457, 7
        %v3459 = vsub.s32 0, %v3458
        %v3460 = vrot.slane %v2282, %v3459
        %v3462 = vadd.f32 %v3455, %v3460
        %v3463 = vadd.f32 %v3462, %v2265
        %v3464 = vld [vmem:[#allocation16] sm:$0x1]
        %v3465 = vld [vmem:[#allocation17] sm:$0x1]
        %v3466 = vsel %vm1062, %v3463, 0.0
        %3467 = vadd.xlane.f32.xlu0 %v3466
        %v3468 = vpop.xlane.xlu0 %3467
        %v3469 = vmul.f32 %v3468, %v2241
        %v3470 = vsub.f32 %v3463, %v3469
        %v3471 = vmul.f32 %v3470, %v3470
        %v3472 = vsel %vm1062, %v3471, 0.0
        %3473 = vadd.xlane.f32.xlu0 %v3472
        %v3474 = vpop.xlane.xlu0 %3473
        %v3475 = vmul.f32 %v3474, %v2241
        %v3476 = vadd.f32 %v3475, 1e-05
        %v3477 = vrsqrt.pop %v3476
        %v3478 = vmul.f32 %v3470, %v3477
        %v3480 = vlaneseq
        %v3481 = vshrl.u32 %v3480, 7
        %v3482 = vsub.s32 0, %v3481
        %v3483 = vrot.slane %v3464, %v3482
        %v3485 = vmul.f32 %v3478, %v3483
        %v3487 = vlaneseq
        %v3488 = vshrl.u32 %v3487, 7
        %v3489 = vsub.s32 0, %v3488
        %v3490 = vrot.slane %v3465, %v3489
        %v3492 = vadd.f32 %v3485, %v3490
        %v3493 = vld [vmem:[#allocation19] sm:$0xff]
        %v3494 = vld [vmem:[#allocation19 + $0x8] sm:$0xff]
        %v3495 = vld [vmem:[#allocation19 + $0x10] sm:$0xff]
        %v3496 = vld [vmem:[#allocation19 + $0x18] sm:$0xff]
        %v3497 = vld [vmem:[#allocation20] sm:$0x1]
        %v3499 = vlaneseq
        %v3500 = vshrl.u32 %v3499, 7
        %v3501 = vsub.s32 0, %v3500
        %v3502 = vrot.slane %v3497, %v3501
        %v3505 = vsel %vm1062, %v3492, 0
        %3507 = vmatprep.subr.mxu0 0.0
        %3508 = vmatpush1.msra.mxu0 %v3493
        %3509 = vmatprep.subr.mxu0 0.0
        %3510 = vmatpush1.msra.mxu0 %v3494
        %3511 = vmatprep.subr.mxu0 0.0
        %3512 = vmatpush1.msra.mxu0 %v3495
        %3513 = vmatprep.subr.mxu0 0.0
        %3514 = vmatpush1.msra.mxu0 %v3496
        %3515 = vmatprep.subr.mxu0 0.0
        %3516 = vmatpush1.msra.mxu0 0.0
        %3517 = vmatprep.subr.mxu0 0.0
        %3518 = vmatpush1.msra.mxu0 0.0
        %3519 = vmatprep.subr.mxu0 0.0
        %3520 = vmatpush1.msra.mxu0 0.0
        %3521 = vmatprep.subr.mxu0 0.0
        %3522 = vmatpush1.msra.mxu0 0.0
        %3523 = vmatprep.subr.mxu0 0.0
        %3524 = vmatpush1.msra.mxu0 0.0
        %3525 = vmatprep.subr.mxu0 0.0
        %3526 = vmatpush1.msra.mxu0 0.0
        %3527 = vmatprep.subr.mxu0 0.0
        %3528 = vmatpush1.msra.mxu0 0.0
        %3529 = vmatprep.subr.mxu0 0.0
        %3530 = vmatpush1.msra.mxu0 0.0
        %3531 = vmatprep.subr.mxu0 0.0
        %3532 = vmatpush1.msra.mxu0 0.0
        %3533 = vmatprep.subr.mxu0 0.0
        %3534 = vmatpush1.msra.mxu0 0.0
        %3535 = vmatprep.subr.mxu0 0.0
        %3536 = vmatpush1.msra.mxu0 0.0
        %3537 = vmatprep.subr.mxu0 0.0
        %3538 = vmatpush1.msra.mxu0 0.0
        %3539 = vmatprep.subr.mxu0 0.0
        %3540 = vmatpush1.msra.mxu0 0.0
        %3541 = vmatprep.subr.mxu0 0.0
        %3542 = vmatpush1.msra.mxu0 0.0
        %3543 = vmatprep.subr.mxu0 0.0
        %3544 = vmatpush1.msra.mxu0 0.0
        %3545 = vmatprep.subr.mxu0 0.0
        %3546 = vmatpush1.msra.mxu0 0.0
        %3547 = vmatprep.subr.mxu0 0.0
        %3548 = vmatpush1.msra.mxu0 0.0
        %3549 = vmatprep.subr.mxu0 0.0
        %3550 = vmatpush1.msra.mxu0 0.0
        %3551 = vmatprep.subr.mxu0 0.0
        %3552 = vmatpush1.msra.mxu0 0.0
        %3553 = vmatprep.subr.mxu0 0.0
        %3554 = vmatpush1.msra.mxu0 0.0
        %3555 = vmatprep.subr.mxu0 0.0
        %3556 = vmatpush1.msra.mxu0 0.0
        %3557 = vmatprep.subr.mxu0 0.0
        %3558 = vmatpush1.msra.mxu0 0.0
        %3559 = vmatprep.subr.mxu0 0.0
        %3560 = vmatpush1.msra.mxu0 0.0
        %3561 = vmatprep.subr.mxu0 0.0
        %3562 = vmatpush1.msra.mxu0 0.0
        %3563 = vmatprep.subr.mxu0 0.0
        %3564 = vmatpush1.msra.mxu0 0.0
        %3565 = vmatprep.subr.mxu0 0.0
        %3566 = vmatpush1.msra.mxu0 0.0
        %3567 = vmatprep.subr.mxu0 0.0
        %3568 = vmatpush1.msra.mxu0 0.0
        %3569 = vmatprep.subr.mxu0 0.0
        %3570 = vmatpush1.msra.mxu0 0.0
        %3571 = vmatprep.mubr.f32.mxu0 0.0
        %3572 = vmatmul.mubr.f32.gmra.mrb[0].mxu0 %v3505
        %v3573 = vpop.f32.mrb[0].mxu0
        %v3574 = vadd.f32 %v3502, %v3573
        %v3575 = vpop.f32.mrb[0].mxu0
        %3576 = vdwg.mxu0
        %v3577 = vmax.f32 %v3574, 0.0
        %v3578 = vld [vmem:[%s20] sm:$0xff]
        %v3579 = vld [vmem:[%s20 + $0x8] sm:$0xff]
        %v3580 = vld [vmem:[%s20 + $0x10] sm:$0xff]
        %v3581 = vld [vmem:[%s20 + $0x18] sm:$0xff]
        %v3582 = vld [vmem:[%s20 + $0x20] sm:$0xff]
        %v3583 = vld [vmem:[%s20 + $0x28] sm:$0xff]
        %v3584 = vld [vmem:[%s20 + $0x30] sm:$0xff]
        %v3585 = vld [vmem:[%s20 + $0x38] sm:$0xff]
        %v3586 = vld [vmem:[%s21] sm:$0x1]
        %v3588 = vlaneseq
        %v3589 = vshrl.u32 %v3588, 7
        %v3590 = vsub.s32 0, %v3589
        %v3591 = vrot.slane %v3586, %v3590
        %vm3593 = vcmask 523264
        %v3595 = vsel %vm3593, %v3577, 0
        %3597 = vmatprep.subr.mxu0 0.0
        %3598 = vmatpush1.msra.mxu0 %v3578
        %3599 = vmatprep.subr.mxu0 0.0
        %3600 = vmatpush1.msra.mxu0 %v3579
        %3601 = vmatprep.subr.mxu0 0.0
        %3602 = vmatpush1.msra.mxu0 %v3580
        %3603 = vmatprep.subr.mxu0 0.0
        %3604 = vmatpush1.msra.mxu0 %v3581
        %3605 = vmatprep.subr.mxu0 0.0
        %3606 = vmatpush1.msra.mxu0 %v3582
        %3607 = vmatprep.subr.mxu0 0.0
        %3608 = vmatpush1.msra.mxu0 %v3583
        %3609 = vmatprep.subr.mxu0 0.0
        %3610 = vmatpush1.msra.mxu0 %v3584
        %3611 = vmatprep.subr.mxu0 0.0
        %3612 = vmatpush1.msra.mxu0 %v3585
        %3613 = vmatprep.subr.mxu0 0.0
        %3614 = vmatpush1.msra.mxu0 0.0
        %3615 = vmatprep.subr.mxu0 0.0
        %3616 = vmatpush1.msra.mxu0 0.0
        %3617 = vmatprep.subr.mxu0 0.0
        %3618 = vmatpush1.msra.mxu0 0.0
        %3619 = vmatprep.subr.mxu0 0.0
        %3620 = vmatpush1.msra.mxu0 0.0
        %3621 = vmatprep.subr.mxu0 0.0
        %3622 = vmatpush1.msra.mxu0 0.0
        %3623 = vmatprep.subr.mxu0 0.0
        %3624 = vmatpush1.msra.mxu0 0.0
        %3625 = vmatprep.subr.mxu0 0.0
        %3626 = vmatpush1.msra.mxu0 0.0
        %3627 = vmatprep.subr.mxu0 0.0
        %3628 = vmatpush1.msra.mxu0 0.0
        %3629 = vmatprep.subr.mxu0 0.0
        %3630 = vmatpush1.msra.mxu0 0.0
        %3631 = vmatprep.subr.mxu0 0.0
        %3632 = vmatpush1.msra.mxu0 0.0
        %3633 = vmatprep.subr.mxu0 0.0
        %3634 = vmatpush1.msra.mxu0 0.0
        %3635 = vmatprep.subr.mxu0 0.0
        %3636 = vmatpush1.msra.mxu0 0.0
        %3637 = vmatprep.subr.mxu0 0.0
        %3638 = vmatpush1.msra.mxu0 0.0
        %3639 = vmatprep.subr.mxu0 0.0
        %3640 = vmatpush1.msra.mxu0 0.0
        %3641 = vmatprep.subr.mxu0 0.0
        %3642 = vmatpush1.msra.mxu0 0.0
        %3643 = vmatprep.subr.mxu0 0.0
        %3644 = vmatpush1.msra.mxu0 0.0
        %3645 = vmatprep.subr.mxu0 0.0
        %3646 = vmatpush1.msra.mxu0 0.0
        %3647 = vmatprep.subr.mxu0 0.0
        %3648 = vmatpush1.msra.mxu0 0.0
        %3649 = vmatprep.subr.mxu0 0.0
        %3650 = vmatpush1.msra.mxu0 0.0
        %3651 = vmatprep.subr.mxu0 0.0
        %3652 = vmatpush1.msra.mxu0 0.0
        %3653 = vmatprep.subr.mxu0 0.0
        %3654 = vmatpush1.msra.mxu0 0.0
        %3655 = vmatprep.subr.mxu0 0.0
        %3656 = vmatpush1.msra.mxu0 0.0
        %3657 = vmatprep.subr.mxu0 0.0
        %3658 = vmatpush1.msra.mxu0 0.0
        %3659 = vmatprep.subr.mxu0 0.0
        %3660 = vmatpush1.msra.mxu0 0.0
        %3661 = vmatprep.mubr.f32.mxu0 0.0
        %3662 = vmatmul.mubr.f32.gmra.mrb[0].mxu0 %v3595
        %v3663 = vpop.f32.mrb[0].mxu0
        %v3664 = vadd.f32 %v3591, %v3663
        %v3665 = vpop.f32.mrb[0].mxu0
        %3666 = vdwg.mxu0
        %v3667 = vadd.f32 %v3664, %v3492
        %v3668 = vld [vmem:[%s22] sm:$0x1]
        %v3669 = vld [vmem:[%s23] sm:$0x1]
        %v3670 = vsel %vm1062, %v3667, 0.0
        %3671 = vadd.xlane.f32.xlu0 %v3670
        %v3672 = vpop.xlane.xlu0 %3671
        %v3673 = vmul.f32 %v3672, %v2241
        %v3674 = vsub.f32 %v3667, %v3673
        %v3675 = vmul.f32 %v3674, %v3674
        %v3676 = vsel %vm1062, %v3675, 0.0
        %3677 = vadd.xlane.f32.xlu0 %v3676
        %v3678 = vpop.xlane.xlu0 %3677
        %v3679 = vmul.f32 %v3678, %v2241
        %v3680 = vadd.f32 %v3679, 1e-05
        %v3681 = vrsqrt.pop %v3680
        %v3682 = vmul.f32 %v3674, %v3681
        %v3684 = vlaneseq
        %v3685 = vshrl.u32 %v3684, 7
        %v3686 = vsub.s32 0, %v3685
        %v3687 = vrot.slane %v3668, %v3686
        %v3689 = vmul.f32 %v3682, %v3687
        %v3691 = vlaneseq
        %v3692 = vshrl.u32 %v3691, 7
        %v3693 = vsub.s32 0, %v3692
        %v3694 = vrot.slane %v3669, %v3693
        %v3696 = vadd.f32 %v3689, %v3694
        %s3697 = scalar_lea.vmem %s4, 32
        %v3698 = vld [vmem:[%s3697] sm:$0xff]
        %v3699 = vld [vmem:[%s3697 + $0x8] sm:$0xff]
        %v3700 = vld [vmem:[%s3697 + $0x10] sm:$0xff]
        %v3701 = vld [vmem:[%s3697 + $0x18] sm:$0xff]
        %s3702 = scalar_lea.vmem %s5, 32
        %v3703 = vld [vmem:[%s3702] sm:$0xff]
        %v3704 = vld [vmem:[%s3702 + $0x8] sm:$0xff]
        %v3705 = vld [vmem:[%s3702 + $0x10] sm:$0xff]
        %v3706 = vld [vmem:[%s3702 + $0x18] sm:$0xff]
        %s3707 = scalar_lea.vmem %s6, 32
        %v3708 = vld [vmem:[%s3707] sm:$0xff]
        %v3709 = vld [vmem:[%s3707 + $0x8] sm:$0xff]
        %v3710 = vld [vmem:[%s3707 + $0x10] sm:$0xff]
        %v3711 = vld [vmem:[%s3707 + $0x18] sm:$0xff]
        %s3712 = scalar_lea.vmem [#allocation8], 32
        %v3713 = vld [vmem:[%s3712] sm:$0xff]
        %v3714 = vld [vmem:[%s3712 + $0x8] sm:$0xff]
        %v3715 = vld [vmem:[%s3712 + $0x10] sm:$0xff]
        %v3716 = vld [vmem:[%s3712 + $0x18] sm:$0xff]
        %s3717 = scalar_lea.vmem %s8, 1
        %v3718 = vld [vmem:[%s3717] sm:$0x1]
        %v3720 = vsel %vm1062, %v3696, 0
        %3722 = vmatprep.subr.mxu0 0.0
        %3723 = vmatpush1.msra.mxu0 %v3698
        %3724 = vmatprep.subr.mxu0 0.0
        %3725 = vmatpush1.msra.mxu0 %v3699
        %3726 = vmatprep.subr.mxu0 0.0
        %3727 = vmatpush1.msra.mxu0 %v3700
        %3728 = vmatprep.subr.mxu0 0.0
        %3729 = vmatpush1.msra.mxu0 %v3701
        %3730 = vmatprep.subr.mxu0 0.0
        %3731 = vmatpush1.msra.mxu0 0.0
        %3732 = vmatprep.subr.mxu0 0.0
        %3733 = vmatpush1.msra.mxu0 0.0
        %3734 = vmatprep.subr.mxu0 0.0
        %3735 = vmatpush1.msra.mxu0 0.0
        %3736 = vmatprep.subr.mxu0 0.0
        %3737 = vmatpush1.msra.mxu0 0.0
        %3738 = vmatprep.subr.mxu0 0.0
        %3739 = vmatpush1.msra.mxu0 0.0
        %3740 = vmatprep.subr.mxu0 0.0
        %3741 = vmatpush1.msra.mxu0 0.0
        %3742 = vmatprep.subr.mxu0 0.0
        %3743 = vmatpush1.msra.mxu0 0.0
        %3744 = vmatprep.subr.mxu0 0.0
        %3745 = vmatpush1.msra.mxu0 0.0
        %3746 = vmatprep.subr.mxu0 0.0
        %3747 = vmatpush1.msra.mxu0 0.0
        %3748 = vmatprep.subr.mxu0 0.0
        %3749 = vmatpush1.msra.mxu0 0.0
        %3750 = vmatprep.subr.mxu0 0.0
        %3751 = vmatpush1.msra.mxu0 0.0
        %3752 = vmatprep.subr.mxu0 0.0
        %3753 = vmatpush1.msra.mxu0 0.0
        %3754 = vmatprep.subr.mxu0 0.0
        %3755 = vmatpush1.msra.mxu0 0.0
        %3756 = vmatprep.subr.mxu0 0.0
        %3757 = vmatpush1.msra.mxu0 0.0
        %3758 = vmatprep.subr.mxu0 0.0
        %3759 = vmatpush1.msra.mxu0 0.0
        %3760 = vmatprep.subr.mxu0 0.0
        %3761 = vmatpush1.msra.mxu0 0.0
        %3762 = vmatprep.subr.mxu0 0.0
        %3763 = vmatpush1.msra.mxu0 0.0
        %3764 = vmatprep.subr.mxu0 0.0
        %3765 = vmatpush1.msra.mxu0 0.0
        %3766 = vmatprep.subr.mxu0 0.0
        %3767 = vmatpush1.msra.mxu0 0.0
        %3768 = vmatprep.subr.mxu0 0.0
        %3769 = vmatpush1.msra.mxu0 0.0
        %3770 = vmatprep.subr.mxu0 0.0
        %3771 = vmatpush1.msra.mxu0 0.0
        %3772 = vmatprep.subr.mxu0 0.0
        %3773 = vmatpush1.msra.mxu0 0.0
        %3774 = vmatprep.subr.mxu0 0.0
        %3775 = vmatpush1.msra.mxu0 0.0
        %3776 = vmatprep.subr.mxu0 0.0
        %3777 = vmatpush1.msra.mxu0 0.0
        %3778 = vmatprep.subr.mxu0 0.0
        %3779 = vmatpush1.msra.mxu0 0.0
        %3780 = vmatprep.subr.mxu0 0.0
        %3781 = vmatpush1.msra.mxu0 0.0
        %3782 = vmatprep.subr.mxu0 0.0
        %3783 = vmatpush1.msra.mxu0 0.0
        %3784 = vmatprep.subr.mxu0 0.0
        %3785 = vmatpush1.msra.mxu0 0.0
        %3786 = vmatprep.mubr.f32.mxu0 0.0
        %3787 = vmatmul.mubr.f32.gmra.mrb[0].mxu0 %v3720
        %v3788 = vpop.f32.mrb[0].mxu0
        %v3789 = vadd.f32 0.0, %v3788
        %v3790 = vpop.f32.mrb[0].mxu0
        %3791 = vdwg.mxu0
        %v3792 = vmul.f32 %v3789, 0.17677669
        %3793 = vmatprep.subr.mxu0 0.0
        %3794 = vmatpush1.msra.mxu0 %v3703
        %3795 = vmatprep.subr.mxu0 0.0
        %3796 = vmatpush1.msra.mxu0 %v3704
        %3797 = vmatprep.subr.mxu0 0.0
        %3798 = vmatpush1.msra.mxu0 %v3705
        %3799 = vmatprep.subr.mxu0 0.0
        %3800 = vmatpush1.msra.mxu0 %v3706
        %3801 = vmatprep.subr.mxu0 0.0
        %3802 = vmatpush1.msra.mxu0 0.0
        %3803 = vmatprep.subr.mxu0 0.0
        %3804 = vmatpush1.msra.mxu0 0.0
        %3805 = vmatprep.subr.mxu0 0.0
        %3806 = vmatpush1.msra.mxu0 0.0
        %3807 = vmatprep.subr.mxu0 0.0
        %3808 = vmatpush1.msra.mxu0 0.0
        %3809 = vmatprep.subr.mxu0 0.0
        %3810 = vmatpush1.msra.mxu0 0.0
        %3811 = vmatprep.subr.mxu0 0.0
        %3812 = vmatpush1.msra.mxu0 0.0
        %3813 = vmatprep.subr.mxu0 0.0
        %3814 = vmatpush1.msra.mxu0 0.0
        %3815 = vmatprep.subr.mxu0 0.0
        %3816 = vmatpush1.msra.mxu0 0.0
        %3817 = vmatprep.subr.mxu0 0.0
        %3818 = vmatpush1.msra.mxu0 0.0
        %3819 = vmatprep.subr.mxu0 0.0
        %3820 = vmatpush1.msra.mxu0 0.0
        %3821 = vmatprep.subr.mxu0 0.0
        %3822 = vmatpush1.msra.mxu0 0.0
        %3823 = vmatprep.subr.mxu0 0.0
        %3824 = vmatpush1.msra.mxu0 0.0
        %3825 = vmatprep.subr.mxu0 0.0
        %3826 = vmatpush1.msra.mxu0 0.0
        %3827 = vmatprep.subr.mxu0 0.0
        %3828 = vmatpush1.msra.mxu0 0.0
        %3829 = vmatprep.subr.mxu0 0.0
        %3830 = vmatpush1.msra.mxu0 0.0
        %3831 = vmatprep.subr.mxu0 0.0
        %3832 = vmatpush1.msra.mxu0 0.0
        %3833 = vmatprep.subr.mxu0 0.0
        %3834 = vmatpush1.msra.mxu0 0.0
        %3835 = vmatprep.subr.mxu0 0.0
        %3836 = vmatpush1.msra.mxu0 0.0
        %3837 = vmatprep.subr.mxu0 0.0
        %3838 = vmatpush1.msra.mxu0 0.0
        %3839 = vmatprep.subr.mxu0 0.0
        %3840 = vmatpush1.msra.mxu0 0.0
        %3841 = vmatprep.subr.mxu0 0.0
        %3842 = vmatpush1.msra.mxu0 0.0
        %3843 = vmatprep.subr.mxu0 0.0
        %3844 = vmatpush1.msra.mxu0 0.0
        %3845 = vmatprep.subr.mxu0 0.0
        %3846 = vmatpush1.msra.mxu0 0.0
        %3847 = vmatprep.subr.mxu0 0.0
        %3848 = vmatpush1.msra.mxu0 0.0
        %3849 = vmatprep.subr.mxu0 0.0
        %3850 = vmatpush1.msra.mxu0 0.0
        %3851 = vmatprep.subr.mxu0 0.0
        %3852 = vmatpush1.msra.mxu0 0.0
        %3853 = vmatprep.subr.mxu0 0.0
        %3854 = vmatpush1.msra.mxu0 0.0
        %3855 = vmatprep.subr.mxu0 0.0
        %3856 = vmatpush1.msra.mxu0 0.0
        %3857 = vmatprep.mubr.f32.mxu0 0.0
        %3858 = vmatmul.mubr.f32.gmra.mrb[0].mxu0 %v3720
        %v3859 = vpop.f32.mrb[0].mxu0
        %v3860 = vadd.f32 0.0, %v3859
        %v3861 = vpop.f32.mrb[0].mxu0
        %3862 = vdwg.mxu0
        %3863 = vmatprep.subr.mxu0 0.0
        %3864 = vmatpush1.msra.mxu0 %v3708
        %3865 = vmatprep.subr.mxu0 0.0
        %3866 = vmatpush1.msra.mxu0 %v3709
        %3867 = vmatprep.subr.mxu0 0.0
        %3868 = vmatpush1.msra.mxu0 %v3710
        %3869 = vmatprep.subr.mxu0 0.0
        %3870 = vmatpush1.msra.mxu0 %v3711
        %3871 = vmatprep.subr.mxu0 0.0
        %3872 = vmatpush1.msra.mxu0 0.0
        %3873 = vmatprep.subr.mxu0 0.0
        %3874 = vmatpush1.msra.mxu0 0.0
        %3875 = vmatprep.subr.mxu0 0.0
        %3876 = vmatpush1.msra.mxu0 0.0
        %3877 = vmatprep.subr.mxu0 0.0
        %3878 = vmatpush1.msra.mxu0 0.0
        %3879 = vmatprep.subr.mxu0 0.0
        %3880 = vmatpush1.msra.mxu0 0.0
        %3881 = vmatprep.subr.mxu0 0.0
        %3882 = vmatpush1.msra.mxu0 0.0
        %3883 = vmatprep.subr.mxu0 0.0
        %3884 = vmatpush1.msra.mxu0 0.0
        %3885 = vmatprep.subr.mxu0 0.0
        %3886 = vmatpush1.msra.mxu0 0.0
        %3887 = vmatprep.subr.mxu0 0.0
        %3888 = vmatpush1.msra.mxu0 0.0
        %3889 = vmatprep.subr.mxu0 0.0
        %3890 = vmatpush1.msra.mxu0 0.0
        %3891 = vmatprep.subr.mxu0 0.0
        %3892 = vmatpush1.msra.mxu0 0.0
        %3893 = vmatprep.subr.mxu0 0.0
        %3894 = vmatpush1.msra.mxu0 0.0
        %3895 = vmatprep.subr.mxu0 0.0
        %3896 = vmatpush1.msra.mxu0 0.0
        %3897 = vmatprep.subr.mxu0 0.0
        %3898 = vmatpush1.msra.mxu0 0.0
        %3899 = vmatprep.subr.mxu0 0.0
        %3900 = vmatpush1.msra.mxu0 0.0
        %3901 = vmatprep.subr.mxu0 0.0
        %3902 = vmatpush1.msra.mxu0 0.0
        %3903 = vmatprep.subr.mxu0 0.0
        %3904 = vmatpush1.msra.mxu0 0.0
        %3905 = vmatprep.subr.mxu0 0.0
        %3906 = vmatpush1.msra.mxu0 0.0
        %3907 = vmatprep.subr.mxu0 0.0
        %3908 = vmatpush1.msra.mxu0 0.0
        %3909 = vmatprep.subr.mxu0 0.0
        %3910 = vmatpush1.msra.mxu0 0.0
        %3911 = vmatprep.subr.mxu0 0.0
        %3912 = vmatpush1.msra.mxu0 0.0
        %3913 = vmatprep.subr.mxu0 0.0
        %3914 = vmatpush1.msra.mxu0 0.0
        %3915 = vmatprep.subr.mxu0 0.0
        %3916 = vmatpush1.msra.mxu0 0.0
        %3917 = vmatprep.subr.mxu0 0.0
        %3918 = vmatpush1.msra.mxu0 0.0
        %3919 = vmatprep.subr.mxu0 0.0
        %3920 = vmatpush1.msra.mxu0 0.0
        %3921 = vmatprep.subr.mxu0 0.0
        %3922 = vmatpush1.msra.mxu0 0.0
        %3923 = vmatprep.subr.mxu0 0.0
        %3924 = vmatpush1.msra.mxu0 0.0
        %3925 = vmatprep.subr.mxu0 0.0
        %3926 = vmatpush1.msra.mxu0 0.0
        %3927 = vmatprep.mubr.f32.mxu0 0.0
        %3928 = vmatmul.mubr.f32.gmra.mrb[0].mxu0 %v3720
        %v3929 = vpop.f32.mrb[0].mxu0
        %v3930 = vadd.f32 0.0, %v3929
        %v3931 = vpop.f32.mrb[0].mxu0
        %3932 = vdwg.mxu0
        %v3934 = vsel %vm1277, %v3792, 0
        %v3937 = vsel %vm1277, %v3860, 0
        %3939 = vmatprep.subr.mxu0 0.0
        %3940 = vmatpush1.xpose.msra.mxu0 %v3937
        %3941 = vmatprep.subr.mxu0 0.0
        %3942 = vmatpush1.xpose.msra.mxu0 0.0
        %3943 = vmatprep.subr.mxu0 0.0
        %3944 = vmatpush1.xpose.msra.mxu0 0.0
        %3945 = vmatprep.subr.mxu0 0.0
        %3946 = vmatpush1.xpose.msra.mxu0 0.0
        %3947 = vmatprep.subr.mxu0 0.0
        %3948 = vmatpush1.xpose.msra.mxu0 0.0
        %3949 = vmatprep.subr.mxu0 0.0
        %3950 = vmatpush1.xpose.msra.mxu0 0.0
        %3951 = vmatprep.subr.mxu0 0.0
        %3952 = vmatpush1.xpose.msra.mxu0 0.0
        %3953 = vmatprep.subr.mxu0 0.0
        %3954 = vmatpush1.xpose.msra.mxu0 0.0
        %3955 = vmatprep.subr.mxu0 0.0
        %3956 = vmatpush1.xpose.msra.mxu0 0.0
        %3957 = vmatprep.subr.mxu0 0.0
        %3958 = vmatpush1.xpose.msra.mxu0 0.0
        %3959 = vmatprep.subr.mxu0 0.0
        %3960 = vmatpush1.xpose.msra.mxu0 0.0
        %3961 = vmatprep.subr.mxu0 0.0
        %3962 = vmatpush1.xpose.msra.mxu0 0.0
        %3963 = vmatprep.subr.mxu0 0.0
        %3964 = vmatpush1.xpose.msra.mxu0 0.0
        %3965 = vmatprep.subr.mxu0 0.0
        %3966 = vmatpush1.xpose.msra.mxu0 0.0
        %3967 = vmatprep.subr.mxu0 0.0
        %3968 = vmatpush1.xpose.msra.mxu0 0.0
        %3969 = vmatprep.subr.mxu0 0.0
        %3970 = vmatpush1.xpose.msra.mxu0 0.0
        %3971 = vmatprep.subr.mxu0 0.0
        %3972 = vmatpush1.xpose.msra.mxu0 0.0
        %3973 = vmatprep.subr.mxu0 0.0
        %3974 = vmatpush1.xpose.msra.mxu0 0.0
        %3975 = vmatprep.subr.mxu0 0.0
        %3976 = vmatpush1.xpose.msra.mxu0 0.0
        %3977 = vmatprep.subr.mxu0 0.0
        %3978 = vmatpush1.xpose.msra.mxu0 0.0
        %3979 = vmatprep.subr.mxu0 0.0
        %3980 = vmatpush1.xpose.msra.mxu0 0.0
        %3981 = vmatprep.subr.mxu0 0.0
        %3982 = vmatpush1.xpose.msra.mxu0 0.0
        %3983 = vmatprep.subr.mxu0 0.0
        %3984 = vmatpush1.xpose.msra.mxu0 0.0
        %3985 = vmatprep.subr.mxu0 0.0
        %3986 = vmatpush1.xpose.msra.mxu0 0.0
        %3987 = vmatprep.subr.mxu0 0.0
        %3988 = vmatpush1.xpose.msra.mxu0 0.0
        %3989 = vmatprep.subr.mxu0 0.0
        %3990 = vmatpush1.xpose.msra.mxu0 0.0
        %3991 = vmatprep.subr.mxu0 0.0
        %3992 = vmatpush1.xpose.msra.mxu0 0.0
        %3993 = vmatprep.subr.mxu0 0.0
        %3994 = vmatpush1.xpose.msra.mxu0 0.0
        %3995 = vmatprep.subr.mxu0 0.0
        %3996 = vmatpush1.xpose.msra.mxu0 0.0
        %3997 = vmatprep.subr.mxu0 0.0
        %3998 = vmatpush1.xpose.msra.mxu0 0.0
        %3999 = vmatprep.subr.mxu0 0.0
        %4000 = vmatpush1.xpose.msra.mxu0 0.0
        %4001 = vmatprep.subr.mxu0 0.0
        %4002 = vmatpush1.xpose.msra.mxu0 0.0
        %4003 = vmatprep.mubr.f32.mxu0 0.0
        %4004 = vmatmul.mubr.f32.gmra.mrb[0].mxu0 %v3934
        %v4005 = vpop.f32.mrb[0].mxu0
        %v4006 = vadd.f32 %v1041, %v4005
        %v4007 = vpop.f32.mrb[0].mxu0
        %4008 = vdwg.mxu0
        %v4009 = vsel %vm1277, %v4006, -inf
        %4010 = vmax.xlane.f32.xlu0 %v4009
        %v4011 = vpop.xlane.xlu0 %4010
        %v4012 = vsub.f32 %v4006, %v4011
        %v4013 = vmul.f32 %v4012, 1.442695
        %v4014 = vpow.pop %v4013
        %v4015 = vsel %vm1277, %v4014, 0.0
        %4016 = vadd.xlane.f32.xlu0 %v4015
        %v4017 = vpop.xlane.xlu0 %4016
        %v4018 = vrcp.pop %v4017
        %v4019 = vmul.f32 %v4014, %v4018
        %v4021 = vsel %vm1277, %v4019, 0
        %4023 = vmatprep.subr.mxu0 0.0
        %4024 = vmatpush1.msra.mxu0 %v3930
        %4025 = vmatprep.subr.mxu0 0.0
        %4026 = vmatpush1.msra.mxu0 0.0
        %4027 = vmatprep.subr.mxu0 0.0
        %4028 = vmatpush1.msra.mxu0 0.0
        %4029 = vmatprep.subr.mxu0 0.0
        %4030 = vmatpush1.msra.mxu0 0.0
        %4031 = vmatprep.subr.mxu0 0.0
        %4032 = vmatpush1.msra.mxu0 0.0
        %4033 = vmatprep.subr.mxu0 0.0
        %4034 = vmatpush1.msra.mxu0 0.0
        %4035 = vmatprep.subr.mxu0 0.0
        %4036 = vmatpush1.msra.mxu0 0.0
        %4037 = vmatprep.subr.mxu0 0.0
        %4038 = vmatpush1.msra.mxu0 0.0
        %4039 = vmatprep.subr.mxu0 0.0
        %4040 = vmatpush1.msra.mxu0 0.0
        %4041 = vmatprep.subr.mxu0 0.0
        %4042 = vmatpush1.msra.mxu0 0.0
        %4043 = vmatprep.subr.mxu0 0.0
        %4044 = vmatpush1.msra.mxu0 0.0
        %4045 = vmatprep.subr.mxu0 0.0
        %4046 = vmatpush1.msra.mxu0 0.0
        %4047 = vmatprep.subr.mxu0 0.0
        %4048 = vmatpush1.msra.mxu0 0.0
        %4049 = vmatprep.subr.mxu0 0.0
        %4050 = vmatpush1.msra.mxu0 0.0
        %4051 = vmatprep.subr.mxu0 0.0
        %4052 = vmatpush1.msra.mxu0 0.0
        %4053 = vmatprep.subr.mxu0 0.0
        %4054 = vmatpush1.msra.mxu0 0.0
        %4055 = vmatprep.subr.mxu0 0.0
        %4056 = vmatpush1.msra.mxu0 0.0
        %4057 = vmatprep.subr.mxu0 0.0
        %4058 = vmatpush1.msra.mxu0 0.0
        %4059 = vmatprep.subr.mxu0 0.0
        %4060 = vmatpush1.msra.mxu0 0.0
        %4061 = vmatprep.subr.mxu0 0.0
        %4062 = vmatpush1.msra.mxu0 0.0
        %4063 = vmatprep.subr.mxu0 0.0
        %4064 = vmatpush1.msra.mxu0 0.0
        %4065 = vmatprep.subr.mxu0 0.0
        %4066 = vmatpush1.msra.mxu0 0.0
        %4067 = vmatprep.subr.mxu0 0.0
        %4068 = vmatpush1.msra.mxu0 0.0
        %4069 = vmatprep.subr.mxu0 0.0
        %4070 = vmatpush1.msra.mxu0 0.0
        %4071 = vmatprep.subr.mxu0 0.0
        %4072 = vmatpush1.msra.mxu0 0.0
        %4073 = vmatprep.subr.mxu0 0.0
        %4074 = vmatpush1.msra.mxu0 0.0
        %4075 = vmatprep.subr.mxu0 0.0
        %4076 = vmatpush1.msra.mxu0 0.0
        %4077 = vmatprep.subr.mxu0 0.0
        %4078 = vmatpush1.msra.mxu0 0.0
        %4079 = vmatprep.subr.mxu0 0.0
        %4080 = vmatpush1.msra.mxu0 0.0
        %4081 = vmatprep.subr.mxu0 0.0
        %4082 = vmatpush1.msra.mxu0 0.0
        %4083 = vmatprep.subr.mxu0 0.0
        %4084 = vmatpush1.msra.mxu0 0.0
        %4085 = vmatprep.subr.mxu0 0.0
        %4086 = vmatpush1.msra.mxu0 0.0
        %4087 = vmatprep.mubr.f32.mxu0 0.0
        %4088 = vmatmul.mubr.f32.gmra.mrb[0].mxu0 %v4021
        %v4089 = vpop.f32.mrb[0].mxu0
        %v4090 = vadd.f32 0.0, %v4089
        %v4091 = vpop.f32.mrb[0].mxu0
        %4092 = vdwg.mxu0
        %4093 = vrot.lane.b32.xlu0 %v3792, 120
        %v4094 = vpop.permute.xlu0 %4093
        %4095 = vrot.lane.b32.xlu0 %v3860, 120
        %v4096 = vpop.permute.xlu0 %4095
        %v4097 = vsel %vm1277, %v4094, 0
        %v4099 = vsel %vm1277, %v4096, 0
        %4101 = vmatprep.subr.mxu0 0.0
        %4102 = vmatpush1.xpose.msra.mxu0 %v4099
        %4103 = vmatprep.subr.mxu0 0.0
        %4104 = vmatpush1.xpose.msra.mxu0 0.0
        %4105 = vmatprep.subr.mxu0 0.0
        %4106 = vmatpush1.xpose.msra.mxu0 0.0
        %4107 = vmatprep.subr.mxu0 0.0
        %4108 = vmatpush1.xpose.msra.mxu0 0.0
        %4109 = vmatprep.subr.mxu0 0.0
        %4110 = vmatpush1.xpose.msra.mxu0 0.0
        %4111 = vmatprep.subr.mxu0 0.0
        %4112 = vmatpush1.xpose.msra.mxu0 0.0
        %4113 = vmatprep.subr.mxu0 0.0
        %4114 = vmatpush1.xpose.msra.mxu0 0.0
        %4115 = vmatprep.subr.mxu0 0.0
        %4116 = vmatpush1.xpose.msra.mxu0 0.0
        %4117 = vmatprep.subr.mxu0 0.0
        %4118 = vmatpush1.xpose.msra.mxu0 0.0
        %4119 = vmatprep.subr.mxu0 0.0
        %4120 = vmatpush1.xpose.msra.mxu0 0.0
        %4121 = vmatprep.subr.mxu0 0.0
        %4122 = vmatpush1.xpose.msra.mxu0 0.0
        %4123 = vmatprep.subr.mxu0 0.0
        %4124 = vmatpush1.xpose.msra.mxu0 0.0
        %4125 = vmatprep.subr.mxu0 0.0
        %4126 = vmatpush1.xpose.msra.mxu0 0.0
        %4127 = vmatprep.subr.mxu0 0.0
        %4128 = vmatpush1.xpose.msra.mxu0 0.0
        %4129 = vmatprep.subr.mxu0 0.0
        %4130 = vmatpush1.xpose.msra.mxu0 0.0
        %4131 = vmatprep.subr.mxu0 0.0
        %4132 = vmatpush1.xpose.msra.mxu0 0.0
        %4133 = vmatprep.subr.mxu0 0.0
        %4134 = vmatpush1.xpose.msra.mxu0 0.0
        %4135 = vmatprep.subr.mxu0 0.0
        %4136 = vmatpush1.xpose.msra.mxu0 0.0
        %4137 = vmatprep.subr.mxu0 0.0
        %4138 = vmatpush1.xpose.msra.mxu0 0.0
        %4139 = vmatprep.subr.mxu0 0.0
        %4140 = vmatpush1.xpose.msra.mxu0 0.0
        %4141 = vmatprep.subr.mxu0 0.0
        %4142 = vmatpush1.xpose.msra.mxu0 0.0
        %4143 = vmatprep.subr.mxu0 0.0
        %4144 = vmatpush1.xpose.msra.mxu0 0.0
        %4145 = vmatprep.subr.mxu0 0.0
        %4146 = vmatpush1.xpose.msra.mxu0 0.0
        %4147 = vmatprep.subr.mxu0 0.0
        %4148 = vmatpush1.xpose.msra.mxu0 0.0
        %4149 = vmatprep.subr.mxu0 0.0
        %4150 = vmatpush1.xpose.msra.mxu0 0.0
        %4151 = vmatprep.subr.mxu0 0.0
        %4152 = vmatpush1.xpose.msra.mxu0 0.0
        %4153 = vmatprep.subr.mxu0 0.0
        %4154 = vmatpush1.xpose.msra.mxu0 0.0
        %4155 = vmatprep.subr.mxu0 0.0
        %4156 = vmatpush1.xpose.msra.mxu0 0.0
        %4157 = vmatprep.subr.mxu0 0.0
        %4158 = vmatpush1.xpose.msra.mxu0 0.0
        %4159 = vmatprep.subr.mxu0 0.0
        %4160 = vmatpush1.xpose.msra.mxu0 0.0
        %4161 = vmatprep.subr.mxu0 0.0
        %4162 = vmatpush1.xpose.msra.mxu0 0.0
        %4163 = vmatprep.subr.mxu0 0.0
        %4164 = vmatpush1.xpose.msra.mxu0 0.0
        %4165 = vmatprep.mubr.f32.mxu0 0.0
        %4166 = vmatmul.mubr.f32.gmra.mrb[0].mxu0 %v4097
        %v4167 = vpop.f32.mrb[0].mxu0
        %v4168 = vadd.f32 %v1041, %v4167
        %v4169 = vpop.f32.mrb[0].mxu0
        %4170 = vdwg.mxu0
        %v4171 = vsel %vm1277, %v4168, -inf
        %4172 = vmax.xlane.f32.xlu0 %v4171
        %v4173 = vpop.xlane.xlu0 %4172
        %v4174 = vsub.f32 %v4168, %v4173
        %v4175 = vmul.f32 %v4174, 1.442695
        %v4176 = vpow.pop %v4175
        %v4177 = vsel %vm1277, %v4176, 0.0
        %4178 = vadd.xlane.f32.xlu0 %v4177
        %v4179 = vpop.xlane.xlu0 %4178
        %v4180 = vrcp.pop %v4179
        %v4181 = vmul.f32 %v4176, %v4180
        %4183 = vrot.lane.b32.xlu0 %v3930, 120
        %v4184 = vpop.permute.xlu0 %4183
        %v4187 = vsel %vm1277, %v4181, 0
        %4189 = vmatprep.subr.mxu0 0.0
        %4190 = vmatpush1.msra.mxu0 %v4184
        %4191 = vmatprep.subr.mxu0 0.0
        %4192 = vmatpush1.msra.mxu0 0.0
        %4193 = vmatprep.subr.mxu0 0.0
        %4194 = vmatpush1.msra.mxu0 0.0
        %4195 = vmatprep.subr.mxu0 0.0
        %4196 = vmatpush1.msra.mxu0 0.0
        %4197 = vmatprep.subr.mxu0 0.0
        %4198 = vmatpush1.msra.mxu0 0.0
        %4199 = vmatprep.subr.mxu0 0.0
        %4200 = vmatpush1.msra.mxu0 0.0
        %4201 = vmatprep.subr.mxu0 0.0
        %4202 = vmatpush1.msra.mxu0 0.0
        %4203 = vmatprep.subr.mxu0 0.0
        %4204 = vmatpush1.msra.mxu0 0.0
        %4205 = vmatprep.subr.mxu0 0.0
        %4206 = vmatpush1.msra.mxu0 0.0
        %4207 = vmatprep.subr.mxu0 0.0
        %4208 = vmatpush1.msra.mxu0 0.0
        %4209 = vmatprep.subr.mxu0 0.0
        %4210 = vmatpush1.msra.mxu0 0.0
        %4211 = vmatprep.subr.mxu0 0.0
        %4212 = vmatpush1.msra.mxu0 0.0
        %4213 = vmatprep.subr.mxu0 0.0
        %4214 = vmatpush1.msra.mxu0 0.0
        %4215 = vmatprep.subr.mxu0 0.0
        %4216 = vmatpush1.msra.mxu0 0.0
        %4217 = vmatprep.subr.mxu0 0.0
        %4218 = vmatpush1.msra.mxu0 0.0
        %4219 = vmatprep.subr.mxu0 0.0
        %4220 = vmatpush1.msra.mxu0 0.0
        %4221 = vmatprep.subr.mxu0 0.0
        %4222 = vmatpush1.msra.mxu0 0.0
        %4223 = vmatprep.subr.mxu0 0.0
        %4224 = vmatpush1.msra.mxu0 0.0
        %4225 = vmatprep.subr.mxu0 0.0
        %4226 = vmatpush1.msra.mxu0 0.0
        %4227 = vmatprep.subr.mxu0 0.0
        %4228 = vmatpush1.msra.mxu0 0.0
        %4229 = vmatprep.subr.mxu0 0.0
        %4230 = vmatpush1.msra.mxu0 0.0
        %4231 = vmatprep.subr.mxu0 0.0
        %4232 = vmatpush1.msra.mxu0 0.0
        %4233 = vmatprep.subr.mxu0 0.0
        %4234 = vmatpush1.msra.mxu0 0.0
        %4235 = vmatprep.subr.mxu0 0.0
        %4236 = vmatpush1.msra.mxu0 0.0
        %4237 = vmatprep.subr.mxu0 0.0
        %4238 = vmatpush1.msra.mxu0 0.0
        %4239 = vmatprep.subr.mxu0 0.0
        %4240 = vmatpush1.msra.mxu0 0.0
        %4241 = vmatprep.subr.mxu0 0.0
        %4242 = vmatpush1.msra.mxu0 0.0
        %4243 = vmatprep.subr.mxu0 0.0
        %4244 = vmatpush1.msra.mxu0 0.0
        %4245 = vmatprep.subr.mxu0 0.0
        %4246 = vmatpush1.msra.mxu0 0.0
        %4247 = vmatprep.subr.mxu0 0.0
        %4248 = vmatpush1.msra.mxu0 0.0
        %4249 = vmatprep.subr.mxu0 0.0
        %4250 = vmatpush1.msra.mxu0 0.0
        %4251 = vmatprep.subr.mxu0 0.0
        %4252 = vmatpush1.msra.mxu0 0.0
        %4253 = vmatprep.mubr.f32.mxu0 0.0
        %4254 = vmatmul.mubr.f32.gmra.mrb[0].mxu0 %v4187
        %v4255 = vpop.f32.mrb[0].mxu0
        %v4256 = vadd.f32 0.0, %v4255
        %v4257 = vpop.f32.mrb[0].mxu0
        %4258 = vdwg.mxu0
        %v4260 = vsel %vm1277, %v4256, 0
        %4262 = vmatprep.subr.mxu0 0.0
        %4263 = vmatpush1.msra.mxu0 %v3714
        %4264 = vmatprep.subr.mxu0 0.0
        %4265 = vmatpush1.msra.mxu0 0.0
        %4266 = vmatprep.subr.mxu0 0.0
        %4267 = vmatpush1.msra.mxu0 0.0
        %4268 = vmatprep.subr.mxu0 0.0
        %4269 = vmatpush1.msra.mxu0 0.0
        %4270 = vmatprep.subr.mxu0 0.0
        %4271 = vmatpush1.msra.mxu0 0.0
        %4272 = vmatprep.subr.mxu0 0.0
        %4273 = vmatpush1.msra.mxu0 0.0
        %4274 = vmatprep.subr.mxu0 0.0
        %4275 = vmatpush1.msra.mxu0 0.0
        %4276 = vmatprep.subr.mxu0 0.0
        %4277 = vmatpush1.msra.mxu0 0.0
        %4278 = vmatprep.subr.mxu0 0.0
        %4279 = vmatpush1.msra.mxu0 0.0
        %4280 = vmatprep.subr.mxu0 0.0
        %4281 = vmatpush1.msra.mxu0 0.0
        %4282 = vmatprep.subr.mxu0 0.0
        %4283 = vmatpush1.msra.mxu0 0.0
        %4284 = vmatprep.subr.mxu0 0.0
        %4285 = vmatpush1.msra.mxu0 0.0
        %4286 = vmatprep.subr.mxu0 0.0
        %4287 = vmatpush1.msra.mxu0 0.0
        %4288 = vmatprep.subr.mxu0 0.0
        %4289 = vmatpush1.msra.mxu0 0.0
        %4290 = vmatprep.subr.mxu0 0.0
        %4291 = vmatpush1.msra.mxu0 0.0
        %4292 = vmatprep.subr.mxu0 0.0
        %4293 = vmatpush1.msra.mxu0 0.0
        %4294 = vmatprep.subr.mxu0 0.0
        %4295 = vmatpush1.msra.mxu0 0.0
        %4296 = vmatprep.subr.mxu0 0.0
        %4297 = vmatpush1.msra.mxu0 0.0
        %4298 = vmatprep.subr.mxu0 0.0
        %4299 = vmatpush1.msra.mxu0 0.0
        %4300 = vmatprep.subr.mxu0 0.0
        %4301 = vmatpush1.msra.mxu0 0.0
        %4302 = vmatprep.subr.mxu0 0.0
        %4303 = vmatpush1.msra.mxu0 0.0
        %4304 = vmatprep.subr.mxu0 0.0
        %4305 = vmatpush1.msra.mxu0 0.0
        %4306 = vmatprep.subr.mxu0 0.0
        %4307 = vmatpush1.msra.mxu0 0.0
        %4308 = vmatprep.subr.mxu0 0.0
        %4309 = vmatpush1.msra.mxu0 0.0
        %4310 = vmatprep.subr.mxu0 0.0
        %4311 = vmatpush1.msra.mxu0 0.0
        %4312 = vmatprep.subr.mxu0 0.0
        %4313 = vmatpush1.msra.mxu0 0.0
        %4314 = vmatprep.subr.mxu0 0.0
        %4315 = vmatpush1.msra.mxu0 0.0
        %4316 = vmatprep.subr.mxu0 0.0
        %4317 = vmatpush1.msra.mxu0 0.0
        %4318 = vmatprep.subr.mxu0 0.0
        %4319 = vmatpush1.msra.mxu0 0.0
        %4320 = vmatprep.subr.mxu0 0.0
        %4321 = vmatpush1.msra.mxu0 0.0
        %4322 = vmatprep.subr.mxu0 0.0
        %4323 = vmatpush1.msra.mxu0 0.0
        %4324 = vmatprep.subr.mxu0 0.0
        %4325 = vmatpush1.msra.mxu0 0.0
        %4326 = vmatprep.mubr.f32.mxu0 0.0
        %4327 = vmatmul.mubr.f32.gmra.mrb[0].mxu0 %v4260
        %v4328 = vpop.f32.mrb[0].mxu0
        %v4329 = vadd.f32 0.0, %v4328
        %v4330 = vpop.f32.mrb[0].mxu0
        %4331 = vdwg.mxu0
        %v4333 = vsel %vm1277, %v4090, 0
        %4335 = vmatprep.subr.mxu0 0.0
        %4336 = vmatpush1.msra.mxu0 %v3713
        %4337 = vmatprep.subr.mxu0 0.0
        %4338 = vmatpush1.msra.mxu0 0.0
        %4339 = vmatprep.subr.mxu0 0.0
        %4340 = vmatpush1.msra.mxu0 0.0
        %4341 = vmatprep.subr.mxu0 0.0
        %4342 = vmatpush1.msra.mxu0 0.0
        %4343 = vmatprep.subr.mxu0 0.0
        %4344 = vmatpush1.msra.mxu0 0.0
        %4345 = vmatprep.subr.mxu0 0.0
        %4346 = vmatpush1.msra.mxu0 0.0
        %4347 = vmatprep.subr.mxu0 0.0
        %4348 = vmatpush1.msra.mxu0 0.0
        %4349 = vmatprep.subr.mxu0 0.0
        %4350 = vmatpush1.msra.mxu0 0.0
        %4351 = vmatprep.subr.mxu0 0.0
        %4352 = vmatpush1.msra.mxu0 0.0
        %4353 = vmatprep.subr.mxu0 0.0
        %4354 = vmatpush1.msra.mxu0 0.0
        %4355 = vmatprep.subr.mxu0 0.0
        %4356 = vmatpush1.msra.mxu0 0.0
        %4357 = vmatprep.subr.mxu0 0.0
        %4358 = vmatpush1.msra.mxu0 0.0
        %4359 = vmatprep.subr.mxu0 0.0
        %4360 = vmatpush1.msra.mxu0 0.0
        %4361 = vmatprep.subr.mxu0 0.0
        %4362 = vmatpush1.msra.mxu0 0.0
        %4363 = vmatprep.subr.mxu0 0.0
        %4364 = vmatpush1.msra.mxu0 0.0
        %4365 = vmatprep.subr.mxu0 0.0
        %4366 = vmatpush1.msra.mxu0 0.0
        %4367 = vmatprep.subr.mxu0 0.0
        %4368 = vmatpush1.msra.mxu0 0.0
        %4369 = vmatprep.subr.mxu0 0.0
        %4370 = vmatpush1.msra.mxu0 0.0
        %4371 = vmatprep.subr.mxu0 0.0
        %4372 = vmatpush1.msra.mxu0 0.0
        %4373 = vmatprep.subr.mxu0 0.0
        %4374 = vmatpush1.msra.mxu0 0.0
        %4375 = vmatprep.subr.mxu0 0.0
        %4376 = vmatpush1.msra.mxu0 0.0
        %4377 = vmatprep.subr.mxu0 0.0
        %4378 = vmatpush1.msra.mxu0 0.0
        %4379 = vmatprep.subr.mxu0 0.0
        %4380 = vmatpush1.msra.mxu0 0.0
        %4381 = vmatprep.subr.mxu0 0.0
        %4382 = vmatpush1.msra.mxu0 0.0
        %4383 = vmatprep.subr.mxu0 0.0
        %4384 = vmatpush1.msra.mxu0 0.0
        %4385 = vmatprep.subr.mxu0 0.0
        %4386 = vmatpush1.msra.mxu0 0.0
        %4387 = vmatprep.subr.mxu0 0.0
        %4388 = vmatpush1.msra.mxu0 0.0
        %4389 = vmatprep.subr.mxu0 0.0
        %4390 = vmatpush1.msra.mxu0 0.0
        %4391 = vmatprep.subr.mxu0 0.0
        %4392 = vmatpush1.msra.mxu0 0.0
        %4393 = vmatprep.subr.mxu0 0.0
        %4394 = vmatpush1.msra.mxu0 0.0
        %4395 = vmatprep.subr.mxu0 0.0
        %4396 = vmatpush1.msra.mxu0 0.0
        %4397 = vmatprep.subr.mxu0 0.0
        %4398 = vmatpush1.msra.mxu0 0.0
        %4399 = vmatprep.mubr.f32.mxu0 0.0
        %4400 = vmatmul.mubr.f32.gmra.mrb[0].mxu0 %v4333
        %v4401 = vpop.f32.mrb[0].mxu0
        %v4402 = vadd.f32 %v4329, %v4401
        %v4403 = vpop.f32.mrb[0].mxu0
        %4404 = vdwg.mxu0
        %4405 = vrot.lane.b32.xlu0 %v3792, 112
        %v4406 = vpop.permute.xlu0 %4405
        %4407 = vrot.lane.b32.xlu0 %v3860, 112
        %v4408 = vpop.permute.xlu0 %4407
        %v4409 = vsel %vm1277, %v4406, 0
        %v4411 = vsel %vm1277, %v4408, 0
        %4413 = vmatprep.subr.mxu0 0.0
        %4414 = vmatpush1.xpose.msra.mxu0 %v4411
        %4415 = vmatprep.subr.mxu0 0.0
        %4416 = vmatpush1.xpose.msra.mxu0 0.0
        %4417 = vmatprep.subr.mxu0 0.0
        %4418 = vmatpush1.xpose.msra.mxu0 0.0
        %4419 = vmatprep.subr.mxu0 0.0
        %4420 = vmatpush1.xpose.msra.mxu0 0.0
        %4421 = vmatprep.subr.mxu0 0.0
        %4422 = vmatpush1.xpose.msra.mxu0 0.0
        %4423 = vmatprep.subr.mxu0 0.0
        %4424 = vmatpush1.xpose.msra.mxu0 0.0
        %4425 = vmatprep.subr.mxu0 0.0
        %4426 = vmatpush1.xpose.msra.mxu0 0.0
        %4427 = vmatprep.subr.mxu0 0.0
        %4428 = vmatpush1.xpose.msra.mxu0 0.0
        %4429 = vmatprep.subr.mxu0 0.0
        %4430 = vmatpush1.xpose.msra.mxu0 0.0
        %4431 = vmatprep.subr.mxu0 0.0
        %4432 = vmatpush1.xpose.msra.mxu0 0.0
        %4433 = vmatprep.subr.mxu0 0.0
        %4434 = vmatpush1.xpose.msra.mxu0 0.0
        %4435 = vmatprep.subr.mxu0 0.0
        %4436 = vmatpush1.xpose.msra.mxu0 0.0
        %4437 = vmatprep.subr.mxu0 0.0
        %4438 = vmatpush1.xpose.msra.mxu0 0.0
        %4439 = vmatprep.subr.mxu0 0.0
        %4440 = vmatpush1.xpose.msra.mxu0 0.0
        %4441 = vmatprep.subr.mxu0 0.0
        %4442 = vmatpush1.xpose.msra.mxu0 0.0
        %4443 = vmatprep.subr.mxu0 0.0
        %4444 = vmatpush1.xpose.msra.mxu0 0.0
        %4445 = vmatprep.subr.mxu0 0.0
        %4446 = vmatpush1.xpose.msra.mxu0 0.0
        %4447 = vmatprep.subr.mxu0 0.0
        %4448 = vmatpush1.xpose.msra.mxu0 0.0
        %4449 = vmatprep.subr.mxu0 0.0
        %4450 = vmatpush1.xpose.msra.mxu0 0.0
        %4451 = vmatprep.subr.mxu0 0.0
        %4452 = vmatpush1.xpose.msra.mxu0 0.0
        %4453 = vmatprep.subr.mxu0 0.0
        %4454 = vmatpush1.xpose.msra.mxu0 0.0
        %4455 = vmatprep.subr.mxu0 0.0
        %4456 = vmatpush1.xpose.msra.mxu0 0.0
        %4457 = vmatprep.subr.mxu0 0.0
        %4458 = vmatpush1.xpose.msra.mxu0 0.0
        %4459 = vmatprep.subr.mxu0 0.0
        %4460 = vmatpush1.xpose.msra.mxu0 0.0
        %4461 = vmatprep.subr.mxu0 0.0
        %4462 = vmatpush1.xpose.msra.mxu0 0.0
        %4463 = vmatprep.subr.mxu0 0.0
        %4464 = vmatpush1.xpose.msra.mxu0 0.0
        %4465 = vmatprep.subr.mxu0 0.0
        %4466 = vmatpush1.xpose.msra.mxu0 0.0
        %4467 = vmatprep.subr.mxu0 0.0
        %4468 = vmatpush1.xpose.msra.mxu0 0.0
        %4469 = vmatprep.subr.mxu0 0.0
        %4470 = vmatpush1.xpose.msra.mxu0 0.0
        %4471 = vmatprep.subr.mxu0 0.0
        %4472 = vmatpush1.xpose.msra.mxu0 0.0
        %4473 = vmatprep.subr.mxu0 0.0
        %4474 = vmatpush1.xpose.msra.mxu0 0.0
        %4475 = vmatprep.subr.mxu0 0.0
        %4476 = vmatpush1.xpose.msra.mxu0 0.0
        %4477 = vmatprep.mubr.f32.mxu0 0.0
        %4478 = vmatmul.mubr.f32.gmra.mrb[0].mxu0 %v4409
        %v4479 = vpop.f32.mrb[0].mxu0
        %v4480 = vadd.f32 %v1041, %v4479
        %v4481 = vpop.f32.mrb[0].mxu0
        %4482 = vdwg.mxu0
        %v4483 = vsel %vm1277, %v4480, -inf
        %4484 = vmax.xlane.f32.xlu0 %v4483
        %v4485 = vpop.xlane.xlu0 %4484
        %v4486 = vsub.f32 %v4480, %v4485
        %v4487 = vmul.f32 %v4486, 1.442695
        %v4488 = vpow.pop %v4487
        %v4489 = vsel %vm1277, %v4488, 0.0
        %4490 = vadd.xlane.f32.xlu0 %v4489
        %v4491 = vpop.xlane.xlu0 %4490
        %v4492 = vrcp.pop %v4491
        %v4493 = vmul.f32 %v4488, %v4492
        %4494 = vrot.lane.b32.xlu0 %v3930, 112
        %v4495 = vpop.permute.xlu0 %4494
        %v4498 = vsel %vm1277, %v4493, 0
        %4500 = vmatprep.subr.mxu0 0.0
        %4501 = vmatpush1.msra.mxu0 %v4495
        %4502 = vmatprep.subr.mxu0 0.0
        %4503 = vmatpush1.msra.mxu0 0.0
        %4504 = vmatprep.subr.mxu0 0.0
        %4505 = vmatpush1.msra.mxu0 0.0
        %4506 = vmatprep.subr.mxu0 0.0
        %4507 = vmatpush1.msra.mxu0 0.0
        %4508 = vmatprep.subr.mxu0 0.0
        %4509 = vmatpush1.msra.mxu0 0.0
        %4510 = vmatprep.subr.mxu0 0.0
        %4511 = vmatpush1.msra.mxu0 0.0
        %4512 = vmatprep.subr.mxu0 0.0
        %4513 = vmatpush1.msra.mxu0 0.0
        %4514 = vmatprep.subr.mxu0 0.0
        %4515 = vmatpush1.msra.mxu0 0.0
        %4516 = vmatprep.subr.mxu0 0.0
        %4517 = vmatpush1.msra.mxu0 0.0
        %4518 = vmatprep.subr.mxu0 0.0
        %4519 = vmatpush1.msra.mxu0 0.0
        %4520 = vmatprep.subr.mxu0 0.0
        %4521 = vmatpush1.msra.mxu0 0.0
        %4522 = vmatprep.subr.mxu0 0.0
        %4523 = vmatpush1.msra.mxu0 0.0
        %4524 = vmatprep.subr.mxu0 0.0
        %4525 = vmatpush1.msra.mxu0 0.0
        %4526 = vmatprep.subr.mxu0 0.0
        %4527 = vmatpush1.msra.mxu0 0.0
        %4528 = vmatprep.subr.mxu0 0.0
        %4529 = vmatpush1.msra.mxu0 0.0
        %4530 = vmatprep.subr.mxu0 0.0
        %4531 = vmatpush1.msra.mxu0 0.0
        %4532 = vmatprep.subr.mxu0 0.0
        %4533 = vmatpush1.msra.mxu0 0.0
        %4534 = vmatprep.subr.mxu0 0.0
        %4535 = vmatpush1.msra.mxu0 0.0
        %4536 = vmatprep.subr.mxu0 0.0
        %4537 = vmatpush1.msra.mxu0 0.0
        %4538 = vmatprep.subr.mxu0 0.0
        %4539 = vmatpush1.msra.mxu0 0.0
        %4540 = vmatprep.subr.mxu0 0.0
        %4541 = vmatpush1.msra.mxu0 0.0
        %4542 = vmatprep.subr.mxu0 0.0
        %4543 = vmatpush1.msra.mxu0 0.0
        %4544 = vmatprep.subr.mxu0 0.0
        %4545 = vmatpush1.msra.mxu0 0.0
        %4546 = vmatprep.subr.mxu0 0.0
        %4547 = vmatpush1.msra.mxu0 0.0
        %4548 = vmatprep.subr.mxu0 0.0
        %4549 = vmatpush1.msra.mxu0 0.0
        %4550 = vmatprep.subr.mxu0 0.0
        %4551 = vmatpush1.msra.mxu0 0.0
        %4552 = vmatprep.subr.mxu0 0.0
        %4553 = vmatpush1.msra.mxu0 0.0
        %4554 = vmatprep.subr.mxu0 0.0
        %4555 = vmatpush1.msra.mxu0 0.0
        %4556 = vmatprep.subr.mxu0 0.0
        %4557 = vmatpush1.msra.mxu0 0.0
        %4558 = vmatprep.subr.mxu0 0.0
        %4559 = vmatpush1.msra.mxu0 0.0
        %4560 = vmatprep.subr.mxu0 0.0
        %4561 = vmatpush1.msra.mxu0 0.0
        %4562 = vmatprep.subr.mxu0 0.0
        %4563 = vmatpush1.msra.mxu0 0.0
        %4564 = vmatprep.mubr.f32.mxu0 0.0
        %4565 = vmatmul.mubr.f32.gmra.mrb[0].mxu0 %v4498
        %v4566 = vpop.f32.mrb[0].mxu0
        %v4567 = vadd.f32 0.0, %v4566
        %v4568 = vpop.f32.mrb[0].mxu0
        %4569 = vdwg.mxu0
        %v4571 = vsel %vm1277, %v4567, 0
        %4573 = vmatprep.subr.mxu0 0.0
        %4574 = vmatpush1.msra.mxu0 %v3715
        %4575 = vmatprep.subr.mxu0 0.0
        %4576 = vmatpush1.msra.mxu0 0.0
        %4577 = vmatprep.subr.mxu0 0.0
        %4578 = vmatpush1.msra.mxu0 0.0
        %4579 = vmatprep.subr.mxu0 0.0
        %4580 = vmatpush1.msra.mxu0 0.0
        %4581 = vmatprep.subr.mxu0 0.0
        %4582 = vmatpush1.msra.mxu0 0.0
        %4583 = vmatprep.subr.mxu0 0.0
        %4584 = vmatpush1.msra.mxu0 0.0
        %4585 = vmatprep.subr.mxu0 0.0
        %4586 = vmatpush1.msra.mxu0 0.0
        %4587 = vmatprep.subr.mxu0 0.0
        %4588 = vmatpush1.msra.mxu0 0.0
        %4589 = vmatprep.subr.mxu0 0.0
        %4590 = vmatpush1.msra.mxu0 0.0
        %4591 = vmatprep.subr.mxu0 0.0
        %4592 = vmatpush1.msra.mxu0 0.0
        %4593 = vmatprep.subr.mxu0 0.0
        %4594 = vmatpush1.msra.mxu0 0.0
        %4595 = vmatprep.subr.mxu0 0.0
        %4596 = vmatpush1.msra.mxu0 0.0
        %4597 = vmatprep.subr.mxu0 0.0
        %4598 = vmatpush1.msra.mxu0 0.0
        %4599 = vmatprep.subr.mxu0 0.0
        %4600 = vmatpush1.msra.mxu0 0.0
        %4601 = vmatprep.subr.mxu0 0.0
        %4602 = vmatpush1.msra.mxu0 0.0
        %4603 = vmatprep.subr.mxu0 0.0
        %4604 = vmatpush1.msra.mxu0 0.0
        %4605 = vmatprep.subr.mxu0 0.0
        %4606 = vmatpush1.msra.mxu0 0.0
        %4607 = vmatprep.subr.mxu0 0.0
        %4608 = vmatpush1.msra.mxu0 0.0
        %4609 = vmatprep.subr.mxu0 0.0
        %4610 = vmatpush1.msra.mxu0 0.0
        %4611 = vmatprep.subr.mxu0 0.0
        %4612 = vmatpush1.msra.mxu0 0.0
        %4613 = vmatprep.subr.mxu0 0.0
        %4614 = vmatpush1.msra.mxu0 0.0
        %4615 = vmatprep.subr.mxu0 0.0
        %4616 = vmatpush1.msra.mxu0 0.0
        %4617 = vmatprep.subr.mxu0 0.0
        %4618 = vmatpush1.msra.mxu0 0.0
        %4619 = vmatprep.subr.mxu0 0.0
        %4620 = vmatpush1.msra.mxu0 0.0
        %4621 = vmatprep.subr.mxu0 0.0
        %4622 = vmatpush1.msra.mxu0 0.0
        %4623 = vmatprep.subr.mxu0 0.0
        %4624 = vmatpush1.msra.mxu0 0.0
        %4625 = vmatprep.subr.mxu0 0.0
        %4626 = vmatpush1.msra.mxu0 0.0
        %4627 = vmatprep.subr.mxu0 0.0
        %4628 = vmatpush1.msra.mxu0 0.0
        %4629 = vmatprep.subr.mxu0 0.0
        %4630 = vmatpush1.msra.mxu0 0.0
        %4631 = vmatprep.subr.mxu0 0.0
        %4632 = vmatpush1.msra.mxu0 0.0
        %4633 = vmatprep.subr.mxu0 0.0
        %4634 = vmatpush1.msra.mxu0 0.0
        %4635 = vmatprep.subr.mxu0 0.0
        %4636 = vmatpush1.msra.mxu0 0.0
        %4637 = vmatprep.mubr.f32.mxu0 0.0
        %4638 = vmatmul.mubr.f32.gmra.mrb[0].mxu0 %v4571
        %v4639 = vpop.f32.mrb[0].mxu0
        %v4640 = vadd.f32 0.0, %v4639
        %v4641 = vpop.f32.mrb[0].mxu0
        %4642 = vdwg.mxu0
        %v4643 = vadd.f32 %v4402, %v4640
        %4644 = vrot.lane.b32.xlu0 %v3792, 104
        %v4645 = vpop.permute.xlu0 %4644
        %4646 = vrot.lane.b32.xlu0 %v3860, 104
        %v4647 = vpop.permute.xlu0 %4646
        %v4648 = vsel %vm1277, %v4645, 0
        %v4650 = vsel %vm1277, %v4647, 0
        %4652 = vmatprep.subr.mxu0 0.0
        %4653 = vmatpush1.xpose.msra.mxu0 %v4650
        %4654 = vmatprep.subr.mxu0 0.0
        %4655 = vmatpush1.xpose.msra.mxu0 0.0
        %4656 = vmatprep.subr.mxu0 0.0
        %4657 = vmatpush1.xpose.msra.mxu0 0.0
        %4658 = vmatprep.subr.mxu0 0.0
        %4659 = vmatpush1.xpose.msra.mxu0 0.0
        %4660 = vmatprep.subr.mxu0 0.0
        %4661 = vmatpush1.xpose.msra.mxu0 0.0
        %4662 = vmatprep.subr.mxu0 0.0
        %4663 = vmatpush1.xpose.msra.mxu0 0.0
        %4664 = vmatprep.subr.mxu0 0.0
        %4665 = vmatpush1.xpose.msra.mxu0 0.0
        %4666 = vmatprep.subr.mxu0 0.0
        %4667 = vmatpush1.xpose.msra.mxu0 0.0
        %4668 = vmatprep.subr.mxu0 0.0
        %4669 = vmatpush1.xpose.msra.mxu0 0.0
        %4670 = vmatprep.subr.mxu0 0.0
        %4671 = vmatpush1.xpose.msra.mxu0 0.0
        %4672 = vmatprep.subr.mxu0 0.0
        %4673 = vmatpush1.xpose.msra.mxu0 0.0
        %4674 = vmatprep.subr.mxu0 0.0
        %4675 = vmatpush1.xpose.msra.mxu0 0.0
        %4676 = vmatprep.subr.mxu0 0.0
        %4677 = vmatpush1.xpose.msra.mxu0 0.0
        %4678 = vmatprep.subr.mxu0 0.0
        %4679 = vmatpush1.xpose.msra.mxu0 0.0
        %4680 = vmatprep.subr.mxu0 0.0
        %4681 = vmatpush1.xpose.msra.mxu0 0.0
        %4682 = vmatprep.subr.mxu0 0.0
        %4683 = vmatpush1.xpose.msra.mxu0 0.0
        %4684 = vmatprep.subr.mxu0 0.0
        %4685 = vmatpush1.xpose.msra.mxu0 0.0
        %4686 = vmatprep.subr.mxu0 0.0
        %4687 = vmatpush1.xpose.msra.mxu0 0.0
        %4688 = vmatprep.subr.mxu0 0.0
        %4689 = vmatpush1.xpose.msra.mxu0 0.0
        %4690 = vmatprep.subr.mxu0 0.0
        %4691 = vmatpush1.xpose.msra.mxu0 0.0
        %4692 = vmatprep.subr.mxu0 0.0
        %4693 = vmatpush1.xpose.msra.mxu0 0.0
        %4694 = vmatprep.subr.mxu0 0.0
        %4695 = vmatpush1.xpose.msra.mxu0 0.0
        %4696 = vmatprep.subr.mxu0 0.0
        %4697 = vmatpush1.xpose.msra.mxu0 0.0
        %4698 = vmatprep.subr.mxu0 0.0
        %4699 = vmatpush1.xpose.msra.mxu0 0.0
        %4700 = vmatprep.subr.mxu0 0.0
        %4701 = vmatpush1.xpose.msra.mxu0 0.0
        %4702 = vmatprep.subr.mxu0 0.0
        %4703 = vmatpush1.xpose.msra.mxu0 0.0
        %4704 = vmatprep.subr.mxu0 0.0
        %4705 = vmatpush1.xpose.msra.mxu0 0.0
        %4706 = vmatprep.subr.mxu0 0.0
        %4707 = vmatpush1.xpose.msra.mxu0 0.0
        %4708 = vmatprep.subr.mxu0 0.0
        %4709 = vmatpush1.xpose.msra.mxu0 0.0
        %4710 = vmatprep.subr.mxu0 0.0
        %4711 = vmatpush1.xpose.msra.mxu0 0.0
        %4712 = vmatprep.subr.mxu0 0.0
        %4713 = vmatpush1.xpose.msra.mxu0 0.0
        %4714 = vmatprep.subr.mxu0 0.0
        %4715 = vmatpush1.xpose.msra.mxu0 0.0
        %4716 = vmatprep.mubr.f32.mxu0 0.0
        %4717 = vmatmul.mubr.f32.gmra.mrb[0].mxu0 %v4648
        %v4718 = vpop.f32.mrb[0].mxu0
        %v4719 = vadd.f32 %v1041, %v4718
        %v4720 = vpop.f32.mrb[0].mxu0
        %4721 = vdwg.mxu0
        %v4722 = vsel %vm1277, %v4719, -inf
        %4723 = vmax.xlane.f32.xlu0 %v4722
        %v4724 = vpop.xlane.xlu0 %4723
        %v4725 = vsub.f32 %v4719, %v4724
        %v4726 = vmul.f32 %v4725, 1.442695
        %v4727 = vpow.pop %v4726
        %v4728 = vsel %vm1277, %v4727, 0.0
        %4729 = vadd.xlane.f32.xlu0 %v4728
        %v4730 = vpop.xlane.xlu0 %4729
        %v4731 = vrcp.pop %v4730
        %v4732 = vmul.f32 %v4727, %v4731
        %4733 = vrot.lane.b32.xlu0 %v3930, 104
        %v4734 = vpop.permute.xlu0 %4733
        %v4737 = vsel %vm1277, %v4732, 0
        %4739 = vmatprep.subr.mxu0 0.0
        %4740 = vmatpush1.msra.mxu0 %v4734
        %4741 = vmatprep.subr.mxu0 0.0
        %4742 = vmatpush1.msra.mxu0 0.0
        %4743 = vmatprep.subr.mxu0 0.0
        %4744 = vmatpush1.msra.mxu0 0.0
        %4745 = vmatprep.subr.mxu0 0.0
        %4746 = vmatpush1.msra.mxu0 0.0
        %4747 = vmatprep.subr.mxu0 0.0
        %4748 = vmatpush1.msra.mxu0 0.0
        %4749 = vmatprep.subr.mxu0 0.0
        %4750 = vmatpush1.msra.mxu0 0.0
        %4751 = vmatprep.subr.mxu0 0.0
        %4752 = vmatpush1.msra.mxu0 0.0
        %4753 = vmatprep.subr.mxu0 0.0
        %4754 = vmatpush1.msra.mxu0 0.0
        %4755 = vmatprep.subr.mxu0 0.0
        %4756 = vmatpush1.msra.mxu0 0.0
        %4757 = vmatprep.subr.mxu0 0.0
        %4758 = vmatpush1.msra.mxu0 0.0
        %4759 = vmatprep.subr.mxu0 0.0
        %4760 = vmatpush1.msra.mxu0 0.0
        %4761 = vmatprep.subr.mxu0 0.0
        %4762 = vmatpush1.msra.mxu0 0.0
        %4763 = vmatprep.subr.mxu0 0.0
        %4764 = vmatpush1.msra.mxu0 0.0
        %4765 = vmatprep.subr.mxu0 0.0
        %4766 = vmatpush1.msra.mxu0 0.0
        %4767 = vmatprep.subr.mxu0 0.0
        %4768 = vmatpush1.msra.mxu0 0.0
        %4769 = vmatprep.subr.mxu0 0.0
        %4770 = vmatpush1.msra.mxu0 0.0
        %4771 = vmatprep.subr.mxu0 0.0
        %4772 = vmatpush1.msra.mxu0 0.0
        %4773 = vmatprep.subr.mxu0 0.0
        %4774 = vmatpush1.msra.mxu0 0.0
        %4775 = vmatprep.subr.mxu0 0.0
        %4776 = vmatpush1.msra.mxu0 0.0
        %4777 = vmatprep.subr.mxu0 0.0
        %4778 = vmatpush1.msra.mxu0 0.0
        %4779 = vmatprep.subr.mxu0 0.0
        %4780 = vmatpush1.msra.mxu0 0.0
        %4781 = vmatprep.subr.mxu0 0.0
        %4782 = vmatpush1.msra.mxu0 0.0
        %4783 = vmatprep.subr.mxu0 0.0
        %4784 = vmatpush1.msra.mxu0 0.0
        %4785 = vmatprep.subr.mxu0 0.0
        %4786 = vmatpush1.msra.mxu0 0.0
        %4787 = vmatprep.subr.mxu0 0.0
        %4788 = vmatpush1.msra.mxu0 0.0
        %4789 = vmatprep.subr.mxu0 0.0
        %4790 = vmatpush1.msra.mxu0 0.0
        %4791 = vmatprep.subr.mxu0 0.0
        %4792 = vmatpush1.msra.mxu0 0.0
        %4793 = vmatprep.subr.mxu0 0.0
        %4794 = vmatpush1.msra.mxu0 0.0
        %4795 = vmatprep.subr.mxu0 0.0
        %4796 = vmatpush1.msra.mxu0 0.0
        %4797 = vmatprep.subr.mxu0 0.0
        %4798 = vmatpush1.msra.mxu0 0.0
        %4799 = vmatprep.subr.mxu0 0.0
        %4800 = vmatpush1.msra.mxu0 0.0
        %4801 = vmatprep.subr.mxu0 0.0
        %4802 = vmatpush1.msra.mxu0 0.0
        %4803 = vmatprep.mubr.f32.mxu0 0.0
        %4804 = vmatmul.mubr.f32.gmra.mrb[0].mxu0 %v4737
        %v4805 = vpop.f32.mrb[0].mxu0
        %v4806 = vadd.f32 0.0, %v4805
        %v4807 = vpop.f32.mrb[0].mxu0
        %4808 = vdwg.mxu0
        %v4810 = vsel %vm1277, %v4806, 0
        %4812 = vmatprep.subr.mxu0 0.0
        %4813 = vmatpush1.msra.mxu0 %v3716
        %4814 = vmatprep.subr.mxu0 0.0
        %4815 = vmatpush1.msra.mxu0 0.0
        %4816 = vmatprep.subr.mxu0 0.0
        %4817 = vmatpush1.msra.mxu0 0.0
        %4818 = vmatprep.subr.mxu0 0.0
        %4819 = vmatpush1.msra.mxu0 0.0
        %4820 = vmatprep.subr.mxu0 0.0
        %4821 = vmatpush1.msra.mxu0 0.0
        %4822 = vmatprep.subr.mxu0 0.0
        %4823 = vmatpush1.msra.mxu0 0.0
        %4824 = vmatprep.subr.mxu0 0.0
        %4825 = vmatpush1.msra.mxu0 0.0
        %4826 = vmatprep.subr.mxu0 0.0
        %4827 = vmatpush1.msra.mxu0 0.0
        %4828 = vmatprep.subr.mxu0 0.0
        %4829 = vmatpush1.msra.mxu0 0.0
        %4830 = vmatprep.subr.mxu0 0.0
        %4831 = vmatpush1.msra.mxu0 0.0
        %4832 = vmatprep.subr.mxu0 0.0
        %4833 = vmatpush1.msra.mxu0 0.0
        %4834 = vmatprep.subr.mxu0 0.0
        %4835 = vmatpush1.msra.mxu0 0.0
        %4836 = vmatprep.subr.mxu0 0.0
        %4837 = vmatpush1.msra.mxu0 0.0
        %4838 = vmatprep.subr.mxu0 0.0
        %4839 = vmatpush1.msra.mxu0 0.0
        %4840 = vmatprep.subr.mxu0 0.0
        %4841 = vmatpush1.msra.mxu0 0.0
        %4842 = vmatprep.subr.mxu0 0.0
        %4843 = vmatpush1.msra.mxu0 0.0
        %4844 = vmatprep.subr.mxu0 0.0
        %4845 = vmatpush1.msra.mxu0 0.0
        %4846 = vmatprep.subr.mxu0 0.0
        %4847 = vmatpush1.msra.mxu0 0.0
        %4848 = vmatprep.subr.mxu0 0.0
        %4849 = vmatpush1.msra.mxu0 0.0
        %4850 = vmatprep.subr.mxu0 0.0
        %4851 = vmatpush1.msra.mxu0 0.0
        %4852 = vmatprep.subr.mxu0 0.0
        %4853 = vmatpush1.msra.mxu0 0.0
        %4854 = vmatprep.subr.mxu0 0.0
        %4855 = vmatpush1.msra.mxu0 0.0
        %4856 = vmatprep.subr.mxu0 0.0
        %4857 = vmatpush1.msra.mxu0 0.0
        %4858 = vmatprep.subr.mxu0 0.0
        %4859 = vmatpush1.msra.mxu0 0.0
        %4860 = vmatprep.subr.mxu0 0.0
        %4861 = vmatpush1.msra.mxu0 0.0
        %4862 = vmatprep.subr.mxu0 0.0
        %4863 = vmatpush1.msra.mxu0 0.0
        %4864 = vmatprep.subr.mxu0 0.0
        %4865 = vmatpush1.msra.mxu0 0.0
        %4866 = vmatprep.subr.mxu0 0.0
        %4867 = vmatpush1.msra.mxu0 0.0
        %4868 = vmatprep.subr.mxu0 0.0
        %4869 = vmatpush1.msra.mxu0 0.0
        %4870 = vmatprep.subr.mxu0 0.0
        %4871 = vmatpush1.msra.mxu0 0.0
        %4872 = vmatprep.subr.mxu0 0.0
        %4873 = vmatpush1.msra.mxu0 0.0
        %4874 = vmatprep.subr.mxu0 0.0
        %4875 = vmatpush1.msra.mxu0 0.0
        %4876 = vmatprep.mubr.f32.mxu0 0.0
        %4877 = vmatmul.mubr.f32.gmra.mrb[0].mxu0 %v4810
        %v4878 = vpop.f32.mrb[0].mxu0
        %v4879 = vadd.f32 0.0, %v4878
        %v4880 = vpop.f32.mrb[0].mxu0
        %4881 = vdwg.mxu0
        %v4882 = vadd.f32 %v4643, %v4879
        %v4884 = vlaneseq
        %v4885 = vshrl.u32 %v4884, 7
        %v4886 = vsub.s32 0, %v4885
        %v4887 = vrot.slane %v3718, %v4886
        %v4889 = vadd.f32 %v4882, %v4887
        %v4890 = vadd.f32 %v4889, %v3696
        %s4891 = scalar_lea.vmem %s9, 1
        %v4892 = vld [vmem:[%s4891] sm:$0x1]
        %s4893 = scalar_lea.vmem %s10, 1
        %v4894 = vld [vmem:[%s4893] sm:$0x1]
        %v4895 = vsel %vm1062, %v4890, 0.0
        %4896 = vadd.xlane.f32.xlu0 %v4895
        %v4897 = vpop.xlane.xlu0 %4896
        %v4898 = vmul.f32 %v4897, %v2241
        %v4899 = vsub.f32 %v4890, %v4898
        %v4900 = vmul.f32 %v4899, %v4899
        %v4901 = vsel %vm1062, %v4900, 0.0
        %4902 = vadd.xlane.f32.xlu0 %v4901
        %v4903 = vpop.xlane.xlu0 %4902
        %v4904 = vmul.f32 %v4903, %v2241
        %v4905 = vadd.f32 %v4904, 1e-05
        %v4906 = vrsqrt.pop %v4905
        %v4907 = vmul.f32 %v4899, %v4906
        %v4909 = vlaneseq
        %v4910 = vshrl.u32 %v4909, 7
        %v4911 = vsub.s32 0, %v4910
        %v4912 = vrot.slane %v4892, %v4911
        %v4914 = vmul.f32 %v4907, %v4912
        %v4916 = vlaneseq
        %v4917 = vshrl.u32 %v4916, 7
        %v4918 = vsub.s32 0, %v4917
        %v4919 = vrot.slane %v4894, %v4918
        %v4921 = vadd.f32 %v4914, %v4919
        %s4922 = scalar_lea.vmem [#allocation10], 32
        %v4923 = vld [vmem:[%s4922] sm:$0xff]
        %v4924 = vld [vmem:[%s4922 + $0x8] sm:$0xff]
        %v4925 = vld [vmem:[%s4922 + $0x10] sm:$0xff]
        %v4926 = vld [vmem:[%s4922 + $0x18] sm:$0xff]
        %s4927 = scalar_lea.vmem [#allocation11], 32
        %v4928 = vld [vmem:[%s4927] sm:$0xff]
        %v4929 = vld [vmem:[%s4927 + $0x8] sm:$0xff]
        %v4930 = vld [vmem:[%s4927 + $0x10] sm:$0xff]
        %v4931 = vld [vmem:[%s4927 + $0x18] sm:$0xff]
        %s4932 = scalar_lea.vmem [#allocation13], 32
        %v4933 = vld [vmem:[%s4932] sm:$0xff]
        %v4934 = vld [vmem:[%s4932 + $0x8] sm:$0xff]
        %v4935 = vld [vmem:[%s4932 + $0x10] sm:$0xff]
        %v4936 = vld [vmem:[%s4932 + $0x18] sm:$0xff]
        %s4937 = scalar_lea.vmem [#allocation14], 32
        %v4938 = vld [vmem:[%s4937] sm:$0xff]
        %v4939 = vld [vmem:[%s4937 + $0x8] sm:$0xff]
        %v4940 = vld [vmem:[%s4937 + $0x10] sm:$0xff]
        %v4941 = vld [vmem:[%s4937 + $0x18] sm:$0xff]
        %s4942 = scalar_lea.vmem %s15, 1
        %v4943 = vld [vmem:[%s4942] sm:$0x1]
        %v4945 = vsel %vm1062, %v4921, 0
        %4947 = vmatprep.subr.mxu0 0.0
        %4948 = vmatpush1.msra.mxu0 %v4923
        %4949 = vmatprep.subr.mxu0 0.0
        %4950 = vmatpush1.msra.mxu0 %v4924
        %4951 = vmatprep.subr.mxu0 0.0
        %4952 = vmatpush1.msra.mxu0 %v4925
        %4953 = vmatprep.subr.mxu0 0.0
        %4954 = vmatpush1.msra.mxu0 %v4926
        %4955 = vmatprep.subr.mxu0 0.0
        %4956 = vmatpush1.msra.mxu0 0.0
        %4957 = vmatprep.subr.mxu0 0.0
        %4958 = vmatpush1.msra.mxu0 0.0
        %4959 = vmatprep.subr.mxu0 0.0
        %4960 = vmatpush1.msra.mxu0 0.0
        %4961 = vmatprep.subr.mxu0 0.0
        %4962 = vmatpush1.msra.mxu0 0.0
        %4963 = vmatprep.subr.mxu0 0.0
        %4964 = vmatpush1.msra.mxu0 0.0
        %4965 = vmatprep.subr.mxu0 0.0
        %4966 = vmatpush1.msra.mxu0 0.0
        %4967 = vmatprep.subr.mxu0 0.0
        %4968 = vmatpush1.msra.mxu0 0.0
        %4969 = vmatprep.subr.mxu0 0.0
        %4970 = vmatpush1.msra.mxu0 0.0
        %4971 = vmatprep.subr.mxu0 0.0
        %4972 = vmatpush1.msra.mxu0 0.0
        %4973 = vmatprep.subr.mxu0 0.0
        %4974 = vmatpush1.msra.mxu0 0.0
        %4975 = vmatprep.subr.mxu0 0.0
        %4976 = vmatpush1.msra.mxu0 0.0
        %4977 = vmatprep.subr.mxu0 0.0
        %4978 = vmatpush1.msra.mxu0 0.0
        %4979 = vmatprep.subr.mxu0 0.0
        %4980 = vmatpush1.msra.mxu0 0.0
        %4981 = vmatprep.subr.mxu0 0.0
        %4982 = vmatpush1.msra.mxu0 0.0
        %4983 = vmatprep.subr.mxu0 0.0
        %4984 = vmatpush1.msra.mxu0 0.0
        %4985 = vmatprep.subr.mxu0 0.0
        %4986 = vmatpush1.msra.mxu0 0.0
        %4987 = vmatprep.subr.mxu0 0.0
        %4988 = vmatpush1.msra.mxu0 0.0
        %4989 = vmatprep.subr.mxu0 0.0
        %4990 = vmatpush1.msra.mxu0 0.0
        %4991 = vmatprep.subr.mxu0 0.0
        %4992 = vmatpush1.msra.mxu0 0.0
        %4993 = vmatprep.subr.mxu0 0.0
        %4994 = vmatpush1.msra.mxu0 0.0
        %4995 = vmatprep.subr.mxu0 0.0
        %4996 = vmatpush1.msra.mxu0 0.0
        %4997 = vmatprep.subr.mxu0 0.0
        %4998 = vmatpush1.msra.mxu0 0.0
        %4999 = vmatprep.subr.mxu0 0.0
        %5000 = vmatpush1.msra.mxu0 0.0
        %5001 = vmatprep.subr.mxu0 0.0
        %5002 = vmatpush1.msra.mxu0 0.0
        %5003 = vmatprep.subr.mxu0 0.0
        %5004 = vmatpush1.msra.mxu0 0.0
        %5005 = vmatprep.subr.mxu0 0.0
        %5006 = vmatpush1.msra.mxu0 0.0
        %5007 = vmatprep.subr.mxu0 0.0
        %5008 = vmatpush1.msra.mxu0 0.0
        %5009 = vmatprep.subr.mxu0 0.0
        %5010 = vmatpush1.msra.mxu0 0.0
        %5011 = vmatprep.mubr.f32.mxu0 0.0
        %5012 = vmatmul.mubr.f32.gmra.mrb[0].mxu0 %v4945
        %v5013 = vpop.f32.mrb[0].mxu0
        %v5014 = vadd.f32 0.0, %v5013
        %v5015 = vpop.f32.mrb[0].mxu0
        %5016 = vdwg.mxu0
        %v5017 = vmul.f32 %v5014, 0.17677669
        %5018 = vmatprep.subr.mxu0 0.0
        %5019 = vmatpush1.msra.mxu0 %v4928
        %5020 = vmatprep.subr.mxu0 0.0
        %5021 = vmatpush1.msra.mxu0 %v4929
        %5022 = vmatprep.subr.mxu0 0.0
        %5023 = vmatpush1.msra.mxu0 %v4930
        %5024 = vmatprep.subr.mxu0 0.0
        %5025 = vmatpush1.msra.mxu0 %v4931
        %5026 = vmatprep.subr.mxu0 0.0
        %5027 = vmatpush1.msra.mxu0 0.0
        %5028 = vmatprep.subr.mxu0 0.0
        %5029 = vmatpush1.msra.mxu0 0.0
        %5030 = vmatprep.subr.mxu0 0.0
        %5031 = vmatpush1.msra.mxu0 0.0
        %5032 = vmatprep.subr.mxu0 0.0
        %5033 = vmatpush1.msra.mxu0 0.0
        %5034 = vmatprep.subr.mxu0 0.0
        %5035 = vmatpush1.msra.mxu0 0.0
        %5036 = vmatprep.subr.mxu0 0.0
        %5037 = vmatpush1.msra.mxu0 0.0
        %5038 = vmatprep.subr.mxu0 0.0
        %5039 = vmatpush1.msra.mxu0 0.0
        %5040 = vmatprep.subr.mxu0 0.0
        %5041 = vmatpush1.msra.mxu0 0.0
        %5042 = vmatprep.subr.mxu0 0.0
        %5043 = vmatpush1.msra.mxu0 0.0
        %5044 = vmatprep.subr.mxu0 0.0
        %5045 = vmatpush1.msra.mxu0 0.0
        %5046 = vmatprep.subr.mxu0 0.0
        %5047 = vmatpush1.msra.mxu0 0.0
        %5048 = vmatprep.subr.mxu0 0.0
        %5049 = vmatpush1.msra.mxu0 0.0
        %5050 = vmatprep.subr.mxu0 0.0
        %5051 = vmatpush1.msra.mxu0 0.0
        %5052 = vmatprep.subr.mxu0 0.0
        %5053 = vmatpush1.msra.mxu0 0.0
        %5054 = vmatprep.subr.mxu0 0.0
        %5055 = vmatpush1.msra.mxu0 0.0
        %5056 = vmatprep.subr.mxu0 0.0
        %5057 = vmatpush1.msra.mxu0 0.0
        %5058 = vmatprep.subr.mxu0 0.0
        %5059 = vmatpush1.msra.mxu0 0.0
        %5060 = vmatprep.subr.mxu0 0.0
        %5061 = vmatpush1.msra.mxu0 0.0
        %5062 = vmatprep.subr.mxu0 0.0
        %5063 = vmatpush1.msra.mxu0 0.0
        %5064 = vmatprep.subr.mxu0 0.0
        %5065 = vmatpush1.msra.mxu0 0.0
        %5066 = vmatprep.subr.mxu0 0.0
        %5067 = vmatpush1.msra.mxu0 0.0
        %5068 = vmatprep.subr.mxu0 0.0
        %5069 = vmatpush1.msra.mxu0 0.0
        %5070 = vmatprep.subr.mxu0 0.0
        %5071 = vmatpush1.msra.mxu0 0.0
        %5072 = vmatprep.subr.mxu0 0.0
        %5073 = vmatpush1.msra.mxu0 0.0
        %5074 = vmatprep.subr.mxu0 0.0
        %5075 = vmatpush1.msra.mxu0 0.0
        %5076 = vmatprep.subr.mxu0 0.0
        %5077 = vmatpush1.msra.mxu0 0.0
        %5078 = vmatprep.subr.mxu0 0.0
        %5079 = vmatpush1.msra.mxu0 0.0
        %5080 = vmatprep.subr.mxu0 0.0
        %5081 = vmatpush1.msra.mxu0 0.0
        %5082 = vmatprep.mubr.f32.mxu0 0.0
        %5083 = vmatmul.mubr.f32.gmra.mrb[0].mxu0 %v2358
        %v5084 = vpop.f32.mrb[0].mxu0
        %v5085 = vadd.f32 0.0, %v5084
        %v5086 = vpop.f32.mrb[0].mxu0
        %5087 = vdwg.mxu0
        %5088 = vmatprep.subr.mxu0 0.0
        %5089 = vmatpush1.msra.mxu0 %v4933
        %5090 = vmatprep.subr.mxu0 0.0
        %5091 = vmatpush1.msra.mxu0 %v4934
        %5092 = vmatprep.subr.mxu0 0.0
        %5093 = vmatpush1.msra.mxu0 %v4935
        %5094 = vmatprep.subr.mxu0 0.0
        %5095 = vmatpush1.msra.mxu0 %v4936
        %5096 = vmatprep.subr.mxu0 0.0
        %5097 = vmatpush1.msra.mxu0 0.0
        %5098 = vmatprep.subr.mxu0 0.0
        %5099 = vmatpush1.msra.mxu0 0.0
        %5100 = vmatprep.subr.mxu0 0.0
        %5101 = vmatpush1.msra.mxu0 0.0
        %5102 = vmatprep.subr.mxu0 0.0
        %5103 = vmatpush1.msra.mxu0 0.0
        %5104 = vmatprep.subr.mxu0 0.0
        %5105 = vmatpush1.msra.mxu0 0.0
        %5106 = vmatprep.subr.mxu0 0.0
        %5107 = vmatpush1.msra.mxu0 0.0
        %5108 = vmatprep.subr.mxu0 0.0
        %5109 = vmatpush1.msra.mxu0 0.0
        %5110 = vmatprep.subr.mxu0 0.0
        %5111 = vmatpush1.msra.mxu0 0.0
        %5112 = vmatprep.subr.mxu0 0.0
        %5113 = vmatpush1.msra.mxu0 0.0
        %5114 = vmatprep.subr.mxu0 0.0
        %5115 = vmatpush1.msra.mxu0 0.0
        %5116 = vmatprep.subr.mxu0 0.0
        %5117 = vmatpush1.msra.mxu0 0.0
        %5118 = vmatprep.subr.mxu0 0.0
        %5119 = vmatpush1.msra.mxu0 0.0
        %5120 = vmatprep.subr.mxu0 0.0
        %5121 = vmatpush1.msra.mxu0 0.0
        %5122 = vmatprep.subr.mxu0 0.0
        %5123 = vmatpush1.msra.mxu0 0.0
        %5124 = vmatprep.subr.mxu0 0.0
        %5125 = vmatpush1.msra.mxu0 0.0
        %5126 = vmatprep.subr.mxu0 0.0
        %5127 = vmatpush1.msra.mxu0 0.0
        %5128 = vmatprep.subr.mxu0 0.0
        %5129 = vmatpush1.msra.mxu0 0.0
        %5130 = vmatprep.subr.mxu0 0.0
        %5131 = vmatpush1.msra.mxu0 0.0
        %5132 = vmatprep.subr.mxu0 0.0
        %5133 = vmatpush1.msra.mxu0 0.0
        %5134 = vmatprep.subr.mxu0 0.0
        %5135 = vmatpush1.msra.mxu0 0.0
        %5136 = vmatprep.subr.mxu0 0.0
        %5137 = vmatpush1.msra.mxu0 0.0
        %5138 = vmatprep.subr.mxu0 0.0
        %5139 = vmatpush1.msra.mxu0 0.0
        %5140 = vmatprep.subr.mxu0 0.0
        %5141 = vmatpush1.msra.mxu0 0.0
        %5142 = vmatprep.subr.mxu0 0.0
        %5143 = vmatpush1.msra.mxu0 0.0
        %5144 = vmatprep.subr.mxu0 0.0
        %5145 = vmatpush1.msra.mxu0 0.0
        %5146 = vmatprep.subr.mxu0 0.0
        %5147 = vmatpush1.msra.mxu0 0.0
        %5148 = vmatprep.subr.mxu0 0.0
        %5149 = vmatpush1.msra.mxu0 0.0
        %5150 = vmatprep.subr.mxu0 0.0
        %5151 = vmatpush1.msra.mxu0 0.0
        %5152 = vmatprep.mubr.f32.mxu0 0.0
        %5153 = vmatmul.mubr.f32.gmra.mrb[0].mxu0 %v2358
        %v5154 = vpop.f32.mrb[0].mxu0
        %v5155 = vadd.f32 0.0, %v5154
        %v5156 = vpop.f32.mrb[0].mxu0
        %5157 = vdwg.mxu0
        %v5159 = vsel %vm1277, %v5017, 0
        %v5162 = vsel %vm1277, %v5085, 0
        %5164 = vmatprep.subr.mxu0 0.0
        %5165 = vmatpush1.xpose.msra.mxu0 %v5162
        %5166 = vmatprep.subr.mxu0 0.0
        %5167 = vmatpush1.xpose.msra.mxu0 0.0
        %5168 = vmatprep.subr.mxu0 0.0
        %5169 = vmatpush1.xpose.msra.mxu0 0.0
        %5170 = vmatprep.subr.mxu0 0.0
        %5171 = vmatpush1.xpose.msra.mxu0 0.0
        %5172 = vmatprep.subr.mxu0 0.0
        %5173 = vmatpush1.xpose.msra.mxu0 0.0
        %5174 = vmatprep.subr.mxu0 0.0
        %5175 = vmatpush1.xpose.msra.mxu0 0.0
        %5176 = vmatprep.subr.mxu0 0.0
        %5177 = vmatpush1.xpose.msra.mxu0 0.0
        %5178 = vmatprep.subr.mxu0 0.0
        %5179 = vmatpush1.xpose.msra.mxu0 0.0
        %5180 = vmatprep.subr.mxu0 0.0
        %5181 = vmatpush1.xpose.msra.mxu0 0.0
        %5182 = vmatprep.subr.mxu0 0.0
        %5183 = vmatpush1.xpose.msra.mxu0 0.0
        %5184 = vmatprep.subr.mxu0 0.0
        %5185 = vmatpush1.xpose.msra.mxu0 0.0
        %5186 = vmatprep.subr.mxu0 0.0
        %5187 = vmatpush1.xpose.msra.mxu0 0.0
        %5188 = vmatprep.subr.mxu0 0.0
        %5189 = vmatpush1.xpose.msra.mxu0 0.0
        %5190 = vmatprep.subr.mxu0 0.0
        %5191 = vmatpush1.xpose.msra.mxu0 0.0
        %5192 = vmatprep.subr.mxu0 0.0
        %5193 = vmatpush1.xpose.msra.mxu0 0.0
        %5194 = vmatprep.subr.mxu0 0.0
        %5195 = vmatpush1.xpose.msra.mxu0 0.0
        %5196 = vmatprep.subr.mxu0 0.0
        %5197 = vmatpush1.xpose.msra.mxu0 0.0
        %5198 = vmatprep.subr.mxu0 0.0
        %5199 = vmatpush1.xpose.msra.mxu0 0.0
        %5200 = vmatprep.subr.mxu0 0.0
        %5201 = vmatpush1.xpose.msra.mxu0 0.0
        %5202 = vmatprep.subr.mxu0 0.0
        %5203 = vmatpush1.xpose.msra.mxu0 0.0
        %5204 = vmatprep.subr.mxu0 0.0
        %5205 = vmatpush1.xpose.msra.mxu0 0.0
        %5206 = vmatprep.subr.mxu0 0.0
        %5207 = vmatpush1.xpose.msra.mxu0 0.0
        %5208 = vmatprep.subr.mxu0 0.0
        %5209 = vmatpush1.xpose.msra.mxu0 0.0
        %5210 = vmatprep.subr.mxu0 0.0
        %5211 = vmatpush1.xpose.msra.mxu0 0.0
        %5212 = vmatprep.subr.mxu0 0.0
        %5213 = vmatpush1.xpose.msra.mxu0 0.0
        %5214 = vmatprep.subr.mxu0 0.0
        %5215 = vmatpush1.xpose.msra.mxu0 0.0
        %5216 = vmatprep.subr.mxu0 0.0
        %5217 = vmatpush1.xpose.msra.mxu0 0.0
        %5218 = vmatprep.subr.mxu0 0.0
        %5219 = vmatpush1.xpose.msra.mxu0 0.0
        %5220 = vmatprep.subr.mxu0 0.0
        %5221 = vmatpush1.xpose.msra.mxu0 0.0
        %5222 = vmatprep.subr.mxu0 0.0
        %5223 = vmatpush1.xpose.msra.mxu0 0.0
        %5224 = vmatprep.subr.mxu0 0.0
        %5225 = vmatpush1.xpose.msra.mxu0 0.0
        %5226 = vmatprep.subr.mxu0 0.0
        %5227 = vmatpush1.xpose.msra.mxu0 0.0
        %5228 = vmatprep.mubr.f32.mxu0 0.0
        %5229 = vmatmul.mubr.f32.gmra.mrb[0].mxu0 %v5159
        %v5230 = vpop.f32.mrb[0].mxu0
        %v5231 = vadd.f32 %v2504, %v5230
        %v5232 = vpop.f32.mrb[0].mxu0
        %5233 = vdwg.mxu0
        %v5234 = vsel %vm1277, %v5231, -inf
        %5235 = vmax.xlane.f32.xlu0 %v5234
        %v5236 = vpop.xlane.xlu0 %5235
        %v5237 = vsub.f32 %v5231, %v5236
        %v5238 = vmul.f32 %v5237, 1.442695
        %v5239 = vpow.pop %v5238
        %v5240 = vsel %vm1277, %v5239, 0.0
        %5241 = vadd.xlane.f32.xlu0 %v5240
        %v5242 = vpop.xlane.xlu0 %5241
        %v5243 = vrcp.pop %v5242
        %v5244 = vmul.f32 %v5239, %v5243
        %v5246 = vsel %vm1277, %v5244, 0
        %5248 = vmatprep.subr.mxu0 0.0
        %5249 = vmatpush1.msra.mxu0 %v5155
        %5250 = vmatprep.subr.mxu0 0.0
        %5251 = vmatpush1.msra.mxu0 0.0
        %5252 = vmatprep.subr.mxu0 0.0
        %5253 = vmatpush1.msra.mxu0 0.0
        %5254 = vmatprep.subr.mxu0 0.0
        %5255 = vmatpush1.msra.mxu0 0.0
        %5256 = vmatprep.subr.mxu0 0.0
        %5257 = vmatpush1.msra.mxu0 0.0
        %5258 = vmatprep.subr.mxu0 0.0
        %5259 = vmatpush1.msra.mxu0 0.0
        %5260 = vmatprep.subr.mxu0 0.0
        %5261 = vmatpush1.msra.mxu0 0.0
        %5262 = vmatprep.subr.mxu0 0.0
        %5263 = vmatpush1.msra.mxu0 0.0
        %5264 = vmatprep.subr.mxu0 0.0
        %5265 = vmatpush1.msra.mxu0 0.0
        %5266 = vmatprep.subr.mxu0 0.0
        %5267 = vmatpush1.msra.mxu0 0.0
        %5268 = vmatprep.subr.mxu0 0.0
        %5269 = vmatpush1.msra.mxu0 0.0
        %5270 = vmatprep.subr.mxu0 0.0
        %5271 = vmatpush1.msra.mxu0 0.0
        %5272 = vmatprep.subr.mxu0 0.0
        %5273 = vmatpush1.msra.mxu0 0.0
        %5274 = vmatprep.subr.mxu0 0.0
        %5275 = vmatpush1.msra.mxu0 0.0
        %5276 = vmatprep.subr.mxu0 0.0
        %5277 = vmatpush1.msra.mxu0 0.0
        %5278 = vmatprep.subr.mxu0 0.0
        %5279 = vmatpush1.msra.mxu0 0.0
        %5280 = vmatprep.subr.mxu0 0.0
        %5281 = vmatpush1.msra.mxu0 0.0
        %5282 = vmatprep.subr.mxu0 0.0
        %5283 = vmatpush1.msra.mxu0 0.0
        %5284 = vmatprep.subr.mxu0 0.0
        %5285 = vmatpush1.msra.mxu0 0.0
        %5286 = vmatprep.subr.mxu0 0.0
        %5287 = vmatpush1.msra.mxu0 0.0
        %5288 = vmatprep.subr.mxu0 0.0
        %5289 = vmatpush1.msra.mxu0 0.0
        %5290 = vmatprep.subr.mxu0 0.0
        %5291 = vmatpush1.msra.mxu0 0.0
        %5292 = vmatprep.subr.mxu0 0.0
        %5293 = vmatpush1.msra.mxu0 0.0
        %5294 = vmatprep.subr.mxu0 0.0
        %5295 = vmatpush1.msra.mxu0 0.0
        %5296 = vmatprep.subr.mxu0 0.0
        %5297 = vmatpush1.msra.mxu0 0.0
        %5298 = vmatprep.subr.mxu0 0.0
        %5299 = vmatpush1.msra.mxu0 0.0
        %5300 = vmatprep.subr.mxu0 0.0
        %5301 = vmatpush1.msra.mxu0 0.0
        %5302 = vmatprep.subr.mxu0 0.0
        %5303 = vmatpush1.msra.mxu0 0.0
        %5304 = vmatprep.subr.mxu0 0.0
        %5305 = vmatpush1.msra.mxu0 0.0
        %5306 = vmatprep.subr.mxu0 0.0
        %5307 = vmatpush1.msra.mxu0 0.0
        %5308 = vmatprep.subr.mxu0 0.0
        %5309 = vmatpush1.msra.mxu0 0.0
        %5310 = vmatprep.subr.mxu0 0.0
        %5311 = vmatpush1.msra.mxu0 0.0
        %5312 = vmatprep.mubr.f32.mxu0 0.0
        %5313 = vmatmul.mubr.f32.gmra.mrb[0].mxu0 %v5246
        %v5314 = vpop.f32.mrb[0].mxu0
        %v5315 = vadd.f32 0.0, %v5314
        %v5316 = vpop.f32.mrb[0].mxu0
        %5317 = vdwg.mxu0
        %5318 = vrot.lane.b32.xlu0 %v5017, 120
        %v5319 = vpop.permute.xlu0 %5318
        %5320 = vrot.lane.b32.xlu0 %v5085, 120
        %v5321 = vpop.permute.xlu0 %5320
        %v5322 = vsel %vm1277, %v5319, 0
        %v5324 = vsel %vm1277, %v5321, 0
        %5326 = vmatprep.subr.mxu0 0.0
        %5327 = vmatpush1.xpose.msra.mxu0 %v5324
        %5328 = vmatprep.subr.mxu0 0.0
        %5329 = vmatpush1.xpose.msra.mxu0 0.0
        %5330 = vmatprep.subr.mxu0 0.0
        %5331 = vmatpush1.xpose.msra.mxu0 0.0
        %5332 = vmatprep.subr.mxu0 0.0
        %5333 = vmatpush1.xpose.msra.mxu0 0.0
        %5334 = vmatprep.subr.mxu0 0.0
        %5335 = vmatpush1.xpose.msra.mxu0 0.0
        %5336 = vmatprep.subr.mxu0 0.0
        %5337 = vmatpush1.xpose.msra.mxu0 0.0
        %5338 = vmatprep.subr.mxu0 0.0
        %5339 = vmatpush1.xpose.msra.mxu0 0.0
        %5340 = vmatprep.subr.mxu0 0.0
        %5341 = vmatpush1.xpose.msra.mxu0 0.0
        %5342 = vmatprep.subr.mxu0 0.0
        %5343 = vmatpush1.xpose.msra.mxu0 0.0
        %5344 = vmatprep.subr.mxu0 0.0
        %5345 = vmatpush1.xpose.msra.mxu0 0.0
        %5346 = vmatprep.subr.mxu0 0.0
        %5347 = vmatpush1.xpose.msra.mxu0 0.0
        %5348 = vmatprep.subr.mxu0 0.0
        %5349 = vmatpush1.xpose.msra.mxu0 0.0
        %5350 = vmatprep.subr.mxu0 0.0
        %5351 = vmatpush1.xpose.msra.mxu0 0.0
        %5352 = vmatprep.subr.mxu0 0.0
        %5353 = vmatpush1.xpose.msra.mxu0 0.0
        %5354 = vmatprep.subr.mxu0 0.0
        %5355 = vmatpush1.xpose.msra.mxu0 0.0
        %5356 = vmatprep.subr.mxu0 0.0
        %5357 = vmatpush1.xpose.msra.mxu0 0.0
        %5358 = vmatprep.subr.mxu0 0.0
        %5359 = vmatpush1.xpose.msra.mxu0 0.0
        %5360 = vmatprep.subr.mxu0 0.0
        %5361 = vmatpush1.xpose.msra.mxu0 0.0
        %5362 = vmatprep.subr.mxu0 0.0
        %5363 = vmatpush1.xpose.msra.mxu0 0.0
        %5364 = vmatprep.subr.mxu0 0.0
        %5365 = vmatpush1.xpose.msra.mxu0 0.0
        %5366 = vmatprep.subr.mxu0 0.0
        %5367 = vmatpush1.xpose.msra.mxu0 0.0
        %5368 = vmatprep.subr.mxu0 0.0
        %5369 = vmatpush1.xpose.msra.mxu0 0.0
        %5370 = vmatprep.subr.mxu0 0.0
        %5371 = vmatpush1.xpose.msra.mxu0 0.0
        %5372 = vmatprep.subr.mxu0 0.0
        %5373 = vmatpush1.xpose.msra.mxu0 0.0
        %5374 = vmatprep.subr.mxu0 0.0
        %5375 = vmatpush1.xpose.msra.mxu0 0.0
        %5376 = vmatprep.subr.mxu0 0.0
        %5377 = vmatpush1.xpose.msra.mxu0 0.0
        %5378 = vmatprep.subr.mxu0 0.0
        %5379 = vmatpush1.xpose.msra.mxu0 0.0
        %5380 = vmatprep.subr.mxu0 0.0
        %5381 = vmatpush1.xpose.msra.mxu0 0.0
        %5382 = vmatprep.subr.mxu0 0.0
        %5383 = vmatpush1.xpose.msra.mxu0 0.0
        %5384 = vmatprep.subr.mxu0 0.0
        %5385 = vmatpush1.xpose.msra.mxu0 0.0
        %5386 = vmatprep.subr.mxu0 0.0
        %5387 = vmatpush1.xpose.msra.mxu0 0.0
        %5388 = vmatprep.subr.mxu0 0.0
        %5389 = vmatpush1.xpose.msra.mxu0 0.0
        %5390 = vmatprep.mubr.f32.mxu0 0.0
        %5391 = vmatmul.mubr.f32.gmra.mrb[0].mxu0 %v5322
        %v5392 = vpop.f32.mrb[0].mxu0
        %v5393 = vadd.f32 %v2504, %v5392
        %v5394 = vpop.f32.mrb[0].mxu0
        %5395 = vdwg.mxu0
        %v5396 = vsel %vm1277, %v5393, -inf
        %5397 = vmax.xlane.f32.xlu0 %v5396
        %v5398 = vpop.xlane.xlu0 %5397
        %v5399 = vsub.f32 %v5393, %v5398
        %v5400 = vmul.f32 %v5399, 1.442695
        %v5401 = vpow.pop %v5400
        %v5402 = vsel %vm1277, %v5401, 0.0
        %5403 = vadd.xlane.f32.xlu0 %v5402
        %v5404 = vpop.xlane.xlu0 %5403
        %v5405 = vrcp.pop %v5404
        %v5406 = vmul.f32 %v5401, %v5405
        %5408 = vrot.lane.b32.xlu0 %v5155, 120
        %v5409 = vpop.permute.xlu0 %5408
        %v5412 = vsel %vm1277, %v5406, 0
        %5414 = vmatprep.subr.mxu0 0.0
        %5415 = vmatpush1.msra.mxu0 %v5409
        %5416 = vmatprep.subr.mxu0 0.0
        %5417 = vmatpush1.msra.mxu0 0.0
        %5418 = vmatprep.subr.mxu0 0.0
        %5419 = vmatpush1.msra.mxu0 0.0
        %5420 = vmatprep.subr.mxu0 0.0
        %5421 = vmatpush1.msra.mxu0 0.0
        %5422 = vmatprep.subr.mxu0 0.0
        %5423 = vmatpush1.msra.mxu0 0.0
        %5424 = vmatprep.subr.mxu0 0.0
        %5425 = vmatpush1.msra.mxu0 0.0
        %5426 = vmatprep.subr.mxu0 0.0
        %5427 = vmatpush1.msra.mxu0 0.0
        %5428 = vmatprep.subr.mxu0 0.0
        %5429 = vmatpush1.msra.mxu0 0.0
        %5430 = vmatprep.subr.mxu0 0.0
        %5431 = vmatpush1.msra.mxu0 0.0
        %5432 = vmatprep.subr.mxu0 0.0
        %5433 = vmatpush1.msra.mxu0 0.0
        %5434 = vmatprep.subr.mxu0 0.0
        %5435 = vmatpush1.msra.mxu0 0.0
        %5436 = vmatprep.subr.mxu0 0.0
        %5437 = vmatpush1.msra.mxu0 0.0
        %5438 = vmatprep.subr.mxu0 0.0
        %5439 = vmatpush1.msra.mxu0 0.0
        %5440 = vmatprep.subr.mxu0 0.0
        %5441 = vmatpush1.msra.mxu0 0.0
        %5442 = vmatprep.subr.mxu0 0.0
        %5443 = vmatpush1.msra.mxu0 0.0
        %5444 = vmatprep.subr.mxu0 0.0
        %5445 = vmatpush1.msra.mxu0 0.0
        %5446 = vmatprep.subr.mxu0 0.0
        %5447 = vmatpush1.msra.mxu0 0.0
        %5448 = vmatprep.subr.mxu0 0.0
        %5449 = vmatpush1.msra.mxu0 0.0
        %5450 = vmatprep.subr.mxu0 0.0
        %5451 = vmatpush1.msra.mxu0 0.0
        %5452 = vmatprep.subr.mxu0 0.0
        %5453 = vmatpush1.msra.mxu0 0.0
        %5454 = vmatprep.subr.mxu0 0.0
        %5455 = vmatpush1.msra.mxu0 0.0
        %5456 = vmatprep.subr.mxu0 0.0
        %5457 = vmatpush1.msra.mxu0 0.0
        %5458 = vmatprep.subr.mxu0 0.0
        %5459 = vmatpush1.msra.mxu0 0.0
        %5460 = vmatprep.subr.mxu0 0.0
        %5461 = vmatpush1.msra.mxu0 0.0
        %5462 = vmatprep.subr.mxu0 0.0
        %5463 = vmatpush1.msra.mxu0 0.0
        %5464 = vmatprep.subr.mxu0 0.0
        %5465 = vmatpush1.msra.mxu0 0.0
        %5466 = vmatprep.subr.mxu0 0.0
        %5467 = vmatpush1.msra.mxu0 0.0
        %5468 = vmatprep.subr.mxu0 0.0
        %5469 = vmatpush1.msra.mxu0 0.0
        %5470 = vmatprep.subr.mxu0 0.0
        %5471 = vmatpush1.msra.mxu0 0.0
        %5472 = vmatprep.subr.mxu0 0.0
        %5473 = vmatpush1.msra.mxu0 0.0
        %5474 = vmatprep.subr.mxu0 0.0
        %5475 = vmatpush1.msra.mxu0 0.0
        %5476 = vmatprep.subr.mxu0 0.0
        %5477 = vmatpush1.msra.mxu0 0.0
        %5478 = vmatprep.mubr.f32.mxu0 0.0
        %5479 = vmatmul.mubr.f32.gmra.mrb[0].mxu0 %v5412
        %v5480 = vpop.f32.mrb[0].mxu0
        %v5481 = vadd.f32 0.0, %v5480
        %v5482 = vpop.f32.mrb[0].mxu0
        %5483 = vdwg.mxu0
        %v5485 = vsel %vm1277, %v5481, 0
        %5487 = vmatprep.subr.mxu0 0.0
        %5488 = vmatpush1.msra.mxu0 %v4939
        %5489 = vmatprep.subr.mxu0 0.0
        %5490 = vmatpush1.msra.mxu0 0.0
        %5491 = vmatprep.subr.mxu0 0.0
        %5492 = vmatpush1.msra.mxu0 0.0
        %5493 = vmatprep.subr.mxu0 0.0
        %5494 = vmatpush1.msra.mxu0 0.0
        %5495 = vmatprep.subr.mxu0 0.0
        %5496 = vmatpush1.msra.mxu0 0.0
        %5497 = vmatprep.subr.mxu0 0.0
        %5498 = vmatpush1.msra.mxu0 0.0
        %5499 = vmatprep.subr.mxu0 0.0
        %5500 = vmatpush1.msra.mxu0 0.0
        %5501 = vmatprep.subr.mxu0 0.0
        %5502 = vmatpush1.msra.mxu0 0.0
        %5503 = vmatprep.subr.mxu0 0.0
        %5504 = vmatpush1.msra.mxu0 0.0
        %5505 = vmatprep.subr.mxu0 0.0
        %5506 = vmatpush1.msra.mxu0 0.0
        %5507 = vmatprep.subr.mxu0 0.0
        %5508 = vmatpush1.msra.mxu0 0.0
        %5509 = vmatprep.subr.mxu0 0.0
        %5510 = vmatpush1.msra.mxu0 0.0
        %5511 = vmatprep.subr.mxu0 0.0
        %5512 = vmatpush1.msra.mxu0 0.0
        %5513 = vmatprep.subr.mxu0 0.0
        %5514 = vmatpush1.msra.mxu0 0.0
        %5515 = vmatprep.subr.mxu0 0.0
        %5516 = vmatpush1.msra.mxu0 0.0
        %5517 = vmatprep.subr.mxu0 0.0
        %5518 = vmatpush1.msra.mxu0 0.0
        %5519 = vmatprep.subr.mxu0 0.0
        %5520 = vmatpush1.msra.mxu0 0.0
        %5521 = vmatprep.subr.mxu0 0.0
        %5522 = vmatpush1.msra.mxu0 0.0
        %5523 = vmatprep.subr.mxu0 0.0
        %5524 = vmatpush1.msra.mxu0 0.0
        %5525 = vmatprep.subr.mxu0 0.0
        %5526 = vmatpush1.msra.mxu0 0.0
        %5527 = vmatprep.subr.mxu0 0.0
        %5528 = vmatpush1.msra.mxu0 0.0
        %5529 = vmatprep.subr.mxu0 0.0
        %5530 = vmatpush1.msra.mxu0 0.0
        %5531 = vmatprep.subr.mxu0 0.0
        %5532 = vmatpush1.msra.mxu0 0.0
        %5533 = vmatprep.subr.mxu0 0.0
        %5534 = vmatpush1.msra.mxu0 0.0
        %5535 = vmatprep.subr.mxu0 0.0
        %5536 = vmatpush1.msra.mxu0 0.0
        %5537 = vmatprep.subr.mxu0 0.0
        %5538 = vmatpush1.msra.mxu0 0.0
        %5539 = vmatprep.subr.mxu0 0.0
        %5540 = vmatpush1.msra.mxu0 0.0
        %5541 = vmatprep.subr.mxu0 0.0
        %5542 = vmatpush1.msra.mxu0 0.0
        %5543 = vmatprep.subr.mxu0 0.0
        %5544 = vmatpush1.msra.mxu0 0.0
        %5545 = vmatprep.subr.mxu0 0.0
        %5546 = vmatpush1.msra.mxu0 0.0
        %5547 = vmatprep.subr.mxu0 0.0
        %5548 = vmatpush1.msra.mxu0 0.0
        %5549 = vmatprep.subr.mxu0 0.0
        %5550 = vmatpush1.msra.mxu0 0.0
        %5551 = vmatprep.mubr.f32.mxu0 0.0
        %5552 = vmatmul.mubr.f32.gmra.mrb[0].mxu0 %v5485
        %v5553 = vpop.f32.mrb[0].mxu0
        %v5554 = vadd.f32 0.0, %v5553
        %v5555 = vpop.f32.mrb[0].mxu0
        %5556 = vdwg.mxu0
        %v5558 = vsel %vm1277, %v5315, 0
        %5560 = vmatprep.subr.mxu0 0.0
        %5561 = vmatpush1.msra.mxu0 %v4938
        %5562 = vmatprep.subr.mxu0 0.0
        %5563 = vmatpush1.msra.mxu0 0.0
        %5564 = vmatprep.subr.mxu0 0.0
        %5565 = vmatpush1.msra.mxu0 0.0
        %5566 = vmatprep.subr.mxu0 0.0
        %5567 = vmatpush1.msra.mxu0 0.0
        %5568 = vmatprep.subr.mxu0 0.0
        %5569 = vmatpush1.msra.mxu0 0.0
        %5570 = vmatprep.subr.mxu0 0.0
        %5571 = vmatpush1.msra.mxu0 0.0
        %5572 = vmatprep.subr.mxu0 0.0
        %5573 = vmatpush1.msra.mxu0 0.0
        %5574 = vmatprep.subr.mxu0 0.0
        %5575 = vmatpush1.msra.mxu0 0.0
        %5576 = vmatprep.subr.mxu0 0.0
        %5577 = vmatpush1.msra.mxu0 0.0
        %5578 = vmatprep.subr.mxu0 0.0
        %5579 = vmatpush1.msra.mxu0 0.0
        %5580 = vmatprep.subr.mxu0 0.0
        %5581 = vmatpush1.msra.mxu0 0.0
        %5582 = vmatprep.subr.mxu0 0.0
        %5583 = vmatpush1.msra.mxu0 0.0
        %5584 = vmatprep.subr.mxu0 0.0
        %5585 = vmatpush1.msra.mxu0 0.0
        %5586 = vmatprep.subr.mxu0 0.0
        %5587 = vmatpush1.msra.mxu0 0.0
        %5588 = vmatprep.subr.mxu0 0.0
        %5589 = vmatpush1.msra.mxu0 0.0
        %5590 = vmatprep.subr.mxu0 0.0
        %5591 = vmatpush1.msra.mxu0 0.0
        %5592 = vmatprep.subr.mxu0 0.0
        %5593 = vmatpush1.msra.mxu0 0.0
        %5594 = vmatprep.subr.mxu0 0.0
        %5595 = vmatpush1.msra.mxu0 0.0
        %5596 = vmatprep.subr.mxu0 0.0
        %5597 = vmatpush1.msra.mxu0 0.0
        %5598 = vmatprep.subr.mxu0 0.0
        %5599 = vmatpush1.msra.mxu0 0.0
        %5600 = vmatprep.subr.mxu0 0.0
        %5601 = vmatpush1.msra.mxu0 0.0
        %5602 = vmatprep.subr.mxu0 0.0
        %5603 = vmatpush1.msra.mxu0 0.0
        %5604 = vmatprep.subr.mxu0 0.0
        %5605 = vmatpush1.msra.mxu0 0.0
        %5606 = vmatprep.subr.mxu0 0.0
        %5607 = vmatpush1.msra.mxu0 0.0
        %5608 = vmatprep.subr.mxu0 0.0
        %5609 = vmatpush1.msra.mxu0 0.0
        %5610 = vmatprep.subr.mxu0 0.0
        %5611 = vmatpush1.msra.mxu0 0.0
        %5612 = vmatprep.subr.mxu0 0.0
        %5613 = vmatpush1.msra.mxu0 0.0
        %5614 = vmatprep.subr.mxu0 0.0
        %5615 = vmatpush1.msra.mxu0 0.0
        %5616 = vmatprep.subr.mxu0 0.0
        %5617 = vmatpush1.msra.mxu0 0.0
        %5618 = vmatprep.subr.mxu0 0.0
        %5619 = vmatpush1.msra.mxu0 0.0
        %5620 = vmatprep.subr.mxu0 0.0
        %5621 = vmatpush1.msra.mxu0 0.0
        %5622 = vmatprep.subr.mxu0 0.0
        %5623 = vmatpush1.msra.mxu0 0.0
        %5624 = vmatprep.mubr.f32.mxu0 0.0
        %5625 = vmatmul.mubr.f32.gmra.mrb[0].mxu0 %v5558
        %v5626 = vpop.f32.mrb[0].mxu0
        %v5627 = vadd.f32 %v5554, %v5626
        %v5628 = vpop.f32.mrb[0].mxu0
        %5629 = vdwg.mxu0
        %5630 = vrot.lane.b32.xlu0 %v5017, 112
        %v5631 = vpop.permute.xlu0 %5630
        %5632 = vrot.lane.b32.xlu0 %v5085, 112
        %v5633 = vpop.permute.xlu0 %5632
        %v5634 = vsel %vm1277, %v5631, 0
        %v5636 = vsel %vm1277, %v5633, 0
        %5638 = vmatprep.subr.mxu0 0.0
        %5639 = vmatpush1.xpose.msra.mxu0 %v5636
        %5640 = vmatprep.subr.mxu0 0.0
        %5641 = vmatpush1.xpose.msra.mxu0 0.0
        %5642 = vmatprep.subr.mxu0 0.0
        %5643 = vmatpush1.xpose.msra.mxu0 0.0
        %5644 = vmatprep.subr.mxu0 0.0
        %5645 = vmatpush1.xpose.msra.mxu0 0.0
        %5646 = vmatprep.subr.mxu0 0.0
        %5647 = vmatpush1.xpose.msra.mxu0 0.0
        %5648 = vmatprep.subr.mxu0 0.0
        %5649 = vmatpush1.xpose.msra.mxu0 0.0
        %5650 = vmatprep.subr.mxu0 0.0
        %5651 = vmatpush1.xpose.msra.mxu0 0.0
        %5652 = vmatprep.subr.mxu0 0.0
        %5653 = vmatpush1.xpose.msra.mxu0 0.0
        %5654 = vmatprep.subr.mxu0 0.0
        %5655 = vmatpush1.xpose.msra.mxu0 0.0
        %5656 = vmatprep.subr.mxu0 0.0
        %5657 = vmatpush1.xpose.msra.mxu0 0.0
        %5658 = vmatprep.subr.mxu0 0.0
        %5659 = vmatpush1.xpose.msra.mxu0 0.0
        %5660 = vmatprep.subr.mxu0 0.0
        %5661 = vmatpush1.xpose.msra.mxu0 0.0
        %5662 = vmatprep.subr.mxu0 0.0
        %5663 = vmatpush1.xpose.msra.mxu0 0.0
        %5664 = vmatprep.subr.mxu0 0.0
        %5665 = vmatpush1.xpose.msra.mxu0 0.0
        %5666 = vmatprep.subr.mxu0 0.0
        %5667 = vmatpush1.xpose.msra.mxu0 0.0
        %5668 = vmatprep.subr.mxu0 0.0
        %5669 = vmatpush1.xpose.msra.mxu0 0.0
        %5670 = vmatprep.subr.mxu0 0.0
        %5671 = vmatpush1.xpose.msra.mxu0 0.0
        %5672 = vmatprep.subr.mxu0 0.0
        %5673 = vmatpush1.xpose.msra.mxu0 0.0
        %5674 = vmatprep.subr.mxu0 0.0
        %5675 = vmatpush1.xpose.msra.mxu0 0.0
        %5676 = vmatprep.subr.mxu0 0.0
        %5677 = vmatpush1.xpose.msra.mxu0 0.0
        %5678 = vmatprep.subr.mxu0 0.0
        %5679 = vmatpush1.xpose.msra.mxu0 0.0
        %5680 = vmatprep.subr.mxu0 0.0
        %5681 = vmatpush1.xpose.msra.mxu0 0.0
        %5682 = vmatprep.subr.mxu0 0.0
        %5683 = vmatpush1.xpose.msra.mxu0 0.0
        %5684 = vmatprep.subr.mxu0 0.0
        %5685 = vmatpush1.xpose.msra.mxu0 0.0
        %5686 = vmatprep.subr.mxu0 0.0
        %5687 = vmatpush1.xpose.msra.mxu0 0.0
        %5688 = vmatprep.subr.mxu0 0.0
        %5689 = vmatpush1.xpose.msra.mxu0 0.0
        %5690 = vmatprep.subr.mxu0 0.0
        %5691 = vmatpush1.xpose.msra.mxu0 0.0
        %5692 = vmatprep.subr.mxu0 0.0
        %5693 = vmatpush1.xpose.msra.mxu0 0.0
        %5694 = vmatprep.subr.mxu0 0.0
        %5695 = vmatpush1.xpose.msra.mxu0 0.0
        %5696 = vmatprep.subr.mxu0 0.0
        %5697 = vmatpush1.xpose.msra.mxu0 0.0
        %5698 = vmatprep.subr.mxu0 0.0
        %5699 = vmatpush1.xpose.msra.mxu0 0.0
        %5700 = vmatprep.subr.mxu0 0.0
        %5701 = vmatpush1.xpose.msra.mxu0 0.0
        %5702 = vmatprep.mubr.f32.mxu0 0.0
        %5703 = vmatmul.mubr.f32.gmra.mrb[0].mxu0 %v5634
        %v5704 = vpop.f32.mrb[0].mxu0
        %v5705 = vadd.f32 %v2504, %v5704
        %v5706 = vpop.f32.mrb[0].mxu0
        %5707 = vdwg.mxu0
        %v5708 = vsel %vm1277, %v5705, -inf
        %5709 = vmax.xlane.f32.xlu0 %v5708
        %v5710 = vpop.xlane.xlu0 %5709
        %v5711 = vsub.f32 %v5705, %v5710
        %v5712 = vmul.f32 %v5711, 1.442695
        %v5713 = vpow.pop %v5712
        %v5714 = vsel %vm1277, %v5713, 0.0
        %5715 = vadd.xlane.f32.xlu0 %v5714
        %v5716 = vpop.xlane.xlu0 %5715
        %v5717 = vrcp.pop %v5716
        %v5718 = vmul.f32 %v5713, %v5717
        %5719 = vrot.lane.b32.xlu0 %v5155, 112
        %v5720 = vpop.permute.xlu0 %5719
        %v5723 = vsel %vm1277, %v5718, 0
        %5725 = vmatprep.subr.mxu0 0.0
        %5726 = vmatpush1.msra.mxu0 %v5720
        %5727 = vmatprep.subr.mxu0 0.0
        %5728 = vmatpush1.msra.mxu0 0.0
        %5729 = vmatprep.subr.mxu0 0.0
        %5730 = vmatpush1.msra.mxu0 0.0
        %5731 = vmatprep.subr.mxu0 0.0
        %5732 = vmatpush1.msra.mxu0 0.0
        %5733 = vmatprep.subr.mxu0 0.0
        %5734 = vmatpush1.msra.mxu0 0.0
        %5735 = vmatprep.subr.mxu0 0.0
        %5736 = vmatpush1.msra.mxu0 0.0
        %5737 = vmatprep.subr.mxu0 0.0
        %5738 = vmatpush1.msra.mxu0 0.0
        %5739 = vmatprep.subr.mxu0 0.0
        %5740 = vmatpush1.msra.mxu0 0.0
        %5741 = vmatprep.subr.mxu0 0.0
        %5742 = vmatpush1.msra.mxu0 0.0
        %5743 = vmatprep.subr.mxu0 0.0
        %5744 = vmatpush1.msra.mxu0 0.0
        %5745 = vmatprep.subr.mxu0 0.0
        %5746 = vmatpush1.msra.mxu0 0.0
        %5747 = vmatprep.subr.mxu0 0.0
        %5748 = vmatpush1.msra.mxu0 0.0
        %5749 = vmatprep.subr.mxu0 0.0
        %5750 = vmatpush1.msra.mxu0 0.0
        %5751 = vmatprep.subr.mxu0 0.0
        %5752 = vmatpush1.msra.mxu0 0.0
        %5753 = vmatprep.subr.mxu0 0.0
        %5754 = vmatpush1.msra.mxu0 0.0
        %5755 = vmatprep.subr.mxu0 0.0
        %5756 = vmatpush1.msra.mxu0 0.0
        %5757 = vmatprep.subr.mxu0 0.0
        %5758 = vmatpush1.msra.mxu0 0.0
        %5759 = vmatprep.subr.mxu0 0.0
        %5760 = vmatpush1.msra.mxu0 0.0
        %5761 = vmatprep.subr.mxu0 0.0
        %5762 = vmatpush1.msra.mxu0 0.0
        %5763 = vmatprep.subr.mxu0 0.0
        %5764 = vmatpush1.msra.mxu0 0.0
        %5765 = vmatprep.subr.mxu0 0.0
        %5766 = vmatpush1.msra.mxu0 0.0
        %5767 = vmatprep.subr.mxu0 0.0
        %5768 = vmatpush1.msra.mxu0 0.0
        %5769 = vmatprep.subr.mxu0 0.0
        %5770 = vmatpush1.msra.mxu0 0.0
        %5771 = vmatprep.subr.mxu0 0.0
        %5772 = vmatpush1.msra.mxu0 0.0
        %5773 = vmatprep.subr.mxu0 0.0
        %5774 = vmatpush1.msra.mxu0 0.0
        %5775 = vmatprep.subr.mxu0 0.0
        %5776 = vmatpush1.msra.mxu0 0.0
        %5777 = vmatprep.subr.mxu0 0.0
        %5778 = vmatpush1.msra.mxu0 0.0
        %5779 = vmatprep.subr.mxu0 0.0
        %5780 = vmatpush1.msra.mxu0 0.0
        %5781 = vmatprep.subr.mxu0 0.0
        %5782 = vmatpush1.msra.mxu0 0.0
        %5783 = vmatprep.subr.mxu0 0.0
        %5784 = vmatpush1.msra.mxu0 0.0
        %5785 = vmatprep.subr.mxu0 0.0
        %5786 = vmatpush1.msra.mxu0 0.0
        %5787 = vmatprep.subr.mxu0 0.0
        %5788 = vmatpush1.msra.mxu0 0.0
        %5789 = vmatprep.mubr.f32.mxu0 0.0
        %5790 = vmatmul.mubr.f32.gmra.mrb[0].mxu0 %v5723
        %v5791 = vpop.f32.mrb[0].mxu0
        %v5792 = vadd.f32 0.0, %v5791
        %v5793 = vpop.f32.mrb[0].mxu0
        %5794 = vdwg.mxu0
        %v5796 = vsel %vm1277, %v5792, 0
        %5798 = vmatprep.subr.mxu0 0.0
        %5799 = vmatpush1.msra.mxu0 %v4940
        %5800 = vmatprep.subr.mxu0 0.0
        %5801 = vmatpush1.msra.mxu0 0.0
        %5802 = vmatprep.subr.mxu0 0.0
        %5803 = vmatpush1.msra.mxu0 0.0
        %5804 = vmatprep.subr.mxu0 0.0
        %5805 = vmatpush1.msra.mxu0 0.0
        %5806 = vmatprep.subr.mxu0 0.0
        %5807 = vmatpush1.msra.mxu0 0.0
        %5808 = vmatprep.subr.mxu0 0.0
        %5809 = vmatpush1.msra.mxu0 0.0
        %5810 = vmatprep.subr.mxu0 0.0
        %5811 = vmatpush1.msra.mxu0 0.0
        %5812 = vmatprep.subr.mxu0 0.0
        %5813 = vmatpush1.msra.mxu0 0.0
        %5814 = vmatprep.subr.mxu0 0.0
        %5815 = vmatpush1.msra.mxu0 0.0
        %5816 = vmatprep.subr.mxu0 0.0
        %5817 = vmatpush1.msra.mxu0 0.0
        %5818 = vmatprep.subr.mxu0 0.0
        %5819 = vmatpush1.msra.mxu0 0.0
        %5820 = vmatprep.subr.mxu0 0.0
        %5821 = vmatpush1.msra.mxu0 0.0
        %5822 = vmatprep.subr.mxu0 0.0
        %5823 = vmatpush1.msra.mxu0 0.0
        %5824 = vmatprep.subr.mxu0 0.0
        %5825 = vmatpush1.msra.mxu0 0.0
        %5826 = vmatprep.subr.mxu0 0.0
        %5827 = vmatpush1.msra.mxu0 0.0
        %5828 = vmatprep.subr.mxu0 0.0
        %5829 = vmatpush1.msra.mxu0 0.0
        %5830 = vmatprep.subr.mxu0 0.0
        %5831 = vmatpush1.msra.mxu0 0.0
        %5832 = vmatprep.subr.mxu0 0.0
        %5833 = vmatpush1.msra.mxu0 0.0
        %5834 = vmatprep.subr.mxu0 0.0
        %5835 = vmatpush1.msra.mxu0 0.0
        %5836 = vmatprep.subr.mxu0 0.0
        %5837 = vmatpush1.msra.mxu0 0.0
        %5838 = vmatprep.subr.mxu0 0.0
        %5839 = vmatpush1.msra.mxu0 0.0
        %5840 = vmatprep.subr.mxu0 0.0
        %5841 = vmatpush1.msra.mxu0 0.0
        %5842 = vmatprep.subr.mxu0 0.0
        %5843 = vmatpush1.msra.mxu0 0.0
        %5844 = vmatprep.subr.mxu0 0.0
        %5845 = vmatpush1.msra.mxu0 0.0
        %5846 = vmatprep.subr.mxu0 0.0
        %5847 = vmatpush1.msra.mxu0 0.0
        %5848 = vmatprep.subr.mxu0 0.0
        %5849 = vmatpush1.msra.mxu0 0.0
        %5850 = vmatprep.subr.mxu0 0.0
        %5851 = vmatpush1.msra.mxu0 0.0
        %5852 = vmatprep.subr.mxu0 0.0
        %5853 = vmatpush1.msra.mxu0 0.0
        %5854 = vmatprep.subr.mxu0 0.0
        %5855 = vmatpush1.msra.mxu0 0.0
        %5856 = vmatprep.subr.mxu0 0.0
        %5857 = vmatpush1.msra.mxu0 0.0
        %5858 = vmatprep.subr.mxu0 0.0
        %5859 = vmatpush1.msra.mxu0 0.0
        %5860 = vmatprep.subr.mxu0 0.0
        %5861 = vmatpush1.msra.mxu0 0.0
        %5862 = vmatprep.mubr.f32.mxu0 0.0
        %5863 = vmatmul.mubr.f32.gmra.mrb[0].mxu0 %v5796
        %v5864 = vpop.f32.mrb[0].mxu0
        %v5865 = vadd.f32 0.0, %v5864
        %v5866 = vpop.f32.mrb[0].mxu0
        %5867 = vdwg.mxu0
        %v5868 = vadd.f32 %v5627, %v5865
        %5869 = vrot.lane.b32.xlu0 %v5017, 104
        %v5870 = vpop.permute.xlu0 %5869
        %5871 = vrot.lane.b32.xlu0 %v5085, 104
        %v5872 = vpop.permute.xlu0 %5871
        %v5873 = vsel %vm1277, %v5870, 0
        %v5875 = vsel %vm1277, %v5872, 0
        %5877 = vmatprep.subr.mxu0 0.0
        %5878 = vmatpush1.xpose.msra.mxu0 %v5875
        %5879 = vmatprep.subr.mxu0 0.0
        %5880 = vmatpush1.xpose.msra.mxu0 0.0
        %5881 = vmatprep.subr.mxu0 0.0
        %5882 = vmatpush1.xpose.msra.mxu0 0.0
        %5883 = vmatprep.subr.mxu0 0.0
        %5884 = vmatpush1.xpose.msra.mxu0 0.0
        %5885 = vmatprep.subr.mxu0 0.0
        %5886 = vmatpush1.xpose.msra.mxu0 0.0
        %5887 = vmatprep.subr.mxu0 0.0
        %5888 = vmatpush1.xpose.msra.mxu0 0.0
        %5889 = vmatprep.subr.mxu0 0.0
        %5890 = vmatpush1.xpose.msra.mxu0 0.0
        %5891 = vmatprep.subr.mxu0 0.0
        %5892 = vmatpush1.xpose.msra.mxu0 0.0
        %5893 = vmatprep.subr.mxu0 0.0
        %5894 = vmatpush1.xpose.msra.mxu0 0.0
        %5895 = vmatprep.subr.mxu0 0.0
        %5896 = vmatpush1.xpose.msra.mxu0 0.0
        %5897 = vmatprep.subr.mxu0 0.0
        %5898 = vmatpush1.xpose.msra.mxu0 0.0
        %5899 = vmatprep.subr.mxu0 0.0
        %5900 = vmatpush1.xpose.msra.mxu0 0.0
        %5901 = vmatprep.subr.mxu0 0.0
        %5902 = vmatpush1.xpose.msra.mxu0 0.0
        %5903 = vmatprep.subr.mxu0 0.0
        %5904 = vmatpush1.xpose.msra.mxu0 0.0
        %5905 = vmatprep.subr.mxu0 0.0
        %5906 = vmatpush1.xpose.msra.mxu0 0.0
        %5907 = vmatprep.subr.mxu0 0.0
        %5908 = vmatpush1.xpose.msra.mxu0 0.0
        %5909 = vmatprep.subr.mxu0 0.0
        %5910 = vmatpush1.xpose.msra.mxu0 0.0
        %5911 = vmatprep.subr.mxu0 0.0
        %5912 = vmatpush1.xpose.msra.mxu0 0.0
        %5913 = vmatprep.subr.mxu0 0.0
        %5914 = vmatpush1.xpose.msra.mxu0 0.0
        %5915 = vmatprep.subr.mxu0 0.0
        %5916 = vmatpush1.xpose.msra.mxu0 0.0
        %5917 = vmatprep.subr.mxu0 0.0
        %5918 = vmatpush1.xpose.msra.mxu0 0.0
        %5919 = vmatprep.subr.mxu0 0.0
        %5920 = vmatpush1.xpose.msra.mxu0 0.0
        %5921 = vmatprep.subr.mxu0 0.0
        %5922 = vmatpush1.xpose.msra.mxu0 0.0
        %5923 = vmatprep.subr.mxu0 0.0
        %5924 = vmatpush1.xpose.msra.mxu0 0.0
        %5925 = vmatprep.subr.mxu0 0.0
        %5926 = vmatpush1.xpose.msra.mxu0 0.0
        %5927 = vmatprep.subr.mxu0 0.0
        %5928 = vmatpush1.xpose.msra.mxu0 0.0
        %5929 = vmatprep.subr.mxu0 0.0
        %5930 = vmatpush1.xpose.msra.mxu0 0.0
        %5931 = vmatprep.subr.mxu0 0.0
        %5932 = vmatpush1.xpose.msra.mxu0 0.0
        %5933 = vmatprep.subr.mxu0 0.0
        %5934 = vmatpush1.xpose.msra.mxu0 0.0
        %5935 = vmatprep.subr.mxu0 0.0
        %5936 = vmatpush1.xpose.msra.mxu0 0.0
        %5937 = vmatprep.subr.mxu0 0.0
        %5938 = vmatpush1.xpose.msra.mxu0 0.0
        %5939 = vmatprep.subr.mxu0 0.0
        %5940 = vmatpush1.xpose.msra.mxu0 0.0
        %5941 = vmatprep.mubr.f32.mxu0 0.0
        %5942 = vmatmul.mubr.f32.gmra.mrb[0].mxu0 %v5873
        %v5943 = vpop.f32.mrb[0].mxu0
        %v5944 = vadd.f32 %v2504, %v5943
        %v5945 = vpop.f32.mrb[0].mxu0
        %5946 = vdwg.mxu0
        %v5947 = vsel %vm1277, %v5944, -inf
        %5948 = vmax.xlane.f32.xlu0 %v5947
        %v5949 = vpop.xlane.xlu0 %5948
        %v5950 = vsub.f32 %v5944, %v5949
        %v5951 = vmul.f32 %v5950, 1.442695
        %v5952 = vpow.pop %v5951
        %v5953 = vsel %vm1277, %v5952, 0.0
        %5954 = vadd.xlane.f32.xlu0 %v5953
        %v5955 = vpop.xlane.xlu0 %5954
        %v5956 = vrcp.pop %v5955
        %v5957 = vmul.f32 %v5952, %v5956
        %5958 = vrot.lane.b32.xlu0 %v5155, 104
        %v5959 = vpop.permute.xlu0 %5958
        %v5962 = vsel %vm1277, %v5957, 0
        %5964 = vmatprep.subr.mxu0 0.0
        %5965 = vmatpush1.msra.mxu0 %v5959
        %5966 = vmatprep.subr.mxu0 0.0
        %5967 = vmatpush1.msra.mxu0 0.0
        %5968 = vmatprep.subr.mxu0 0.0
        %5969 = vmatpush1.msra.mxu0 0.0
        %5970 = vmatprep.subr.mxu0 0.0
        %5971 = vmatpush1.msra.mxu0 0.0
        %5972 = vmatprep.subr.mxu0 0.0
        %5973 = vmatpush1.msra.mxu0 0.0
        %5974 = vmatprep.subr.mxu0 0.0
        %5975 = vmatpush1.msra.mxu0 0.0
        %5976 = vmatprep.subr.mxu0 0.0
        %5977 = vmatpush1.msra.mxu0 0.0
        %5978 = vmatprep.subr.mxu0 0.0
        %5979 = vmatpush1.msra.mxu0 0.0
        %5980 = vmatprep.subr.mxu0 0.0
        %5981 = vmatpush1.msra.mxu0 0.0
        %5982 = vmatprep.subr.mxu0 0.0
        %5983 = vmatpush1.msra.mxu0 0.0
        %5984 = vmatprep.subr.mxu0 0.0
        %5985 = vmatpush1.msra.mxu0 0.0
        %5986 = vmatprep.subr.mxu0 0.0
        %5987 = vmatpush1.msra.mxu0 0.0
        %5988 = vmatprep.subr.mxu0 0.0
        %5989 = vmatpush1.msra.mxu0 0.0
        %5990 = vmatprep.subr.mxu0 0.0
        %5991 = vmatpush1.msra.mxu0 0.0
        %5992 = vmatprep.subr.mxu0 0.0
        %5993 = vmatpush1.msra.mxu0 0.0
        %5994 = vmatprep.subr.mxu0 0.0
        %5995 = vmatpush1.msra.mxu0 0.0
        %5996 = vmatprep.subr.mxu0 0.0
        %5997 = vmatpush1.msra.mxu0 0.0
        %5998 = vmatprep.subr.mxu0 0.0
        %5999 = vmatpush1.msra.mxu0 0.0
        %6000 = vmatprep.subr.mxu0 0.0
        %6001 = vmatpush1.msra.mxu0 0.0
        %6002 = vmatprep.subr.mxu0 0.0
        %6003 = vmatpush1.msra.mxu0 0.0
        %6004 = vmatprep.subr.mxu0 0.0
        %6005 = vmatpush1.msra.mxu0 0.0
        %6006 = vmatprep.subr.mxu0 0.0
        %6007 = vmatpush1.msra.mxu0 0.0
        %6008 = vmatprep.subr.mxu0 0.0
        %6009 = vmatpush1.msra.mxu0 0.0
        %6010 = vmatprep.subr.mxu0 0.0
        %6011 = vmatpush1.msra.mxu0 0.0
        %6012 = vmatprep.subr.mxu0 0.0
        %6013 = vmatpush1.msra.mxu0 0.0
        %6014 = vmatprep.subr.mxu0 0.0
        %6015 = vmatpush1.msra.mxu0 0.0
        %6016 = vmatprep.subr.mxu0 0.0
        %6017 = vmatpush1.msra.mxu0 0.0
        %6018 = vmatprep.subr.mxu0 0.0
        %6019 = vmatpush1.msra.mxu0 0.0
        %6020 = vmatprep.subr.mxu0 0.0
        %6021 = vmatpush1.msra.mxu0 0.0
        %6022 = vmatprep.subr.mxu0 0.0
        %6023 = vmatpush1.msra.mxu0 0.0
        %6024 = vmatprep.subr.mxu0 0.0
        %6025 = vmatpush1.msra.mxu0 0.0
        %6026 = vmatprep.subr.mxu0 0.0
        %6027 = vmatpush1.msra.mxu0 0.0
        %6028 = vmatprep.mubr.f32.mxu0 0.0
        %6029 = vmatmul.mubr.f32.gmra.mrb[0].mxu0 %v5962
        %v6030 = vpop.f32.mrb[0].mxu0
        %v6031 = vadd.f32 0.0, %v6030
        %v6032 = vpop.f32.mrb[0].mxu0
        %6033 = vdwg.mxu0
        %v6035 = vsel %vm1277, %v6031, 0
        %6037 = vmatprep.subr.mxu0 0.0
        %6038 = vmatpush1.msra.mxu0 %v4941
        %6039 = vmatprep.subr.mxu0 0.0
        %6040 = vmatpush1.msra.mxu0 0.0
        %6041 = vmatprep.subr.mxu0 0.0
        %6042 = vmatpush1.msra.mxu0 0.0
        %6043 = vmatprep.subr.mxu0 0.0
        %6044 = vmatpush1.msra.mxu0 0.0
        %6045 = vmatprep.subr.mxu0 0.0
        %6046 = vmatpush1.msra.mxu0 0.0
        %6047 = vmatprep.subr.mxu0 0.0
        %6048 = vmatpush1.msra.mxu0 0.0
        %6049 = vmatprep.subr.mxu0 0.0
        %6050 = vmatpush1.msra.mxu0 0.0
        %6051 = vmatprep.subr.mxu0 0.0
        %6052 = vmatpush1.msra.mxu0 0.0
        %6053 = vmatprep.subr.mxu0 0.0
        %6054 = vmatpush1.msra.mxu0 0.0
        %6055 = vmatprep.subr.mxu0 0.0
        %6056 = vmatpush1.msra.mxu0 0.0
        %6057 = vmatprep.subr.mxu0 0.0
        %6058 = vmatpush1.msra.mxu0 0.0
        %6059 = vmatprep.subr.mxu0 0.0
        %6060 = vmatpush1.msra.mxu0 0.0
        %6061 = vmatprep.subr.mxu0 0.0
        %6062 = vmatpush1.msra.mxu0 0.0
        %6063 = vmatprep.subr.mxu0 0.0
        %6064 = vmatpush1.msra.mxu0 0.0
        %6065 = vmatprep.subr.mxu0 0.0
        %6066 = vmatpush1.msra.mxu0 0.0
        %6067 = vmatprep.subr.mxu0 0.0
        %6068 = vmatpush1.msra.mxu0 0.0
        %6069 = vmatprep.subr.mxu0 0.0
        %6070 = vmatpush1.msra.mxu0 0.0
        %6071 = vmatprep.subr.mxu0 0.0
        %6072 = vmatpush1.msra.mxu0 0.0
        %6073 = vmatprep.subr.mxu0 0.0
        %6074 = vmatpush1.msra.mxu0 0.0
        %6075 = vmatprep.subr.mxu0 0.0
        %6076 = vmatpush1.msra.mxu0 0.0
        %6077 = vmatprep.subr.mxu0 0.0
        %6078 = vmatpush1.msra.mxu0 0.0
        %6079 = vmatprep.subr.mxu0 0.0
        %6080 = vmatpush1.msra.mxu0 0.0
        %6081 = vmatprep.subr.mxu0 0.0
        %6082 = vmatpush1.msra.mxu0 0.0
        %6083 = vmatprep.subr.mxu0 0.0
        %6084 = vmatpush1.msra.mxu0 0.0
        %6085 = vmatprep.subr.mxu0 0.0
        %6086 = vmatpush1.msra.mxu0 0.0
        %6087 = vmatprep.subr.mxu0 0.0
        %6088 = vmatpush1.msra.mxu0 0.0
        %6089 = vmatprep.subr.mxu0 0.0
        %6090 = vmatpush1.msra.mxu0 0.0
        %6091 = vmatprep.subr.mxu0 0.0
        %6092 = vmatpush1.msra.mxu0 0.0
        %6093 = vmatprep.subr.mxu0 0.0
        %6094 = vmatpush1.msra.mxu0 0.0
        %6095 = vmatprep.subr.mxu0 0.0
        %6096 = vmatpush1.msra.mxu0 0.0
        %6097 = vmatprep.subr.mxu0 0.0
        %6098 = vmatpush1.msra.mxu0 0.0
        %6099 = vmatprep.subr.mxu0 0.0
        %6100 = vmatpush1.msra.mxu0 0.0
        %6101 = vmatprep.mubr.f32.mxu0 0.0
        %6102 = vmatmul.mubr.f32.gmra.mrb[0].mxu0 %v6035
        %v6103 = vpop.f32.mrb[0].mxu0
        %v6104 = vadd.f32 0.0, %v6103
        %v6105 = vpop.f32.mrb[0].mxu0
        %6106 = vdwg.mxu0
        %v6107 = vadd.f32 %v5868, %v6104
        %v6109 = vlaneseq
        %v6110 = vshrl.u32 %v6109, 7
        %v6111 = vsub.s32 0, %v6110
        %v6112 = vrot.slane %v4943, %v6111
        %v6114 = vadd.f32 %v6107, %v6112
        %v6115 = vadd.f32 %v6114, %v4921
        %s6116 = scalar_lea.vmem [#allocation16], 1
        %v6117 = vld [vmem:[%s6116] sm:$0x1]
        %s6118 = scalar_lea.vmem [#allocation17], 1
        %v6119 = vld [vmem:[%s6118] sm:$0x1]
        %v6120 = vsel %vm1062, %v6115, 0.0
        %6121 = vadd.xlane.f32.xlu0 %v6120
        %v6122 = vpop.xlane.xlu0 %6121
        %v6123 = vmul.f32 %v6122, %v2241
        %v6124 = vsub.f32 %v6115, %v6123
        %v6125 = vmul.f32 %v6124, %v6124
        %v6126 = vsel %vm1062, %v6125, 0.0
        %6127 = vadd.xlane.f32.xlu0 %v6126
        %v6128 = vpop.xlane.xlu0 %6127
        %v6129 = vmul.f32 %v6128, %v2241
        %v6130 = vadd.f32 %v6129, 1e-05
        %v6131 = vrsqrt.pop %v6130
        %v6132 = vmul.f32 %v6124, %v6131
        %v6134 = vlaneseq
        %v6135 = vshrl.u32 %v6134, 7
        %v6136 = vsub.s32 0, %v6135
        %v6137 = vrot.slane %v6117, %v6136
        %v6139 = vmul.f32 %v6132, %v6137
        %v6141 = vlaneseq
        %v6142 = vshrl.u32 %v6141, 7
        %v6143 = vsub.s32 0, %v6142
        %v6144 = vrot.slane %v6119, %v6143
        %v6146 = vadd.f32 %v6139, %v6144
        %s6147 = scalar_lea.vmem [#allocation19], 32
        %v6148 = vld [vmem:[%s6147] sm:$0xff]
        %v6149 = vld [vmem:[%s6147 + $0x8] sm:$0xff]
        %v6150 = vld [vmem:[%s6147 + $0x10] sm:$0xff]
        %v6151 = vld [vmem:[%s6147 + $0x18] sm:$0xff]
        %s6152 = scalar_lea.vmem [#allocation20], 1
        %v6153 = vld [vmem:[%s6152] sm:$0x1]
        %v6155 = vlaneseq
        %v6156 = vshrl.u32 %v6155, 7
        %v6157 = vsub.s32 0, %v6156
        %v6158 = vrot.slane %v6153, %v6157
        %v6161 = vsel %vm1062, %v6146, 0
        %6163 = vmatprep.subr.mxu0 0.0
        %6164 = vmatpush1.msra.mxu0 %v6148
        %6165 = vmatprep.subr.mxu0 0.0
        %6166 = vmatpush1.msra.mxu0 %v6149
        %6167 = vmatprep.subr.mxu0 0.0
        %6168 = vmatpush1.msra.mxu0 %v6150
        %6169 = vmatprep.subr.mxu0 0.0
        %6170 = vmatpush1.msra.mxu0 %v6151
        %6171 = vmatprep.subr.mxu0 0.0
        %6172 = vmatpush1.msra.mxu0 0.0
        %6173 = vmatprep.subr.mxu0 0.0
        %6174 = vmatpush1.msra.mxu0 0.0
        %6175 = vmatprep.subr.mxu0 0.0
        %6176 = vmatpush1.msra.mxu0 0.0
        %6177 = vmatprep.subr.mxu0 0.0
        %6178 = vmatpush1.msra.mxu0 0.0
        %6179 = vmatprep.subr.mxu0 0.0
        %6180 = vmatpush1.msra.mxu0 0.0
        %6181 = vmatprep.subr.mxu0 0.0
        %6182 = vmatpush1.msra.mxu0 0.0
        %6183 = vmatprep.subr.mxu0 0.0
        %6184 = vmatpush1.msra.mxu0 0.0
        %6185 = vmatprep.subr.mxu0 0.0
        %6186 = vmatpush1.msra.mxu0 0.0
        %6187 = vmatprep.subr.mxu0 0.0
        %6188 = vmatpush1.msra.mxu0 0.0
        %6189 = vmatprep.subr.mxu0 0.0
        %6190 = vmatpush1.msra.mxu0 0.0
        %6191 = vmatprep.subr.mxu0 0.0
        %6192 = vmatpush1.msra.mxu0 0.0
        %6193 = vmatprep.subr.mxu0 0.0
        %6194 = vmatpush1.msra.mxu0 0.0
        %6195 = vmatprep.subr.mxu0 0.0
        %6196 = vmatpush1.msra.mxu0 0.0
        %6197 = vmatprep.subr.mxu0 0.0
        %6198 = vmatpush1.msra.mxu0 0.0
        %6199 = vmatprep.subr.mxu0 0.0
        %6200 = vmatpush1.msra.mxu0 0.0
        %6201 = vmatprep.subr.mxu0 0.0
        %6202 = vmatpush1.msra.mxu0 0.0
        %6203 = vmatprep.subr.mxu0 0.0
        %6204 = vmatpush1.msra.mxu0 0.0
        %6205 = vmatprep.subr.mxu0 0.0
        %6206 = vmatpush1.msra.mxu0 0.0
        %6207 = vmatprep.subr.mxu0 0.0
        %6208 = vmatpush1.msra.mxu0 0.0
        %6209 = vmatprep.subr.mxu0 0.0
        %6210 = vmatpush1.msra.mxu0 0.0
        %6211 = vmatprep.subr.mxu0 0.0
        %6212 = vmatpush1.msra.mxu0 0.0
        %6213 = vmatprep.subr.mxu0 0.0
        %6214 = vmatpush1.msra.mxu0 0.0
        %6215 = vmatprep.subr.mxu0 0.0
        %6216 = vmatpush1.msra.mxu0 0.0
        %6217 = vmatprep.subr.mxu0 0.0
        %6218 = vmatpush1.msra.mxu0 0.0
        %6219 = vmatprep.subr.mxu0 0.0
        %6220 = vmatpush1.msra.mxu0 0.0
        %6221 = vmatprep.subr.mxu0 0.0
        %6222 = vmatpush1.msra.mxu0 0.0
        %6223 = vmatprep.subr.mxu0 0.0
        %6224 = vmatpush1.msra.mxu0 0.0
        %6225 = vmatprep.subr.mxu0 0.0
        %6226 = vmatpush1.msra.mxu0 0.0
        %6227 = vmatprep.mubr.f32.mxu0 0.0
        %6228 = vmatmul.mubr.f32.gmra.mrb[0].mxu0 %v6161
        %v6229 = vpop.f32.mrb[0].mxu0
        %v6230 = vadd.f32 %v6158, %v6229
        %v6231 = vpop.f32.mrb[0].mxu0
        %6232 = vdwg.mxu0
        %v6233 = vmax.f32 %v6230, 0.0
        %s6234 = scalar_lea.vmem %s20, 64
        %v6235 = vld [vmem:[%s6234] sm:$0xff]
        %v6236 = vld [vmem:[%s6234 + $0x8] sm:$0xff]
        %v6237 = vld [vmem:[%s6234 + $0x10] sm:$0xff]
        %v6238 = vld [vmem:[%s6234 + $0x18] sm:$0xff]
        %v6239 = vld [vmem:[%s6234 + $0x20] sm:$0xff]
        %v6240 = vld [vmem:[%s6234 + $0x28] sm:$0xff]
        %v6241 = vld [vmem:[%s6234 + $0x30] sm:$0xff]
        %v6242 = vld [vmem:[%s6234 + $0x38] sm:$0xff]
        %s6243 = scalar_lea.vmem %s21, 1
        %v6244 = vld [vmem:[%s6243] sm:$0x1]
        %v6246 = vlaneseq
        %v6247 = vshrl.u32 %v6246, 7
        %v6248 = vsub.s32 0, %v6247
        %v6249 = vrot.slane %v6244, %v6248
        %v6252 = vsel %vm3593, %v6233, 0
        %6254 = vmatprep.subr.mxu0 0.0
        %6255 = vmatpush1.msra.mxu0 %v6235
        %6256 = vmatprep.subr.mxu0 0.0
        %6257 = vmatpush1.msra.mxu0 %v6236
        %6258 = vmatprep.subr.mxu0 0.0
        %6259 = vmatpush1.msra.mxu0 %v6237
        %6260 = vmatprep.subr.mxu0 0.0
        %6261 = vmatpush1.msra.mxu0 %v6238
        %6262 = vmatprep.subr.mxu0 0.0
        %6263 = vmatpush1.msra.mxu0 %v6239
        %6264 = vmatprep.subr.mxu0 0.0
        %6265 = vmatpush1.msra.mxu0 %v6240
        %6266 = vmatprep.subr.mxu0 0.0
        %6267 = vmatpush1.msra.mxu0 %v6241
        %6268 = vmatprep.subr.mxu0 0.0
        %6269 = vmatpush1.msra.mxu0 %v6242
        %6270 = vmatprep.subr.mxu0 0.0
        %6271 = vmatpush1.msra.mxu0 0.0
        %6272 = vmatprep.subr.mxu0 0.0
        %6273 = vmatpush1.msra.mxu0 0.0
        %6274 = vmatprep.subr.mxu0 0.0
        %6275 = vmatpush1.msra.mxu0 0.0
        %6276 = vmatprep.subr.mxu0 0.0
        %6277 = vmatpush1.msra.mxu0 0.0
        %6278 = vmatprep.subr.mxu0 0.0
        %6279 = vmatpush1.msra.mxu0 0.0
        %6280 = vmatprep.subr.mxu0 0.0
        %6281 = vmatpush1.msra.mxu0 0.0
        %6282 = vmatprep.subr.mxu0 0.0
        %6283 = vmatpush1.msra.mxu0 0.0
        %6284 = vmatprep.subr.mxu0 0.0
        %6285 = vmatpush1.msra.mxu0 0.0
        %6286 = vmatprep.subr.mxu0 0.0
        %6287 = vmatpush1.msra.mxu0 0.0
        %6288 = vmatprep.subr.mxu0 0.0
        %6289 = vmatpush1.msra.mxu0 0.0
        %6290 = vmatprep.subr.mxu0 0.0
        %6291 = vmatpush1.msra.mxu0 0.0
        %6292 = vmatprep.subr.mxu0 0.0
        %6293 = vmatpush1.msra.mxu0 0.0
        %6294 = vmatprep.subr.mxu0 0.0
        %6295 = vmatpush1.msra.mxu0 0.0
        %6296 = vmatprep.subr.mxu0 0.0
        %6297 = vmatpush1.msra.mxu0 0.0
        %6298 = vmatprep.subr.mxu0 0.0
        %6299 = vmatpush1.msra.mxu0 0.0
        %6300 = vmatprep.subr.mxu0 0.0
        %6301 = vmatpush1.msra.mxu0 0.0
        %6302 = vmatprep.subr.mxu0 0.0
        %6303 = vmatpush1.msra.mxu0 0.0
        %6304 = vmatprep.subr.mxu0 0.0
        %6305 = vmatpush1.msra.mxu0 0.0
        %6306 = vmatprep.subr.mxu0 0.0
        %6307 = vmatpush1.msra.mxu0 0.0
        %6308 = vmatprep.subr.mxu0 0.0
        %6309 = vmatpush1.msra.mxu0 0.0
        %6310 = vmatprep.subr.mxu0 0.0
        %6311 = vmatpush1.msra.mxu0 0.0
        %6312 = vmatprep.subr.mxu0 0.0
        %6313 = vmatpush1.msra.mxu0 0.0
        %6314 = vmatprep.subr.mxu0 0.0
        %6315 = vmatpush1.msra.mxu0 0.0
        %6316 = vmatprep.subr.mxu0 0.0
        %6317 = vmatpush1.msra.mxu0 0.0
        %6318 = vmatprep.mubr.f32.mxu0 0.0
        %6319 = vmatmul.mubr.f32.gmra.mrb[0].mxu0 %v6252
        %v6320 = vpop.f32.mrb[0].mxu0
        %v6321 = vadd.f32 %v6249, %v6320
        %v6322 = vpop.f32.mrb[0].mxu0
        %6323 = vdwg.mxu0
        %v6324 = vadd.f32 %v6321, %v6146
        %s6325 = scalar_lea.vmem %s22, 1
        %v6326 = vld [vmem:[%s6325] sm:$0x1]
        %s6327 = scalar_lea.vmem %s23, 1
        %v6328 = vld [vmem:[%s6327] sm:$0x1]
        %v6329 = vsel %vm1062, %v6324, 0.0
        %6330 = vadd.xlane.f32.xlu0 %v6329
        %v6331 = vpop.xlane.xlu0 %6330
        %v6332 = vmul.f32 %v6331, %v2241
        %v6333 = vsub.f32 %v6324, %v6332
        %v6334 = vmul.f32 %v6333, %v6333
        %v6335 = vsel %vm1062, %v6334, 0.0
        %6336 = vadd.xlane.f32.xlu0 %v6335
        %v6337 = vpop.xlane.xlu0 %6336
        %v6338 = vmul.f32 %v6337, %v2241
        %v6339 = vadd.f32 %v6338, 1e-05
        %v6340 = vrsqrt.pop %v6339
        %v6341 = vmul.f32 %v6333, %v6340
        %v6343 = vlaneseq
        %v6344 = vshrl.u32 %v6343, 7
        %v6345 = vsub.s32 0, %v6344
        %v6346 = vrot.slane %v6326, %v6345
        %v6348 = vmul.f32 %v6341, %v6346
        %v6350 = vlaneseq
        %v6351 = vshrl.u32 %v6350, 7
        %v6352 = vsub.s32 0, %v6351
        %v6353 = vrot.slane %v6328, %v6352
        %v6355 = vadd.f32 %v6348, %v6353
        %v6356 = vld [vmem:[#allocation22] sm:$0xff]
        %v6357 = vld [vmem:[#allocation22 + $0x8] sm:$0xff]
        %v6358 = vld [vmem:[#allocation22 + $0x10] sm:$0xff]
        %v6359 = vld [vmem:[#allocation22 + $0x18] sm:$0xff]
        %v6360 = vld [vmem:[%s25] sm:$0x1]
        %v6362 = vlaneseq
        %v6363 = vshrl.u32 %v6362, 7
        %v6364 = vsub.s32 0, %v6363
        %v6365 = vrot.slane %v6360, %v6364
        %v6368 = vsel %vm1062, %v6355, 0
        %6370 = vmatprep.subr.mxu0 0.0
        %6371 = vmatpush1.msra.mxu0 %v6356
        %6372 = vmatprep.subr.mxu0 0.0
        %6373 = vmatpush1.msra.mxu0 %v6357
        %6374 = vmatprep.subr.mxu0 0.0
        %6375 = vmatpush1.msra.mxu0 %v6358
        %6376 = vmatprep.subr.mxu0 0.0
        %6377 = vmatpush1.msra.mxu0 %v6359
        %6378 = vmatprep.subr.mxu0 0.0
        %6379 = vmatpush1.msra.mxu0 0.0
        %6380 = vmatprep.subr.mxu0 0.0
        %6381 = vmatpush1.msra.mxu0 0.0
        %6382 = vmatprep.subr.mxu0 0.0
        %6383 = vmatpush1.msra.mxu0 0.0
        %6384 = vmatprep.subr.mxu0 0.0
        %6385 = vmatpush1.msra.mxu0 0.0
        %6386 = vmatprep.subr.mxu0 0.0
        %6387 = vmatpush1.msra.mxu0 0.0
        %6388 = vmatprep.subr.mxu0 0.0
        %6389 = vmatpush1.msra.mxu0 0.0
        %6390 = vmatprep.subr.mxu0 0.0
        %6391 = vmatpush1.msra.mxu0 0.0
        %6392 = vmatprep.subr.mxu0 0.0
        %6393 = vmatpush1.msra.mxu0 0.0
        %6394 = vmatprep.subr.mxu0 0.0
        %6395 = vmatpush1.msra.mxu0 0.0
        %6396 = vmatprep.subr.mxu0 0.0
        %6397 = vmatpush1.msra.mxu0 0.0
        %6398 = vmatprep.subr.mxu0 0.0
        %6399 = vmatpush1.msra.mxu0 0.0
        %6400 = vmatprep.subr.mxu0 0.0
        %6401 = vmatpush1.msra.mxu0 0.0
        %6402 = vmatprep.subr.mxu0 0.0
        %6403 = vmatpush1.msra.mxu0 0.0
        %6404 = vmatprep.subr.mxu0 0.0
        %6405 = vmatpush1.msra.mxu0 0.0
        %6406 = vmatprep.subr.mxu0 0.0
        %6407 = vmatpush1.msra.mxu0 0.0
        %6408 = vmatprep.subr.mxu0 0.0
        %6409 = vmatpush1.msra.mxu0 0.0
        %6410 = vmatprep.subr.mxu0 0.0
        %6411 = vmatpush1.msra.mxu0 0.0
        %6412 = vmatprep.subr.mxu0 0.0
        %6413 = vmatpush1.msra.mxu0 0.0
        %6414 = vmatprep.subr.mxu0 0.0
        %6415 = vmatpush1.msra.mxu0 0.0
        %6416 = vmatprep.subr.mxu0 0.0
        %6417 = vmatpush1.msra.mxu0 0.0
        %6418 = vmatprep.subr.mxu0 0.0
        %6419 = vmatpush1.msra.mxu0 0.0
        %6420 = vmatprep.subr.mxu0 0.0
        %6421 = vmatpush1.msra.mxu0 0.0
        %6422 = vmatprep.subr.mxu0 0.0
        %6423 = vmatpush1.msra.mxu0 0.0
        %6424 = vmatprep.subr.mxu0 0.0
        %6425 = vmatpush1.msra.mxu0 0.0
        %6426 = vmatprep.subr.mxu0 0.0
        %6427 = vmatpush1.msra.mxu0 0.0
        %6428 = vmatprep.subr.mxu0 0.0
        %6429 = vmatpush1.msra.mxu0 0.0
        %6430 = vmatprep.subr.mxu0 0.0
        %6431 = vmatpush1.msra.mxu0 0.0
        %6432 = vmatprep.subr.mxu0 0.0
        %6433 = vmatpush1.msra.mxu0 0.0
        %6434 = vmatprep.mubr.f32.mxu0 0.0
        %6435 = vmatmul.mubr.f32.gmra.mrb[0].mxu0 %v6368
        %v6436 = vpop.f32.mrb[0].mxu0
        %v6437 = vadd.f32 %v6365, %v6436
        %v6438 = vpop.f32.mrb[0].mxu0
        %6439 = vdwg.mxu0
        %6440 = vst [vmem:[%s1033] sm:$0xff] %v6437
        %s6441 = sand.u32 %s625, 1
        %s6442 = scalar_lea.sflag [#allocation4], %s6441
        %s6443 = sand.u32 %s625, 1
        %s6444 = smul.addr %s6443, 8
        %s6445 = scalar_lea.vmem [#allocation23], %s6444
        // Predicated region
        $region177: #{tpu_custom_call.1} parent=123 // pred_check
          %p6446 = pneg %p635
        $region178: #{tpu_custom_call.1} parent=123 // pred_check_branch
          %6448 = sbr.rel (%p6446) target = $region180
        $region179: #{tpu_custom_call.1} parent=123 // pred_region
          %s6450 = ssub.s32 128, 128
          %6451 = vsyncadd %s6442, %s6450
          %s6452 = smul.addr %s51, 128
          %s6453 = scalar_lea.hbm %s26, %s6452
          %s6455 = sshll.u32 %s6445, 4
          %s6456 = int_to_ptr.vmem [resolvable:$true] %s6455
          %6458 = dma.vmem_to_hbm [thread:$0]  %s6456, 128, %s6453, %s6442
        $region180: #{tpu_custom_call.1} parent=123 // pred_fallthru
          _
      $region124: #{tpu_custom_call.1} parent=5 // pred_fallthru
        _
      %p6459 = scmp.le.s32.totalorder 2, %s46
      // Predicated region
      $region181: #{tpu_custom_call.1} parent=5 // pred_check
        %p6460 = pneg %p6459
      $region182: #{tpu_custom_call.1} parent=5 // pred_check_branch
        %6462 = sbr.rel (%p6460) target = $region184
      $region183: #{tpu_custom_call.1} parent=5 // pred_region
        %s6463 = ssub.s32 %s46, 2
        // Predicated region
        $region185: #{tpu_custom_call.1} parent=183 // pred_check
          %p6464 = pneg %p641
        $region186: #{tpu_custom_call.1} parent=183 // pred_check_branch
          %6466 = sbr.rel (%p6464) target = $region188
        $region187: #{tpu_custom_call.1} parent=183 // pred_region
          %s6467 = sand.u32 %s626, 1
          %s6468 = scalar_lea.sflag [#allocation4], %s6467
          %s6469 = sand.u32 %s626, 1
          %s6470 = smul.addr %s6469, 8
          %s6471 = scalar_lea.vmem [#allocation23], %s6470
          %6472 = dma.done %s6468, 128
        $region188: #{tpu_custom_call.1} parent=183 // pred_fallthru
          _
      $region184: #{tpu_custom_call.1} parent=5 // pred_fallthru
        _
    $region6: #{tpu_custom_call.1} parent=1 // loop_footer
      %s50 = sadd.s32 1, %s46
    $region7: #{tpu_custom_call.1} parent=1 // loop_footer_branch
      %45 = sbr.rel target = $region3
    $region8: #{tpu_custom_call.1} parent=1 // loop_exit
      _
    %6473 = vsyncpa [#allocation3], 1
    %s6474 = scalar_lea.sflag [#allocation3], 1
    %6475 = vsyncpa %s6474, 1
    %6476 = vsyncpa [#allocation6], 1
    %s6477 = scalar_lea.sflag [#allocation6], 1
    %6478 = vsyncpa %s6477, 1
    %6479 = vsyncpa [#allocation9], 1
    %6480 = vsyncpa [#allocation12], 1
    %6481 = vsyncpa [#allocation15], 1
    %6482 = vsyncpa [#allocation18], 1
    %6483 = vsyncpa [#allocation21], 1
    %6484 = vsyncpa [#allocation4], 1
    %s6485 = scalar_lea.sflag [#allocation4], 1
    %6486 = vsyncpa %s6485, 1

</llo_original>
